<compile_context>
chip_gen: v6e
topology: v6e:2x2x1
jax: 0.10.0
libtpu: 0.0.40
codegen_flags: <defaults>
</compile_context>

<pallas_src>
import jax
import jax.numpy as jnp
from jax.experimental import pallas as pl
from jax.experimental.pallas import tpu as pltpu  # noqa: F401  (TPU backend assumed)

# ---------------------------------------------------------------------------
# Configuration (small synthetic shapes; feature dim matches the real model)
# ---------------------------------------------------------------------------
NUM_CLASSES = 10
C_IN = 3          # RGB input
C_STEM = 32       # stem conv output channels
FEAT = 2560       # EfficientNet-B7 feature width (fixed by the module)
FC_PAD = 128      # lane-dense padding of the fc output (sliced back to 10)


# ---------------------------------------------------------------------------
# Fused Pallas kernel: stem conv -> conv_head + BN + SiLU -> avg pool -> fc
# ---------------------------------------------------------------------------
def make_fused_kernel(B, HW):
    inv_hw = 1.0 / float(HW)

    def fused_kernel(p_ref, ws_ref, bs_ref, wh_ref, sh_ref, bh_ref,
                     wf_ref, bf_ref, logits_ref, feats_ref):
        # --- stem 3x3/s2 conv as im2col matmul (bf16 in, f32 acc) + SiLU ---
        # p_ref: (B*HW, 9*C_IN) bf16, ws_ref: (9*C_IN, C_STEM) bf16
        y = jnp.dot(p_ref[...], ws_ref[...],
                    preferred_element_type=jnp.float32) + bs_ref[...]
        y = y * jax.nn.sigmoid(y)                                 # (B*HW, C_STEM)

        # --- conv_head 1x1 to 2560 ch + folded BN + SiLU (single N=2560 dot) ---
        h = jnp.dot(y.astype(jnp.bfloat16), wh_ref[...],
                    preferred_element_type=jnp.float32)           # (B*HW, FEAT)
        h = h * sh_ref[...] + bh_ref[...]
        h = h * jax.nn.sigmoid(h)

        # --- global average pool: sublane sum + one multiply by 1/HW ---
        feats = jnp.sum(h.reshape(B, HW, FEAT), axis=1) * inv_hw  # (B, FEAT)
        feats_ref[...] = feats

        # --- fc Linear(2560 -> num_classes), lane-dense padded to 128 ---
        logits_ref[...] = (
            jnp.dot(feats.astype(jnp.bfloat16), wf_ref[...],
                    preferred_element_type=jnp.float32) + bf_ref[...]
        )

    return fused_kernel


# ---------------------------------------------------------------------------
# Parameters & layout glue
# ---------------------------------------------------------------------------
def init_params(key):
    ks = jax.random.split(key, 6)
    return {
        "w_stem": 0.1 * jax.random.normal(ks[0], (9 * C_IN, C_STEM), jnp.float32),
        "b_stem": 0.01 * jax.random.normal(ks[1], (1, C_STEM), jnp.float32),
        "w_head": 0.05 * jax.random.normal(ks[2], (C_STEM, FEAT), jnp.float32),
        "s_head": 1.0 + 0.01 * jax.random.normal(ks[3], (1, FEAT), jnp.float32),
        "b_head": 0.01 * jax.random.normal(ks[4], (1, FEAT), jnp.float32),
        "w_fc": 0.02 * jax.random.normal(ks[5], (FEAT, NUM_CLASSES), jnp.float32),
        "b_fc": jnp.zeros((1, NUM_CLASSES), jnp.float32),
    }


def _im2col_3x3_s2(x_nchw):
    """NCHW -> (B*Ho*Wo, 9*C) patches for a 3x3/stride-2/pad-1 conv."""
    x = jnp.transpose(x_nchw, (0, 2, 3, 1))            # NHWC (channels -> lanes)
    B, H, W, C = x.shape
    Ho, Wo = H // 2, W // 2
    xp = jnp.pad(x, ((0, 0), (1, 1), (1, 1), (0, 0)))
    cols = []
    for dy in range(3):
        for dx in range(3):
            cols.append(xp[:, dy:dy + H:2, dx:dx + W:2, :])   # (B, Ho, Wo, C)
    patches = jnp.concatenate(cols, axis=-1)            # (B, Ho, Wo, 9C)
    return patches.reshape(B * Ho * Wo, 9 * C), B, Ho * Wo


def my_efficientnet_forward(x_nchw, params):
    patches, B, HW = _im2col_3x3_s2(x_nchw)

    # bf16 matmul operands (f32 accumulation inside the kernel).
    patches_bf = patches.astype(jnp.bfloat16)
    w_stem_bf = params["w_stem"].astype(jnp.bfloat16)
    w_head_bf = params["w_head"].astype(jnp.bfloat16)
    # Lane-dense fc weight/bias: pad the 10-wide output axis to 128.
    w_fc_bf = jnp.pad(params["w_fc"].astype(jnp.bfloat16),
                      ((0, 0), (0, FC_PAD - NUM_CLASSES)))
    b_fc_pad = jnp.pad(params["b_fc"], ((0, 0), (0, FC_PAD - NUM_CLASSES)))

    logits_pad, feats = pl.pallas_call(
        make_fused_kernel(B, HW),
        out_shape=(
            jax.ShapeDtypeStruct((B, FC_PAD), jnp.float32),   # padded logits
            jax.ShapeDtypeStruct((B, FEAT), jnp.float32),     # pooled features
        ),
    )(patches_bf, w_stem_bf, params["b_stem"],
      w_head_bf, params["s_head"], params["b_head"],
      w_fc_bf, b_fc_pad)

    # matches PyTorch: return (logits, backbone_features)
    return logits_pad[:, :NUM_CLASSES], feats


def reference_forward(x_nchw, params):
    """Pure-JAX reference of the same compute (same bf16 matmul operands)."""
    patches, B, HW = _im2col_3x3_s2(x_nchw)
    p = patches.astype(jnp.bfloat16)
    y = jnp.dot(p, params["w_stem"].astype(jnp.bfloat16),
                preferred_element_type=jnp.float32) + params["b_stem"]
    y = y * jax.nn.sigmoid(y)
    h = jnp.dot(y.astype(jnp.bfloat16), params["w_head"].astype(jnp.bfloat16),
                preferred_element_type=jnp.float32)
    h = h * params["s_head"] + params["b_head"]
    h = h * jax.nn.sigmoid(h)
    feats = jnp.mean(h.reshape(B, HW, FEAT), axis=1)
    out = jnp.dot(feats.astype(jnp.bfloat16), params["w_fc"].astype(jnp.bfloat16),
                  preferred_element_type=jnp.float32) + params["b_fc"]
    return out, feats


if __name__ == "__main__":
    key = jax.random.PRNGKey(0)
    pkey, xkey = jax.random.split(key)
    params = init_params(pkey)

    # Small synthetic input consistent with the module's NCHW image input.
    x = jax.random.normal(xkey, (2, C_IN, 16, 16), dtype=jnp.float32)

    out, feats = jax.jit(my_efficientnet_forward)(x, params)
    jax.block_until_ready((out, feats))

    out_ref, feats_ref = reference_forward(x, params)
    assert out.shape == (2, NUM_CLASSES) and feats.shape == (2, FEAT)
    assert jnp.allclose(out, out_ref, atol=1e-3, rtol=1e-3)
    assert jnp.allclose(feats, feats_ref, atol=1e-3, rtol=1e-3)

    print("KERNEL_OK")
</pallas_src>

<mosaic_0001>
module attributes {stable_mosaic.version = 11 : i64} {
  func.func @fused_kernel(%arg0: memref<128x27xbf16, #tpu.memory_space<vmem>>, %arg1: memref<27x32xbf16, #tpu.memory_space<vmem>>, %arg2: memref<1x32xf32, #tpu.memory_space<vmem>>, %arg3: memref<32x2560xbf16, #tpu.memory_space<vmem>>, %arg4: memref<1x2560xf32, #tpu.memory_space<vmem>>, %arg5: memref<1x2560xf32, #tpu.memory_space<vmem>>, %arg6: memref<2560x128xbf16, #tpu.memory_space<vmem>>, %arg7: memref<1x128xf32, #tpu.memory_space<vmem>>, %arg8: memref<2x128xf32, #tpu.memory_space<vmem>>, %arg9: memref<2x2560xf32, #tpu.memory_space<vmem>>) attributes {dimension_semantics = [], scalar_prefetch = 0 : i64, scratch_operands = 0 : i64, tpu.core_type = #tpu.core_type<tc>} {
    %c0 = arith.constant 0 : index
    %c0_0 = arith.constant 0 : index
    %0 = vector.load %arg0[%c0, %c0_0] : memref<128x27xbf16, #tpu.memory_space<vmem>>, vector<128x27xbf16>
    %c0_1 = arith.constant 0 : index
    %c0_2 = arith.constant 0 : index
    %1 = vector.load %arg1[%c0_1, %c0_2] : memref<27x32xbf16, #tpu.memory_space<vmem>>, vector<27x32xbf16>
    %cst = arith.constant dense<0.000000e+00> : vector<128x32xf32>
    %2 = tpu.matmul %0, %1, %cst {dimension_numbers = #tpu.dot_dimension_numbers<[1], [0], [0], [1], [0, 0, 1, 1], [], []>} : vector<128x27xbf16>, vector<27x32xbf16>, vector<128x32xf32> -> vector<128x32xf32>
    %c0_3 = arith.constant 0 : index
    %c0_4 = arith.constant 0 : index
    %3 = vector.load %arg2[%c0_3, %c0_4] : memref<1x32xf32, #tpu.memory_space<vmem>>, vector<1x32xf32>
    %4 = vector.broadcast %3 : vector<1x32xf32> to vector<128x32xf32>
    %5 = arith.addf %2, %4 : vector<128x32xf32>
    %6 = arith.negf %5 : vector<128x32xf32>
    %7 = math.exp %6 : vector<128x32xf32>
    %cst_5 = arith.constant 1.000000e+00 : f32
    %8 = vector.broadcast %cst_5 : f32 to vector<128x32xf32>
    %9 = arith.addf %8, %7 : vector<128x32xf32>
    %10 = arith.divf %8, %9 : vector<128x32xf32>
    %11 = arith.mulf %5, %10 : vector<128x32xf32>
    %12 = arith.truncf %11 : vector<128x32xf32> to vector<128x32xbf16>
    %c0_6 = arith.constant 0 : index
    %c0_7 = arith.constant 0 : index
    %13 = vector.load %arg3[%c0_6, %c0_7] : memref<32x2560xbf16, #tpu.memory_space<vmem>>, vector<32x2560xbf16>
    %cst_8 = arith.constant dense<0.000000e+00> : vector<128x2560xf32>
    %14 = tpu.matmul %12, %13, %cst_8 {dimension_numbers = #tpu.dot_dimension_numbers<[1], [0], [0], [1], [0, 0, 1, 1], [], []>} : vector<128x32xbf16>, vector<32x2560xbf16>, vector<128x2560xf32> -> vector<128x2560xf32>
    %c0_9 = arith.constant 0 : index
    %c0_10 = arith.constant 0 : index
    %15 = vector.load %arg4[%c0_9, %c0_10] : memref<1x2560xf32, #tpu.memory_space<vmem>>, vector<1x2560xf32>
    %16 = vector.broadcast %15 : vector<1x2560xf32> to vector<128x2560xf32>
    %17 = arith.mulf %14, %16 : vector<128x2560xf32>
    %c0_11 = arith.constant 0 : index
    %c0_12 = arith.constant 0 : index
    %18 = vector.load %arg5[%c0_11, %c0_12] : memref<1x2560xf32, #tpu.memory_space<vmem>>, vector<1x2560xf32>
    %19 = vector.broadcast %18 : vector<1x2560xf32> to vector<128x2560xf32>
    %20 = arith.addf %17, %19 : vector<128x2560xf32>
    %21 = arith.negf %20 : vector<128x2560xf32>
    %22 = math.exp %21 : vector<128x2560xf32>
    %cst_13 = arith.constant 1.000000e+00 : f32
    %23 = vector.broadcast %cst_13 : f32 to vector<128x2560xf32>
    %24 = arith.addf %23, %22 : vector<128x2560xf32>
    %25 = arith.divf %23, %24 : vector<128x2560xf32>
    %26 = arith.mulf %20, %25 : vector<128x2560xf32>
    %27 = vector.shape_cast %26 : vector<128x2560xf32> to vector<2x64x2560xf32>
    %cst_14 = arith.constant dense<0.000000e+00> : vector<2x2560xf32>
    %28 = vector.multi_reduction <add>, %27, %cst_14 [1] : vector<2x64x2560xf32> to vector<2x2560xf32>
    %cst_15 = arith.constant 1.562500e-02 : f32
    %29 = vector.broadcast %cst_15 : f32 to vector<2x2560xf32>
    %30 = arith.mulf %28, %29 : vector<2x2560xf32>
    %c0_16 = arith.constant 0 : index
    %c0_17 = arith.constant 0 : index
    %31 = vector.load %arg9[%c0_16, %c0_17] : memref<2x2560xf32, #tpu.memory_space<vmem>>, vector<2x2560xf32>
    tpu.vector_store %arg9[%c0_16, %c0_17], %30 {strides = array<i32>} : memref<2x2560xf32, #tpu.memory_space<vmem>>, vector<2x2560xf32>,
    %32 = arith.truncf %30 : vector<2x2560xf32> to vector<2x2560xbf16>
    %c0_18 = arith.constant 0 : index
    %c0_19 = arith.constant 0 : index
    %33 = vector.load %arg6[%c0_18, %c0_19] : memref<2560x128xbf16, #tpu.memory_space<vmem>>, vector<2560x128xbf16>
    %cst_20 = arith.constant dense<0.000000e+00> : vector<2x128xf32>
    %34 = tpu.matmul %32, %33, %cst_20 {dimension_numbers = #tpu.dot_dimension_numbers<[1], [0], [0], [1], [0, 0, 1, 1], [], []>} : vector<2x2560xbf16>, vector<2560x128xbf16>, vector<2x128xf32> -> vector<2x128xf32>
    %c0_21 = arith.constant 0 : index
    %c0_22 = arith.constant 0 : index
    %35 = vector.load %arg7[%c0_21, %c0_22] : memref<1x128xf32, #tpu.memory_space<vmem>>, vector<1x128xf32>
    %36 = vector.broadcast %35 : vector<1x128xf32> to vector<2x128xf32>
    %37 = arith.addf %34, %36 : vector<2x128xf32>
    %c0_23 = arith.constant 0 : index
    %c0_24 = arith.constant 0 : index
    %38 = vector.load %arg8[%c0_23, %c0_24] : memref<2x128xf32, #tpu.memory_space<vmem>>, vector<2x128xf32>
    tpu.vector_store %arg8[%c0_23, %c0_24], %37 {strides = array<i32>} : memref<2x128xf32, #tpu.memory_space<vmem>>, vector<2x128xf32>,
    return
  }
}

</mosaic_0001>

<llo_original>
// kernel: my_efficientnet_forward.1
$region0: #{my_efficientnet_forward.1}
  #allocation0 [shape = 'u32[]', space=smem, size = 0x4, offset = 0x4, fixed_abs, tag = 'smem constant byte address 0x4 - core index']
  #allocation1 [shape = 'u32[144,128]{1,0:T(1,128)}', space=vmem, size = 0x12000, scoped, tag = 'internal scratch']
  %s0 = inlined_call_operand.vmem [shape: bf16[128,27], index: 0, kind: input, shape index: {}]
  %s1 = inlined_call_operand.vmem [shape: bf16[27,32], index: 1, kind: input, shape index: {}]
  %s2 = inlined_call_operand.vmem [shape: f32[1,32], index: 2, kind: input, shape index: {}]
  %s3 = inlined_call_operand.vmem [shape: bf16[32,2560], index: 3, kind: input, shape index: {}]
  %s4 = inlined_call_operand.vmem [shape: f32[1,2560], index: 4, kind: input, shape index: {}]
  %s5 = inlined_call_operand.vmem [shape: f32[1,2560], index: 5, kind: input, shape index: {}]
  %s6 = inlined_call_operand.vmem [shape: bf16[2560,128], index: 6, kind: input, shape index: {}]
  %s7 = inlined_call_operand.vmem [shape: f32[1,128], index: 7, kind: input, shape index: {}]
  %s8 = inlined_call_operand.hbm [shape: f32[2,128], index: 8, kind: output, shape index: {0}]
  %s9 = inlined_call_operand.hbm [shape: f32[2,2560], index: 9, kind: output, shape index: {1}]
  %10 = xla_tuple %s8, %s9
  %s11 = sld [smem:[#allocation0]]
  $region50: #{my_efficientnet_forward.1} parent=0
    _
  %s13 = ssub.s32 1, %s11
  %s14 = scalar_select 0, %s13, %s11
  $region1: #{my_efficientnet_forward.1} parent=0
    #allocation2 [shape = 'u8[1024]{0}', space=vmem, size = 0x400, scoped, tag = 'output window, operand 0, single buffered']
    #allocation3 [shape = 's32[1]{0}', space=sflag, size = 0x4, scoped, tag = 'scoped memory for my_efficientnet_forward.1']
    #allocation4 [shape = 'u8[20480]{0}', space=vmem, size = 0x5000, scoped, tag = 'output window, operand 1, single buffered']
    #allocation5 [shape = 's32[1]{0}', space=sflag, size = 0x4, scoped, tag = 'scoped memory for my_efficientnet_forward.1']
    %15 = vsyncpa [#allocation3], 0
    %16 = vsyncpa [#allocation5], 0
    // Predicated region
    $region2: #{my_efficientnet_forward.1} parent=1 // pred_check
      _
    $region3: #{my_efficientnet_forward.1} parent=1 // pred_check_branch
      %18 = sbr.rel (0) target = $region5
    $region4: #{my_efficientnet_forward.1} parent=1 // pred_region
      _
    $region5: #{my_efficientnet_forward.1} parent=1 // pred_fallthru
      _
    // Predicated region
    $region6: #{my_efficientnet_forward.1} parent=1 // pred_check
      _
    $region7: #{my_efficientnet_forward.1} parent=1 // pred_check_branch
      %20 = sbr.rel (0) target = $region9
    $region8: #{my_efficientnet_forward.1} parent=1 // pred_region
      _
    $region9: #{my_efficientnet_forward.1} parent=1 // pred_fallthru
      _
    // Predicated region
    $region10: #{my_efficientnet_forward.1} parent=1 // pred_check
      _
    $region11: #{my_efficientnet_forward.1} parent=1 // pred_check_branch
      %22 = sbr.rel (0) target = $region13
    $region12: #{my_efficientnet_forward.1} parent=1 // pred_region
      _
    $region13: #{my_efficientnet_forward.1} parent=1 // pred_fallthru
      _
    // Predicated region
    $region14: #{my_efficientnet_forward.1} parent=1 // pred_check
      _
    $region15: #{my_efficientnet_forward.1} parent=1 // pred_check_branch
      %24 = sbr.rel (0) target = $region17
    $region16: #{my_efficientnet_forward.1} parent=1 // pred_region
      _
    $region17: #{my_efficientnet_forward.1} parent=1 // pred_fallthru
      _
    // Predicated region
    $region18: #{my_efficientnet_forward.1} parent=1 // pred_check
      _
    $region19: #{my_efficientnet_forward.1} parent=1 // pred_check_branch
      %26 = sbr.rel (0) target = $region21
    $region20: #{my_efficientnet_forward.1} parent=1 // pred_region
      _
    $region21: #{my_efficientnet_forward.1} parent=1 // pred_fallthru
      _
    // Predicated region
    $region22: #{my_efficientnet_forward.1} parent=1 // pred_check
      _
    $region23: #{my_efficientnet_forward.1} parent=1 // pred_check_branch
      %28 = sbr.rel (0) target = $region25
    $region24: #{my_efficientnet_forward.1} parent=1 // pred_region
      _
    $region25: #{my_efficientnet_forward.1} parent=1 // pred_fallthru
      _
    // Predicated region
    $region26: #{my_efficientnet_forward.1} parent=1 // pred_check
      _
    $region27: #{my_efficientnet_forward.1} parent=1 // pred_check_branch
      %30 = sbr.rel (0) target = $region29
    $region28: #{my_efficientnet_forward.1} parent=1 // pred_region
      _
    $region29: #{my_efficientnet_forward.1} parent=1 // pred_fallthru
      _
    // Predicated region
    $region30: #{my_efficientnet_forward.1} parent=1 // pred_check
      _
    $region31: #{my_efficientnet_forward.1} parent=1 // pred_check_branch
      %32 = sbr.rel (0) target = $region33
    $region32: #{my_efficientnet_forward.1} parent=1 // pred_region
      _
    $region33: #{my_efficientnet_forward.1} parent=1 // pred_fallthru
      _
    %v34 = vld [vmem:[%s0] sm:$0xf]
    %v35 = vld [vmem:[%s0 + $0x4] sm:$0xf]
    %v36 = vld [vmem:[%s0 + $0x8] sm:$0xf]
    %v37 = vld [vmem:[%s0 + $0xc] sm:$0xf]
    %v38 = vld [vmem:[%s0 + $0x10] sm:$0xf]
    %v39 = vld [vmem:[%s0 + $0x14] sm:$0xf]
    %v40 = vld [vmem:[%s0 + $0x18] sm:$0xf]
    %v41 = vld [vmem:[%s0 + $0x1c] sm:$0xf]
    %v42 = vld [vmem:[%s0 + $0x20] sm:$0xf]
    %v43 = vld [vmem:[%s0 + $0x24] sm:$0xf]
    %v44 = vld [vmem:[%s0 + $0x28] sm:$0xf]
    %v45 = vld [vmem:[%s0 + $0x2c] sm:$0xf]
    %v46 = vld [vmem:[%s0 + $0x30] sm:$0xf]
    %v47 = vld [vmem:[%s0 + $0x34] sm:$0xf]
    %v48 = vld [vmem:[%s0 + $0x38] sm:$0xf]
    %v49 = vld [vmem:[%s0 + $0x3c] sm:$0xf]
    %v50 = vld [vmem:[%s1] sm:$0xf]
    %v51 = vld [vmem:[%s1 + $0x4] sm:$0xf]
    %v52 = vld [vmem:[%s1 + $0x8] sm:$0xf]
    %v53 = vld [vmem:[%s1 + $0xc] sm:$0x3]
    %v54 = vld [vmem:[%s2] sm:$0x1]
    %v56 = vlaneseq
    %v57 = vshrl.u32 %v56, 7
    %v58 = vsub.s32 0, %v57
    %v59 = vrot.slane %v54, %v58
    %v77 = vunpack.c.l.b16 %v34
    %v78 = vunpack.c.l.b16 %v35
    %v79 = vunpack.c.l.b16 %v36
    %v80 = vunpack.c.l.b16 %v37
    %v81 = vunpack.c.l.b16 %v38
    %v82 = vunpack.c.l.b16 %v39
    %v83 = vunpack.c.l.b16 %v40
    %v84 = vunpack.c.l.b16 %v41
    %v85 = vunpack.c.l.b16 %v42
    %v86 = vunpack.c.l.b16 %v43
    %v87 = vunpack.c.l.b16 %v44
    %v88 = vunpack.c.l.b16 %v45
    %v89 = vunpack.c.l.b16 %v46
    %v90 = vunpack.c.l.b16 %v47
    %v91 = vunpack.c.l.b16 %v48
    %v92 = vunpack.c.l.b16 %v49
    %v93 = vpack.c.b16 %v78, %v77
    %v94 = vpack.c.b16 %v80, %v79
    %v95 = vpack.c.b16 %v82, %v81
    %v96 = vpack.c.b16 %v84, %v83
    %v97 = vpack.c.b16 %v86, %v85
    %v98 = vpack.c.b16 %v88, %v87
    %v99 = vpack.c.b16 %v90, %v89
    %v100 = vpack.c.b16 %v92, %v91
    %v105 = vunpack.c.l.b16 %v50
    %v106 = vunpack.c.l.b16 %v51
    %v107 = vunpack.c.l.b16 %v52
    %v108 = vunpack.c.l.b16 %v53
    %v109 = vpack.c.b16 %v106, %v105
    %v110 = vpack.c.b16 %v108, %v107
    %vm112 = vcmask 220160
    %v114 = vsel %vm112, %v93, 0
    %v117 = vsel %vm112, %v94, 0
    %v120 = vsel %vm112, %v95, 0
    %v123 = vsel %vm112, %v96, 0
    %v126 = vsel %vm112, %v97, 0
    %v129 = vsel %vm112, %v98, 0
    %v132 = vsel %vm112, %v99, 0
    %v135 = vsel %vm112, %v100, 0
    %vm137 = vcmask 1044480
    %vm138 = vcmask 1045504
    %v139 = vsel %vm137, 4294967295, 65535
    %v140 = vsel %vm138, %v139, 0
    %v142 = vand.u32 %v110, %v140
    %144 = vmatprep.subr.bf16.mxu0 0
    %145 = vmatpush1.bf16.msra.mxu0 0
    %146 = vmatprep.subr.bf16.mxu0 0
    %147 = vmatpush1.bf16.msra.mxu0 0
    %148 = vmatprep.subr.bf16.mxu0 0
    %149 = vmatpush1.bf16.msra.mxu0 0
    %150 = vmatprep.subr.bf16.mxu0 0
    %151 = vmatpush1.bf16.msra.mxu0 0
    %152 = vmatprep.subr.bf16.mxu0 0
    %153 = vmatpush1.bf16.msra.mxu0 0
    %154 = vmatprep.subr.bf16.mxu0 0
    %155 = vmatpush1.bf16.msra.mxu0 0
    %156 = vmatprep.subr.bf16.mxu0 0
    %157 = vmatpush1.bf16.msra.mxu0 %v142
    %158 = vmatprep.subr.bf16.mxu0 0
    %159 = vmatpush1.bf16.msra.mxu0 %v109
    %160 = vmatprep.subr.bf16.mxu0 0
    %161 = vmatpush2.bf16.msra.mxu0 0
    %162 = vmatprep.subr.bf16.mxu0 0
    %163 = vmatpush2.bf16.msra.mxu0 0
    %164 = vmatprep.subr.bf16.mxu0 0
    %165 = vmatpush2.bf16.msra.mxu0 0
    %166 = vmatprep.subr.bf16.mxu0 0
    %167 = vmatpush2.bf16.msra.mxu0 0
    %168 = vmatprep.subr.bf16.mxu0 0
    %169 = vmatpush2.bf16.msra.mxu0 0
    %170 = vmatprep.subr.bf16.mxu0 0
    %171 = vmatpush2.bf16.msra.mxu0 0
    %172 = vmatprep.subr.bf16.mxu0 0
    %173 = vmatpush2.bf16.msra.mxu0 0
    %174 = vmatprep.subr.bf16.mxu0 0
    %175 = vmatpush2.bf16.msra.mxu0 0
    %176 = vmatprep.mubr.bf16.mxu0 0
    %177 = vmatmul.mubr.bf16.gmra.mxu0 %v114
    %v178 = vpop.f32.mrf.mxu0
    %v179 = vadd.f32 %v59, %v178
    %v180 = vpop.f32.mrf.mxu0
    %v181 = vpop.f32.mrf.mxu0
    %v182 = vadd.f32 %v59, %v181
    %v183 = vpop.f32.mrf.mxu0
    %184 = vmatprep.mubr.bf16.mxu0 0
    %185 = vmatmul.mubr.bf16.gmra.mxu0 %v117
    %v186 = vpop.f32.mrf.mxu0
    %v187 = vadd.f32 %v59, %v186
    %v188 = vpop.f32.mrf.mxu0
    %v189 = vpop.f32.mrf.mxu0
    %v190 = vadd.f32 %v59, %v189
    %v191 = vpop.f32.mrf.mxu0
    %192 = vmatprep.mubr.bf16.mxu0 0
    %193 = vmatmul.mubr.bf16.gmra.mxu0 %v120
    %v194 = vpop.f32.mrf.mxu0
    %v195 = vadd.f32 %v59, %v194
    %v196 = vpop.f32.mrf.mxu0
    %v197 = vpop.f32.mrf.mxu0
    %v198 = vadd.f32 %v59, %v197
    %v199 = vpop.f32.mrf.mxu0
    %200 = vmatprep.mubr.bf16.mxu0 0
    %201 = vmatmul.mubr.bf16.gmra.mxu0 %v123
    %v202 = vpop.f32.mrf.mxu0
    %v203 = vadd.f32 %v59, %v202
    %v204 = vpop.f32.mrf.mxu0
    %v205 = vpop.f32.mrf.mxu0
    %v206 = vadd.f32 %v59, %v205
    %v207 = vpop.f32.mrf.mxu0
    %208 = vmatprep.mubr.bf16.mxu0 0
    %209 = vmatmul.mubr.bf16.gmra.mxu0 %v126
    %v210 = vpop.f32.mrf.mxu0
    %v211 = vadd.f32 %v59, %v210
    %v212 = vpop.f32.mrf.mxu0
    %v213 = vpop.f32.mrf.mxu0
    %v214 = vadd.f32 %v59, %v213
    %v215 = vpop.f32.mrf.mxu0
    %216 = vmatprep.mubr.bf16.mxu0 0
    %217 = vmatmul.mubr.bf16.gmra.mxu0 %v129
    %v218 = vpop.f32.mrf.mxu0
    %v219 = vadd.f32 %v59, %v218
    %v220 = vpop.f32.mrf.mxu0
    %v221 = vpop.f32.mrf.mxu0
    %v222 = vadd.f32 %v59, %v221
    %v223 = vpop.f32.mrf.mxu0
    %224 = vmatprep.mubr.bf16.mxu0 0
    %225 = vmatmul.mubr.bf16.gmra.mxu0 %v132
    %v226 = vpop.f32.mrf.mxu0
    %v227 = vadd.f32 %v59, %v226
    %v228 = vpop.f32.mrf.mxu0
    %v229 = vpop.f32.mrf.mxu0
    %v230 = vadd.f32 %v59, %v229
    %v231 = vpop.f32.mrf.mxu0
    %232 = vmatprep.mubr.bf16.mxu0 0
    %233 = vmatmul.mubr.bf16.gmra.mxu0 %v135
    %v234 = vpop.f32.mrf.mxu0
    %v235 = vadd.f32 %v59, %v234
    %v236 = vpop.f32.mrf.mxu0
    %v237 = vpop.f32.mrf.mxu0
    %v238 = vadd.f32 %v59, %v237
    %v239 = vpop.f32.mrf.mxu0
    %240 = vdwg.mxu0
    %v241 = vxor.u32 %v179, 2147483648
    %v242 = vxor.u32 %v182, 2147483648
    %v243 = vxor.u32 %v187, 2147483648
    %v244 = vxor.u32 %v190, 2147483648
    %v245 = vxor.u32 %v195, 2147483648
    %v246 = vxor.u32 %v198, 2147483648
    %v247 = vxor.u32 %v203, 2147483648
    %v248 = vxor.u32 %v206, 2147483648
    %v249 = vxor.u32 %v211, 2147483648
    %v250 = vxor.u32 %v214, 2147483648
    %v251 = vxor.u32 %v219, 2147483648
    %v252 = vxor.u32 %v222, 2147483648
    %v253 = vxor.u32 %v227, 2147483648
    %v254 = vxor.u32 %v230, 2147483648
    %v255 = vxor.u32 %v235, 2147483648
    %v256 = vxor.u32 %v238, 2147483648
    %v257 = vmul.f32 %v241, 1.442695
    %v258 = vpow.pop %v257
    %v259 = vmul.f32 %v242, 1.442695
    %v260 = vpow.pop %v259
    %v261 = vmul.f32 %v243, 1.442695
    %v262 = vpow.pop %v261
    %v263 = vmul.f32 %v244, 1.442695
    %v264 = vpow.pop %v263
    %v265 = vmul.f32 %v245, 1.442695
    %v266 = vpow.pop %v265
    %v267 = vmul.f32 %v246, 1.442695
    %v268 = vpow.pop %v267
    %v269 = vmul.f32 %v247, 1.442695
    %v270 = vpow.pop %v269
    %v271 = vmul.f32 %v248, 1.442695
    %v272 = vpow.pop %v271
    %v273 = vmul.f32 %v249, 1.442695
    %v274 = vpow.pop %v273
    %v275 = vmul.f32 %v250, 1.442695
    %v276 = vpow.pop %v275
    %v277 = vmul.f32 %v251, 1.442695
    %v278 = vpow.pop %v277
    %v279 = vmul.f32 %v252, 1.442695
    %v280 = vpow.pop %v279
    %v281 = vmul.f32 %v253, 1.442695
    %v282 = vpow.pop %v281
    %v283 = vmul.f32 %v254, 1.442695
    %v284 = vpow.pop %v283
    %v285 = vmul.f32 %v255, 1.442695
    %v286 = vpow.pop %v285
    %v287 = vmul.f32 %v256, 1.442695
    %v288 = vpow.pop %v287
    %v289 = vadd.f32 %v258, 1.0
    %v290 = vadd.f32 %v260, 1.0
    %v291 = vadd.f32 %v262, 1.0
    %v292 = vadd.f32 %v264, 1.0
    %v293 = vadd.f32 %v266, 1.0
    %v294 = vadd.f32 %v268, 1.0
    %v295 = vadd.f32 %v270, 1.0
    %v296 = vadd.f32 %v272, 1.0
    %v297 = vadd.f32 %v274, 1.0
    %v298 = vadd.f32 %v276, 1.0
    %v299 = vadd.f32 %v278, 1.0
    %v300 = vadd.f32 %v280, 1.0
    %v301 = vadd.f32 %v282, 1.0
    %v302 = vadd.f32 %v284, 1.0
    %v303 = vadd.f32 %v286, 1.0
    %v304 = vadd.f32 %v288, 1.0
    %v305 = vrcp.pop %v289
    %v306 = vmul.f32 1.0, %v305
    %v307 = vrcp.pop %v290
    %v308 = vmul.f32 1.0, %v307
    %v309 = vrcp.pop %v291
    %v310 = vmul.f32 1.0, %v309
    %v311 = vrcp.pop %v292
    %v312 = vmul.f32 1.0, %v311
    %v313 = vrcp.pop %v293
    %v314 = vmul.f32 1.0, %v313
    %v315 = vrcp.pop %v294
    %v316 = vmul.f32 1.0, %v315
    %v317 = vrcp.pop %v295
    %v318 = vmul.f32 1.0, %v317
    %v319 = vrcp.pop %v296
    %v320 = vmul.f32 1.0, %v319
    %v321 = vrcp.pop %v297
    %v322 = vmul.f32 1.0, %v321
    %v323 = vrcp.pop %v298
    %v324 = vmul.f32 1.0, %v323
    %v325 = vrcp.pop %v299
    %v326 = vmul.f32 1.0, %v325
    %v327 = vrcp.pop %v300
    %v328 = vmul.f32 1.0, %v327
    %v329 = vrcp.pop %v301
    %v330 = vmul.f32 1.0, %v329
    %v331 = vrcp.pop %v302
    %v332 = vmul.f32 1.0, %v331
    %v333 = vrcp.pop %v303
    %v334 = vmul.f32 1.0, %v333
    %v335 = vrcp.pop %v304
    %v336 = vmul.f32 1.0, %v335
    %v337 = vmul.f32 %v179, %v306
    %v338 = vmul.f32 %v182, %v308
    %v339 = vmul.f32 %v187, %v310
    %v340 = vmul.f32 %v190, %v312
    %v341 = vmul.f32 %v195, %v314
    %v342 = vmul.f32 %v198, %v316
    %v343 = vmul.f32 %v203, %v318
    %v344 = vmul.f32 %v206, %v320
    %v345 = vmul.f32 %v211, %v322
    %v346 = vmul.f32 %v214, %v324
    %v347 = vmul.f32 %v219, %v326
    %v348 = vmul.f32 %v222, %v328
    %v349 = vmul.f32 %v227, %v330
    %v350 = vmul.f32 %v230, %v332
    %v351 = vmul.f32 %v235, %v334
    %v352 = vmul.f32 %v238, %v336
    %v353 = vpack.c.bf16 %v338, %v337
    %v354 = vpack.c.bf16 %v340, %v339
    %v355 = vpack.c.bf16 %v342, %v341
    %v356 = vpack.c.bf16 %v344, %v343
    %v357 = vpack.c.bf16 %v346, %v345
    %v358 = vpack.c.bf16 %v348, %v347
    %v359 = vpack.c.bf16 %v350, %v349
    %v360 = vpack.c.bf16 %v352, %v351
    %v361 = vld [vmem:[%s3] sm:$0xff]
    %v362 = vld [vmem:[%s3 + $0x8] sm:$0xff]
    %v363 = vld [vmem:[%s3 + $0x10] sm:$0xff]
    %v364 = vld [vmem:[%s3 + $0x18] sm:$0xff]
    %v365 = vld [vmem:[%s3 + $0x20] sm:$0xff]
    %v366 = vld [vmem:[%s3 + $0x28] sm:$0xff]
    %v367 = vld [vmem:[%s3 + $0x30] sm:$0xff]
    %v368 = vld [vmem:[%s3 + $0x38] sm:$0xff]
    %v369 = vld [vmem:[%s3 + $0x40] sm:$0xff]
    %v370 = vld [vmem:[%s3 + $0x48] sm:$0xff]
    %v371 = vld [vmem:[%s3 + $0x50] sm:$0xff]
    %v372 = vld [vmem:[%s3 + $0x58] sm:$0xff]
    %v373 = vld [vmem:[%s3 + $0x60] sm:$0xff]
    %v374 = vld [vmem:[%s3 + $0x68] sm:$0xff]
    %v375 = vld [vmem:[%s3 + $0x70] sm:$0xff]
    %v376 = vld [vmem:[%s3 + $0x78] sm:$0xff]
    %v377 = vld [vmem:[%s3 + $0x80] sm:$0xff]
    %v378 = vld [vmem:[%s3 + $0x88] sm:$0xff]
    %v379 = vld [vmem:[%s3 + $0x90] sm:$0xff]
    %v380 = vld [vmem:[%s3 + $0x98] sm:$0xff]
    %v381 = vld [vmem:[%s3 + $0xa0] sm:$0xff]
    %v382 = vld [vmem:[%s3 + $0xa8] sm:$0xff]
    %v383 = vld [vmem:[%s3 + $0xb0] sm:$0xff]
    %v384 = vld [vmem:[%s3 + $0xb8] sm:$0xff]
    %v385 = vld [vmem:[%s3 + $0xc0] sm:$0xff]
    %v386 = vld [vmem:[%s3 + $0xc8] sm:$0xff]
    %v387 = vld [vmem:[%s3 + $0xd0] sm:$0xff]
    %v388 = vld [vmem:[%s3 + $0xd8] sm:$0xff]
    %v389 = vld [vmem:[%s3 + $0xe0] sm:$0xff]
    %v390 = vld [vmem:[%s3 + $0xe8] sm:$0xff]
    %v391 = vld [vmem:[%s3 + $0xf0] sm:$0xff]
    %v392 = vld [vmem:[%s3 + $0xf8] sm:$0xff]
    %v393 = vld [vmem:[%s3 + $0x100] sm:$0xff]
    %v394 = vld [vmem:[%s3 + $0x108] sm:$0xff]
    %v395 = vld [vmem:[%s3 + $0x110] sm:$0xff]
    %v396 = vld [vmem:[%s3 + $0x118] sm:$0xff]
    %v397 = vld [vmem:[%s3 + $0x120] sm:$0xff]
    %v398 = vld [vmem:[%s3 + $0x128] sm:$0xff]
    %v399 = vld [vmem:[%s3 + $0x130] sm:$0xff]
    %v400 = vld [vmem:[%s3 + $0x138] sm:$0xff]
    %v441 = vunpack.c.l.b16 %v361
    %v442 = vunpack.c.h.b16 %v361
    %v443 = vunpack.c.l.b16 %v362
    %v444 = vunpack.c.h.b16 %v362
    %v445 = vunpack.c.l.b16 %v363
    %v446 = vunpack.c.h.b16 %v363
    %v447 = vunpack.c.l.b16 %v364
    %v448 = vunpack.c.h.b16 %v364
    %v449 = vunpack.c.l.b16 %v365
    %v450 = vunpack.c.h.b16 %v365
    %v451 = vunpack.c.l.b16 %v366
    %v452 = vunpack.c.h.b16 %v366
    %v453 = vunpack.c.l.b16 %v367
    %v454 = vunpack.c.h.b16 %v367
    %v455 = vunpack.c.l.b16 %v368
    %v456 = vunpack.c.h.b16 %v368
    %v457 = vunpack.c.l.b16 %v369
    %v458 = vunpack.c.h.b16 %v369
    %v459 = vunpack.c.l.b16 %v370
    %v460 = vunpack.c.h.b16 %v370
    %v461 = vunpack.c.l.b16 %v371
    %v462 = vunpack.c.h.b16 %v371
    %v463 = vunpack.c.l.b16 %v372
    %v464 = vunpack.c.h.b16 %v372
    %v465 = vunpack.c.l.b16 %v373
    %v466 = vunpack.c.h.b16 %v373
    %v467 = vunpack.c.l.b16 %v374
    %v468 = vunpack.c.h.b16 %v374
    %v469 = vunpack.c.l.b16 %v375
    %v470 = vunpack.c.h.b16 %v375
    %v471 = vunpack.c.l.b16 %v376
    %v472 = vunpack.c.h.b16 %v376
    %v473 = vunpack.c.l.b16 %v377
    %v474 = vunpack.c.h.b16 %v377
    %v475 = vunpack.c.l.b16 %v378
    %v476 = vunpack.c.h.b16 %v378
    %v477 = vunpack.c.l.b16 %v379
    %v478 = vunpack.c.h.b16 %v379
    %v479 = vunpack.c.l.b16 %v380
    %v480 = vunpack.c.h.b16 %v380
    %v481 = vunpack.c.l.b16 %v381
    %v482 = vunpack.c.h.b16 %v381
    %v483 = vunpack.c.l.b16 %v382
    %v484 = vunpack.c.h.b16 %v382
    %v485 = vunpack.c.l.b16 %v383
    %v486 = vunpack.c.h.b16 %v383
    %v487 = vunpack.c.l.b16 %v384
    %v488 = vunpack.c.h.b16 %v384
    %v489 = vunpack.c.l.b16 %v385
    %v490 = vunpack.c.h.b16 %v385
    %v491 = vunpack.c.l.b16 %v386
    %v492 = vunpack.c.h.b16 %v386
    %v493 = vunpack.c.l.b16 %v387
    %v494 = vunpack.c.h.b16 %v387
    %v495 = vunpack.c.l.b16 %v388
    %v496 = vunpack.c.h.b16 %v388
    %v497 = vunpack.c.l.b16 %v389
    %v498 = vunpack.c.h.b16 %v389
    %v499 = vunpack.c.l.b16 %v390
    %v500 = vunpack.c.h.b16 %v390
    %v501 = vunpack.c.l.b16 %v391
    %v502 = vunpack.c.h.b16 %v391
    %v503 = vunpack.c.l.b16 %v392
    %v504 = vunpack.c.h.b16 %v392
    %v505 = vunpack.c.l.b16 %v393
    %v506 = vunpack.c.h.b16 %v393
    %v507 = vunpack.c.l.b16 %v394
    %v508 = vunpack.c.h.b16 %v394
    %v509 = vunpack.c.l.b16 %v395
    %v510 = vunpack.c.h.b16 %v395
    %v511 = vunpack.c.l.b16 %v396
    %v512 = vunpack.c.h.b16 %v396
    %v513 = vunpack.c.l.b16 %v397
    %v514 = vunpack.c.h.b16 %v397
    %v515 = vunpack.c.l.b16 %v398
    %v516 = vunpack.c.h.b16 %v398
    %v517 = vunpack.c.l.b16 %v399
    %v518 = vunpack.c.h.b16 %v399
    %v519 = vunpack.c.l.b16 %v400
    %v520 = vunpack.c.h.b16 %v400
    %v521 = vpack.c.b16 %v461, %v441
    %v522 = vpack.c.b16 %v462, %v442
    %v523 = vpack.c.b16 %v463, %v443
    %v524 = vpack.c.b16 %v464, %v444
    %v525 = vpack.c.b16 %v465, %v445
    %v526 = vpack.c.b16 %v466, %v446
    %v527 = vpack.c.b16 %v467, %v447
    %v528 = vpack.c.b16 %v468, %v448
    %v529 = vpack.c.b16 %v469, %v449
    %v530 = vpack.c.b16 %v470, %v450
    %v531 = vpack.c.b16 %v471, %v451
    %v532 = vpack.c.b16 %v472, %v452
    %v533 = vpack.c.b16 %v473, %v453
    %v534 = vpack.c.b16 %v474, %v454
    %v535 = vpack.c.b16 %v475, %v455
    %v536 = vpack.c.b16 %v476, %v456
    %v537 = vpack.c.b16 %v477, %v457
    %v538 = vpack.c.b16 %v478, %v458
    %v539 = vpack.c.b16 %v479, %v459
    %v540 = vpack.c.b16 %v480, %v460
    %v541 = vpack.c.b16 %v501, %v481
    %v542 = vpack.c.b16 %v502, %v482
    %v543 = vpack.c.b16 %v503, %v483
    %v544 = vpack.c.b16 %v504, %v484
    %v545 = vpack.c.b16 %v505, %v485
    %v546 = vpack.c.b16 %v506, %v486
    %v547 = vpack.c.b16 %v507, %v487
    %v548 = vpack.c.b16 %v508, %v488
    %v549 = vpack.c.b16 %v509, %v489
    %v550 = vpack.c.b16 %v510, %v490
    %v551 = vpack.c.b16 %v511, %v491
    %v552 = vpack.c.b16 %v512, %v492
    %v553 = vpack.c.b16 %v513, %v493
    %v554 = vpack.c.b16 %v514, %v494
    %v555 = vpack.c.b16 %v515, %v495
    %v556 = vpack.c.b16 %v516, %v496
    %v557 = vpack.c.b16 %v517, %v497
    %v558 = vpack.c.b16 %v518, %v498
    %v559 = vpack.c.b16 %v519, %v499
    %v560 = vpack.c.b16 %v520, %v500
    %vm601 = vcmask 261120
    %v603 = vsel %vm601, %v353, 0
    %v606 = vsel %vm601, %v354, 0
    %v609 = vsel %vm601, %v355, 0
    %v612 = vsel %vm601, %v356, 0
    %v615 = vsel %vm601, %v357, 0
    %v618 = vsel %vm601, %v358, 0
    %v621 = vsel %vm601, %v359, 0
    %v624 = vsel %vm601, %v360, 0
    %626 = vmatprep.subr.bf16.mxu0 0
    %627 = vmatpush1.bf16.msra.mxu0 0
    %628 = vmatprep.subr.bf16.mxu0 0
    %629 = vmatpush1.bf16.msra.mxu0 0
    %630 = vmatprep.subr.bf16.mxu0 0
    %631 = vmatpush1.bf16.msra.mxu0 0
    %632 = vmatprep.subr.bf16.mxu0 0
    %633 = vmatpush1.bf16.msra.mxu0 0
    %634 = vmatprep.subr.bf16.mxu0 0
    %635 = vmatpush1.bf16.msra.mxu0 0
    %636 = vmatprep.subr.bf16.mxu0 0
    %637 = vmatpush1.bf16.msra.mxu0 0
    %638 = vmatprep.subr.bf16.mxu0 %v542
    %639 = vmatpush1.bf16.msra.mxu0 %v541
    %640 = vmatprep.subr.bf16.mxu0 %v522
    %641 = vmatpush1.bf16.msra.mxu0 %v521
    %642 = vmatprep.subr.bf16.mxu0 0
    %643 = vmatpush2.bf16.msra.mxu0 0
    %644 = vmatprep.subr.bf16.mxu0 0
    %645 = vmatpush2.bf16.msra.mxu0 0
    %646 = vmatprep.subr.bf16.mxu0 0
    %647 = vmatpush2.bf16.msra.mxu0 0
    %648 = vmatprep.subr.bf16.mxu0 0
    %649 = vmatpush2.bf16.msra.mxu0 0
    %650 = vmatprep.subr.bf16.mxu0 0
    %651 = vmatpush2.bf16.msra.mxu0 0
    %652 = vmatprep.subr.bf16.mxu0 0
    %653 = vmatpush2.bf16.msra.mxu0 0
    %654 = vmatprep.subr.bf16.mxu0 0
    %655 = vmatpush2.bf16.msra.mxu0 0
    %656 = vmatprep.subr.bf16.mxu0 0
    %657 = vmatpush2.bf16.msra.mxu0 0
    %658 = vmatprep.mubr.bf16.mxu0 0
    %659 = vmatmul.mubr.bf16.gmra.mxu0 %v603
    %v660 = vpop.f32.mrf.mxu0
    %v661 = vadd.f32 0.0, %v660
    %v662 = vpop.f32.mrf.mxu0
    %v663 = vadd.f32 0.0, %v662
    %v664 = vpop.f32.mrf.mxu0
    %v665 = vadd.f32 0.0, %v664
    %v666 = vpop.f32.mrf.mxu0
    %v667 = vadd.f32 0.0, %v666
    %668 = vmatprep.mubr.bf16.mxu0 0
    %669 = vmatmul.mubr.bf16.gmra.mxu0 %v606
    %v670 = vpop.f32.mrf.mxu0
    %v671 = vadd.f32 0.0, %v670
    %v672 = vpop.f32.mrf.mxu0
    %v673 = vadd.f32 0.0, %v672
    %v674 = vpop.f32.mrf.mxu0
    %v675 = vadd.f32 0.0, %v674
    %v676 = vpop.f32.mrf.mxu0
    %v677 = vadd.f32 0.0, %v676
    %678 = vmatprep.mubr.bf16.mxu0 0
    %679 = vmatmul.mubr.bf16.gmra.mxu0 %v609
    %v680 = vpop.f32.mrf.mxu0
    %v681 = vadd.f32 0.0, %v680
    %v682 = vpop.f32.mrf.mxu0
    %v683 = vadd.f32 0.0, %v682
    %v684 = vpop.f32.mrf.mxu0
    %v685 = vadd.f32 0.0, %v684
    %v686 = vpop.f32.mrf.mxu0
    %v687 = vadd.f32 0.0, %v686
    %688 = vmatprep.mubr.bf16.mxu0 0
    %689 = vmatmul.mubr.bf16.gmra.mxu0 %v612
    %v690 = vpop.f32.mrf.mxu0
    %v691 = vadd.f32 0.0, %v690
    %v692 = vpop.f32.mrf.mxu0
    %v693 = vadd.f32 0.0, %v692
    %v694 = vpop.f32.mrf.mxu0
    %v695 = vadd.f32 0.0, %v694
    %v696 = vpop.f32.mrf.mxu0
    %v697 = vadd.f32 0.0, %v696
    %698 = vmatprep.mubr.bf16.mxu0 0
    %699 = vmatmul.mubr.bf16.gmra.mxu0 %v615
    %v700 = vpop.f32.mrf.mxu0
    %v701 = vadd.f32 0.0, %v700
    %v702 = vpop.f32.mrf.mxu0
    %v703 = vadd.f32 0.0, %v702
    %v704 = vpop.f32.mrf.mxu0
    %v705 = vadd.f32 0.0, %v704
    %v706 = vpop.f32.mrf.mxu0
    %v707 = vadd.f32 0.0, %v706
    %708 = vmatprep.mubr.bf16.mxu0 0
    %709 = vmatmul.mubr.bf16.gmra.mxu0 %v618
    %v710 = vpop.f32.mrf.mxu0
    %v711 = vadd.f32 0.0, %v710
    %v712 = vpop.f32.mrf.mxu0
    %v713 = vadd.f32 0.0, %v712
    %v714 = vpop.f32.mrf.mxu0
    %v715 = vadd.f32 0.0, %v714
    %v716 = vpop.f32.mrf.mxu0
    %v717 = vadd.f32 0.0, %v716
    %718 = vmatprep.mubr.bf16.mxu0 0
    %719 = vmatmul.mubr.bf16.gmra.mxu0 %v621
    %v720 = vpop.f32.mrf.mxu0
    %v721 = vadd.f32 0.0, %v720
    %v722 = vpop.f32.mrf.mxu0
    %v723 = vadd.f32 0.0, %v722
    %v724 = vpop.f32.mrf.mxu0
    %v725 = vadd.f32 0.0, %v724
    %v726 = vpop.f32.mrf.mxu0
    %v727 = vadd.f32 0.0, %v726
    %728 = vmatprep.mubr.bf16.mxu0 0
    %729 = vmatmul.mubr.bf16.gmra.mxu0 %v624
    %v730 = vpop.f32.mrf.mxu0
    %v731 = vadd.f32 0.0, %v730
    %v732 = vpop.f32.mrf.mxu0
    %v733 = vadd.f32 0.0, %v732
    %v734 = vpop.f32.mrf.mxu0
    %v735 = vadd.f32 0.0, %v734
    %v736 = vpop.f32.mrf.mxu0
    %v737 = vadd.f32 0.0, %v736
    %738 = vdwg.mxu0
    %739 = vmatprep.subr.bf16.mxu0 0
    %740 = vmatpush1.bf16.msra.mxu0 0
    %741 = vmatprep.subr.bf16.mxu0 0
    %742 = vmatpush1.bf16.msra.mxu0 0
    %743 = vmatprep.subr.bf16.mxu0 0
    %744 = vmatpush1.bf16.msra.mxu0 0
    %745 = vmatprep.subr.bf16.mxu0 0
    %746 = vmatpush1.bf16.msra.mxu0 0
    %747 = vmatprep.subr.bf16.mxu0 0
    %748 = vmatpush1.bf16.msra.mxu0 0
    %749 = vmatprep.subr.bf16.mxu0 0
    %750 = vmatpush1.bf16.msra.mxu0 0
    %751 = vmatprep.subr.bf16.mxu0 %v544
    %752 = vmatpush1.bf16.msra.mxu0 %v543
    %753 = vmatprep.subr.bf16.mxu0 %v524
    %754 = vmatpush1.bf16.msra.mxu0 %v523
    %755 = vmatprep.subr.bf16.mxu0 0
    %756 = vmatpush2.bf16.msra.mxu0 0
    %757 = vmatprep.subr.bf16.mxu0 0
    %758 = vmatpush2.bf16.msra.mxu0 0
    %759 = vmatprep.subr.bf16.mxu0 0
    %760 = vmatpush2.bf16.msra.mxu0 0
    %761 = vmatprep.subr.bf16.mxu0 0
    %762 = vmatpush2.bf16.msra.mxu0 0
    %763 = vmatprep.subr.bf16.mxu0 0
    %764 = vmatpush2.bf16.msra.mxu0 0
    %765 = vmatprep.subr.bf16.mxu0 0
    %766 = vmatpush2.bf16.msra.mxu0 0
    %767 = vmatprep.subr.bf16.mxu0 0
    %768 = vmatpush2.bf16.msra.mxu0 0
    %769 = vmatprep.subr.bf16.mxu0 0
    %770 = vmatpush2.bf16.msra.mxu0 0
    %771 = vmatprep.mubr.bf16.mxu0 0
    %772 = vmatmul.mubr.bf16.gmra.mxu0 %v603
    %v773 = vpop.f32.mrf.mxu0
    %v774 = vadd.f32 0.0, %v773
    %v775 = vpop.f32.mrf.mxu0
    %v776 = vadd.f32 0.0, %v775
    %v777 = vpop.f32.mrf.mxu0
    %v778 = vadd.f32 0.0, %v777
    %v779 = vpop.f32.mrf.mxu0
    %v780 = vadd.f32 0.0, %v779
    %781 = vmatprep.mubr.bf16.mxu0 0
    %782 = vmatmul.mubr.bf16.gmra.mxu0 %v606
    %v783 = vpop.f32.mrf.mxu0
    %v784 = vadd.f32 0.0, %v783
    %v785 = vpop.f32.mrf.mxu0
    %v786 = vadd.f32 0.0, %v785
    %v787 = vpop.f32.mrf.mxu0
    %v788 = vadd.f32 0.0, %v787
    %v789 = vpop.f32.mrf.mxu0
    %v790 = vadd.f32 0.0, %v789
    %791 = vmatprep.mubr.bf16.mxu0 0
    %792 = vmatmul.mubr.bf16.gmra.mxu0 %v609
    %v793 = vpop.f32.mrf.mxu0
    %v794 = vadd.f32 0.0, %v793
    %v795 = vpop.f32.mrf.mxu0
    %v796 = vadd.f32 0.0, %v795
    %v797 = vpop.f32.mrf.mxu0
    %v798 = vadd.f32 0.0, %v797
    %v799 = vpop.f32.mrf.mxu0
    %v800 = vadd.f32 0.0, %v799
    %801 = vmatprep.mubr.bf16.mxu0 0
    %802 = vmatmul.mubr.bf16.gmra.mxu0 %v612
    %v803 = vpop.f32.mrf.mxu0
    %v804 = vadd.f32 0.0, %v803
    %v805 = vpop.f32.mrf.mxu0
    %v806 = vadd.f32 0.0, %v805
    %v807 = vpop.f32.mrf.mxu0
    %v808 = vadd.f32 0.0, %v807
    %v809 = vpop.f32.mrf.mxu0
    %v810 = vadd.f32 0.0, %v809
    %811 = vmatprep.mubr.bf16.mxu0 0
    %812 = vmatmul.mubr.bf16.gmra.mxu0 %v615
    %v813 = vpop.f32.mrf.mxu0
    %v814 = vadd.f32 0.0, %v813
    %v815 = vpop.f32.mrf.mxu0
    %v816 = vadd.f32 0.0, %v815
    %v817 = vpop.f32.mrf.mxu0
    %v818 = vadd.f32 0.0, %v817
    %v819 = vpop.f32.mrf.mxu0
    %v820 = vadd.f32 0.0, %v819
    %821 = vmatprep.mubr.bf16.mxu0 0
    %822 = vmatmul.mubr.bf16.gmra.mxu0 %v618
    %v823 = vpop.f32.mrf.mxu0
    %v824 = vadd.f32 0.0, %v823
    %v825 = vpop.f32.mrf.mxu0
    %v826 = vadd.f32 0.0, %v825
    %v827 = vpop.f32.mrf.mxu0
    %v828 = vadd.f32 0.0, %v827
    %v829 = vpop.f32.mrf.mxu0
    %v830 = vadd.f32 0.0, %v829
    %831 = vmatprep.mubr.bf16.mxu0 0
    %832 = vmatmul.mubr.bf16.gmra.mxu0 %v621
    %v833 = vpop.f32.mrf.mxu0
    %v834 = vadd.f32 0.0, %v833
    %v835 = vpop.f32.mrf.mxu0
    %v836 = vadd.f32 0.0, %v835
    %v837 = vpop.f32.mrf.mxu0
    %v838 = vadd.f32 0.0, %v837
    %v839 = vpop.f32.mrf.mxu0
    %v840 = vadd.f32 0.0, %v839
    %841 = vmatprep.mubr.bf16.mxu0 0
    %842 = vmatmul.mubr.bf16.gmra.mxu0 %v624
    %v843 = vpop.f32.mrf.mxu0
    %v844 = vadd.f32 0.0, %v843
    %v845 = vpop.f32.mrf.mxu0
    %v846 = vadd.f32 0.0, %v845
    %v847 = vpop.f32.mrf.mxu0
    %v848 = vadd.f32 0.0, %v847
    %v849 = vpop.f32.mrf.mxu0
    %v850 = vadd.f32 0.0, %v849
    %851 = vdwg.mxu0
    %852 = vmatprep.subr.bf16.mxu0 0
    %853 = vmatpush1.bf16.msra.mxu0 0
    %854 = vmatprep.subr.bf16.mxu0 0
    %855 = vmatpush1.bf16.msra.mxu0 0
    %856 = vmatprep.subr.bf16.mxu0 0
    %857 = vmatpush1.bf16.msra.mxu0 0
    %858 = vmatprep.subr.bf16.mxu0 0
    %859 = vmatpush1.bf16.msra.mxu0 0
    %860 = vmatprep.subr.bf16.mxu0 0
    %861 = vmatpush1.bf16.msra.mxu0 0
    %862 = vmatprep.subr.bf16.mxu0 0
    %863 = vmatpush1.bf16.msra.mxu0 0
    %864 = vmatprep.subr.bf16.mxu0 %v546
    %865 = vmatpush1.bf16.msra.mxu0 %v545
    %866 = vmatprep.subr.bf16.mxu0 %v526
    %867 = vmatpush1.bf16.msra.mxu0 %v525
    %868 = vmatprep.subr.bf16.mxu0 0
    %869 = vmatpush2.bf16.msra.mxu0 0
    %870 = vmatprep.subr.bf16.mxu0 0
    %871 = vmatpush2.bf16.msra.mxu0 0
    %872 = vmatprep.subr.bf16.mxu0 0
    %873 = vmatpush2.bf16.msra.mxu0 0
    %874 = vmatprep.subr.bf16.mxu0 0
    %875 = vmatpush2.bf16.msra.mxu0 0
    %876 = vmatprep.subr.bf16.mxu0 0
    %877 = vmatpush2.bf16.msra.mxu0 0
    %878 = vmatprep.subr.bf16.mxu0 0
    %879 = vmatpush2.bf16.msra.mxu0 0
    %880 = vmatprep.subr.bf16.mxu0 0
    %881 = vmatpush2.bf16.msra.mxu0 0
    %882 = vmatprep.subr.bf16.mxu0 0
    %883 = vmatpush2.bf16.msra.mxu0 0
    %884 = vmatprep.mubr.bf16.mxu0 0
    %885 = vmatmul.mubr.bf16.gmra.mxu0 %v603
    %v886 = vpop.f32.mrf.mxu0
    %v887 = vadd.f32 0.0, %v886
    %v888 = vpop.f32.mrf.mxu0
    %v889 = vadd.f32 0.0, %v888
    %v890 = vpop.f32.mrf.mxu0
    %v891 = vadd.f32 0.0, %v890
    %v892 = vpop.f32.mrf.mxu0
    %v893 = vadd.f32 0.0, %v892
    %894 = vmatprep.mubr.bf16.mxu0 0
    %895 = vmatmul.mubr.bf16.gmra.mxu0 %v606
    %v896 = vpop.f32.mrf.mxu0
    %v897 = vadd.f32 0.0, %v896
    %v898 = vpop.f32.mrf.mxu0
    %v899 = vadd.f32 0.0, %v898
    %v900 = vpop.f32.mrf.mxu0
    %v901 = vadd.f32 0.0, %v900
    %v902 = vpop.f32.mrf.mxu0
    %v903 = vadd.f32 0.0, %v902
    %904 = vmatprep.mubr.bf16.mxu0 0
    %905 = vmatmul.mubr.bf16.gmra.mxu0 %v609
    %v906 = vpop.f32.mrf.mxu0
    %v907 = vadd.f32 0.0, %v906
    %v908 = vpop.f32.mrf.mxu0
    %v909 = vadd.f32 0.0, %v908
    %v910 = vpop.f32.mrf.mxu0
    %v911 = vadd.f32 0.0, %v910
    %v912 = vpop.f32.mrf.mxu0
    %v913 = vadd.f32 0.0, %v912
    %914 = vmatprep.mubr.bf16.mxu0 0
    %915 = vmatmul.mubr.bf16.gmra.mxu0 %v612
    %v916 = vpop.f32.mrf.mxu0
    %v917 = vadd.f32 0.0, %v916
    %v918 = vpop.f32.mrf.mxu0
    %v919 = vadd.f32 0.0, %v918
    %v920 = vpop.f32.mrf.mxu0
    %v921 = vadd.f32 0.0, %v920
    %v922 = vpop.f32.mrf.mxu0
    %v923 = vadd.f32 0.0, %v922
    %924 = vmatprep.mubr.bf16.mxu0 0
    %925 = vmatmul.mubr.bf16.gmra.mxu0 %v615
    %v926 = vpop.f32.mrf.mxu0
    %v927 = vadd.f32 0.0, %v926
    %v928 = vpop.f32.mrf.mxu0
    %v929 = vadd.f32 0.0, %v928
    %v930 = vpop.f32.mrf.mxu0
    %v931 = vadd.f32 0.0, %v930
    %v932 = vpop.f32.mrf.mxu0
    %v933 = vadd.f32 0.0, %v932
    %934 = vmatprep.mubr.bf16.mxu0 0
    %935 = vmatmul.mubr.bf16.gmra.mxu0 %v618
    %v936 = vpop.f32.mrf.mxu0
    %v937 = vadd.f32 0.0, %v936
    %v938 = vpop.f32.mrf.mxu0
    %v939 = vadd.f32 0.0, %v938
    %v940 = vpop.f32.mrf.mxu0
    %v941 = vadd.f32 0.0, %v940
    %v942 = vpop.f32.mrf.mxu0
    %v943 = vadd.f32 0.0, %v942
    %944 = vmatprep.mubr.bf16.mxu0 0
    %945 = vmatmul.mubr.bf16.gmra.mxu0 %v621
    %v946 = vpop.f32.mrf.mxu0
    %v947 = vadd.f32 0.0, %v946
    %v948 = vpop.f32.mrf.mxu0
    %v949 = vadd.f32 0.0, %v948
    %v950 = vpop.f32.mrf.mxu0
    %v951 = vadd.f32 0.0, %v950
    %v952 = vpop.f32.mrf.mxu0
    %v953 = vadd.f32 0.0, %v952
    %954 = vmatprep.mubr.bf16.mxu0 0
    %955 = vmatmul.mubr.bf16.gmra.mxu0 %v624
    %v956 = vpop.f32.mrf.mxu0
    %v957 = vadd.f32 0.0, %v956
    %v958 = vpop.f32.mrf.mxu0
    %v959 = vadd.f32 0.0, %v958
    %v960 = vpop.f32.mrf.mxu0
    %v961 = vadd.f32 0.0, %v960
    %v962 = vpop.f32.mrf.mxu0
    %v963 = vadd.f32 0.0, %v962
    %964 = vdwg.mxu0
    %965 = vmatprep.subr.bf16.mxu0 0
    %966 = vmatpush1.bf16.msra.mxu0 0
    %967 = vmatprep.subr.bf16.mxu0 0
    %968 = vmatpush1.bf16.msra.mxu0 0
    %969 = vmatprep.subr.bf16.mxu0 0
    %970 = vmatpush1.bf16.msra.mxu0 0
    %971 = vmatprep.subr.bf16.mxu0 0
    %972 = vmatpush1.bf16.msra.mxu0 0
    %973 = vmatprep.subr.bf16.mxu0 0
    %974 = vmatpush1.bf16.msra.mxu0 0
    %975 = vmatprep.subr.bf16.mxu0 0
    %976 = vmatpush1.bf16.msra.mxu0 0
    %977 = vmatprep.subr.bf16.mxu0 %v548
    %978 = vmatpush1.bf16.msra.mxu0 %v547
    %979 = vmatprep.subr.bf16.mxu0 %v528
    %980 = vmatpush1.bf16.msra.mxu0 %v527
    %981 = vmatprep.subr.bf16.mxu0 0
    %982 = vmatpush2.bf16.msra.mxu0 0
    %983 = vmatprep.subr.bf16.mxu0 0
    %984 = vmatpush2.bf16.msra.mxu0 0
    %985 = vmatprep.subr.bf16.mxu0 0
    %986 = vmatpush2.bf16.msra.mxu0 0
    %987 = vmatprep.subr.bf16.mxu0 0
    %988 = vmatpush2.bf16.msra.mxu0 0
    %989 = vmatprep.subr.bf16.mxu0 0
    %990 = vmatpush2.bf16.msra.mxu0 0
    %991 = vmatprep.subr.bf16.mxu0 0
    %992 = vmatpush2.bf16.msra.mxu0 0
    %993 = vmatprep.subr.bf16.mxu0 0
    %994 = vmatpush2.bf16.msra.mxu0 0
    %995 = vmatprep.subr.bf16.mxu0 0
    %996 = vmatpush2.bf16.msra.mxu0 0
    %997 = vmatprep.mubr.bf16.mxu0 0
    %998 = vmatmul.mubr.bf16.gmra.mxu0 %v603
    %v999 = vpop.f32.mrf.mxu0
    %v1000 = vadd.f32 0.0, %v999
    %v1001 = vpop.f32.mrf.mxu0
    %v1002 = vadd.f32 0.0, %v1001
    %v1003 = vpop.f32.mrf.mxu0
    %v1004 = vadd.f32 0.0, %v1003
    %v1005 = vpop.f32.mrf.mxu0
    %v1006 = vadd.f32 0.0, %v1005
    %1007 = vmatprep.mubr.bf16.mxu0 0
    %1008 = vmatmul.mubr.bf16.gmra.mxu0 %v606
    %v1009 = vpop.f32.mrf.mxu0
    %v1010 = vadd.f32 0.0, %v1009
    %v1011 = vpop.f32.mrf.mxu0
    %v1012 = vadd.f32 0.0, %v1011
    %v1013 = vpop.f32.mrf.mxu0
    %v1014 = vadd.f32 0.0, %v1013
    %v1015 = vpop.f32.mrf.mxu0
    %v1016 = vadd.f32 0.0, %v1015
    %1017 = vmatprep.mubr.bf16.mxu0 0
    %1018 = vmatmul.mubr.bf16.gmra.mxu0 %v609
    %v1019 = vpop.f32.mrf.mxu0
    %v1020 = vadd.f32 0.0, %v1019
    %v1021 = vpop.f32.mrf.mxu0
    %v1022 = vadd.f32 0.0, %v1021
    %v1023 = vpop.f32.mrf.mxu0
    %v1024 = vadd.f32 0.0, %v1023
    %v1025 = vpop.f32.mrf.mxu0
    %v1026 = vadd.f32 0.0, %v1025
    %1027 = vmatprep.mubr.bf16.mxu0 0
    %1028 = vmatmul.mubr.bf16.gmra.mxu0 %v612
    %v1029 = vpop.f32.mrf.mxu0
    %v1030 = vadd.f32 0.0, %v1029
    %v1031 = vpop.f32.mrf.mxu0
    %v1032 = vadd.f32 0.0, %v1031
    %v1033 = vpop.f32.mrf.mxu0
    %v1034 = vadd.f32 0.0, %v1033
    %v1035 = vpop.f32.mrf.mxu0
    %v1036 = vadd.f32 0.0, %v1035
    %1037 = vmatprep.mubr.bf16.mxu0 0
    %1038 = vmatmul.mubr.bf16.gmra.mxu0 %v615
    %v1039 = vpop.f32.mrf.mxu0
    %v1040 = vadd.f32 0.0, %v1039
    %v1041 = vpop.f32.mrf.mxu0
    %v1042 = vadd.f32 0.0, %v1041
    %v1043 = vpop.f32.mrf.mxu0
    %v1044 = vadd.f32 0.0, %v1043
    %v1045 = vpop.f32.mrf.mxu0
    %v1046 = vadd.f32 0.0, %v1045
    %1047 = vmatprep.mubr.bf16.mxu0 0
    %1048 = vmatmul.mubr.bf16.gmra.mxu0 %v618
    %v1049 = vpop.f32.mrf.mxu0
    %v1050 = vadd.f32 0.0, %v1049
    %v1051 = vpop.f32.mrf.mxu0
    %v1052 = vadd.f32 0.0, %v1051
    %v1053 = vpop.f32.mrf.mxu0
    %v1054 = vadd.f32 0.0, %v1053
    %v1055 = vpop.f32.mrf.mxu0
    %v1056 = vadd.f32 0.0, %v1055
    %1057 = vmatprep.mubr.bf16.mxu0 0
    %1058 = vmatmul.mubr.bf16.gmra.mxu0 %v621
    %v1059 = vpop.f32.mrf.mxu0
    %v1060 = vadd.f32 0.0, %v1059
    %v1061 = vpop.f32.mrf.mxu0
    %v1062 = vadd.f32 0.0, %v1061
    %v1063 = vpop.f32.mrf.mxu0
    %v1064 = vadd.f32 0.0, %v1063
    %v1065 = vpop.f32.mrf.mxu0
    %v1066 = vadd.f32 0.0, %v1065
    %1067 = vmatprep.mubr.bf16.mxu0 0
    %1068 = vmatmul.mubr.bf16.gmra.mxu0 %v624
    %v1069 = vpop.f32.mrf.mxu0
    %v1070 = vadd.f32 0.0, %v1069
    %v1071 = vpop.f32.mrf.mxu0
    %v1072 = vadd.f32 0.0, %v1071
    %v1073 = vpop.f32.mrf.mxu0
    %v1074 = vadd.f32 0.0, %v1073
    %v1075 = vpop.f32.mrf.mxu0
    %v1076 = vadd.f32 0.0, %v1075
    %1077 = vdwg.mxu0
    %1078 = vmatprep.subr.bf16.mxu0 0
    %1079 = vmatpush1.bf16.msra.mxu0 0
    %1080 = vmatprep.subr.bf16.mxu0 0
    %1081 = vmatpush1.bf16.msra.mxu0 0
    %1082 = vmatprep.subr.bf16.mxu0 0
    %1083 = vmatpush1.bf16.msra.mxu0 0
    %1084 = vmatprep.subr.bf16.mxu0 0
    %1085 = vmatpush1.bf16.msra.mxu0 0
    %1086 = vmatprep.subr.bf16.mxu0 0
    %1087 = vmatpush1.bf16.msra.mxu0 0
    %1088 = vmatprep.subr.bf16.mxu0 0
    %1089 = vmatpush1.bf16.msra.mxu0 0
    %1090 = vmatprep.subr.bf16.mxu0 %v550
    %1091 = vmatpush1.bf16.msra.mxu0 %v549
    %1092 = vmatprep.subr.bf16.mxu0 %v530
    %1093 = vmatpush1.bf16.msra.mxu0 %v529
    %1094 = vmatprep.subr.bf16.mxu0 0
    %1095 = vmatpush2.bf16.msra.mxu0 0
    %1096 = vmatprep.subr.bf16.mxu0 0
    %1097 = vmatpush2.bf16.msra.mxu0 0
    %1098 = vmatprep.subr.bf16.mxu0 0
    %1099 = vmatpush2.bf16.msra.mxu0 0
    %1100 = vmatprep.subr.bf16.mxu0 0
    %1101 = vmatpush2.bf16.msra.mxu0 0
    %1102 = vmatprep.subr.bf16.mxu0 0
    %1103 = vmatpush2.bf16.msra.mxu0 0
    %1104 = vmatprep.subr.bf16.mxu0 0
    %1105 = vmatpush2.bf16.msra.mxu0 0
    %1106 = vmatprep.subr.bf16.mxu0 0
    %1107 = vmatpush2.bf16.msra.mxu0 0
    %1108 = vmatprep.subr.bf16.mxu0 0
    %1109 = vmatpush2.bf16.msra.mxu0 0
    %1110 = vmatprep.mubr.bf16.mxu0 0
    %1111 = vmatmul.mubr.bf16.gmra.mxu0 %v603
    %v1112 = vpop.f32.mrf.mxu0
    %v1113 = vadd.f32 0.0, %v1112
    %v1114 = vpop.f32.mrf.mxu0
    %v1115 = vadd.f32 0.0, %v1114
    %v1116 = vpop.f32.mrf.mxu0
    %v1117 = vadd.f32 0.0, %v1116
    %v1118 = vpop.f32.mrf.mxu0
    %v1119 = vadd.f32 0.0, %v1118
    %1120 = vmatprep.mubr.bf16.mxu0 0
    %1121 = vmatmul.mubr.bf16.gmra.mxu0 %v606
    %v1122 = vpop.f32.mrf.mxu0
    %v1123 = vadd.f32 0.0, %v1122
    %v1124 = vpop.f32.mrf.mxu0
    %v1125 = vadd.f32 0.0, %v1124
    %v1126 = vpop.f32.mrf.mxu0
    %v1127 = vadd.f32 0.0, %v1126
    %v1128 = vpop.f32.mrf.mxu0
    %v1129 = vadd.f32 0.0, %v1128
    %1130 = vmatprep.mubr.bf16.mxu0 0
    %1131 = vmatmul.mubr.bf16.gmra.mxu0 %v609
    %v1132 = vpop.f32.mrf.mxu0
    %v1133 = vadd.f32 0.0, %v1132
    %v1134 = vpop.f32.mrf.mxu0
    %v1135 = vadd.f32 0.0, %v1134
    %v1136 = vpop.f32.mrf.mxu0
    %v1137 = vadd.f32 0.0, %v1136
    %v1138 = vpop.f32.mrf.mxu0
    %v1139 = vadd.f32 0.0, %v1138
    %1140 = vmatprep.mubr.bf16.mxu0 0
    %1141 = vmatmul.mubr.bf16.gmra.mxu0 %v612
    %v1142 = vpop.f32.mrf.mxu0
    %v1143 = vadd.f32 0.0, %v1142
    %v1144 = vpop.f32.mrf.mxu0
    %v1145 = vadd.f32 0.0, %v1144
    %v1146 = vpop.f32.mrf.mxu0
    %v1147 = vadd.f32 0.0, %v1146
    %v1148 = vpop.f32.mrf.mxu0
    %v1149 = vadd.f32 0.0, %v1148
    %1150 = vmatprep.mubr.bf16.mxu0 0
    %1151 = vmatmul.mubr.bf16.gmra.mxu0 %v615
    %v1152 = vpop.f32.mrf.mxu0
    %v1153 = vadd.f32 0.0, %v1152
    %v1154 = vpop.f32.mrf.mxu0
    %v1155 = vadd.f32 0.0, %v1154
    %v1156 = vpop.f32.mrf.mxu0
    %v1157 = vadd.f32 0.0, %v1156
    %v1158 = vpop.f32.mrf.mxu0
    %v1159 = vadd.f32 0.0, %v1158
    %1160 = vmatprep.mubr.bf16.mxu0 0
    %1161 = vmatmul.mubr.bf16.gmra.mxu0 %v618
    %v1162 = vpop.f32.mrf.mxu0
    %v1163 = vadd.f32 0.0, %v1162
    %v1164 = vpop.f32.mrf.mxu0
    %v1165 = vadd.f32 0.0, %v1164
    %v1166 = vpop.f32.mrf.mxu0
    %v1167 = vadd.f32 0.0, %v1166
    %v1168 = vpop.f32.mrf.mxu0
    %v1169 = vadd.f32 0.0, %v1168
    %1170 = vmatprep.mubr.bf16.mxu0 0
    %1171 = vmatmul.mubr.bf16.gmra.mxu0 %v621
    %v1172 = vpop.f32.mrf.mxu0
    %v1173 = vadd.f32 0.0, %v1172
    %v1174 = vpop.f32.mrf.mxu0
    %v1175 = vadd.f32 0.0, %v1174
    %v1176 = vpop.f32.mrf.mxu0
    %v1177 = vadd.f32 0.0, %v1176
    %v1178 = vpop.f32.mrf.mxu0
    %v1179 = vadd.f32 0.0, %v1178
    %1180 = vmatprep.mubr.bf16.mxu0 0
    %1181 = vmatmul.mubr.bf16.gmra.mxu0 %v624
    %v1182 = vpop.f32.mrf.mxu0
    %v1183 = vadd.f32 0.0, %v1182
    %v1184 = vpop.f32.mrf.mxu0
    %v1185 = vadd.f32 0.0, %v1184
    %v1186 = vpop.f32.mrf.mxu0
    %v1187 = vadd.f32 0.0, %v1186
    %v1188 = vpop.f32.mrf.mxu0
    %v1189 = vadd.f32 0.0, %v1188
    %1190 = vdwg.mxu0
    %1191 = vmatprep.subr.bf16.mxu0 0
    %1192 = vmatpush1.bf16.msra.mxu0 0
    %1193 = vmatprep.subr.bf16.mxu0 0
    %1194 = vmatpush1.bf16.msra.mxu0 0
    %1195 = vmatprep.subr.bf16.mxu0 0
    %1196 = vmatpush1.bf16.msra.mxu0 0
    %1197 = vmatprep.subr.bf16.mxu0 0
    %1198 = vmatpush1.bf16.msra.mxu0 0
    %1199 = vmatprep.subr.bf16.mxu0 0
    %1200 = vmatpush1.bf16.msra.mxu0 0
    %1201 = vmatprep.subr.bf16.mxu0 0
    %1202 = vmatpush1.bf16.msra.mxu0 0
    %1203 = vmatprep.subr.bf16.mxu0 %v552
    %1204 = vmatpush1.bf16.msra.mxu0 %v551
    %1205 = vmatprep.subr.bf16.mxu0 %v532
    %1206 = vmatpush1.bf16.msra.mxu0 %v531
    %1207 = vmatprep.subr.bf16.mxu0 0
    %1208 = vmatpush2.bf16.msra.mxu0 0
    %1209 = vmatprep.subr.bf16.mxu0 0
    %1210 = vmatpush2.bf16.msra.mxu0 0
    %1211 = vmatprep.subr.bf16.mxu0 0
    %1212 = vmatpush2.bf16.msra.mxu0 0
    %1213 = vmatprep.subr.bf16.mxu0 0
    %1214 = vmatpush2.bf16.msra.mxu0 0
    %1215 = vmatprep.subr.bf16.mxu0 0
    %1216 = vmatpush2.bf16.msra.mxu0 0
    %1217 = vmatprep.subr.bf16.mxu0 0
    %1218 = vmatpush2.bf16.msra.mxu0 0
    %1219 = vmatprep.subr.bf16.mxu0 0
    %1220 = vmatpush2.bf16.msra.mxu0 0
    %1221 = vmatprep.subr.bf16.mxu0 0
    %1222 = vmatpush2.bf16.msra.mxu0 0
    %1223 = vmatprep.mubr.bf16.mxu0 0
    %1224 = vmatmul.mubr.bf16.gmra.mxu0 %v603
    %v1225 = vpop.f32.mrf.mxu0
    %v1226 = vadd.f32 0.0, %v1225
    %v1227 = vpop.f32.mrf.mxu0
    %v1228 = vadd.f32 0.0, %v1227
    %v1229 = vpop.f32.mrf.mxu0
    %v1230 = vadd.f32 0.0, %v1229
    %v1231 = vpop.f32.mrf.mxu0
    %v1232 = vadd.f32 0.0, %v1231
    %1233 = vmatprep.mubr.bf16.mxu0 0
    %1234 = vmatmul.mubr.bf16.gmra.mxu0 %v606
    %v1235 = vpop.f32.mrf.mxu0
    %v1236 = vadd.f32 0.0, %v1235
    %v1237 = vpop.f32.mrf.mxu0
    %v1238 = vadd.f32 0.0, %v1237
    %v1239 = vpop.f32.mrf.mxu0
    %v1240 = vadd.f32 0.0, %v1239
    %v1241 = vpop.f32.mrf.mxu0
    %v1242 = vadd.f32 0.0, %v1241
    %1243 = vmatprep.mubr.bf16.mxu0 0
    %1244 = vmatmul.mubr.bf16.gmra.mxu0 %v609
    %v1245 = vpop.f32.mrf.mxu0
    %v1246 = vadd.f32 0.0, %v1245
    %v1247 = vpop.f32.mrf.mxu0
    %v1248 = vadd.f32 0.0, %v1247
    %v1249 = vpop.f32.mrf.mxu0
    %v1250 = vadd.f32 0.0, %v1249
    %v1251 = vpop.f32.mrf.mxu0
    %v1252 = vadd.f32 0.0, %v1251
    %1253 = vmatprep.mubr.bf16.mxu0 0
    %1254 = vmatmul.mubr.bf16.gmra.mxu0 %v612
    %v1255 = vpop.f32.mrf.mxu0
    %v1256 = vadd.f32 0.0, %v1255
    %v1257 = vpop.f32.mrf.mxu0
    %v1258 = vadd.f32 0.0, %v1257
    %v1259 = vpop.f32.mrf.mxu0
    %v1260 = vadd.f32 0.0, %v1259
    %v1261 = vpop.f32.mrf.mxu0
    %v1262 = vadd.f32 0.0, %v1261
    %1263 = vmatprep.mubr.bf16.mxu0 0
    %1264 = vmatmul.mubr.bf16.gmra.mxu0 %v615
    %v1265 = vpop.f32.mrf.mxu0
    %v1266 = vadd.f32 0.0, %v1265
    %v1267 = vpop.f32.mrf.mxu0
    %v1268 = vadd.f32 0.0, %v1267
    %v1269 = vpop.f32.mrf.mxu0
    %v1270 = vadd.f32 0.0, %v1269
    %v1271 = vpop.f32.mrf.mxu0
    %v1272 = vadd.f32 0.0, %v1271
    %1273 = vmatprep.mubr.bf16.mxu0 0
    %1274 = vmatmul.mubr.bf16.gmra.mxu0 %v618
    %v1275 = vpop.f32.mrf.mxu0
    %v1276 = vadd.f32 0.0, %v1275
    %v1277 = vpop.f32.mrf.mxu0
    %v1278 = vadd.f32 0.0, %v1277
    %v1279 = vpop.f32.mrf.mxu0
    %v1280 = vadd.f32 0.0, %v1279
    %v1281 = vpop.f32.mrf.mxu0
    %v1282 = vadd.f32 0.0, %v1281
    %1283 = vmatprep.mubr.bf16.mxu0 0
    %1284 = vmatmul.mubr.bf16.gmra.mxu0 %v621
    %v1285 = vpop.f32.mrf.mxu0
    %v1286 = vadd.f32 0.0, %v1285
    %v1287 = vpop.f32.mrf.mxu0
    %v1288 = vadd.f32 0.0, %v1287
    %v1289 = vpop.f32.mrf.mxu0
    %v1290 = vadd.f32 0.0, %v1289
    %v1291 = vpop.f32.mrf.mxu0
    %v1292 = vadd.f32 0.0, %v1291
    %1293 = vmatprep.mubr.bf16.mxu0 0
    %1294 = vmatmul.mubr.bf16.gmra.mxu0 %v624
    %v1295 = vpop.f32.mrf.mxu0
    %v1296 = vadd.f32 0.0, %v1295
    %v1297 = vpop.f32.mrf.mxu0
    %v1298 = vadd.f32 0.0, %v1297
    %v1299 = vpop.f32.mrf.mxu0
    %v1300 = vadd.f32 0.0, %v1299
    %v1301 = vpop.f32.mrf.mxu0
    %v1302 = vadd.f32 0.0, %v1301
    %1303 = vdwg.mxu0
    %1304 = vmatprep.subr.bf16.mxu0 0
    %1305 = vmatpush1.bf16.msra.mxu0 0
    %1306 = vmatprep.subr.bf16.mxu0 0
    %1307 = vmatpush1.bf16.msra.mxu0 0
    %1308 = vmatprep.subr.bf16.mxu0 0
    %1309 = vmatpush1.bf16.msra.mxu0 0
    %1310 = vmatprep.subr.bf16.mxu0 0
    %1311 = vmatpush1.bf16.msra.mxu0 0
    %1312 = vmatprep.subr.bf16.mxu0 0
    %1313 = vmatpush1.bf16.msra.mxu0 0
    %1314 = vmatprep.subr.bf16.mxu0 0
    %1315 = vmatpush1.bf16.msra.mxu0 0
    %1316 = vmatprep.subr.bf16.mxu0 %v554
    %1317 = vmatpush1.bf16.msra.mxu0 %v553
    %1318 = vmatprep.subr.bf16.mxu0 %v534
    %1319 = vmatpush1.bf16.msra.mxu0 %v533
    %1320 = vmatprep.subr.bf16.mxu0 0
    %1321 = vmatpush2.bf16.msra.mxu0 0
    %1322 = vmatprep.subr.bf16.mxu0 0
    %1323 = vmatpush2.bf16.msra.mxu0 0
    %1324 = vmatprep.subr.bf16.mxu0 0
    %1325 = vmatpush2.bf16.msra.mxu0 0
    %1326 = vmatprep.subr.bf16.mxu0 0
    %1327 = vmatpush2.bf16.msra.mxu0 0
    %1328 = vmatprep.subr.bf16.mxu0 0
    %1329 = vmatpush2.bf16.msra.mxu0 0
    %1330 = vmatprep.subr.bf16.mxu0 0
    %1331 = vmatpush2.bf16.msra.mxu0 0
    %1332 = vmatprep.subr.bf16.mxu0 0
    %1333 = vmatpush2.bf16.msra.mxu0 0
    %1334 = vmatprep.subr.bf16.mxu0 0
    %1335 = vmatpush2.bf16.msra.mxu0 0
    %1336 = vmatprep.mubr.bf16.mxu0 0
    %1337 = vmatmul.mubr.bf16.gmra.mxu0 %v603
    %v1338 = vpop.f32.mrf.mxu0
    %v1339 = vadd.f32 0.0, %v1338
    %v1340 = vpop.f32.mrf.mxu0
    %v1341 = vadd.f32 0.0, %v1340
    %v1342 = vpop.f32.mrf.mxu0
    %v1343 = vadd.f32 0.0, %v1342
    %v1344 = vpop.f32.mrf.mxu0
    %v1345 = vadd.f32 0.0, %v1344
    %1346 = vmatprep.mubr.bf16.mxu0 0
    %1347 = vmatmul.mubr.bf16.gmra.mxu0 %v606
    %v1348 = vpop.f32.mrf.mxu0
    %v1349 = vadd.f32 0.0, %v1348
    %v1350 = vpop.f32.mrf.mxu0
    %v1351 = vadd.f32 0.0, %v1350
    %v1352 = vpop.f32.mrf.mxu0
    %v1353 = vadd.f32 0.0, %v1352
    %v1354 = vpop.f32.mrf.mxu0
    %v1355 = vadd.f32 0.0, %v1354
    %1356 = vmatprep.mubr.bf16.mxu0 0
    %1357 = vmatmul.mubr.bf16.gmra.mxu0 %v609
    %v1358 = vpop.f32.mrf.mxu0
    %v1359 = vadd.f32 0.0, %v1358
    %v1360 = vpop.f32.mrf.mxu0
    %v1361 = vadd.f32 0.0, %v1360
    %v1362 = vpop.f32.mrf.mxu0
    %v1363 = vadd.f32 0.0, %v1362
    %v1364 = vpop.f32.mrf.mxu0
    %v1365 = vadd.f32 0.0, %v1364
    %1366 = vmatprep.mubr.bf16.mxu0 0
    %1367 = vmatmul.mubr.bf16.gmra.mxu0 %v612
    %v1368 = vpop.f32.mrf.mxu0
    %v1369 = vadd.f32 0.0, %v1368
    %v1370 = vpop.f32.mrf.mxu0
    %v1371 = vadd.f32 0.0, %v1370
    %v1372 = vpop.f32.mrf.mxu0
    %v1373 = vadd.f32 0.0, %v1372
    %v1374 = vpop.f32.mrf.mxu0
    %v1375 = vadd.f32 0.0, %v1374
    %1376 = vmatprep.mubr.bf16.mxu0 0
    %1377 = vmatmul.mubr.bf16.gmra.mxu0 %v615
    %v1378 = vpop.f32.mrf.mxu0
    %v1379 = vadd.f32 0.0, %v1378
    %v1380 = vpop.f32.mrf.mxu0
    %v1381 = vadd.f32 0.0, %v1380
    %v1382 = vpop.f32.mrf.mxu0
    %v1383 = vadd.f32 0.0, %v1382
    %v1384 = vpop.f32.mrf.mxu0
    %v1385 = vadd.f32 0.0, %v1384
    %1386 = vmatprep.mubr.bf16.mxu0 0
    %1387 = vmatmul.mubr.bf16.gmra.mxu0 %v618
    %v1388 = vpop.f32.mrf.mxu0
    %v1389 = vadd.f32 0.0, %v1388
    %v1390 = vpop.f32.mrf.mxu0
    %v1391 = vadd.f32 0.0, %v1390
    %v1392 = vpop.f32.mrf.mxu0
    %v1393 = vadd.f32 0.0, %v1392
    %v1394 = vpop.f32.mrf.mxu0
    %v1395 = vadd.f32 0.0, %v1394
    %1396 = vmatprep.mubr.bf16.mxu0 0
    %1397 = vmatmul.mubr.bf16.gmra.mxu0 %v621
    %v1398 = vpop.f32.mrf.mxu0
    %v1399 = vadd.f32 0.0, %v1398
    %v1400 = vpop.f32.mrf.mxu0
    %v1401 = vadd.f32 0.0, %v1400
    %v1402 = vpop.f32.mrf.mxu0
    %v1403 = vadd.f32 0.0, %v1402
    %v1404 = vpop.f32.mrf.mxu0
    %v1405 = vadd.f32 0.0, %v1404
    %1406 = vmatprep.mubr.bf16.mxu0 0
    %1407 = vmatmul.mubr.bf16.gmra.mxu0 %v624
    %v1408 = vpop.f32.mrf.mxu0
    %v1409 = vadd.f32 0.0, %v1408
    %v1410 = vpop.f32.mrf.mxu0
    %v1411 = vadd.f32 0.0, %v1410
    %v1412 = vpop.f32.mrf.mxu0
    %v1413 = vadd.f32 0.0, %v1412
    %v1414 = vpop.f32.mrf.mxu0
    %v1415 = vadd.f32 0.0, %v1414
    %1416 = vdwg.mxu0
    %1417 = vmatprep.subr.bf16.mxu0 0
    %1418 = vmatpush1.bf16.msra.mxu0 0
    %1419 = vmatprep.subr.bf16.mxu0 0
    %1420 = vmatpush1.bf16.msra.mxu0 0
    %1421 = vmatprep.subr.bf16.mxu0 0
    %1422 = vmatpush1.bf16.msra.mxu0 0
    %1423 = vmatprep.subr.bf16.mxu0 0
    %1424 = vmatpush1.bf16.msra.mxu0 0
    %1425 = vmatprep.subr.bf16.mxu0 0
    %1426 = vmatpush1.bf16.msra.mxu0 0
    %1427 = vmatprep.subr.bf16.mxu0 0
    %1428 = vmatpush1.bf16.msra.mxu0 0
    %1429 = vmatprep.subr.bf16.mxu0 %v556
    %1430 = vmatpush1.bf16.msra.mxu0 %v555
    %1431 = vmatprep.subr.bf16.mxu0 %v536
    %1432 = vmatpush1.bf16.msra.mxu0 %v535
    %1433 = vmatprep.subr.bf16.mxu0 0
    %1434 = vmatpush2.bf16.msra.mxu0 0
    %1435 = vmatprep.subr.bf16.mxu0 0
    %1436 = vmatpush2.bf16.msra.mxu0 0
    %1437 = vmatprep.subr.bf16.mxu0 0
    %1438 = vmatpush2.bf16.msra.mxu0 0
    %1439 = vmatprep.subr.bf16.mxu0 0
    %1440 = vmatpush2.bf16.msra.mxu0 0
    %1441 = vmatprep.subr.bf16.mxu0 0
    %1442 = vmatpush2.bf16.msra.mxu0 0
    %1443 = vmatprep.subr.bf16.mxu0 0
    %1444 = vmatpush2.bf16.msra.mxu0 0
    %1445 = vmatprep.subr.bf16.mxu0 0
    %1446 = vmatpush2.bf16.msra.mxu0 0
    %1447 = vmatprep.subr.bf16.mxu0 0
    %1448 = vmatpush2.bf16.msra.mxu0 0
    %1449 = vmatprep.mubr.bf16.mxu0 0
    %1450 = vmatmul.mubr.bf16.gmra.mxu0 %v603
    %v1451 = vpop.f32.mrf.mxu0
    %v1452 = vadd.f32 0.0, %v1451
    %v1453 = vpop.f32.mrf.mxu0
    %v1454 = vadd.f32 0.0, %v1453
    %v1455 = vpop.f32.mrf.mxu0
    %v1456 = vadd.f32 0.0, %v1455
    %v1457 = vpop.f32.mrf.mxu0
    %v1458 = vadd.f32 0.0, %v1457
    %1459 = vmatprep.mubr.bf16.mxu0 0
    %1460 = vmatmul.mubr.bf16.gmra.mxu0 %v606
    %v1461 = vpop.f32.mrf.mxu0
    %v1462 = vadd.f32 0.0, %v1461
    %v1463 = vpop.f32.mrf.mxu0
    %v1464 = vadd.f32 0.0, %v1463
    %v1465 = vpop.f32.mrf.mxu0
    %v1466 = vadd.f32 0.0, %v1465
    %v1467 = vpop.f32.mrf.mxu0
    %v1468 = vadd.f32 0.0, %v1467
    %1469 = vmatprep.mubr.bf16.mxu0 0
    %1470 = vmatmul.mubr.bf16.gmra.mxu0 %v609
    %v1471 = vpop.f32.mrf.mxu0
    %v1472 = vadd.f32 0.0, %v1471
    %v1473 = vpop.f32.mrf.mxu0
    %v1474 = vadd.f32 0.0, %v1473
    %v1475 = vpop.f32.mrf.mxu0
    %v1476 = vadd.f32 0.0, %v1475
    %v1477 = vpop.f32.mrf.mxu0
    %v1478 = vadd.f32 0.0, %v1477
    %1479 = vmatprep.mubr.bf16.mxu0 0
    %1480 = vmatmul.mubr.bf16.gmra.mxu0 %v612
    %v1481 = vpop.f32.mrf.mxu0
    %v1482 = vadd.f32 0.0, %v1481
    %v1483 = vpop.f32.mrf.mxu0
    %v1484 = vadd.f32 0.0, %v1483
    %v1485 = vpop.f32.mrf.mxu0
    %v1486 = vadd.f32 0.0, %v1485
    %v1487 = vpop.f32.mrf.mxu0
    %v1488 = vadd.f32 0.0, %v1487
    %1489 = vmatprep.mubr.bf16.mxu0 0
    %1490 = vmatmul.mubr.bf16.gmra.mxu0 %v615
    %v1491 = vpop.f32.mrf.mxu0
    %v1492 = vadd.f32 0.0, %v1491
    %v1493 = vpop.f32.mrf.mxu0
    %v1494 = vadd.f32 0.0, %v1493
    %v1495 = vpop.f32.mrf.mxu0
    %v1496 = vadd.f32 0.0, %v1495
    %v1497 = vpop.f32.mrf.mxu0
    %v1498 = vadd.f32 0.0, %v1497
    %1499 = vmatprep.mubr.bf16.mxu0 0
    %1500 = vmatmul.mubr.bf16.gmra.mxu0 %v618
    %v1501 = vpop.f32.mrf.mxu0
    %v1502 = vadd.f32 0.0, %v1501
    %v1503 = vpop.f32.mrf.mxu0
    %v1504 = vadd.f32 0.0, %v1503
    %v1505 = vpop.f32.mrf.mxu0
    %v1506 = vadd.f32 0.0, %v1505
    %v1507 = vpop.f32.mrf.mxu0
    %v1508 = vadd.f32 0.0, %v1507
    %1509 = vmatprep.mubr.bf16.mxu0 0
    %1510 = vmatmul.mubr.bf16.gmra.mxu0 %v621
    %v1511 = vpop.f32.mrf.mxu0
    %v1512 = vadd.f32 0.0, %v1511
    %v1513 = vpop.f32.mrf.mxu0
    %v1514 = vadd.f32 0.0, %v1513
    %v1515 = vpop.f32.mrf.mxu0
    %v1516 = vadd.f32 0.0, %v1515
    %v1517 = vpop.f32.mrf.mxu0
    %v1518 = vadd.f32 0.0, %v1517
    %1519 = vmatprep.mubr.bf16.mxu0 0
    %1520 = vmatmul.mubr.bf16.gmra.mxu0 %v624
    %v1521 = vpop.f32.mrf.mxu0
    %v1522 = vadd.f32 0.0, %v1521
    %v1523 = vpop.f32.mrf.mxu0
    %v1524 = vadd.f32 0.0, %v1523
    %v1525 = vpop.f32.mrf.mxu0
    %v1526 = vadd.f32 0.0, %v1525
    %v1527 = vpop.f32.mrf.mxu0
    %v1528 = vadd.f32 0.0, %v1527
    %1529 = vdwg.mxu0
    %1530 = vmatprep.subr.bf16.mxu0 0
    %1531 = vmatpush1.bf16.msra.mxu0 0
    %1532 = vmatprep.subr.bf16.mxu0 0
    %1533 = vmatpush1.bf16.msra.mxu0 0
    %1534 = vmatprep.subr.bf16.mxu0 0
    %1535 = vmatpush1.bf16.msra.mxu0 0
    %1536 = vmatprep.subr.bf16.mxu0 0
    %1537 = vmatpush1.bf16.msra.mxu0 0
    %1538 = vmatprep.subr.bf16.mxu0 0
    %1539 = vmatpush1.bf16.msra.mxu0 0
    %1540 = vmatprep.subr.bf16.mxu0 0
    %1541 = vmatpush1.bf16.msra.mxu0 0
    %1542 = vmatprep.subr.bf16.mxu0 %v558
    %1543 = vmatpush1.bf16.msra.mxu0 %v557
    %1544 = vmatprep.subr.bf16.mxu0 %v538
    %1545 = vmatpush1.bf16.msra.mxu0 %v537
    %1546 = vmatprep.subr.bf16.mxu0 0
    %1547 = vmatpush2.bf16.msra.mxu0 0
    %1548 = vmatprep.subr.bf16.mxu0 0
    %1549 = vmatpush2.bf16.msra.mxu0 0
    %1550 = vmatprep.subr.bf16.mxu0 0
    %1551 = vmatpush2.bf16.msra.mxu0 0
    %1552 = vmatprep.subr.bf16.mxu0 0
    %1553 = vmatpush2.bf16.msra.mxu0 0
    %1554 = vmatprep.subr.bf16.mxu0 0
    %1555 = vmatpush2.bf16.msra.mxu0 0
    %1556 = vmatprep.subr.bf16.mxu0 0
    %1557 = vmatpush2.bf16.msra.mxu0 0
    %1558 = vmatprep.subr.bf16.mxu0 0
    %1559 = vmatpush2.bf16.msra.mxu0 0
    %1560 = vmatprep.subr.bf16.mxu0 0
    %1561 = vmatpush2.bf16.msra.mxu0 0
    %1562 = vmatprep.mubr.bf16.mxu0 0
    %1563 = vmatmul.mubr.bf16.gmra.mxu0 %v603
    %v1564 = vpop.f32.mrf.mxu0
    %v1565 = vadd.f32 0.0, %v1564
    %v1566 = vpop.f32.mrf.mxu0
    %v1567 = vadd.f32 0.0, %v1566
    %v1568 = vpop.f32.mrf.mxu0
    %v1569 = vadd.f32 0.0, %v1568
    %v1570 = vpop.f32.mrf.mxu0
    %v1571 = vadd.f32 0.0, %v1570
    %1572 = vmatprep.mubr.bf16.mxu0 0
    %1573 = vmatmul.mubr.bf16.gmra.mxu0 %v606
    %v1574 = vpop.f32.mrf.mxu0
    %v1575 = vadd.f32 0.0, %v1574
    %v1576 = vpop.f32.mrf.mxu0
    %v1577 = vadd.f32 0.0, %v1576
    %v1578 = vpop.f32.mrf.mxu0
    %v1579 = vadd.f32 0.0, %v1578
    %v1580 = vpop.f32.mrf.mxu0
    %v1581 = vadd.f32 0.0, %v1580
    %1582 = vmatprep.mubr.bf16.mxu0 0
    %1583 = vmatmul.mubr.bf16.gmra.mxu0 %v609
    %v1584 = vpop.f32.mrf.mxu0
    %v1585 = vadd.f32 0.0, %v1584
    %v1586 = vpop.f32.mrf.mxu0
    %v1587 = vadd.f32 0.0, %v1586
    %v1588 = vpop.f32.mrf.mxu0
    %v1589 = vadd.f32 0.0, %v1588
    %v1590 = vpop.f32.mrf.mxu0
    %v1591 = vadd.f32 0.0, %v1590
    %1592 = vmatprep.mubr.bf16.mxu0 0
    %1593 = vmatmul.mubr.bf16.gmra.mxu0 %v612
    %v1594 = vpop.f32.mrf.mxu0
    %v1595 = vadd.f32 0.0, %v1594
    %v1596 = vpop.f32.mrf.mxu0
    %v1597 = vadd.f32 0.0, %v1596
    %v1598 = vpop.f32.mrf.mxu0
    %v1599 = vadd.f32 0.0, %v1598
    %v1600 = vpop.f32.mrf.mxu0
    %v1601 = vadd.f32 0.0, %v1600
    %1602 = vmatprep.mubr.bf16.mxu0 0
    %1603 = vmatmul.mubr.bf16.gmra.mxu0 %v615
    %v1604 = vpop.f32.mrf.mxu0
    %v1605 = vadd.f32 0.0, %v1604
    %v1606 = vpop.f32.mrf.mxu0
    %v1607 = vadd.f32 0.0, %v1606
    %v1608 = vpop.f32.mrf.mxu0
    %v1609 = vadd.f32 0.0, %v1608
    %v1610 = vpop.f32.mrf.mxu0
    %v1611 = vadd.f32 0.0, %v1610
    %1612 = vmatprep.mubr.bf16.mxu0 0
    %1613 = vmatmul.mubr.bf16.gmra.mxu0 %v618
    %v1614 = vpop.f32.mrf.mxu0
    %v1615 = vadd.f32 0.0, %v1614
    %v1616 = vpop.f32.mrf.mxu0
    %v1617 = vadd.f32 0.0, %v1616
    %v1618 = vpop.f32.mrf.mxu0
    %v1619 = vadd.f32 0.0, %v1618
    %v1620 = vpop.f32.mrf.mxu0
    %v1621 = vadd.f32 0.0, %v1620
    %1622 = vmatprep.mubr.bf16.mxu0 0
    %1623 = vmatmul.mubr.bf16.gmra.mxu0 %v621
    %v1624 = vpop.f32.mrf.mxu0
    %v1625 = vadd.f32 0.0, %v1624
    %v1626 = vpop.f32.mrf.mxu0
    %v1627 = vadd.f32 0.0, %v1626
    %v1628 = vpop.f32.mrf.mxu0
    %v1629 = vadd.f32 0.0, %v1628
    %v1630 = vpop.f32.mrf.mxu0
    %v1631 = vadd.f32 0.0, %v1630
    %1632 = vmatprep.mubr.bf16.mxu0 0
    %1633 = vmatmul.mubr.bf16.gmra.mxu0 %v624
    %v1634 = vpop.f32.mrf.mxu0
    %v1635 = vadd.f32 0.0, %v1634
    %v1636 = vpop.f32.mrf.mxu0
    %v1637 = vadd.f32 0.0, %v1636
    %v1638 = vpop.f32.mrf.mxu0
    %v1639 = vadd.f32 0.0, %v1638
    %v1640 = vpop.f32.mrf.mxu0
    %v1641 = vadd.f32 0.0, %v1640
    %1642 = vdwg.mxu0
    %1643 = vmatprep.subr.bf16.mxu0 0
    %1644 = vmatpush1.bf16.msra.mxu0 0
    %1645 = vmatprep.subr.bf16.mxu0 0
    %1646 = vmatpush1.bf16.msra.mxu0 0
    %1647 = vmatprep.subr.bf16.mxu0 0
    %1648 = vmatpush1.bf16.msra.mxu0 0
    %1649 = vmatprep.subr.bf16.mxu0 0
    %1650 = vmatpush1.bf16.msra.mxu0 0
    %1651 = vmatprep.subr.bf16.mxu0 0
    %1652 = vmatpush1.bf16.msra.mxu0 0
    %1653 = vmatprep.subr.bf16.mxu0 0
    %1654 = vmatpush1.bf16.msra.mxu0 0
    %1655 = vmatprep.subr.bf16.mxu0 %v560
    %1656 = vmatpush1.bf16.msra.mxu0 %v559
    %1657 = vmatprep.subr.bf16.mxu0 %v540
    %1658 = vmatpush1.bf16.msra.mxu0 %v539
    %1659 = vmatprep.subr.bf16.mxu0 0
    %1660 = vmatpush2.bf16.msra.mxu0 0
    %1661 = vmatprep.subr.bf16.mxu0 0
    %1662 = vmatpush2.bf16.msra.mxu0 0
    %1663 = vmatprep.subr.bf16.mxu0 0
    %1664 = vmatpush2.bf16.msra.mxu0 0
    %1665 = vmatprep.subr.bf16.mxu0 0
    %1666 = vmatpush2.bf16.msra.mxu0 0
    %1667 = vmatprep.subr.bf16.mxu0 0
    %1668 = vmatpush2.bf16.msra.mxu0 0
    %1669 = vmatprep.subr.bf16.mxu0 0
    %1670 = vmatpush2.bf16.msra.mxu0 0
    %1671 = vmatprep.subr.bf16.mxu0 0
    %1672 = vmatpush2.bf16.msra.mxu0 0
    %1673 = vmatprep.subr.bf16.mxu0 0
    %1674 = vmatpush2.bf16.msra.mxu0 0
    %1675 = vmatprep.mubr.bf16.mxu0 0
    %1676 = vmatmul.mubr.bf16.gmra.mxu0 %v603
    %v1677 = vpop.f32.mrf.mxu0
    %v1678 = vadd.f32 0.0, %v1677
    %v1679 = vpop.f32.mrf.mxu0
    %v1680 = vadd.f32 0.0, %v1679
    %v1681 = vpop.f32.mrf.mxu0
    %v1682 = vadd.f32 0.0, %v1681
    %v1683 = vpop.f32.mrf.mxu0
    %v1684 = vadd.f32 0.0, %v1683
    %1685 = vmatprep.mubr.bf16.mxu0 0
    %1686 = vmatmul.mubr.bf16.gmra.mxu0 %v606
    %v1687 = vpop.f32.mrf.mxu0
    %v1688 = vadd.f32 0.0, %v1687
    %v1689 = vpop.f32.mrf.mxu0
    %v1690 = vadd.f32 0.0, %v1689
    %v1691 = vpop.f32.mrf.mxu0
    %v1692 = vadd.f32 0.0, %v1691
    %v1693 = vpop.f32.mrf.mxu0
    %v1694 = vadd.f32 0.0, %v1693
    %1695 = vmatprep.mubr.bf16.mxu0 0
    %1696 = vmatmul.mubr.bf16.gmra.mxu0 %v609
    %v1697 = vpop.f32.mrf.mxu0
    %v1698 = vadd.f32 0.0, %v1697
    %v1699 = vpop.f32.mrf.mxu0
    %v1700 = vadd.f32 0.0, %v1699
    %v1701 = vpop.f32.mrf.mxu0
    %v1702 = vadd.f32 0.0, %v1701
    %v1703 = vpop.f32.mrf.mxu0
    %v1704 = vadd.f32 0.0, %v1703
    %1705 = vmatprep.mubr.bf16.mxu0 0
    %1706 = vmatmul.mubr.bf16.gmra.mxu0 %v612
    %v1707 = vpop.f32.mrf.mxu0
    %v1708 = vadd.f32 0.0, %v1707
    %v1709 = vpop.f32.mrf.mxu0
    %v1710 = vadd.f32 0.0, %v1709
    %v1711 = vpop.f32.mrf.mxu0
    %v1712 = vadd.f32 0.0, %v1711
    %v1713 = vpop.f32.mrf.mxu0
    %v1714 = vadd.f32 0.0, %v1713
    %1715 = vmatprep.mubr.bf16.mxu0 0
    %1716 = vmatmul.mubr.bf16.gmra.mxu0 %v615
    %v1717 = vpop.f32.mrf.mxu0
    %v1718 = vadd.f32 0.0, %v1717
    %v1719 = vpop.f32.mrf.mxu0
    %v1720 = vadd.f32 0.0, %v1719
    %v1721 = vpop.f32.mrf.mxu0
    %v1722 = vadd.f32 0.0, %v1721
    %v1723 = vpop.f32.mrf.mxu0
    %v1724 = vadd.f32 0.0, %v1723
    %1725 = vmatprep.mubr.bf16.mxu0 0
    %1726 = vmatmul.mubr.bf16.gmra.mxu0 %v618
    %v1727 = vpop.f32.mrf.mxu0
    %v1728 = vadd.f32 0.0, %v1727
    %v1729 = vpop.f32.mrf.mxu0
    %v1730 = vadd.f32 0.0, %v1729
    %v1731 = vpop.f32.mrf.mxu0
    %v1732 = vadd.f32 0.0, %v1731
    %v1733 = vpop.f32.mrf.mxu0
    %v1734 = vadd.f32 0.0, %v1733
    %1735 = vmatprep.mubr.bf16.mxu0 0
    %1736 = vmatmul.mubr.bf16.gmra.mxu0 %v621
    %v1737 = vpop.f32.mrf.mxu0
    %v1738 = vadd.f32 0.0, %v1737
    %v1739 = vpop.f32.mrf.mxu0
    %v1740 = vadd.f32 0.0, %v1739
    %v1741 = vpop.f32.mrf.mxu0
    %v1742 = vadd.f32 0.0, %v1741
    %v1743 = vpop.f32.mrf.mxu0
    %v1744 = vadd.f32 0.0, %v1743
    %1745 = vmatprep.mubr.bf16.mxu0 0
    %1746 = vmatmul.mubr.bf16.gmra.mxu0 %v624
    %v1747 = vpop.f32.mrf.mxu0
    %v1748 = vadd.f32 0.0, %v1747
    %v1749 = vpop.f32.mrf.mxu0
    %v1750 = vadd.f32 0.0, %v1749
    %v1751 = vpop.f32.mrf.mxu0
    %v1752 = vadd.f32 0.0, %v1751
    %v1753 = vpop.f32.mrf.mxu0
    %v1754 = vadd.f32 0.0, %v1753
    %1755 = vdwg.mxu0
    %v1756 = vld [vmem:[%s4] sm:$0xff]
    %v1757 = vld [vmem:[%s4 + $0x8] sm:$0xff]
    %v1758 = vld [vmem:[%s4 + $0x10] sm:$0xf]
    %v1762 = vlaneseq
    %v1763 = vshrl.u32 %v1762, 7
    %v1764 = vsub.s32 0, %v1763
    %v1765 = vrot.slane %v1756, %v1764
    %v1766 = vlaneseq
    %v1767 = vshrl.u32 %v1766, 7
    %v1768 = vsub.s32 1, %v1767
    %v1769 = vrot.slane %v1756, %v1768
    %v1770 = vlaneseq
    %v1771 = vshrl.u32 %v1770, 7
    %v1772 = vsub.s32 2, %v1771
    %v1773 = vrot.slane %v1756, %v1772
    %v1774 = vlaneseq
    %v1775 = vshrl.u32 %v1774, 7
    %v1776 = vsub.s32 3, %v1775
    %v1777 = vrot.slane %v1756, %v1776
    %v1778 = vlaneseq
    %v1779 = vshrl.u32 %v1778, 7
    %v1780 = vsub.s32 4, %v1779
    %v1781 = vrot.slane %v1756, %v1780
    %v1782 = vlaneseq
    %v1783 = vshrl.u32 %v1782, 7
    %v1784 = vsub.s32 5, %v1783
    %v1785 = vrot.slane %v1756, %v1784
    %v1786 = vlaneseq
    %v1787 = vshrl.u32 %v1786, 7
    %v1788 = vsub.s32 6, %v1787
    %v1789 = vrot.slane %v1756, %v1788
    %v1790 = vlaneseq
    %v1791 = vshrl.u32 %v1790, 7
    %v1792 = vsub.s32 7, %v1791
    %v1793 = vrot.slane %v1756, %v1792
    %v1794 = vlaneseq
    %v1795 = vshrl.u32 %v1794, 7
    %v1796 = vsub.s32 0, %v1795
    %v1797 = vrot.slane %v1757, %v1796
    %v1798 = vlaneseq
    %v1799 = vshrl.u32 %v1798, 7
    %v1800 = vsub.s32 1, %v1799
    %v1801 = vrot.slane %v1757, %v1800
    %v1802 = vlaneseq
    %v1803 = vshrl.u32 %v1802, 7
    %v1804 = vsub.s32 2, %v1803
    %v1805 = vrot.slane %v1757, %v1804
    %v1806 = vlaneseq
    %v1807 = vshrl.u32 %v1806, 7
    %v1808 = vsub.s32 3, %v1807
    %v1809 = vrot.slane %v1757, %v1808
    %v1810 = vlaneseq
    %v1811 = vshrl.u32 %v1810, 7
    %v1812 = vsub.s32 4, %v1811
    %v1813 = vrot.slane %v1757, %v1812
    %v1814 = vlaneseq
    %v1815 = vshrl.u32 %v1814, 7
    %v1816 = vsub.s32 5, %v1815
    %v1817 = vrot.slane %v1757, %v1816
    %v1818 = vlaneseq
    %v1819 = vshrl.u32 %v1818, 7
    %v1820 = vsub.s32 6, %v1819
    %v1821 = vrot.slane %v1757, %v1820
    %v1822 = vlaneseq
    %v1823 = vshrl.u32 %v1822, 7
    %v1824 = vsub.s32 7, %v1823
    %v1825 = vrot.slane %v1757, %v1824
    %v1826 = vlaneseq
    %v1827 = vshrl.u32 %v1826, 7
    %v1828 = vsub.s32 0, %v1827
    %v1829 = vrot.slane %v1758, %v1828
    %v1830 = vlaneseq
    %v1831 = vshrl.u32 %v1830, 7
    %v1832 = vsub.s32 1, %v1831
    %v1833 = vrot.slane %v1758, %v1832
    %v1834 = vlaneseq
    %v1835 = vshrl.u32 %v1834, 7
    %v1836 = vsub.s32 2, %v1835
    %v1837 = vrot.slane %v1758, %v1836
    %v1838 = vlaneseq
    %v1839 = vshrl.u32 %v1838, 7
    %v1840 = vsub.s32 3, %v1839
    %v1841 = vrot.slane %v1758, %v1840
    %v1862 = vmul.f32 %v661, %v1765
    %v1863 = vmul.f32 %v663, %v1769
    %v1864 = vmul.f32 %v774, %v1773
    %v1865 = vmul.f32 %v776, %v1777
    %v1866 = vmul.f32 %v887, %v1781
    %v1867 = vmul.f32 %v889, %v1785
    %v1868 = vmul.f32 %v1000, %v1789
    %v1869 = vmul.f32 %v1002, %v1793
    %v1870 = vmul.f32 %v1113, %v1797
    %v1871 = vmul.f32 %v1115, %v1801
    %v1872 = vmul.f32 %v1226, %v1805
    %v1873 = vmul.f32 %v1228, %v1809
    %v1874 = vmul.f32 %v1339, %v1813
    %v1875 = vmul.f32 %v1341, %v1817
    %v1876 = vmul.f32 %v1452, %v1821
    %v1877 = vmul.f32 %v1454, %v1825
    %v1878 = vmul.f32 %v1565, %v1829
    %v1879 = vmul.f32 %v1567, %v1833
    %v1880 = vmul.f32 %v1678, %v1837
    %v1881 = vmul.f32 %v1680, %v1841
    %v1882 = vmul.f32 %v665, %v1765
    %v1883 = vmul.f32 %v667, %v1769
    %v1884 = vmul.f32 %v778, %v1773
    %v1885 = vmul.f32 %v780, %v1777
    %v1886 = vmul.f32 %v891, %v1781
    %v1887 = vmul.f32 %v893, %v1785
    %v1888 = vmul.f32 %v1004, %v1789
    %v1889 = vmul.f32 %v1006, %v1793
    %v1890 = vmul.f32 %v1117, %v1797
    %v1891 = vmul.f32 %v1119, %v1801
    %v1892 = vmul.f32 %v1230, %v1805
    %v1893 = vmul.f32 %v1232, %v1809
    %v1894 = vmul.f32 %v1343, %v1813
    %v1895 = vmul.f32 %v1345, %v1817
    %v1896 = vmul.f32 %v1456, %v1821
    %v1897 = vmul.f32 %v1458, %v1825
    %v1898 = vmul.f32 %v1569, %v1829
    %v1899 = vmul.f32 %v1571, %v1833
    %v1900 = vmul.f32 %v1682, %v1837
    %v1901 = vmul.f32 %v1684, %v1841
    %v1902 = vmul.f32 %v671, %v1765
    %v1903 = vmul.f32 %v673, %v1769
    %v1904 = vmul.f32 %v784, %v1773
    %v1905 = vmul.f32 %v786, %v1777
    %v1906 = vmul.f32 %v897, %v1781
    %v1907 = vmul.f32 %v899, %v1785
    %v1908 = vmul.f32 %v1010, %v1789
    %v1909 = vmul.f32 %v1012, %v1793
    %v1910 = vmul.f32 %v1123, %v1797
    %v1911 = vmul.f32 %v1125, %v1801
    %v1912 = vmul.f32 %v1236, %v1805
    %v1913 = vmul.f32 %v1238, %v1809
    %v1914 = vmul.f32 %v1349, %v1813
    %v1915 = vmul.f32 %v1351, %v1817
    %v1916 = vmul.f32 %v1462, %v1821
    %v1917 = vmul.f32 %v1464, %v1825
    %v1918 = vmul.f32 %v1575, %v1829
    %v1919 = vmul.f32 %v1577, %v1833
    %v1920 = vmul.f32 %v1688, %v1837
    %v1921 = vmul.f32 %v1690, %v1841
    %v1922 = vmul.f32 %v675, %v1765
    %v1923 = vmul.f32 %v677, %v1769
    %v1924 = vmul.f32 %v788, %v1773
    %v1925 = vmul.f32 %v790, %v1777
    %v1926 = vmul.f32 %v901, %v1781
    %v1927 = vmul.f32 %v903, %v1785
    %v1928 = vmul.f32 %v1014, %v1789
    %v1929 = vmul.f32 %v1016, %v1793
    %v1930 = vmul.f32 %v1127, %v1797
    %v1931 = vmul.f32 %v1129, %v1801
    %v1932 = vmul.f32 %v1240, %v1805
    %v1933 = vmul.f32 %v1242, %v1809
    %v1934 = vmul.f32 %v1353, %v1813
    %v1935 = vmul.f32 %v1355, %v1817
    %v1936 = vmul.f32 %v1466, %v1821
    %v1937 = vmul.f32 %v1468, %v1825
    %v1938 = vmul.f32 %v1579, %v1829
    %v1939 = vmul.f32 %v1581, %v1833
    %v1940 = vmul.f32 %v1692, %v1837
    %v1941 = vmul.f32 %v1694, %v1841
    %v1942 = vmul.f32 %v681, %v1765
    %v1943 = vmul.f32 %v683, %v1769
    %v1944 = vmul.f32 %v794, %v1773
    %v1945 = vmul.f32 %v796, %v1777
    %v1946 = vmul.f32 %v907, %v1781
    %v1947 = vmul.f32 %v909, %v1785
    %v1948 = vmul.f32 %v1020, %v1789
    %v1949 = vmul.f32 %v1022, %v1793
    %v1950 = vmul.f32 %v1133, %v1797
    %v1951 = vmul.f32 %v1135, %v1801
    %v1952 = vmul.f32 %v1246, %v1805
    %v1953 = vmul.f32 %v1248, %v1809
    %v1954 = vmul.f32 %v1359, %v1813
    %v1955 = vmul.f32 %v1361, %v1817
    %v1956 = vmul.f32 %v1472, %v1821
    %v1957 = vmul.f32 %v1474, %v1825
    %v1958 = vmul.f32 %v1585, %v1829
    %v1959 = vmul.f32 %v1587, %v1833
    %v1960 = vmul.f32 %v1698, %v1837
    %v1961 = vmul.f32 %v1700, %v1841
    %v1962 = vmul.f32 %v685, %v1765
    %v1963 = vmul.f32 %v687, %v1769
    %v1964 = vmul.f32 %v798, %v1773
    %v1965 = vmul.f32 %v800, %v1777
    %v1966 = vmul.f32 %v911, %v1781
    %v1967 = vmul.f32 %v913, %v1785
    %v1968 = vmul.f32 %v1024, %v1789
    %v1969 = vmul.f32 %v1026, %v1793
    %v1970 = vmul.f32 %v1137, %v1797
    %v1971 = vmul.f32 %v1139, %v1801
    %v1972 = vmul.f32 %v1250, %v1805
    %v1973 = vmul.f32 %v1252, %v1809
    %v1974 = vmul.f32 %v1363, %v1813
    %v1975 = vmul.f32 %v1365, %v1817
    %v1976 = vmul.f32 %v1476, %v1821
    %v1977 = vmul.f32 %v1478, %v1825
    %v1978 = vmul.f32 %v1589, %v1829
    %v1979 = vmul.f32 %v1591, %v1833
    %v1980 = vmul.f32 %v1702, %v1837
    %v1981 = vmul.f32 %v1704, %v1841
    %v1982 = vmul.f32 %v691, %v1765
    %v1983 = vmul.f32 %v693, %v1769
    %v1984 = vmul.f32 %v804, %v1773
    %v1985 = vmul.f32 %v806, %v1777
    %v1986 = vmul.f32 %v917, %v1781
    %v1987 = vmul.f32 %v919, %v1785
    %v1988 = vmul.f32 %v1030, %v1789
    %v1989 = vmul.f32 %v1032, %v1793
    %v1990 = vmul.f32 %v1143, %v1797
    %v1991 = vmul.f32 %v1145, %v1801
    %v1992 = vmul.f32 %v1256, %v1805
    %v1993 = vmul.f32 %v1258, %v1809
    %v1994 = vmul.f32 %v1369, %v1813
    %v1995 = vmul.f32 %v1371, %v1817
    %v1996 = vmul.f32 %v1482, %v1821
    %v1997 = vmul.f32 %v1484, %v1825
    %v1998 = vmul.f32 %v1595, %v1829
    %v1999 = vmul.f32 %v1597, %v1833
    %v2000 = vmul.f32 %v1708, %v1837
    %v2001 = vmul.f32 %v1710, %v1841
    %v2002 = vmul.f32 %v695, %v1765
    %v2003 = vmul.f32 %v697, %v1769
    %v2004 = vmul.f32 %v808, %v1773
    %v2005 = vmul.f32 %v810, %v1777
    %v2006 = vmul.f32 %v921, %v1781
    %v2007 = vmul.f32 %v923, %v1785
    %v2008 = vmul.f32 %v1034, %v1789
    %v2009 = vmul.f32 %v1036, %v1793
    %v2010 = vmul.f32 %v1147, %v1797
    %v2011 = vmul.f32 %v1149, %v1801
    %v2012 = vmul.f32 %v1260, %v1805
    %v2013 = vmul.f32 %v1262, %v1809
    %v2014 = vmul.f32 %v1373, %v1813
    %v2015 = vmul.f32 %v1375, %v1817
    %v2016 = vmul.f32 %v1486, %v1821
    %v2017 = vmul.f32 %v1488, %v1825
    %v2018 = vmul.f32 %v1599, %v1829
    %v2019 = vmul.f32 %v1601, %v1833
    %v2020 = vmul.f32 %v1712, %v1837
    %v2021 = vmul.f32 %v1714, %v1841
    %v2022 = vmul.f32 %v701, %v1765
    %v2023 = vmul.f32 %v703, %v1769
    %v2024 = vmul.f32 %v814, %v1773
    %v2025 = vmul.f32 %v816, %v1777
    %v2026 = vmul.f32 %v927, %v1781
    %v2027 = vmul.f32 %v929, %v1785
    %v2028 = vmul.f32 %v1040, %v1789
    %v2029 = vmul.f32 %v1042, %v1793
    %v2030 = vmul.f32 %v1153, %v1797
    %v2031 = vmul.f32 %v1155, %v1801
    %v2032 = vmul.f32 %v1266, %v1805
    %v2033 = vmul.f32 %v1268, %v1809
    %v2034 = vmul.f32 %v1379, %v1813
    %v2035 = vmul.f32 %v1381, %v1817
    %v2036 = vmul.f32 %v1492, %v1821
    %v2037 = vmul.f32 %v1494, %v1825
    %v2038 = vmul.f32 %v1605, %v1829
    %v2039 = vmul.f32 %v1607, %v1833
    %v2040 = vmul.f32 %v1718, %v1837
    %v2041 = vmul.f32 %v1720, %v1841
    %v2042 = vmul.f32 %v705, %v1765
    %v2043 = vmul.f32 %v707, %v1769
    %v2044 = vmul.f32 %v818, %v1773
    %v2045 = vmul.f32 %v820, %v1777
    %v2046 = vmul.f32 %v931, %v1781
    %v2047 = vmul.f32 %v933, %v1785
    %v2048 = vmul.f32 %v1044, %v1789
    %v2049 = vmul.f32 %v1046, %v1793
    %v2050 = vmul.f32 %v1157, %v1797
    %v2051 = vmul.f32 %v1159, %v1801
    %v2052 = vmul.f32 %v1270, %v1805
    %v2053 = vmul.f32 %v1272, %v1809
    %v2054 = vmul.f32 %v1383, %v1813
    %v2055 = vmul.f32 %v1385, %v1817
    %v2056 = vmul.f32 %v1496, %v1821
    %v2057 = vmul.f32 %v1498, %v1825
    %v2058 = vmul.f32 %v1609, %v1829
    %v2059 = vmul.f32 %v1611, %v1833
    %v2060 = vmul.f32 %v1722, %v1837
    %v2061 = vmul.f32 %v1724, %v1841
    %v2062 = vmul.f32 %v711, %v1765
    %v2063 = vmul.f32 %v713, %v1769
    %v2064 = vmul.f32 %v824, %v1773
    %v2065 = vmul.f32 %v826, %v1777
    %v2066 = vmul.f32 %v937, %v1781
    %v2067 = vmul.f32 %v939, %v1785
    %v2068 = vmul.f32 %v1050, %v1789
    %v2069 = vmul.f32 %v1052, %v1793
    %v2070 = vmul.f32 %v1163, %v1797
    %v2071 = vmul.f32 %v1165, %v1801
    %v2072 = vmul.f32 %v1276, %v1805
    %v2073 = vmul.f32 %v1278, %v1809
    %v2074 = vmul.f32 %v1389, %v1813
    %v2075 = vmul.f32 %v1391, %v1817
    %v2076 = vmul.f32 %v1502, %v1821
    %v2077 = vmul.f32 %v1504, %v1825
    %v2078 = vmul.f32 %v1615, %v1829
    %v2079 = vmul.f32 %v1617, %v1833
    %v2080 = vmul.f32 %v1728, %v1837
    %v2081 = vmul.f32 %v1730, %v1841
    %v2082 = vmul.f32 %v715, %v1765
    %v2083 = vmul.f32 %v717, %v1769
    %v2084 = vmul.f32 %v828, %v1773
    %v2085 = vmul.f32 %v830, %v1777
    %v2086 = vmul.f32 %v941, %v1781
    %v2087 = vmul.f32 %v943, %v1785
    %v2088 = vmul.f32 %v1054, %v1789
    %v2089 = vmul.f32 %v1056, %v1793
    %v2090 = vmul.f32 %v1167, %v1797
    %v2091 = vmul.f32 %v1169, %v1801
    %v2092 = vmul.f32 %v1280, %v1805
    %v2093 = vmul.f32 %v1282, %v1809
    %v2094 = vmul.f32 %v1393, %v1813
    %v2095 = vmul.f32 %v1395, %v1817
    %v2096 = vmul.f32 %v1506, %v1821
    %v2097 = vmul.f32 %v1508, %v1825
    %v2098 = vmul.f32 %v1619, %v1829
    %v2099 = vmul.f32 %v1621, %v1833
    %v2100 = vmul.f32 %v1732, %v1837
    %v2101 = vmul.f32 %v1734, %v1841
    %v2102 = vmul.f32 %v721, %v1765
    %v2103 = vmul.f32 %v723, %v1769
    %v2104 = vmul.f32 %v834, %v1773
    %v2105 = vmul.f32 %v836, %v1777
    %v2106 = vmul.f32 %v947, %v1781
    %v2107 = vmul.f32 %v949, %v1785
    %v2108 = vmul.f32 %v1060, %v1789
    %v2109 = vmul.f32 %v1062, %v1793
    %v2110 = vmul.f32 %v1173, %v1797
    %v2111 = vmul.f32 %v1175, %v1801
    %v2112 = vmul.f32 %v1286, %v1805
    %v2113 = vmul.f32 %v1288, %v1809
    %v2114 = vmul.f32 %v1399, %v1813
    %v2115 = vmul.f32 %v1401, %v1817
    %v2116 = vmul.f32 %v1512, %v1821
    %v2117 = vmul.f32 %v1514, %v1825
    %v2118 = vmul.f32 %v1625, %v1829
    %v2119 = vmul.f32 %v1627, %v1833
    %v2120 = vmul.f32 %v1738, %v1837
    %v2121 = vmul.f32 %v1740, %v1841
    %v2122 = vmul.f32 %v725, %v1765
    %v2123 = vmul.f32 %v727, %v1769
    %v2124 = vmul.f32 %v838, %v1773
    %v2125 = vmul.f32 %v840, %v1777
    %v2126 = vmul.f32 %v951, %v1781
    %v2127 = vmul.f32 %v953, %v1785
    %v2128 = vmul.f32 %v1064, %v1789
    %v2129 = vmul.f32 %v1066, %v1793
    %v2130 = vmul.f32 %v1177, %v1797
    %v2131 = vmul.f32 %v1179, %v1801
    %v2132 = vmul.f32 %v1290, %v1805
    %v2133 = vmul.f32 %v1292, %v1809
    %v2134 = vmul.f32 %v1403, %v1813
    %v2135 = vmul.f32 %v1405, %v1817
    %v2136 = vmul.f32 %v1516, %v1821
    %v2137 = vmul.f32 %v1518, %v1825
    %v2138 = vmul.f32 %v1629, %v1829
    %v2139 = vmul.f32 %v1631, %v1833
    %v2140 = vmul.f32 %v1742, %v1837
    %v2141 = vmul.f32 %v1744, %v1841
    %v2142 = vmul.f32 %v731, %v1765
    %v2143 = vmul.f32 %v733, %v1769
    %v2144 = vmul.f32 %v844, %v1773
    %v2145 = vmul.f32 %v846, %v1777
    %v2146 = vmul.f32 %v957, %v1781
    %v2147 = vmul.f32 %v959, %v1785
    %v2148 = vmul.f32 %v1070, %v1789
    %v2149 = vmul.f32 %v1072, %v1793
    %v2150 = vmul.f32 %v1183, %v1797
    %v2151 = vmul.f32 %v1185, %v1801
    %v2152 = vmul.f32 %v1296, %v1805
    %v2153 = vmul.f32 %v1298, %v1809
    %v2154 = vmul.f32 %v1409, %v1813
    %v2155 = vmul.f32 %v1411, %v1817
    %v2156 = vmul.f32 %v1522, %v1821
    %v2157 = vmul.f32 %v1524, %v1825
    %v2158 = vmul.f32 %v1635, %v1829
    %v2159 = vmul.f32 %v1637, %v1833
    %v2160 = vmul.f32 %v1748, %v1837
    %v2161 = vmul.f32 %v1750, %v1841
    %v2162 = vmul.f32 %v735, %v1765
    %v2163 = vmul.f32 %v737, %v1769
    %v2164 = vmul.f32 %v848, %v1773
    %v2165 = vmul.f32 %v850, %v1777
    %v2166 = vmul.f32 %v961, %v1781
    %v2167 = vmul.f32 %v963, %v1785
    %v2168 = vmul.f32 %v1074, %v1789
    %v2169 = vmul.f32 %v1076, %v1793
    %v2170 = vmul.f32 %v1187, %v1797
    %v2171 = vmul.f32 %v1189, %v1801
    %v2172 = vmul.f32 %v1300, %v1805
    %v2173 = vmul.f32 %v1302, %v1809
    %v2174 = vmul.f32 %v1413, %v1813
    %v2175 = vmul.f32 %v1415, %v1817
    %v2176 = vmul.f32 %v1526, %v1821
    %v2177 = vmul.f32 %v1528, %v1825
    %v2178 = vmul.f32 %v1639, %v1829
    %v2179 = vmul.f32 %v1641, %v1833
    %v2180 = vmul.f32 %v1752, %v1837
    %v2181 = vmul.f32 %v1754, %v1841
    %v2182 = vld [vmem:[%s5] sm:$0xff]
    %v2183 = vld [vmem:[%s5 + $0x8] sm:$0xff]
    %v2184 = vld [vmem:[%s5 + $0x10] sm:$0xf]
    %v2188 = vlaneseq
    %v2189 = vshrl.u32 %v2188, 7
    %v2190 = vsub.s32 0, %v2189
    %v2191 = vrot.slane %v2182, %v2190
    %v2192 = vlaneseq
    %v2193 = vshrl.u32 %v2192, 7
    %v2194 = vsub.s32 1, %v2193
    %v2195 = vrot.slane %v2182, %v2194
    %v2196 = vlaneseq
    %v2197 = vshrl.u32 %v2196, 7
    %v2198 = vsub.s32 2, %v2197
    %v2199 = vrot.slane %v2182, %v2198
    %v2200 = vlaneseq
    %v2201 = vshrl.u32 %v2200, 7
    %v2202 = vsub.s32 3, %v2201
    %v2203 = vrot.slane %v2182, %v2202
    %v2204 = vlaneseq
    %v2205 = vshrl.u32 %v2204, 7
    %v2206 = vsub.s32 4, %v2205
    %v2207 = vrot.slane %v2182, %v2206
    %v2208 = vlaneseq
    %v2209 = vshrl.u32 %v2208, 7
    %v2210 = vsub.s32 5, %v2209
    %v2211 = vrot.slane %v2182, %v2210
    %v2212 = vlaneseq
    %v2213 = vshrl.u32 %v2212, 7
    %v2214 = vsub.s32 6, %v2213
    %v2215 = vrot.slane %v2182, %v2214
    %v2216 = vlaneseq
    %v2217 = vshrl.u32 %v2216, 7
    %v2218 = vsub.s32 7, %v2217
    %v2219 = vrot.slane %v2182, %v2218
    %v2220 = vlaneseq
    %v2221 = vshrl.u32 %v2220, 7
    %v2222 = vsub.s32 0, %v2221
    %v2223 = vrot.slane %v2183, %v2222
    %v2224 = vlaneseq
    %v2225 = vshrl.u32 %v2224, 7
    %v2226 = vsub.s32 1, %v2225
    %v2227 = vrot.slane %v2183, %v2226
    %v2228 = vlaneseq
    %v2229 = vshrl.u32 %v2228, 7
    %v2230 = vsub.s32 2, %v2229
    %v2231 = vrot.slane %v2183, %v2230
    %v2232 = vlaneseq
    %v2233 = vshrl.u32 %v2232, 7
    %v2234 = vsub.s32 3, %v2233
    %v2235 = vrot.slane %v2183, %v2234
    %v2236 = vlaneseq
    %v2237 = vshrl.u32 %v2236, 7
    %v2238 = vsub.s32 4, %v2237
    %v2239 = vrot.slane %v2183, %v2238
    %v2240 = vlaneseq
    %v2241 = vshrl.u32 %v2240, 7
    %v2242 = vsub.s32 5, %v2241
    %v2243 = vrot.slane %v2183, %v2242
    %v2244 = vlaneseq
    %v2245 = vshrl.u32 %v2244, 7
    %v2246 = vsub.s32 6, %v2245
    %v2247 = vrot.slane %v2183, %v2246
    %v2248 = vlaneseq
    %v2249 = vshrl.u32 %v2248, 7
    %v2250 = vsub.s32 7, %v2249
    %v2251 = vrot.slane %v2183, %v2250
    %v2252 = vlaneseq
    %v2253 = vshrl.u32 %v2252, 7
    %v2254 = vsub.s32 0, %v2253
    %v2255 = vrot.slane %v2184, %v2254
    %v2256 = vlaneseq
    %v2257 = vshrl.u32 %v2256, 7
    %v2258 = vsub.s32 1, %v2257
    %v2259 = vrot.slane %v2184, %v2258
    %v2260 = vlaneseq
    %v2261 = vshrl.u32 %v2260, 7
    %v2262 = vsub.s32 2, %v2261
    %v2263 = vrot.slane %v2184, %v2262
    %v2264 = vlaneseq
    %v2265 = vshrl.u32 %v2264, 7
    %v2266 = vsub.s32 3, %v2265
    %v2267 = vrot.slane %v2184, %v2266
    %v2288 = vadd.f32 %v1862, %v2191
    %v2289 = vadd.f32 %v1863, %v2195
    %v2290 = vadd.f32 %v1864, %v2199
    %v2291 = vadd.f32 %v1865, %v2203
    %v2292 = vadd.f32 %v1866, %v2207
    %v2293 = vadd.f32 %v1867, %v2211
    %v2294 = vadd.f32 %v1868, %v2215
    %v2295 = vadd.f32 %v1869, %v2219
    %v2296 = vadd.f32 %v1870, %v2223
    %v2297 = vadd.f32 %v1871, %v2227
    %v2298 = vadd.f32 %v1872, %v2231
    %v2299 = vadd.f32 %v1873, %v2235
    %v2300 = vadd.f32 %v1874, %v2239
    %v2301 = vadd.f32 %v1875, %v2243
    %v2302 = vadd.f32 %v1876, %v2247
    %v2303 = vadd.f32 %v1877, %v2251
    %v2304 = vadd.f32 %v1878, %v2255
    %v2305 = vadd.f32 %v1879, %v2259
    %v2306 = vadd.f32 %v1880, %v2263
    %v2307 = vadd.f32 %v1881, %v2267
    %v2308 = vadd.f32 %v1882, %v2191
    %v2309 = vadd.f32 %v1883, %v2195
    %v2310 = vadd.f32 %v1884, %v2199
    %v2311 = vadd.f32 %v1885, %v2203
    %v2312 = vadd.f32 %v1886, %v2207
    %v2313 = vadd.f32 %v1887, %v2211
    %v2314 = vadd.f32 %v1888, %v2215
    %v2315 = vadd.f32 %v1889, %v2219
    %v2316 = vadd.f32 %v1890, %v2223
    %v2317 = vadd.f32 %v1891, %v2227
    %v2318 = vadd.f32 %v1892, %v2231
    %v2319 = vadd.f32 %v1893, %v2235
    %v2320 = vadd.f32 %v1894, %v2239
    %v2321 = vadd.f32 %v1895, %v2243
    %v2322 = vadd.f32 %v1896, %v2247
    %v2323 = vadd.f32 %v1897, %v2251
    %v2324 = vadd.f32 %v1898, %v2255
    %v2325 = vadd.f32 %v1899, %v2259
    %v2326 = vadd.f32 %v1900, %v2263
    %v2327 = vadd.f32 %v1901, %v2267
    %v2328 = vadd.f32 %v1902, %v2191
    %v2329 = vadd.f32 %v1903, %v2195
    %v2330 = vadd.f32 %v1904, %v2199
    %v2331 = vadd.f32 %v1905, %v2203
    %v2332 = vadd.f32 %v1906, %v2207
    %v2333 = vadd.f32 %v1907, %v2211
    %v2334 = vadd.f32 %v1908, %v2215
    %v2335 = vadd.f32 %v1909, %v2219
    %v2336 = vadd.f32 %v1910, %v2223
    %v2337 = vadd.f32 %v1911, %v2227
    %v2338 = vadd.f32 %v1912, %v2231
    %v2339 = vadd.f32 %v1913, %v2235
    %v2340 = vadd.f32 %v1914, %v2239
    %v2341 = vadd.f32 %v1915, %v2243
    %v2342 = vadd.f32 %v1916, %v2247
    %v2343 = vadd.f32 %v1917, %v2251
    %v2344 = vadd.f32 %v1918, %v2255
    %v2345 = vadd.f32 %v1919, %v2259
    %v2346 = vadd.f32 %v1920, %v2263
    %v2347 = vadd.f32 %v1921, %v2267
    %v2348 = vadd.f32 %v1922, %v2191
    %v2349 = vadd.f32 %v1923, %v2195
    %v2350 = vadd.f32 %v1924, %v2199
    %v2351 = vadd.f32 %v1925, %v2203
    %v2352 = vadd.f32 %v1926, %v2207
    %v2353 = vadd.f32 %v1927, %v2211
    %v2354 = vadd.f32 %v1928, %v2215
    %v2355 = vadd.f32 %v1929, %v2219
    %v2356 = vadd.f32 %v1930, %v2223
    %v2357 = vadd.f32 %v1931, %v2227
    %v2358 = vadd.f32 %v1932, %v2231
    %v2359 = vadd.f32 %v1933, %v2235
    %v2360 = vadd.f32 %v1934, %v2239
    %v2361 = vadd.f32 %v1935, %v2243
    %v2362 = vadd.f32 %v1936, %v2247
    %v2363 = vadd.f32 %v1937, %v2251
    %v2364 = vadd.f32 %v1938, %v2255
    %v2365 = vadd.f32 %v1939, %v2259
    %v2366 = vadd.f32 %v1940, %v2263
    %v2367 = vadd.f32 %v1941, %v2267
    %v2368 = vadd.f32 %v1942, %v2191
    %v2369 = vadd.f32 %v1943, %v2195
    %v2370 = vadd.f32 %v1944, %v2199
    %v2371 = vadd.f32 %v1945, %v2203
    %v2372 = vadd.f32 %v1946, %v2207
    %v2373 = vadd.f32 %v1947, %v2211
    %v2374 = vadd.f32 %v1948, %v2215
    %v2375 = vadd.f32 %v1949, %v2219
    %v2376 = vadd.f32 %v1950, %v2223
    %v2377 = vadd.f32 %v1951, %v2227
    %v2378 = vadd.f32 %v1952, %v2231
    %v2379 = vadd.f32 %v1953, %v2235
    %v2380 = vadd.f32 %v1954, %v2239
    %v2381 = vadd.f32 %v1955, %v2243
    %v2382 = vadd.f32 %v1956, %v2247
    %v2383 = vadd.f32 %v1957, %v2251
    %v2384 = vadd.f32 %v1958, %v2255
    %v2385 = vadd.f32 %v1959, %v2259
    %v2386 = vadd.f32 %v1960, %v2263
    %v2387 = vadd.f32 %v1961, %v2267
    %v2388 = vadd.f32 %v1962, %v2191
    %v2389 = vadd.f32 %v1963, %v2195
    %v2390 = vadd.f32 %v1964, %v2199
    %v2391 = vadd.f32 %v1965, %v2203
    %v2392 = vadd.f32 %v1966, %v2207
    %v2393 = vadd.f32 %v1967, %v2211
    %v2394 = vadd.f32 %v1968, %v2215
    %v2395 = vadd.f32 %v1969, %v2219
    %v2396 = vadd.f32 %v1970, %v2223
    %v2397 = vadd.f32 %v1971, %v2227
    %v2398 = vadd.f32 %v1972, %v2231
    %v2399 = vadd.f32 %v1973, %v2235
    %v2400 = vadd.f32 %v1974, %v2239
    %v2401 = vadd.f32 %v1975, %v2243
    %v2402 = vadd.f32 %v1976, %v2247
    %v2403 = vadd.f32 %v1977, %v2251
    %v2404 = vadd.f32 %v1978, %v2255
    %v2405 = vadd.f32 %v1979, %v2259
    %v2406 = vadd.f32 %v1980, %v2263
    %v2407 = vadd.f32 %v1981, %v2267
    %v2408 = vadd.f32 %v1982, %v2191
    %v2409 = vadd.f32 %v1983, %v2195
    %v2410 = vadd.f32 %v1984, %v2199
    %v2411 = vadd.f32 %v1985, %v2203
    %v2412 = vadd.f32 %v1986, %v2207
    %v2413 = vadd.f32 %v1987, %v2211
    %v2414 = vadd.f32 %v1988, %v2215
    %v2415 = vadd.f32 %v1989, %v2219
    %v2416 = vadd.f32 %v1990, %v2223
    %v2417 = vadd.f32 %v1991, %v2227
    %v2418 = vadd.f32 %v1992, %v2231
    %v2419 = vadd.f32 %v1993, %v2235
    %v2420 = vadd.f32 %v1994, %v2239
    %v2421 = vadd.f32 %v1995, %v2243
    %v2422 = vadd.f32 %v1996, %v2247
    %v2423 = vadd.f32 %v1997, %v2251
    %v2424 = vadd.f32 %v1998, %v2255
    %v2425 = vadd.f32 %v1999, %v2259
    %v2426 = vadd.f32 %v2000, %v2263
    %v2427 = vadd.f32 %v2001, %v2267
    %v2428 = vadd.f32 %v2002, %v2191
    %v2429 = vadd.f32 %v2003, %v2195
    %v2430 = vadd.f32 %v2004, %v2199
    %v2431 = vadd.f32 %v2005, %v2203
    %v2432 = vadd.f32 %v2006, %v2207
    %v2433 = vadd.f32 %v2007, %v2211
    %v2434 = vadd.f32 %v2008, %v2215
    %v2435 = vadd.f32 %v2009, %v2219
    %v2436 = vadd.f32 %v2010, %v2223
    %v2437 = vadd.f32 %v2011, %v2227
    %v2438 = vadd.f32 %v2012, %v2231
    %v2439 = vadd.f32 %v2013, %v2235
    %v2440 = vadd.f32 %v2014, %v2239
    %v2441 = vadd.f32 %v2015, %v2243
    %v2442 = vadd.f32 %v2016, %v2247
    %v2443 = vadd.f32 %v2017, %v2251
    %v2444 = vadd.f32 %v2018, %v2255
    %v2445 = vadd.f32 %v2019, %v2259
    %v2446 = vadd.f32 %v2020, %v2263
    %v2447 = vadd.f32 %v2021, %v2267
    %v2448 = vadd.f32 %v2022, %v2191
    %v2449 = vadd.f32 %v2023, %v2195
    %v2450 = vadd.f32 %v2024, %v2199
    %v2451 = vadd.f32 %v2025, %v2203
    %v2452 = vadd.f32 %v2026, %v2207
    %v2453 = vadd.f32 %v2027, %v2211
    %v2454 = vadd.f32 %v2028, %v2215
    %v2455 = vadd.f32 %v2029, %v2219
    %v2456 = vadd.f32 %v2030, %v2223
    %v2457 = vadd.f32 %v2031, %v2227
    %v2458 = vadd.f32 %v2032, %v2231
    %v2459 = vadd.f32 %v2033, %v2235
    %v2460 = vadd.f32 %v2034, %v2239
    %v2461 = vadd.f32 %v2035, %v2243
    %v2462 = vadd.f32 %v2036, %v2247
    %v2463 = vadd.f32 %v2037, %v2251
    %v2464 = vadd.f32 %v2038, %v2255
    %v2465 = vadd.f32 %v2039, %v2259
    %v2466 = vadd.f32 %v2040, %v2263
    %v2467 = vadd.f32 %v2041, %v2267
    %v2468 = vadd.f32 %v2042, %v2191
    %v2469 = vadd.f32 %v2043, %v2195
    %v2470 = vadd.f32 %v2044, %v2199
    %v2471 = vadd.f32 %v2045, %v2203
    %v2472 = vadd.f32 %v2046, %v2207
    %v2473 = vadd.f32 %v2047, %v2211
    %v2474 = vadd.f32 %v2048, %v2215
    %v2475 = vadd.f32 %v2049, %v2219
    %v2476 = vadd.f32 %v2050, %v2223
    %v2477 = vadd.f32 %v2051, %v2227
    %v2478 = vadd.f32 %v2052, %v2231
    %v2479 = vadd.f32 %v2053, %v2235
    %v2480 = vadd.f32 %v2054, %v2239
    %v2481 = vadd.f32 %v2055, %v2243
    %v2482 = vadd.f32 %v2056, %v2247
    %v2483 = vadd.f32 %v2057, %v2251
    %v2484 = vadd.f32 %v2058, %v2255
    %v2485 = vadd.f32 %v2059, %v2259
    %v2486 = vadd.f32 %v2060, %v2263
    %v2487 = vadd.f32 %v2061, %v2267
    %v2488 = vadd.f32 %v2062, %v2191
    %v2489 = vadd.f32 %v2063, %v2195
    %v2490 = vadd.f32 %v2064, %v2199
    %v2491 = vadd.f32 %v2065, %v2203
    %v2492 = vadd.f32 %v2066, %v2207
    %v2493 = vadd.f32 %v2067, %v2211
    %v2494 = vadd.f32 %v2068, %v2215
    %v2495 = vadd.f32 %v2069, %v2219
    %v2496 = vadd.f32 %v2070, %v2223
    %v2497 = vadd.f32 %v2071, %v2227
    %v2498 = vadd.f32 %v2072, %v2231
    %v2499 = vadd.f32 %v2073, %v2235
    %v2500 = vadd.f32 %v2074, %v2239
    %v2501 = vadd.f32 %v2075, %v2243
    %v2502 = vadd.f32 %v2076, %v2247
    %v2503 = vadd.f32 %v2077, %v2251
    %v2504 = vadd.f32 %v2078, %v2255
    %v2505 = vadd.f32 %v2079, %v2259
    %v2506 = vadd.f32 %v2080, %v2263
    %v2507 = vadd.f32 %v2081, %v2267
    %v2508 = vadd.f32 %v2082, %v2191
    %v2509 = vadd.f32 %v2083, %v2195
    %v2510 = vadd.f32 %v2084, %v2199
    %v2511 = vadd.f32 %v2085, %v2203
    %v2512 = vadd.f32 %v2086, %v2207
    %v2513 = vadd.f32 %v2087, %v2211
    %v2514 = vadd.f32 %v2088, %v2215
    %v2515 = vadd.f32 %v2089, %v2219
    %v2516 = vadd.f32 %v2090, %v2223
    %v2517 = vadd.f32 %v2091, %v2227
    %v2518 = vadd.f32 %v2092, %v2231
    %v2519 = vadd.f32 %v2093, %v2235
    %v2520 = vadd.f32 %v2094, %v2239
    %v2521 = vadd.f32 %v2095, %v2243
    %v2522 = vadd.f32 %v2096, %v2247
    %v2523 = vadd.f32 %v2097, %v2251
    %v2524 = vadd.f32 %v2098, %v2255
    %v2525 = vadd.f32 %v2099, %v2259
    %v2526 = vadd.f32 %v2100, %v2263
    %v2527 = vadd.f32 %v2101, %v2267
    %v2528 = vadd.f32 %v2102, %v2191
    %v2529 = vadd.f32 %v2103, %v2195
    %v2530 = vadd.f32 %v2104, %v2199
    %v2531 = vadd.f32 %v2105, %v2203
    %v2532 = vadd.f32 %v2106, %v2207
    %v2533 = vadd.f32 %v2107, %v2211
    %v2534 = vadd.f32 %v2108, %v2215
    %v2535 = vadd.f32 %v2109, %v2219
    %v2536 = vadd.f32 %v2110, %v2223
    %v2537 = vadd.f32 %v2111, %v2227
    %v2538 = vadd.f32 %v2112, %v2231
    %v2539 = vadd.f32 %v2113, %v2235
    %v2540 = vadd.f32 %v2114, %v2239
    %v2541 = vadd.f32 %v2115, %v2243
    %v2542 = vadd.f32 %v2116, %v2247
    %v2543 = vadd.f32 %v2117, %v2251
    %v2544 = vadd.f32 %v2118, %v2255
    %v2545 = vadd.f32 %v2119, %v2259
    %v2546 = vadd.f32 %v2120, %v2263
    %v2547 = vadd.f32 %v2121, %v2267
    %v2548 = vadd.f32 %v2122, %v2191
    %v2549 = vadd.f32 %v2123, %v2195
    %v2550 = vadd.f32 %v2124, %v2199
    %v2551 = vadd.f32 %v2125, %v2203
    %v2552 = vadd.f32 %v2126, %v2207
    %v2553 = vadd.f32 %v2127, %v2211
    %v2554 = vadd.f32 %v2128, %v2215
    %v2555 = vadd.f32 %v2129, %v2219
    %v2556 = vadd.f32 %v2130, %v2223
    %v2557 = vadd.f32 %v2131, %v2227
    %v2558 = vadd.f32 %v2132, %v2231
    %v2559 = vadd.f32 %v2133, %v2235
    %v2560 = vadd.f32 %v2134, %v2239
    %v2561 = vadd.f32 %v2135, %v2243
    %v2562 = vadd.f32 %v2136, %v2247
    %v2563 = vadd.f32 %v2137, %v2251
    %v2564 = vadd.f32 %v2138, %v2255
    %v2565 = vadd.f32 %v2139, %v2259
    %v2566 = vadd.f32 %v2140, %v2263
    %v2567 = vadd.f32 %v2141, %v2267
    %v2568 = vadd.f32 %v2142, %v2191
    %v2569 = vadd.f32 %v2143, %v2195
    %v2570 = vadd.f32 %v2144, %v2199
    %v2571 = vadd.f32 %v2145, %v2203
    %v2572 = vadd.f32 %v2146, %v2207
    %v2573 = vadd.f32 %v2147, %v2211
    %v2574 = vadd.f32 %v2148, %v2215
    %v2575 = vadd.f32 %v2149, %v2219
    %v2576 = vadd.f32 %v2150, %v2223
    %v2577 = vadd.f32 %v2151, %v2227
    %v2578 = vadd.f32 %v2152, %v2231
    %v2579 = vadd.f32 %v2153, %v2235
    %v2580 = vadd.f32 %v2154, %v2239
    %v2581 = vadd.f32 %v2155, %v2243
    %v2582 = vadd.f32 %v2156, %v2247
    %v2583 = vadd.f32 %v2157, %v2251
    %v2584 = vadd.f32 %v2158, %v2255
    %v2585 = vadd.f32 %v2159, %v2259
    %v2586 = vadd.f32 %v2160, %v2263
    %v2587 = vadd.f32 %v2161, %v2267
    %v2588 = vadd.f32 %v2162, %v2191
    %v2589 = vadd.f32 %v2163, %v2195
    %v2590 = vadd.f32 %v2164, %v2199
    %v2591 = vadd.f32 %v2165, %v2203
    %v2592 = vadd.f32 %v2166, %v2207
    %v2593 = vadd.f32 %v2167, %v2211
    %v2594 = vadd.f32 %v2168, %v2215
    %v2595 = vadd.f32 %v2169, %v2219
    %v2596 = vadd.f32 %v2170, %v2223
    %v2597 = vadd.f32 %v2171, %v2227
    %v2598 = vadd.f32 %v2172, %v2231
    %v2599 = vadd.f32 %v2173, %v2235
    %v2600 = vadd.f32 %v2174, %v2239
    %v2601 = vadd.f32 %v2175, %v2243
    %v2602 = vadd.f32 %v2176, %v2247
    %v2603 = vadd.f32 %v2177, %v2251
    %v2604 = vadd.f32 %v2178, %v2255
    %v2605 = vadd.f32 %v2179, %v2259
    %v2606 = vadd.f32 %v2180, %v2263
    %v2607 = vadd.f32 %v2181, %v2267
    %v2608 = vxor.u32 %v2288, 2147483648
    %v2609 = vxor.u32 %v2289, 2147483648
    %v2610 = vxor.u32 %v2290, 2147483648
    %v2611 = vxor.u32 %v2291, 2147483648
    %v2612 = vxor.u32 %v2292, 2147483648
    %v2613 = vxor.u32 %v2293, 2147483648
    %v2614 = vxor.u32 %v2294, 2147483648
    %v2615 = vxor.u32 %v2295, 2147483648
    %v2616 = vxor.u32 %v2296, 2147483648
    %v2617 = vxor.u32 %v2297, 2147483648
    %v2618 = vxor.u32 %v2298, 2147483648
    %v2619 = vxor.u32 %v2299, 2147483648
    %v2620 = vxor.u32 %v2300, 2147483648
    %v2621 = vxor.u32 %v2301, 2147483648
    %v2622 = vxor.u32 %v2302, 2147483648
    %v2623 = vxor.u32 %v2303, 2147483648
    %v2624 = vxor.u32 %v2304, 2147483648
    %v2625 = vxor.u32 %v2305, 2147483648
    %v2626 = vxor.u32 %v2306, 2147483648
    %v2627 = vxor.u32 %v2307, 2147483648
    %v2628 = vxor.u32 %v2308, 2147483648
    %v2629 = vxor.u32 %v2309, 2147483648
    %v2630 = vxor.u32 %v2310, 2147483648
    %v2631 = vxor.u32 %v2311, 2147483648
    %v2632 = vxor.u32 %v2312, 2147483648
    %v2633 = vxor.u32 %v2313, 2147483648
    %v2634 = vxor.u32 %v2314, 2147483648
    %v2635 = vxor.u32 %v2315, 2147483648
    %v2636 = vxor.u32 %v2316, 2147483648
    %v2637 = vxor.u32 %v2317, 2147483648
    %v2638 = vxor.u32 %v2318, 2147483648
    %v2639 = vxor.u32 %v2319, 2147483648
    %v2640 = vxor.u32 %v2320, 2147483648
    %v2641 = vxor.u32 %v2321, 2147483648
    %v2642 = vxor.u32 %v2322, 2147483648
    %v2643 = vxor.u32 %v2323, 2147483648
    %v2644 = vxor.u32 %v2324, 2147483648
    %v2645 = vxor.u32 %v2325, 2147483648
    %v2646 = vxor.u32 %v2326, 2147483648
    %v2647 = vxor.u32 %v2327, 2147483648
    %v2648 = vxor.u32 %v2328, 2147483648
    %v2649 = vxor.u32 %v2329, 2147483648
    %v2650 = vxor.u32 %v2330, 2147483648
    %v2651 = vxor.u32 %v2331, 2147483648
    %v2652 = vxor.u32 %v2332, 2147483648
    %v2653 = vxor.u32 %v2333, 2147483648
    %v2654 = vxor.u32 %v2334, 2147483648
    %v2655 = vxor.u32 %v2335, 2147483648
    %v2656 = vxor.u32 %v2336, 2147483648
    %v2657 = vxor.u32 %v2337, 2147483648
    %v2658 = vxor.u32 %v2338, 2147483648
    %v2659 = vxor.u32 %v2339, 2147483648
    %v2660 = vxor.u32 %v2340, 2147483648
    %v2661 = vxor.u32 %v2341, 2147483648
    %v2662 = vxor.u32 %v2342, 2147483648
    %v2663 = vxor.u32 %v2343, 2147483648
    %v2664 = vxor.u32 %v2344, 2147483648
    %v2665 = vxor.u32 %v2345, 2147483648
    %v2666 = vxor.u32 %v2346, 2147483648
    %v2667 = vxor.u32 %v2347, 2147483648
    %v2668 = vxor.u32 %v2348, 2147483648
    %v2669 = vxor.u32 %v2349, 2147483648
    %v2670 = vxor.u32 %v2350, 2147483648
    %v2671 = vxor.u32 %v2351, 2147483648
    %v2672 = vxor.u32 %v2352, 2147483648
    %v2673 = vxor.u32 %v2353, 2147483648
    %v2674 = vxor.u32 %v2354, 2147483648
    %v2675 = vxor.u32 %v2355, 2147483648
    %v2676 = vxor.u32 %v2356, 2147483648
    %v2677 = vxor.u32 %v2357, 2147483648
    %v2678 = vxor.u32 %v2358, 2147483648
    %v2679 = vxor.u32 %v2359, 2147483648
    %v2680 = vxor.u32 %v2360, 2147483648
    %v2681 = vxor.u32 %v2361, 2147483648
    %v2682 = vxor.u32 %v2362, 2147483648
    %v2683 = vxor.u32 %v2363, 2147483648
    %v2684 = vxor.u32 %v2364, 2147483648
    %v2685 = vxor.u32 %v2365, 2147483648
    %v2686 = vxor.u32 %v2366, 2147483648
    %v2687 = vxor.u32 %v2367, 2147483648
    %v2688 = vxor.u32 %v2368, 2147483648
    %v2689 = vxor.u32 %v2369, 2147483648
    %v2690 = vxor.u32 %v2370, 2147483648
    %v2691 = vxor.u32 %v2371, 2147483648
    %v2692 = vxor.u32 %v2372, 2147483648
    %v2693 = vxor.u32 %v2373, 2147483648
    %v2694 = vxor.u32 %v2374, 2147483648
    %v2695 = vxor.u32 %v2375, 2147483648
    %v2696 = vxor.u32 %v2376, 2147483648
    %v2697 = vxor.u32 %v2377, 2147483648
    %v2698 = vxor.u32 %v2378, 2147483648
    %v2699 = vxor.u32 %v2379, 2147483648
    %v2700 = vxor.u32 %v2380, 2147483648
    %v2701 = vxor.u32 %v2381, 2147483648
    %v2702 = vxor.u32 %v2382, 2147483648
    %v2703 = vxor.u32 %v2383, 2147483648
    %v2704 = vxor.u32 %v2384, 2147483648
    %v2705 = vxor.u32 %v2385, 2147483648
    %v2706 = vxor.u32 %v2386, 2147483648
    %v2707 = vxor.u32 %v2387, 2147483648
    %v2708 = vxor.u32 %v2388, 2147483648
    %v2709 = vxor.u32 %v2389, 2147483648
    %v2710 = vxor.u32 %v2390, 2147483648
    %v2711 = vxor.u32 %v2391, 2147483648
    %v2712 = vxor.u32 %v2392, 2147483648
    %v2713 = vxor.u32 %v2393, 2147483648
    %v2714 = vxor.u32 %v2394, 2147483648
    %v2715 = vxor.u32 %v2395, 2147483648
    %v2716 = vxor.u32 %v2396, 2147483648
    %v2717 = vxor.u32 %v2397, 2147483648
    %v2718 = vxor.u32 %v2398, 2147483648
    %v2719 = vxor.u32 %v2399, 2147483648
    %v2720 = vxor.u32 %v2400, 2147483648
    %v2721 = vxor.u32 %v2401, 2147483648
    %v2722 = vxor.u32 %v2402, 2147483648
    %v2723 = vxor.u32 %v2403, 2147483648
    %v2724 = vxor.u32 %v2404, 2147483648
    %v2725 = vxor.u32 %v2405, 2147483648
    %v2726 = vxor.u32 %v2406, 2147483648
    %v2727 = vxor.u32 %v2407, 2147483648
    %v2728 = vxor.u32 %v2408, 2147483648
    %v2729 = vxor.u32 %v2409, 2147483648
    %v2730 = vxor.u32 %v2410, 2147483648
    %v2731 = vxor.u32 %v2411, 2147483648
    %v2732 = vxor.u32 %v2412, 2147483648
    %v2733 = vxor.u32 %v2413, 2147483648
    %v2734 = vxor.u32 %v2414, 2147483648
    %v2735 = vxor.u32 %v2415, 2147483648
    %v2736 = vxor.u32 %v2416, 2147483648
    %v2737 = vxor.u32 %v2417, 2147483648
    %v2738 = vxor.u32 %v2418, 2147483648
    %v2739 = vxor.u32 %v2419, 2147483648
    %v2740 = vxor.u32 %v2420, 2147483648
    %v2741 = vxor.u32 %v2421, 2147483648
    %v2742 = vxor.u32 %v2422, 2147483648
    %v2743 = vxor.u32 %v2423, 2147483648
    %v2744 = vxor.u32 %v2424, 2147483648
    %v2745 = vxor.u32 %v2425, 2147483648
    %v2746 = vxor.u32 %v2426, 2147483648
    %v2747 = vxor.u32 %v2427, 2147483648
    %v2748 = vxor.u32 %v2428, 2147483648
    %v2749 = vxor.u32 %v2429, 2147483648
    %v2750 = vxor.u32 %v2430, 2147483648
    %v2751 = vxor.u32 %v2431, 2147483648
    %v2752 = vxor.u32 %v2432, 2147483648
    %v2753 = vxor.u32 %v2433, 2147483648
    %v2754 = vxor.u32 %v2434, 2147483648
    %v2755 = vxor.u32 %v2435, 2147483648
    %v2756 = vxor.u32 %v2436, 2147483648
    %v2757 = vxor.u32 %v2437, 2147483648
    %v2758 = vxor.u32 %v2438, 2147483648
    %v2759 = vxor.u32 %v2439, 2147483648
    %v2760 = vxor.u32 %v2440, 2147483648
    %v2761 = vxor.u32 %v2441, 2147483648
    %v2762 = vxor.u32 %v2442, 2147483648
    %v2763 = vxor.u32 %v2443, 2147483648
    %v2764 = vxor.u32 %v2444, 2147483648
    %v2765 = vxor.u32 %v2445, 2147483648
    %v2766 = vxor.u32 %v2446, 2147483648
    %v2767 = vxor.u32 %v2447, 2147483648
    %v2768 = vxor.u32 %v2448, 2147483648
    %v2769 = vxor.u32 %v2449, 2147483648
    %v2770 = vxor.u32 %v2450, 2147483648
    %v2771 = vxor.u32 %v2451, 2147483648
    %v2772 = vxor.u32 %v2452, 2147483648
    %v2773 = vxor.u32 %v2453, 2147483648
    %v2774 = vxor.u32 %v2454, 2147483648
    %v2775 = vxor.u32 %v2455, 2147483648
    %v2776 = vxor.u32 %v2456, 2147483648
    %v2777 = vxor.u32 %v2457, 2147483648
    %v2778 = vxor.u32 %v2458, 2147483648
    %v2779 = vxor.u32 %v2459, 2147483648
    %v2780 = vxor.u32 %v2460, 2147483648
    %v2781 = vxor.u32 %v2461, 2147483648
    %v2782 = vxor.u32 %v2462, 2147483648
    %v2783 = vxor.u32 %v2463, 2147483648
    %v2784 = vxor.u32 %v2464, 2147483648
    %v2785 = vxor.u32 %v2465, 2147483648
    %v2786 = vxor.u32 %v2466, 2147483648
    %v2787 = vxor.u32 %v2467, 2147483648
    %v2788 = vxor.u32 %v2468, 2147483648
    %v2789 = vxor.u32 %v2469, 2147483648
    %v2790 = vxor.u32 %v2470, 2147483648
    %v2791 = vxor.u32 %v2471, 2147483648
    %v2792 = vxor.u32 %v2472, 2147483648
    %v2793 = vxor.u32 %v2473, 2147483648
    %v2794 = vxor.u32 %v2474, 2147483648
    %v2795 = vxor.u32 %v2475, 2147483648
    %v2796 = vxor.u32 %v2476, 2147483648
    %v2797 = vxor.u32 %v2477, 2147483648
    %v2798 = vxor.u32 %v2478, 2147483648
    %v2799 = vxor.u32 %v2479, 2147483648
    %v2800 = vxor.u32 %v2480, 2147483648
    %v2801 = vxor.u32 %v2481, 2147483648
    %v2802 = vxor.u32 %v2482, 2147483648
    %v2803 = vxor.u32 %v2483, 2147483648
    %v2804 = vxor.u32 %v2484, 2147483648
    %v2805 = vxor.u32 %v2485, 2147483648
    %v2806 = vxor.u32 %v2486, 2147483648
    %v2807 = vxor.u32 %v2487, 2147483648
    %v2808 = vxor.u32 %v2488, 2147483648
    %v2809 = vxor.u32 %v2489, 2147483648
    %v2810 = vxor.u32 %v2490, 2147483648
    %v2811 = vxor.u32 %v2491, 2147483648
    %v2812 = vxor.u32 %v2492, 2147483648
    %v2813 = vxor.u32 %v2493, 2147483648
    %v2814 = vxor.u32 %v2494, 2147483648
    %v2815 = vxor.u32 %v2495, 2147483648
    %v2816 = vxor.u32 %v2496, 2147483648
    %v2817 = vxor.u32 %v2497, 2147483648
    %v2818 = vxor.u32 %v2498, 2147483648
    %v2819 = vxor.u32 %v2499, 2147483648
    %v2820 = vxor.u32 %v2500, 2147483648
    %v2821 = vxor.u32 %v2501, 2147483648
    %v2822 = vxor.u32 %v2502, 2147483648
    %v2823 = vxor.u32 %v2503, 2147483648
    %v2824 = vxor.u32 %v2504, 2147483648
    %v2825 = vxor.u32 %v2505, 2147483648
    %v2826 = vxor.u32 %v2506, 2147483648
    %v2827 = vxor.u32 %v2507, 2147483648
    %v2828 = vxor.u32 %v2508, 2147483648
    %v2829 = vxor.u32 %v2509, 2147483648
    %v2830 = vxor.u32 %v2510, 2147483648
    %v2831 = vxor.u32 %v2511, 2147483648
    %v2832 = vxor.u32 %v2512, 2147483648
    %v2833 = vxor.u32 %v2513, 2147483648
    %v2834 = vxor.u32 %v2514, 2147483648
    %v2835 = vxor.u32 %v2515, 2147483648
    %v2836 = vxor.u32 %v2516, 2147483648
    %v2837 = vxor.u32 %v2517, 2147483648
    %v2838 = vxor.u32 %v2518, 2147483648
    %v2839 = vxor.u32 %v2519, 2147483648
    %v2840 = vxor.u32 %v2520, 2147483648
    %v2841 = vxor.u32 %v2521, 2147483648
    %v2842 = vxor.u32 %v2522, 2147483648
    %v2843 = vxor.u32 %v2523, 2147483648
    %v2844 = vxor.u32 %v2524, 2147483648
    %v2845 = vxor.u32 %v2525, 2147483648
    %v2846 = vxor.u32 %v2526, 2147483648
    %v2847 = vxor.u32 %v2527, 2147483648
    %v2848 = vxor.u32 %v2528, 2147483648
    %v2849 = vxor.u32 %v2529, 2147483648
    %v2850 = vxor.u32 %v2530, 2147483648
    %v2851 = vxor.u32 %v2531, 2147483648
    %v2852 = vxor.u32 %v2532, 2147483648
    %v2853 = vxor.u32 %v2533, 2147483648
    %v2854 = vxor.u32 %v2534, 2147483648
    %v2855 = vxor.u32 %v2535, 2147483648
    %v2856 = vxor.u32 %v2536, 2147483648
    %v2857 = vxor.u32 %v2537, 2147483648
    %v2858 = vxor.u32 %v2538, 2147483648
    %v2859 = vxor.u32 %v2539, 2147483648
    %v2860 = vxor.u32 %v2540, 2147483648
    %v2861 = vxor.u32 %v2541, 2147483648
    %v2862 = vxor.u32 %v2542, 2147483648
    %v2863 = vxor.u32 %v2543, 2147483648
    %v2864 = vxor.u32 %v2544, 2147483648
    %v2865 = vxor.u32 %v2545, 2147483648
    %v2866 = vxor.u32 %v2546, 2147483648
    %v2867 = vxor.u32 %v2547, 2147483648
    %v2868 = vxor.u32 %v2548, 2147483648
    %v2869 = vxor.u32 %v2549, 2147483648
    %v2870 = vxor.u32 %v2550, 2147483648
    %v2871 = vxor.u32 %v2551, 2147483648
    %v2872 = vxor.u32 %v2552, 2147483648
    %v2873 = vxor.u32 %v2553, 2147483648
    %v2874 = vxor.u32 %v2554, 2147483648
    %v2875 = vxor.u32 %v2555, 2147483648
    %v2876 = vxor.u32 %v2556, 2147483648
    %v2877 = vxor.u32 %v2557, 2147483648
    %v2878 = vxor.u32 %v2558, 2147483648
    %v2879 = vxor.u32 %v2559, 2147483648
    %v2880 = vxor.u32 %v2560, 2147483648
    %v2881 = vxor.u32 %v2561, 2147483648
    %v2882 = vxor.u32 %v2562, 2147483648
    %v2883 = vxor.u32 %v2563, 2147483648
    %v2884 = vxor.u32 %v2564, 2147483648
    %v2885 = vxor.u32 %v2565, 2147483648
    %v2886 = vxor.u32 %v2566, 2147483648
    %v2887 = vxor.u32 %v2567, 2147483648
    %v2888 = vxor.u32 %v2568, 2147483648
    %v2889 = vxor.u32 %v2569, 2147483648
    %v2890 = vxor.u32 %v2570, 2147483648
    %v2891 = vxor.u32 %v2571, 2147483648
    %v2892 = vxor.u32 %v2572, 2147483648
    %v2893 = vxor.u32 %v2573, 2147483648
    %v2894 = vxor.u32 %v2574, 2147483648
    %v2895 = vxor.u32 %v2575, 2147483648
    %v2896 = vxor.u32 %v2576, 2147483648
    %v2897 = vxor.u32 %v2577, 2147483648
    %v2898 = vxor.u32 %v2578, 2147483648
    %v2899 = vxor.u32 %v2579, 2147483648
    %v2900 = vxor.u32 %v2580, 2147483648
    %v2901 = vxor.u32 %v2581, 2147483648
    %v2902 = vxor.u32 %v2582, 2147483648
    %v2903 = vxor.u32 %v2583, 2147483648
    %v2904 = vxor.u32 %v2584, 2147483648
    %v2905 = vxor.u32 %v2585, 2147483648
    %v2906 = vxor.u32 %v2586, 2147483648
    %v2907 = vxor.u32 %v2587, 2147483648
    %v2908 = vxor.u32 %v2588, 2147483648
    %v2909 = vxor.u32 %v2589, 2147483648
    %v2910 = vxor.u32 %v2590, 2147483648
    %v2911 = vxor.u32 %v2591, 2147483648
    %v2912 = vxor.u32 %v2592, 2147483648
    %v2913 = vxor.u32 %v2593, 2147483648
    %v2914 = vxor.u32 %v2594, 2147483648
    %v2915 = vxor.u32 %v2595, 2147483648
    %v2916 = vxor.u32 %v2596, 2147483648
    %v2917 = vxor.u32 %v2597, 2147483648
    %v2918 = vxor.u32 %v2598, 2147483648
    %v2919 = vxor.u32 %v2599, 2147483648
    %v2920 = vxor.u32 %v2600, 2147483648
    %v2921 = vxor.u32 %v2601, 2147483648
    %v2922 = vxor.u32 %v2602, 2147483648
    %v2923 = vxor.u32 %v2603, 2147483648
    %v2924 = vxor.u32 %v2604, 2147483648
    %v2925 = vxor.u32 %v2605, 2147483648
    %v2926 = vxor.u32 %v2606, 2147483648
    %v2927 = vxor.u32 %v2607, 2147483648
    %v2928 = vmul.f32 %v2608, 1.442695
    %v2929 = vpow.pop %v2928
    %v2930 = vmul.f32 %v2609, 1.442695
    %v2931 = vpow.pop %v2930
    %v2932 = vmul.f32 %v2610, 1.442695
    %v2933 = vpow.pop %v2932
    %v2934 = vmul.f32 %v2611, 1.442695
    %v2935 = vpow.pop %v2934
    %v2936 = vmul.f32 %v2612, 1.442695
    %v2937 = vpow.pop %v2936
    %v2938 = vmul.f32 %v2613, 1.442695
    %v2939 = vpow.pop %v2938
    %v2940 = vmul.f32 %v2614, 1.442695
    %v2941 = vpow.pop %v2940
    %v2942 = vmul.f32 %v2615, 1.442695
    %v2943 = vpow.pop %v2942
    %v2944 = vmul.f32 %v2616, 1.442695
    %v2945 = vpow.pop %v2944
    %v2946 = vmul.f32 %v2617, 1.442695
    %v2947 = vpow.pop %v2946
    %v2948 = vmul.f32 %v2618, 1.442695
    %v2949 = vpow.pop %v2948
    %v2950 = vmul.f32 %v2619, 1.442695
    %v2951 = vpow.pop %v2950
    %v2952 = vmul.f32 %v2620, 1.442695
    %v2953 = vpow.pop %v2952
    %v2954 = vmul.f32 %v2621, 1.442695
    %v2955 = vpow.pop %v2954
    %v2956 = vmul.f32 %v2622, 1.442695
    %v2957 = vpow.pop %v2956
    %v2958 = vmul.f32 %v2623, 1.442695
    %v2959 = vpow.pop %v2958
    %v2960 = vmul.f32 %v2624, 1.442695
    %v2961 = vpow.pop %v2960
    %v2962 = vmul.f32 %v2625, 1.442695
    %v2963 = vpow.pop %v2962
    %v2964 = vmul.f32 %v2626, 1.442695
    %v2965 = vpow.pop %v2964
    %v2966 = vmul.f32 %v2627, 1.442695
    %v2967 = vpow.pop %v2966
    %v2968 = vmul.f32 %v2628, 1.442695
    %v2969 = vpow.pop %v2968
    %v2970 = vmul.f32 %v2629, 1.442695
    %v2971 = vpow.pop %v2970
    %v2972 = vmul.f32 %v2630, 1.442695
    %v2973 = vpow.pop %v2972
    %v2974 = vmul.f32 %v2631, 1.442695
    %v2975 = vpow.pop %v2974
    %v2976 = vmul.f32 %v2632, 1.442695
    %v2977 = vpow.pop %v2976
    %v2978 = vmul.f32 %v2633, 1.442695
    %v2979 = vpow.pop %v2978
    %v2980 = vmul.f32 %v2634, 1.442695
    %v2981 = vpow.pop %v2980
    %v2982 = vmul.f32 %v2635, 1.442695
    %v2983 = vpow.pop %v2982
    %v2984 = vmul.f32 %v2636, 1.442695
    %v2985 = vpow.pop %v2984
    %v2986 = vmul.f32 %v2637, 1.442695
    %v2987 = vpow.pop %v2986
    %v2988 = vmul.f32 %v2638, 1.442695
    %v2989 = vpow.pop %v2988
    %v2990 = vmul.f32 %v2639, 1.442695
    %v2991 = vpow.pop %v2990
    %v2992 = vmul.f32 %v2640, 1.442695
    %v2993 = vpow.pop %v2992
    %v2994 = vmul.f32 %v2641, 1.442695
    %v2995 = vpow.pop %v2994
    %v2996 = vmul.f32 %v2642, 1.442695
    %v2997 = vpow.pop %v2996
    %v2998 = vmul.f32 %v2643, 1.442695
    %v2999 = vpow.pop %v2998
    %v3000 = vmul.f32 %v2644, 1.442695
    %v3001 = vpow.pop %v3000
    %v3002 = vmul.f32 %v2645, 1.442695
    %v3003 = vpow.pop %v3002
    %v3004 = vmul.f32 %v2646, 1.442695
    %v3005 = vpow.pop %v3004
    %v3006 = vmul.f32 %v2647, 1.442695
    %v3007 = vpow.pop %v3006
    %v3008 = vmul.f32 %v2648, 1.442695
    %v3009 = vpow.pop %v3008
    %v3010 = vmul.f32 %v2649, 1.442695
    %v3011 = vpow.pop %v3010
    %v3012 = vmul.f32 %v2650, 1.442695
    %v3013 = vpow.pop %v3012
    %v3014 = vmul.f32 %v2651, 1.442695
    %v3015 = vpow.pop %v3014
    %v3016 = vmul.f32 %v2652, 1.442695
    %v3017 = vpow.pop %v3016
    %v3018 = vmul.f32 %v2653, 1.442695
    %v3019 = vpow.pop %v3018
    %v3020 = vmul.f32 %v2654, 1.442695
    %v3021 = vpow.pop %v3020
    %v3022 = vmul.f32 %v2655, 1.442695
    %v3023 = vpow.pop %v3022
    %v3024 = vmul.f32 %v2656, 1.442695
    %v3025 = vpow.pop %v3024
    %v3026 = vmul.f32 %v2657, 1.442695
    %v3027 = vpow.pop %v3026
    %v3028 = vmul.f32 %v2658, 1.442695
    %v3029 = vpow.pop %v3028
    %v3030 = vmul.f32 %v2659, 1.442695
    %v3031 = vpow.pop %v3030
    %v3032 = vmul.f32 %v2660, 1.442695
    %v3033 = vpow.pop %v3032
    %v3034 = vmul.f32 %v2661, 1.442695
    %v3035 = vpow.pop %v3034
    %v3036 = vmul.f32 %v2662, 1.442695
    %v3037 = vpow.pop %v3036
    %v3038 = vmul.f32 %v2663, 1.442695
    %v3039 = vpow.pop %v3038
    %v3040 = vmul.f32 %v2664, 1.442695
    %v3041 = vpow.pop %v3040
    %v3042 = vmul.f32 %v2665, 1.442695
    %v3043 = vpow.pop %v3042
    %v3044 = vmul.f32 %v2666, 1.442695
    %v3045 = vpow.pop %v3044
    %v3046 = vmul.f32 %v2667, 1.442695
    %v3047 = vpow.pop %v3046
    %v3048 = vmul.f32 %v2668, 1.442695
    %v3049 = vpow.pop %v3048
    %v3050 = vmul.f32 %v2669, 1.442695
    %v3051 = vpow.pop %v3050
    %v3052 = vmul.f32 %v2670, 1.442695
    %v3053 = vpow.pop %v3052
    %v3054 = vmul.f32 %v2671, 1.442695
    %v3055 = vpow.pop %v3054
    %v3056 = vmul.f32 %v2672, 1.442695
    %v3057 = vpow.pop %v3056
    %v3058 = vmul.f32 %v2673, 1.442695
    %v3059 = vpow.pop %v3058
    %v3060 = vmul.f32 %v2674, 1.442695
    %v3061 = vpow.pop %v3060
    %v3062 = vmul.f32 %v2675, 1.442695
    %v3063 = vpow.pop %v3062
    %v3064 = vmul.f32 %v2676, 1.442695
    %v3065 = vpow.pop %v3064
    %v3066 = vmul.f32 %v2677, 1.442695
    %v3067 = vpow.pop %v3066
    %v3068 = vmul.f32 %v2678, 1.442695
    %v3069 = vpow.pop %v3068
    %v3070 = vmul.f32 %v2679, 1.442695
    %v3071 = vpow.pop %v3070
    %v3072 = vmul.f32 %v2680, 1.442695
    %v3073 = vpow.pop %v3072
    %v3074 = vmul.f32 %v2681, 1.442695
    %v3075 = vpow.pop %v3074
    %v3076 = vmul.f32 %v2682, 1.442695
    %v3077 = vpow.pop %v3076
    %v3078 = vmul.f32 %v2683, 1.442695
    %v3079 = vpow.pop %v3078
    %v3080 = vmul.f32 %v2684, 1.442695
    %v3081 = vpow.pop %v3080
    %v3082 = vmul.f32 %v2685, 1.442695
    %v3083 = vpow.pop %v3082
    %v3084 = vmul.f32 %v2686, 1.442695
    %v3085 = vpow.pop %v3084
    %v3086 = vmul.f32 %v2687, 1.442695
    %v3087 = vpow.pop %v3086
    %v3088 = vmul.f32 %v2688, 1.442695
    %v3089 = vpow.pop %v3088
    %v3090 = vmul.f32 %v2689, 1.442695
    %v3091 = vpow.pop %v3090
    %v3092 = vmul.f32 %v2690, 1.442695
    %v3093 = vpow.pop %v3092
    %v3094 = vmul.f32 %v2691, 1.442695
    %v3095 = vpow.pop %v3094
    %v3096 = vmul.f32 %v2692, 1.442695
    %v3097 = vpow.pop %v3096
    %v3098 = vmul.f32 %v2693, 1.442695
    %v3099 = vpow.pop %v3098
    %v3100 = vmul.f32 %v2694, 1.442695
    %v3101 = vpow.pop %v3100
    %v3102 = vmul.f32 %v2695, 1.442695
    %v3103 = vpow.pop %v3102
    %v3104 = vmul.f32 %v2696, 1.442695
    %v3105 = vpow.pop %v3104
    %v3106 = vmul.f32 %v2697, 1.442695
    %v3107 = vpow.pop %v3106
    %v3108 = vmul.f32 %v2698, 1.442695
    %v3109 = vpow.pop %v3108
    %v3110 = vmul.f32 %v2699, 1.442695
    %v3111 = vpow.pop %v3110
    %v3112 = vmul.f32 %v2700, 1.442695
    %v3113 = vpow.pop %v3112
    %v3114 = vmul.f32 %v2701, 1.442695
    %v3115 = vpow.pop %v3114
    %v3116 = vmul.f32 %v2702, 1.442695
    %v3117 = vpow.pop %v3116
    %v3118 = vmul.f32 %v2703, 1.442695
    %v3119 = vpow.pop %v3118
    %v3120 = vmul.f32 %v2704, 1.442695
    %v3121 = vpow.pop %v3120
    %v3122 = vmul.f32 %v2705, 1.442695
    %v3123 = vpow.pop %v3122
    %v3124 = vmul.f32 %v2706, 1.442695
    %v3125 = vpow.pop %v3124
    %v3126 = vmul.f32 %v2707, 1.442695
    %v3127 = vpow.pop %v3126
    %v3128 = vmul.f32 %v2708, 1.442695
    %v3129 = vpow.pop %v3128
    %v3130 = vmul.f32 %v2709, 1.442695
    %v3131 = vpow.pop %v3130
    %v3132 = vmul.f32 %v2710, 1.442695
    %v3133 = vpow.pop %v3132
    %v3134 = vmul.f32 %v2711, 1.442695
    %v3135 = vpow.pop %v3134
    %v3136 = vmul.f32 %v2712, 1.442695
    %v3137 = vpow.pop %v3136
    %v3138 = vmul.f32 %v2713, 1.442695
    %v3139 = vpow.pop %v3138
    %v3140 = vmul.f32 %v2714, 1.442695
    %v3141 = vpow.pop %v3140
    %v3142 = vmul.f32 %v2715, 1.442695
    %v3143 = vpow.pop %v3142
    %v3144 = vmul.f32 %v2716, 1.442695
    %v3145 = vpow.pop %v3144
    %v3146 = vmul.f32 %v2717, 1.442695
    %v3147 = vpow.pop %v3146
    %v3148 = vmul.f32 %v2718, 1.442695
    %v3149 = vpow.pop %v3148
    %v3150 = vmul.f32 %v2719, 1.442695
    %v3151 = vpow.pop %v3150
    %v3152 = vmul.f32 %v2720, 1.442695
    %v3153 = vpow.pop %v3152
    %v3154 = vmul.f32 %v2721, 1.442695
    %v3155 = vpow.pop %v3154
    %v3156 = vmul.f32 %v2722, 1.442695
    %v3157 = vpow.pop %v3156
    %v3158 = vmul.f32 %v2723, 1.442695
    %v3159 = vpow.pop %v3158
    %v3160 = vmul.f32 %v2724, 1.442695
    %v3161 = vpow.pop %v3160
    %v3162 = vmul.f32 %v2725, 1.442695
    %v3163 = vpow.pop %v3162
    %v3164 = vmul.f32 %v2726, 1.442695
    %v3165 = vpow.pop %v3164
    %v3166 = vmul.f32 %v2727, 1.442695
    %v3167 = vpow.pop %v3166
    %v3168 = vmul.f32 %v2728, 1.442695
    %v3169 = vpow.pop %v3168
    %v3170 = vmul.f32 %v2729, 1.442695
    %v3171 = vpow.pop %v3170
    %v3172 = vmul.f32 %v2730, 1.442695
    %v3173 = vpow.pop %v3172
    %v3174 = vmul.f32 %v2731, 1.442695
    %v3175 = vpow.pop %v3174
    %v3176 = vmul.f32 %v2732, 1.442695
    %v3177 = vpow.pop %v3176
    %v3178 = vmul.f32 %v2733, 1.442695
    %v3179 = vpow.pop %v3178
    %v3180 = vmul.f32 %v2734, 1.442695
    %v3181 = vpow.pop %v3180
    %v3182 = vmul.f32 %v2735, 1.442695
    %v3183 = vpow.pop %v3182
    %v3184 = vmul.f32 %v2736, 1.442695
    %v3185 = vpow.pop %v3184
    %v3186 = vmul.f32 %v2737, 1.442695
    %v3187 = vpow.pop %v3186
    %v3188 = vmul.f32 %v2738, 1.442695
    %v3189 = vpow.pop %v3188
    %v3190 = vmul.f32 %v2739, 1.442695
    %v3191 = vpow.pop %v3190
    %v3192 = vmul.f32 %v2740, 1.442695
    %v3193 = vpow.pop %v3192
    %v3194 = vmul.f32 %v2741, 1.442695
    %v3195 = vpow.pop %v3194
    %v3196 = vmul.f32 %v2742, 1.442695
    %v3197 = vpow.pop %v3196
    %v3198 = vmul.f32 %v2743, 1.442695
    %v3199 = vpow.pop %v3198
    %v3200 = vmul.f32 %v2744, 1.442695
    %v3201 = vpow.pop %v3200
    %v3202 = vmul.f32 %v2745, 1.442695
    %v3203 = vpow.pop %v3202
    %v3204 = vmul.f32 %v2746, 1.442695
    %v3205 = vpow.pop %v3204
    %v3206 = vmul.f32 %v2747, 1.442695
    %v3207 = vpow.pop %v3206
    %v3208 = vmul.f32 %v2748, 1.442695
    %v3209 = vpow.pop %v3208
    %v3210 = vmul.f32 %v2749, 1.442695
    %v3211 = vpow.pop %v3210
    %v3212 = vmul.f32 %v2750, 1.442695
    %v3213 = vpow.pop %v3212
    %v3214 = vmul.f32 %v2751, 1.442695
    %v3215 = vpow.pop %v3214
    %v3216 = vmul.f32 %v2752, 1.442695
    %v3217 = vpow.pop %v3216
    %v3218 = vmul.f32 %v2753, 1.442695
    %v3219 = vpow.pop %v3218
    %v3220 = vmul.f32 %v2754, 1.442695
    %v3221 = vpow.pop %v3220
    %v3222 = vmul.f32 %v2755, 1.442695
    %v3223 = vpow.pop %v3222
    %v3224 = vmul.f32 %v2756, 1.442695
    %v3225 = vpow.pop %v3224
    %v3226 = vmul.f32 %v2757, 1.442695
    %v3227 = vpow.pop %v3226
    %v3228 = vmul.f32 %v2758, 1.442695
    %v3229 = vpow.pop %v3228
    %v3230 = vmul.f32 %v2759, 1.442695
    %v3231 = vpow.pop %v3230
    %v3232 = vmul.f32 %v2760, 1.442695
    %v3233 = vpow.pop %v3232
    %v3234 = vmul.f32 %v2761, 1.442695
    %v3235 = vpow.pop %v3234
    %v3236 = vmul.f32 %v2762, 1.442695
    %v3237 = vpow.pop %v3236
    %v3238 = vmul.f32 %v2763, 1.442695
    %v3239 = vpow.pop %v3238
    %v3240 = vmul.f32 %v2764, 1.442695
    %v3241 = vpow.pop %v3240
    %v3242 = vmul.f32 %v2765, 1.442695
    %v3243 = vpow.pop %v3242
    %v3244 = vmul.f32 %v2766, 1.442695
    %v3245 = vpow.pop %v3244
    %v3246 = vmul.f32 %v2767, 1.442695
    %v3247 = vpow.pop %v3246
    %v3248 = vmul.f32 %v2768, 1.442695
    %v3249 = vpow.pop %v3248
    %v3250 = vmul.f32 %v2769, 1.442695
    %v3251 = vpow.pop %v3250
    %v3252 = vmul.f32 %v2770, 1.442695
    %v3253 = vpow.pop %v3252
    %v3254 = vmul.f32 %v2771, 1.442695
    %v3255 = vpow.pop %v3254
    %v3256 = vmul.f32 %v2772, 1.442695
    %v3257 = vpow.pop %v3256
    %v3258 = vmul.f32 %v2773, 1.442695
    %v3259 = vpow.pop %v3258
    %v3260 = vmul.f32 %v2774, 1.442695
    %v3261 = vpow.pop %v3260
    %v3262 = vmul.f32 %v2775, 1.442695
    %v3263 = vpow.pop %v3262
    %v3264 = vmul.f32 %v2776, 1.442695
    %v3265 = vpow.pop %v3264
    %v3266 = vmul.f32 %v2777, 1.442695
    %v3267 = vpow.pop %v3266
    %v3268 = vmul.f32 %v2778, 1.442695
    %v3269 = vpow.pop %v3268
    %v3270 = vmul.f32 %v2779, 1.442695
    %v3271 = vpow.pop %v3270
    %v3272 = vmul.f32 %v2780, 1.442695
    %v3273 = vpow.pop %v3272
    %v3274 = vmul.f32 %v2781, 1.442695
    %v3275 = vpow.pop %v3274
    %v3276 = vmul.f32 %v2782, 1.442695
    %v3277 = vpow.pop %v3276
    %v3278 = vmul.f32 %v2783, 1.442695
    %v3279 = vpow.pop %v3278
    %v3280 = vmul.f32 %v2784, 1.442695
    %v3281 = vpow.pop %v3280
    %v3282 = vmul.f32 %v2785, 1.442695
    %v3283 = vpow.pop %v3282
    %v3284 = vmul.f32 %v2786, 1.442695
    %v3285 = vpow.pop %v3284
    %v3286 = vmul.f32 %v2787, 1.442695
    %v3287 = vpow.pop %v3286
    %v3288 = vmul.f32 %v2788, 1.442695
    %v3289 = vpow.pop %v3288
    %v3290 = vmul.f32 %v2789, 1.442695
    %v3291 = vpow.pop %v3290
    %v3292 = vmul.f32 %v2790, 1.442695
    %v3293 = vpow.pop %v3292
    %v3294 = vmul.f32 %v2791, 1.442695
    %v3295 = vpow.pop %v3294
    %v3296 = vmul.f32 %v2792, 1.442695
    %v3297 = vpow.pop %v3296
    %v3298 = vmul.f32 %v2793, 1.442695
    %v3299 = vpow.pop %v3298
    %v3300 = vmul.f32 %v2794, 1.442695
    %v3301 = vpow.pop %v3300
    %v3302 = vmul.f32 %v2795, 1.442695
    %v3303 = vpow.pop %v3302
    %v3304 = vmul.f32 %v2796, 1.442695
    %v3305 = vpow.pop %v3304
    %v3306 = vmul.f32 %v2797, 1.442695
    %v3307 = vpow.pop %v3306
    %v3308 = vmul.f32 %v2798, 1.442695
    %v3309 = vpow.pop %v3308
    %v3310 = vmul.f32 %v2799, 1.442695
    %v3311 = vpow.pop %v3310
    %v3312 = vmul.f32 %v2800, 1.442695
    %v3313 = vpow.pop %v3312
    %v3314 = vmul.f32 %v2801, 1.442695
    %v3315 = vpow.pop %v3314
    %v3316 = vmul.f32 %v2802, 1.442695
    %v3317 = vpow.pop %v3316
    %v3318 = vmul.f32 %v2803, 1.442695
    %v3319 = vpow.pop %v3318
    %v3320 = vmul.f32 %v2804, 1.442695
    %v3321 = vpow.pop %v3320
    %v3322 = vmul.f32 %v2805, 1.442695
    %v3323 = vpow.pop %v3322
    %v3324 = vmul.f32 %v2806, 1.442695
    %v3325 = vpow.pop %v3324
    %v3326 = vmul.f32 %v2807, 1.442695
    %v3327 = vpow.pop %v3326
    %v3328 = vmul.f32 %v2808, 1.442695
    %v3329 = vpow.pop %v3328
    %v3330 = vmul.f32 %v2809, 1.442695
    %v3331 = vpow.pop %v3330
    %v3332 = vmul.f32 %v2810, 1.442695
    %v3333 = vpow.pop %v3332
    %v3334 = vmul.f32 %v2811, 1.442695
    %v3335 = vpow.pop %v3334
    %v3336 = vmul.f32 %v2812, 1.442695
    %v3337 = vpow.pop %v3336
    %v3338 = vmul.f32 %v2813, 1.442695
    %v3339 = vpow.pop %v3338
    %v3340 = vmul.f32 %v2814, 1.442695
    %v3341 = vpow.pop %v3340
    %v3342 = vmul.f32 %v2815, 1.442695
    %v3343 = vpow.pop %v3342
    %v3344 = vmul.f32 %v2816, 1.442695
    %v3345 = vpow.pop %v3344
    %v3346 = vmul.f32 %v2817, 1.442695
    %v3347 = vpow.pop %v3346
    %v3348 = vmul.f32 %v2818, 1.442695
    %v3349 = vpow.pop %v3348
    %v3350 = vmul.f32 %v2819, 1.442695
    %v3351 = vpow.pop %v3350
    %v3352 = vmul.f32 %v2820, 1.442695
    %v3353 = vpow.pop %v3352
    %v3354 = vmul.f32 %v2821, 1.442695
    %v3355 = vpow.pop %v3354
    %v3356 = vmul.f32 %v2822, 1.442695
    %v3357 = vpow.pop %v3356
    %v3358 = vmul.f32 %v2823, 1.442695
    %v3359 = vpow.pop %v3358
    %v3360 = vmul.f32 %v2824, 1.442695
    %v3361 = vpow.pop %v3360
    %v3362 = vmul.f32 %v2825, 1.442695
    %v3363 = vpow.pop %v3362
    %v3364 = vmul.f32 %v2826, 1.442695
    %v3365 = vpow.pop %v3364
    %v3366 = vmul.f32 %v2827, 1.442695
    %v3367 = vpow.pop %v3366
    %v3368 = vmul.f32 %v2828, 1.442695
    %v3369 = vpow.pop %v3368
    %v3370 = vmul.f32 %v2829, 1.442695
    %v3371 = vpow.pop %v3370
    %v3372 = vmul.f32 %v2830, 1.442695
    %v3373 = vpow.pop %v3372
    %v3374 = vmul.f32 %v2831, 1.442695
    %v3375 = vpow.pop %v3374
    %v3376 = vmul.f32 %v2832, 1.442695
    %v3377 = vpow.pop %v3376
    %v3378 = vmul.f32 %v2833, 1.442695
    %v3379 = vpow.pop %v3378
    %v3380 = vmul.f32 %v2834, 1.442695
    %v3381 = vpow.pop %v3380
    %v3382 = vmul.f32 %v2835, 1.442695
    %v3383 = vpow.pop %v3382
    %v3384 = vmul.f32 %v2836, 1.442695
    %v3385 = vpow.pop %v3384
    %v3386 = vmul.f32 %v2837, 1.442695
    %v3387 = vpow.pop %v3386
    %v3388 = vmul.f32 %v2838, 1.442695
    %v3389 = vpow.pop %v3388
    %v3390 = vmul.f32 %v2839, 1.442695
    %v3391 = vpow.pop %v3390
    %v3392 = vmul.f32 %v2840, 1.442695
    %v3393 = vpow.pop %v3392
    %v3394 = vmul.f32 %v2841, 1.442695
    %v3395 = vpow.pop %v3394
    %v3396 = vmul.f32 %v2842, 1.442695
    %v3397 = vpow.pop %v3396
    %v3398 = vmul.f32 %v2843, 1.442695
    %v3399 = vpow.pop %v3398
    %v3400 = vmul.f32 %v2844, 1.442695
    %v3401 = vpow.pop %v3400
    %v3402 = vmul.f32 %v2845, 1.442695
    %v3403 = vpow.pop %v3402
    %v3404 = vmul.f32 %v2846, 1.442695
    %v3405 = vpow.pop %v3404
    %v3406 = vmul.f32 %v2847, 1.442695
    %v3407 = vpow.pop %v3406
    %v3408 = vmul.f32 %v2848, 1.442695
    %v3409 = vpow.pop %v3408
    %v3410 = vmul.f32 %v2849, 1.442695
    %v3411 = vpow.pop %v3410
    %v3412 = vmul.f32 %v2850, 1.442695
    %v3413 = vpow.pop %v3412
    %v3414 = vmul.f32 %v2851, 1.442695
    %v3415 = vpow.pop %v3414
    %v3416 = vmul.f32 %v2852, 1.442695
    %v3417 = vpow.pop %v3416
    %v3418 = vmul.f32 %v2853, 1.442695
    %v3419 = vpow.pop %v3418
    %v3420 = vmul.f32 %v2854, 1.442695
    %v3421 = vpow.pop %v3420
    %v3422 = vmul.f32 %v2855, 1.442695
    %v3423 = vpow.pop %v3422
    %v3424 = vmul.f32 %v2856, 1.442695
    %v3425 = vpow.pop %v3424
    %v3426 = vmul.f32 %v2857, 1.442695
    %v3427 = vpow.pop %v3426
    %v3428 = vmul.f32 %v2858, 1.442695
    %v3429 = vpow.pop %v3428
    %v3430 = vmul.f32 %v2859, 1.442695
    %v3431 = vpow.pop %v3430
    %v3432 = vmul.f32 %v2860, 1.442695
    %v3433 = vpow.pop %v3432
    %v3434 = vmul.f32 %v2861, 1.442695
    %v3435 = vpow.pop %v3434
    %v3436 = vmul.f32 %v2862, 1.442695
    %v3437 = vpow.pop %v3436
    %v3438 = vmul.f32 %v2863, 1.442695
    %v3439 = vpow.pop %v3438
    %v3440 = vmul.f32 %v2864, 1.442695
    %v3441 = vpow.pop %v3440
    %v3442 = vmul.f32 %v2865, 1.442695
    %v3443 = vpow.pop %v3442
    %v3444 = vmul.f32 %v2866, 1.442695
    %v3445 = vpow.pop %v3444
    %v3446 = vmul.f32 %v2867, 1.442695
    %v3447 = vpow.pop %v3446
    %v3448 = vmul.f32 %v2868, 1.442695
    %v3449 = vpow.pop %v3448
    %v3450 = vmul.f32 %v2869, 1.442695
    %v3451 = vpow.pop %v3450
    %v3452 = vmul.f32 %v2870, 1.442695
    %v3453 = vpow.pop %v3452
    %v3454 = vmul.f32 %v2871, 1.442695
    %v3455 = vpow.pop %v3454
    %v3456 = vmul.f32 %v2872, 1.442695
    %v3457 = vpow.pop %v3456
    %v3458 = vmul.f32 %v2873, 1.442695
    %v3459 = vpow.pop %v3458
    %v3460 = vmul.f32 %v2874, 1.442695
    %v3461 = vpow.pop %v3460
    %v3462 = vmul.f32 %v2875, 1.442695
    %v3463 = vpow.pop %v3462
    %v3464 = vmul.f32 %v2876, 1.442695
    %v3465 = vpow.pop %v3464
    %v3466 = vmul.f32 %v2877, 1.442695
    %v3467 = vpow.pop %v3466
    %v3468 = vmul.f32 %v2878, 1.442695
    %v3469 = vpow.pop %v3468
    %v3470 = vmul.f32 %v2879, 1.442695
    %v3471 = vpow.pop %v3470
    %v3472 = vmul.f32 %v2880, 1.442695
    %v3473 = vpow.pop %v3472
    %v3474 = vmul.f32 %v2881, 1.442695
    %v3475 = vpow.pop %v3474
    %v3476 = vmul.f32 %v2882, 1.442695
    %v3477 = vpow.pop %v3476
    %v3478 = vmul.f32 %v2883, 1.442695
    %v3479 = vpow.pop %v3478
    %v3480 = vmul.f32 %v2884, 1.442695
    %v3481 = vpow.pop %v3480
    %v3482 = vmul.f32 %v2885, 1.442695
    %v3483 = vpow.pop %v3482
    %v3484 = vmul.f32 %v2886, 1.442695
    %v3485 = vpow.pop %v3484
    %v3486 = vmul.f32 %v2887, 1.442695
    %v3487 = vpow.pop %v3486
    %v3488 = vmul.f32 %v2888, 1.442695
    %v3489 = vpow.pop %v3488
    %v3490 = vmul.f32 %v2889, 1.442695
    %v3491 = vpow.pop %v3490
    %v3492 = vmul.f32 %v2890, 1.442695
    %v3493 = vpow.pop %v3492
    %v3494 = vmul.f32 %v2891, 1.442695
    %v3495 = vpow.pop %v3494
    %v3496 = vmul.f32 %v2892, 1.442695
    %v3497 = vpow.pop %v3496
    %v3498 = vmul.f32 %v2893, 1.442695
    %v3499 = vpow.pop %v3498
    %v3500 = vmul.f32 %v2894, 1.442695
    %v3501 = vpow.pop %v3500
    %v3502 = vmul.f32 %v2895, 1.442695
    %v3503 = vpow.pop %v3502
    %v3504 = vmul.f32 %v2896, 1.442695
    %v3505 = vpow.pop %v3504
    %v3506 = vmul.f32 %v2897, 1.442695
    %v3507 = vpow.pop %v3506
    %v3508 = vmul.f32 %v2898, 1.442695
    %v3509 = vpow.pop %v3508
    %v3510 = vmul.f32 %v2899, 1.442695
    %v3511 = vpow.pop %v3510
    %v3512 = vmul.f32 %v2900, 1.442695
    %v3513 = vpow.pop %v3512
    %v3514 = vmul.f32 %v2901, 1.442695
    %v3515 = vpow.pop %v3514
    %v3516 = vmul.f32 %v2902, 1.442695
    %v3517 = vpow.pop %v3516
    %v3518 = vmul.f32 %v2903, 1.442695
    %v3519 = vpow.pop %v3518
    %v3520 = vmul.f32 %v2904, 1.442695
    %v3521 = vpow.pop %v3520
    %v3522 = vmul.f32 %v2905, 1.442695
    %v3523 = vpow.pop %v3522
    %v3524 = vmul.f32 %v2906, 1.442695
    %v3525 = vpow.pop %v3524
    %v3526 = vmul.f32 %v2907, 1.442695
    %v3527 = vpow.pop %v3526
    %v3528 = vmul.f32 %v2908, 1.442695
    %v3529 = vpow.pop %v3528
    %v3530 = vmul.f32 %v2909, 1.442695
    %v3531 = vpow.pop %v3530
    %v3532 = vmul.f32 %v2910, 1.442695
    %v3533 = vpow.pop %v3532
    %v3534 = vmul.f32 %v2911, 1.442695
    %v3535 = vpow.pop %v3534
    %v3536 = vmul.f32 %v2912, 1.442695
    %v3537 = vpow.pop %v3536
    %v3538 = vmul.f32 %v2913, 1.442695
    %v3539 = vpow.pop %v3538
    %v3540 = vmul.f32 %v2914, 1.442695
    %v3541 = vpow.pop %v3540
    %v3542 = vmul.f32 %v2915, 1.442695
    %v3543 = vpow.pop %v3542
    %v3544 = vmul.f32 %v2916, 1.442695
    %v3545 = vpow.pop %v3544
    %v3546 = vmul.f32 %v2917, 1.442695
    %v3547 = vpow.pop %v3546
    %v3548 = vmul.f32 %v2918, 1.442695
    %v3549 = vpow.pop %v3548
    %v3550 = vmul.f32 %v2919, 1.442695
    %v3551 = vpow.pop %v3550
    %v3552 = vmul.f32 %v2920, 1.442695
    %v3553 = vpow.pop %v3552
    %v3554 = vmul.f32 %v2921, 1.442695
    %v3555 = vpow.pop %v3554
    %v3556 = vmul.f32 %v2922, 1.442695
    %v3557 = vpow.pop %v3556
    %v3558 = vmul.f32 %v2923, 1.442695
    %v3559 = vpow.pop %v3558
    %v3560 = vmul.f32 %v2924, 1.442695
    %v3561 = vpow.pop %v3560
    %v3562 = vmul.f32 %v2925, 1.442695
    %v3563 = vpow.pop %v3562
    %v3564 = vmul.f32 %v2926, 1.442695
    %v3565 = vpow.pop %v3564
    %v3566 = vmul.f32 %v2927, 1.442695
    %v3567 = vpow.pop %v3566
    %v3568 = vadd.f32 %v2929, 1.0
    %v3569 = vadd.f32 %v2931, 1.0
    %v3570 = vadd.f32 %v2933, 1.0
    %v3571 = vadd.f32 %v2935, 1.0
    %v3572 = vadd.f32 %v2937, 1.0
    %v3573 = vadd.f32 %v2939, 1.0
    %v3574 = vadd.f32 %v2941, 1.0
    %v3575 = vadd.f32 %v2943, 1.0
    %v3576 = vadd.f32 %v2945, 1.0
    %v3577 = vadd.f32 %v2947, 1.0
    %v3578 = vadd.f32 %v2949, 1.0
    %v3579 = vadd.f32 %v2951, 1.0
    %v3580 = vadd.f32 %v2953, 1.0
    %v3581 = vadd.f32 %v2955, 1.0
    %v3582 = vadd.f32 %v2957, 1.0
    %v3583 = vadd.f32 %v2959, 1.0
    %v3584 = vadd.f32 %v2961, 1.0
    %v3585 = vadd.f32 %v2963, 1.0
    %v3586 = vadd.f32 %v2965, 1.0
    %v3587 = vadd.f32 %v2967, 1.0
    %v3588 = vadd.f32 %v2969, 1.0
    %v3589 = vadd.f32 %v2971, 1.0
    %v3590 = vadd.f32 %v2973, 1.0
    %v3591 = vadd.f32 %v2975, 1.0
    %v3592 = vadd.f32 %v2977, 1.0
    %v3593 = vadd.f32 %v2979, 1.0
    %v3594 = vadd.f32 %v2981, 1.0
    %v3595 = vadd.f32 %v2983, 1.0
    %v3596 = vadd.f32 %v2985, 1.0
    %v3597 = vadd.f32 %v2987, 1.0
    %v3598 = vadd.f32 %v2989, 1.0
    %v3599 = vadd.f32 %v2991, 1.0
    %v3600 = vadd.f32 %v2993, 1.0
    %v3601 = vadd.f32 %v2995, 1.0
    %v3602 = vadd.f32 %v2997, 1.0
    %v3603 = vadd.f32 %v2999, 1.0
    %v3604 = vadd.f32 %v3001, 1.0
    %v3605 = vadd.f32 %v3003, 1.0
    %v3606 = vadd.f32 %v3005, 1.0
    %v3607 = vadd.f32 %v3007, 1.0
    %v3608 = vadd.f32 %v3009, 1.0
    %v3609 = vadd.f32 %v3011, 1.0
    %v3610 = vadd.f32 %v3013, 1.0
    %v3611 = vadd.f32 %v3015, 1.0
    %v3612 = vadd.f32 %v3017, 1.0
    %v3613 = vadd.f32 %v3019, 1.0
    %v3614 = vadd.f32 %v3021, 1.0
    %v3615 = vadd.f32 %v3023, 1.0
    %v3616 = vadd.f32 %v3025, 1.0
    %v3617 = vadd.f32 %v3027, 1.0
    %v3618 = vadd.f32 %v3029, 1.0
    %v3619 = vadd.f32 %v3031, 1.0
    %v3620 = vadd.f32 %v3033, 1.0
    %v3621 = vadd.f32 %v3035, 1.0
    %v3622 = vadd.f32 %v3037, 1.0
    %v3623 = vadd.f32 %v3039, 1.0
    %v3624 = vadd.f32 %v3041, 1.0
    %v3625 = vadd.f32 %v3043, 1.0
    %v3626 = vadd.f32 %v3045, 1.0
    %v3627 = vadd.f32 %v3047, 1.0
    %v3628 = vadd.f32 %v3049, 1.0
    %v3629 = vadd.f32 %v3051, 1.0
    %v3630 = vadd.f32 %v3053, 1.0
    %v3631 = vadd.f32 %v3055, 1.0
    %v3632 = vadd.f32 %v3057, 1.0
    %v3633 = vadd.f32 %v3059, 1.0
    %v3634 = vadd.f32 %v3061, 1.0
    %v3635 = vadd.f32 %v3063, 1.0
    %v3636 = vadd.f32 %v3065, 1.0
    %v3637 = vadd.f32 %v3067, 1.0
    %v3638 = vadd.f32 %v3069, 1.0
    %v3639 = vadd.f32 %v3071, 1.0
    %v3640 = vadd.f32 %v3073, 1.0
    %v3641 = vadd.f32 %v3075, 1.0
    %v3642 = vadd.f32 %v3077, 1.0
    %v3643 = vadd.f32 %v3079, 1.0
    %v3644 = vadd.f32 %v3081, 1.0
    %v3645 = vadd.f32 %v3083, 1.0
    %v3646 = vadd.f32 %v3085, 1.0
    %v3647 = vadd.f32 %v3087, 1.0
    %v3648 = vadd.f32 %v3089, 1.0
    %v3649 = vadd.f32 %v3091, 1.0
    %v3650 = vadd.f32 %v3093, 1.0
    %v3651 = vadd.f32 %v3095, 1.0
    %v3652 = vadd.f32 %v3097, 1.0
    %v3653 = vadd.f32 %v3099, 1.0
    %v3654 = vadd.f32 %v3101, 1.0
    %v3655 = vadd.f32 %v3103, 1.0
    %v3656 = vadd.f32 %v3105, 1.0
    %v3657 = vadd.f32 %v3107, 1.0
    %v3658 = vadd.f32 %v3109, 1.0
    %v3659 = vadd.f32 %v3111, 1.0
    %v3660 = vadd.f32 %v3113, 1.0
    %v3661 = vadd.f32 %v3115, 1.0
    %v3662 = vadd.f32 %v3117, 1.0
    %v3663 = vadd.f32 %v3119, 1.0
    %v3664 = vadd.f32 %v3121, 1.0
    %v3665 = vadd.f32 %v3123, 1.0
    %v3666 = vadd.f32 %v3125, 1.0
    %v3667 = vadd.f32 %v3127, 1.0
    %v3668 = vadd.f32 %v3129, 1.0
    %v3669 = vadd.f32 %v3131, 1.0
    %v3670 = vadd.f32 %v3133, 1.0
    %v3671 = vadd.f32 %v3135, 1.0
    %v3672 = vadd.f32 %v3137, 1.0
    %v3673 = vadd.f32 %v3139, 1.0
    %v3674 = vadd.f32 %v3141, 1.0
    %v3675 = vadd.f32 %v3143, 1.0
    %v3676 = vadd.f32 %v3145, 1.0
    %v3677 = vadd.f32 %v3147, 1.0
    %v3678 = vadd.f32 %v3149, 1.0
    %v3679 = vadd.f32 %v3151, 1.0
    %v3680 = vadd.f32 %v3153, 1.0
    %v3681 = vadd.f32 %v3155, 1.0
    %v3682 = vadd.f32 %v3157, 1.0
    %v3683 = vadd.f32 %v3159, 1.0
    %v3684 = vadd.f32 %v3161, 1.0
    %v3685 = vadd.f32 %v3163, 1.0
    %v3686 = vadd.f32 %v3165, 1.0
    %v3687 = vadd.f32 %v3167, 1.0
    %v3688 = vadd.f32 %v3169, 1.0
    %v3689 = vadd.f32 %v3171, 1.0
    %v3690 = vadd.f32 %v3173, 1.0
    %v3691 = vadd.f32 %v3175, 1.0
    %v3692 = vadd.f32 %v3177, 1.0
    %v3693 = vadd.f32 %v3179, 1.0
    %v3694 = vadd.f32 %v3181, 1.0
    %v3695 = vadd.f32 %v3183, 1.0
    %v3696 = vadd.f32 %v3185, 1.0
    %v3697 = vadd.f32 %v3187, 1.0
    %v3698 = vadd.f32 %v3189, 1.0
    %v3699 = vadd.f32 %v3191, 1.0
    %v3700 = vadd.f32 %v3193, 1.0
    %v3701 = vadd.f32 %v3195, 1.0
    %v3702 = vadd.f32 %v3197, 1.0
    %v3703 = vadd.f32 %v3199, 1.0
    %v3704 = vadd.f32 %v3201, 1.0
    %v3705 = vadd.f32 %v3203, 1.0
    %v3706 = vadd.f32 %v3205, 1.0
    %v3707 = vadd.f32 %v3207, 1.0
    %v3708 = vadd.f32 %v3209, 1.0
    %v3709 = vadd.f32 %v3211, 1.0
    %v3710 = vadd.f32 %v3213, 1.0
    %v3711 = vadd.f32 %v3215, 1.0
    %v3712 = vadd.f32 %v3217, 1.0
    %v3713 = vadd.f32 %v3219, 1.0
    %v3714 = vadd.f32 %v3221, 1.0
    %v3715 = vadd.f32 %v3223, 1.0
    %v3716 = vadd.f32 %v3225, 1.0
    %v3717 = vadd.f32 %v3227, 1.0
    %v3718 = vadd.f32 %v3229, 1.0
    %v3719 = vadd.f32 %v3231, 1.0
    %v3720 = vadd.f32 %v3233, 1.0
    %v3721 = vadd.f32 %v3235, 1.0
    %v3722 = vadd.f32 %v3237, 1.0
    %v3723 = vadd.f32 %v3239, 1.0
    %v3724 = vadd.f32 %v3241, 1.0
    %v3725 = vadd.f32 %v3243, 1.0
    %v3726 = vadd.f32 %v3245, 1.0
    %v3727 = vadd.f32 %v3247, 1.0
    %v3728 = vadd.f32 %v3249, 1.0
    %v3729 = vadd.f32 %v3251, 1.0
    %v3730 = vadd.f32 %v3253, 1.0
    %v3731 = vadd.f32 %v3255, 1.0
    %v3732 = vadd.f32 %v3257, 1.0
    %v3733 = vadd.f32 %v3259, 1.0
    %v3734 = vadd.f32 %v3261, 1.0
    %v3735 = vadd.f32 %v3263, 1.0
    %v3736 = vadd.f32 %v3265, 1.0
    %v3737 = vadd.f32 %v3267, 1.0
    %v3738 = vadd.f32 %v3269, 1.0
    %v3739 = vadd.f32 %v3271, 1.0
    %v3740 = vadd.f32 %v3273, 1.0
    %v3741 = vadd.f32 %v3275, 1.0
    %v3742 = vadd.f32 %v3277, 1.0
    %v3743 = vadd.f32 %v3279, 1.0
    %v3744 = vadd.f32 %v3281, 1.0
    %v3745 = vadd.f32 %v3283, 1.0
    %v3746 = vadd.f32 %v3285, 1.0
    %v3747 = vadd.f32 %v3287, 1.0
    %v3748 = vadd.f32 %v3289, 1.0
    %v3749 = vadd.f32 %v3291, 1.0
    %v3750 = vadd.f32 %v3293, 1.0
    %v3751 = vadd.f32 %v3295, 1.0
    %v3752 = vadd.f32 %v3297, 1.0
    %v3753 = vadd.f32 %v3299, 1.0
    %v3754 = vadd.f32 %v3301, 1.0
    %v3755 = vadd.f32 %v3303, 1.0
    %v3756 = vadd.f32 %v3305, 1.0
    %v3757 = vadd.f32 %v3307, 1.0
    %v3758 = vadd.f32 %v3309, 1.0
    %v3759 = vadd.f32 %v3311, 1.0
    %v3760 = vadd.f32 %v3313, 1.0
    %v3761 = vadd.f32 %v3315, 1.0
    %v3762 = vadd.f32 %v3317, 1.0
    %v3763 = vadd.f32 %v3319, 1.0
    %v3764 = vadd.f32 %v3321, 1.0
    %v3765 = vadd.f32 %v3323, 1.0
    %v3766 = vadd.f32 %v3325, 1.0
    %v3767 = vadd.f32 %v3327, 1.0
    %v3768 = vadd.f32 %v3329, 1.0
    %v3769 = vadd.f32 %v3331, 1.0
    %v3770 = vadd.f32 %v3333, 1.0
    %v3771 = vadd.f32 %v3335, 1.0
    %v3772 = vadd.f32 %v3337, 1.0
    %v3773 = vadd.f32 %v3339, 1.0
    %v3774 = vadd.f32 %v3341, 1.0
    %v3775 = vadd.f32 %v3343, 1.0
    %v3776 = vadd.f32 %v3345, 1.0
    %v3777 = vadd.f32 %v3347, 1.0
    %v3778 = vadd.f32 %v3349, 1.0
    %v3779 = vadd.f32 %v3351, 1.0
    %v3780 = vadd.f32 %v3353, 1.0
    %v3781 = vadd.f32 %v3355, 1.0
    %v3782 = vadd.f32 %v3357, 1.0
    %v3783 = vadd.f32 %v3359, 1.0
    %v3784 = vadd.f32 %v3361, 1.0
    %v3785 = vadd.f32 %v3363, 1.0
    %v3786 = vadd.f32 %v3365, 1.0
    %v3787 = vadd.f32 %v3367, 1.0
    %v3788 = vadd.f32 %v3369, 1.0
    %v3789 = vadd.f32 %v3371, 1.0
    %v3790 = vadd.f32 %v3373, 1.0
    %v3791 = vadd.f32 %v3375, 1.0
    %v3792 = vadd.f32 %v3377, 1.0
    %v3793 = vadd.f32 %v3379, 1.0
    %v3794 = vadd.f32 %v3381, 1.0
    %v3795 = vadd.f32 %v3383, 1.0
    %v3796 = vadd.f32 %v3385, 1.0
    %v3797 = vadd.f32 %v3387, 1.0
    %v3798 = vadd.f32 %v3389, 1.0
    %v3799 = vadd.f32 %v3391, 1.0
    %v3800 = vadd.f32 %v3393, 1.0
    %v3801 = vadd.f32 %v3395, 1.0
    %v3802 = vadd.f32 %v3397, 1.0
    %v3803 = vadd.f32 %v3399, 1.0
    %v3804 = vadd.f32 %v3401, 1.0
    %v3805 = vadd.f32 %v3403, 1.0
    %v3806 = vadd.f32 %v3405, 1.0
    %v3807 = vadd.f32 %v3407, 1.0
    %v3808 = vadd.f32 %v3409, 1.0
    %v3809 = vadd.f32 %v3411, 1.0
    %v3810 = vadd.f32 %v3413, 1.0
    %v3811 = vadd.f32 %v3415, 1.0
    %v3812 = vadd.f32 %v3417, 1.0
    %v3813 = vadd.f32 %v3419, 1.0
    %v3814 = vadd.f32 %v3421, 1.0
    %v3815 = vadd.f32 %v3423, 1.0
    %v3816 = vadd.f32 %v3425, 1.0
    %v3817 = vadd.f32 %v3427, 1.0
    %v3818 = vadd.f32 %v3429, 1.0
    %v3819 = vadd.f32 %v3431, 1.0
    %v3820 = vadd.f32 %v3433, 1.0
    %v3821 = vadd.f32 %v3435, 1.0
    %v3822 = vadd.f32 %v3437, 1.0
    %v3823 = vadd.f32 %v3439, 1.0
    %v3824 = vadd.f32 %v3441, 1.0
    %v3825 = vadd.f32 %v3443, 1.0
    %v3826 = vadd.f32 %v3445, 1.0
    %v3827 = vadd.f32 %v3447, 1.0
    %v3828 = vadd.f32 %v3449, 1.0
    %v3829 = vadd.f32 %v3451, 1.0
    %v3830 = vadd.f32 %v3453, 1.0
    %v3831 = vadd.f32 %v3455, 1.0
    %v3832 = vadd.f32 %v3457, 1.0
    %v3833 = vadd.f32 %v3459, 1.0
    %v3834 = vadd.f32 %v3461, 1.0
    %v3835 = vadd.f32 %v3463, 1.0
    %v3836 = vadd.f32 %v3465, 1.0
    %v3837 = vadd.f32 %v3467, 1.0
    %v3838 = vadd.f32 %v3469, 1.0
    %v3839 = vadd.f32 %v3471, 1.0
    %v3840 = vadd.f32 %v3473, 1.0
    %v3841 = vadd.f32 %v3475, 1.0
    %v3842 = vadd.f32 %v3477, 1.0
    %v3843 = vadd.f32 %v3479, 1.0
    %v3844 = vadd.f32 %v3481, 1.0
    %v3845 = vadd.f32 %v3483, 1.0
    %v3846 = vadd.f32 %v3485, 1.0
    %v3847 = vadd.f32 %v3487, 1.0
    %v3848 = vadd.f32 %v3489, 1.0
    %v3849 = vadd.f32 %v3491, 1.0
    %v3850 = vadd.f32 %v3493, 1.0
    %v3851 = vadd.f32 %v3495, 1.0
    %v3852 = vadd.f32 %v3497, 1.0
    %v3853 = vadd.f32 %v3499, 1.0
    %v3854 = vadd.f32 %v3501, 1.0
    %v3855 = vadd.f32 %v3503, 1.0
    %v3856 = vadd.f32 %v3505, 1.0
    %v3857 = vadd.f32 %v3507, 1.0
    %v3858 = vadd.f32 %v3509, 1.0
    %v3859 = vadd.f32 %v3511, 1.0
    %v3860 = vadd.f32 %v3513, 1.0
    %v3861 = vadd.f32 %v3515, 1.0
    %v3862 = vadd.f32 %v3517, 1.0
    %v3863 = vadd.f32 %v3519, 1.0
    %v3864 = vadd.f32 %v3521, 1.0
    %v3865 = vadd.f32 %v3523, 1.0
    %v3866 = vadd.f32 %v3525, 1.0
    %v3867 = vadd.f32 %v3527, 1.0
    %v3868 = vadd.f32 %v3529, 1.0
    %v3869 = vadd.f32 %v3531, 1.0
    %v3870 = vadd.f32 %v3533, 1.0
    %v3871 = vadd.f32 %v3535, 1.0
    %v3872 = vadd.f32 %v3537, 1.0
    %v3873 = vadd.f32 %v3539, 1.0
    %v3874 = vadd.f32 %v3541, 1.0
    %v3875 = vadd.f32 %v3543, 1.0
    %v3876 = vadd.f32 %v3545, 1.0
    %v3877 = vadd.f32 %v3547, 1.0
    %v3878 = vadd.f32 %v3549, 1.0
    %v3879 = vadd.f32 %v3551, 1.0
    %v3880 = vadd.f32 %v3553, 1.0
    %v3881 = vadd.f32 %v3555, 1.0
    %v3882 = vadd.f32 %v3557, 1.0
    %v3883 = vadd.f32 %v3559, 1.0
    %v3884 = vadd.f32 %v3561, 1.0
    %v3885 = vadd.f32 %v3563, 1.0
    %v3886 = vadd.f32 %v3565, 1.0
    %v3887 = vadd.f32 %v3567, 1.0
    %v3888 = vrcp.pop %v3568
    %v3889 = vmul.f32 1.0, %v3888
    %v3890 = vrcp.pop %v3569
    %v3891 = vmul.f32 1.0, %v3890
    %v3892 = vrcp.pop %v3570
    %v3893 = vmul.f32 1.0, %v3892
    %v3894 = vrcp.pop %v3571
    %v3895 = vmul.f32 1.0, %v3894
    %v3896 = vrcp.pop %v3572
    %v3897 = vmul.f32 1.0, %v3896
    %v3898 = vrcp.pop %v3573
    %v3899 = vmul.f32 1.0, %v3898
    %v3900 = vrcp.pop %v3574
    %v3901 = vmul.f32 1.0, %v3900
    %v3902 = vrcp.pop %v3575
    %v3903 = vmul.f32 1.0, %v3902
    %v3904 = vrcp.pop %v3576
    %v3905 = vmul.f32 1.0, %v3904
    %v3906 = vrcp.pop %v3577
    %v3907 = vmul.f32 1.0, %v3906
    %v3908 = vrcp.pop %v3578
    %v3909 = vmul.f32 1.0, %v3908
    %v3910 = vrcp.pop %v3579
    %v3911 = vmul.f32 1.0, %v3910
    %v3912 = vrcp.pop %v3580
    %v3913 = vmul.f32 1.0, %v3912
    %v3914 = vrcp.pop %v3581
    %v3915 = vmul.f32 1.0, %v3914
    %v3916 = vrcp.pop %v3582
    %v3917 = vmul.f32 1.0, %v3916
    %v3918 = vrcp.pop %v3583
    %v3919 = vmul.f32 1.0, %v3918
    %v3920 = vrcp.pop %v3584
    %v3921 = vmul.f32 1.0, %v3920
    %v3922 = vrcp.pop %v3585
    %v3923 = vmul.f32 1.0, %v3922
    %v3924 = vrcp.pop %v3586
    %v3925 = vmul.f32 1.0, %v3924
    %v3926 = vrcp.pop %v3587
    %v3927 = vmul.f32 1.0, %v3926
    %v3928 = vrcp.pop %v3588
    %v3929 = vmul.f32 1.0, %v3928
    %v3930 = vrcp.pop %v3589
    %v3931 = vmul.f32 1.0, %v3930
    %v3932 = vrcp.pop %v3590
    %v3933 = vmul.f32 1.0, %v3932
    %v3934 = vrcp.pop %v3591
    %v3935 = vmul.f32 1.0, %v3934
    %v3936 = vrcp.pop %v3592
    %v3937 = vmul.f32 1.0, %v3936
    %v3938 = vrcp.pop %v3593
    %v3939 = vmul.f32 1.0, %v3938
    %v3940 = vrcp.pop %v3594
    %v3941 = vmul.f32 1.0, %v3940
    %v3942 = vrcp.pop %v3595
    %v3943 = vmul.f32 1.0, %v3942
    %v3944 = vrcp.pop %v3596
    %v3945 = vmul.f32 1.0, %v3944
    %v3946 = vrcp.pop %v3597
    %v3947 = vmul.f32 1.0, %v3946
    %v3948 = vrcp.pop %v3598
    %v3949 = vmul.f32 1.0, %v3948
    %v3950 = vrcp.pop %v3599
    %v3951 = vmul.f32 1.0, %v3950
    %v3952 = vrcp.pop %v3600
    %v3953 = vmul.f32 1.0, %v3952
    %v3954 = vrcp.pop %v3601
    %v3955 = vmul.f32 1.0, %v3954
    %v3956 = vrcp.pop %v3602
    %v3957 = vmul.f32 1.0, %v3956
    %v3958 = vrcp.pop %v3603
    %v3959 = vmul.f32 1.0, %v3958
    %v3960 = vrcp.pop %v3604
    %v3961 = vmul.f32 1.0, %v3960
    %v3962 = vrcp.pop %v3605
    %v3963 = vmul.f32 1.0, %v3962
    %v3964 = vrcp.pop %v3606
    %v3965 = vmul.f32 1.0, %v3964
    %v3966 = vrcp.pop %v3607
    %v3967 = vmul.f32 1.0, %v3966
    %v3968 = vrcp.pop %v3608
    %v3969 = vmul.f32 1.0, %v3968
    %v3970 = vrcp.pop %v3609
    %v3971 = vmul.f32 1.0, %v3970
    %v3972 = vrcp.pop %v3610
    %v3973 = vmul.f32 1.0, %v3972
    %v3974 = vrcp.pop %v3611
    %v3975 = vmul.f32 1.0, %v3974
    %v3976 = vrcp.pop %v3612
    %v3977 = vmul.f32 1.0, %v3976
    %v3978 = vrcp.pop %v3613
    %v3979 = vmul.f32 1.0, %v3978
    %v3980 = vrcp.pop %v3614
    %v3981 = vmul.f32 1.0, %v3980
    %v3982 = vrcp.pop %v3615
    %v3983 = vmul.f32 1.0, %v3982
    %v3984 = vrcp.pop %v3616
    %v3985 = vmul.f32 1.0, %v3984
    %v3986 = vrcp.pop %v3617
    %v3987 = vmul.f32 1.0, %v3986
    %v3988 = vrcp.pop %v3618
    %v3989 = vmul.f32 1.0, %v3988
    %v3990 = vrcp.pop %v3619
    %v3991 = vmul.f32 1.0, %v3990
    %v3992 = vrcp.pop %v3620
    %v3993 = vmul.f32 1.0, %v3992
    %v3994 = vrcp.pop %v3621
    %v3995 = vmul.f32 1.0, %v3994
    %v3996 = vrcp.pop %v3622
    %v3997 = vmul.f32 1.0, %v3996
    %v3998 = vrcp.pop %v3623
    %v3999 = vmul.f32 1.0, %v3998
    %v4000 = vrcp.pop %v3624
    %v4001 = vmul.f32 1.0, %v4000
    %v4002 = vrcp.pop %v3625
    %v4003 = vmul.f32 1.0, %v4002
    %v4004 = vrcp.pop %v3626
    %v4005 = vmul.f32 1.0, %v4004
    %v4006 = vrcp.pop %v3627
    %v4007 = vmul.f32 1.0, %v4006
    %v4008 = vrcp.pop %v3628
    %v4009 = vmul.f32 1.0, %v4008
    %v4010 = vrcp.pop %v3629
    %v4011 = vmul.f32 1.0, %v4010
    %v4012 = vrcp.pop %v3630
    %v4013 = vmul.f32 1.0, %v4012
    %v4014 = vrcp.pop %v3631
    %v4015 = vmul.f32 1.0, %v4014
    %v4016 = vrcp.pop %v3632
    %v4017 = vmul.f32 1.0, %v4016
    %v4018 = vrcp.pop %v3633
    %v4019 = vmul.f32 1.0, %v4018
    %v4020 = vrcp.pop %v3634
    %v4021 = vmul.f32 1.0, %v4020
    %v4022 = vrcp.pop %v3635
    %v4023 = vmul.f32 1.0, %v4022
    %v4024 = vrcp.pop %v3636
    %v4025 = vmul.f32 1.0, %v4024
    %v4026 = vrcp.pop %v3637
    %v4027 = vmul.f32 1.0, %v4026
    %v4028 = vrcp.pop %v3638
    %v4029 = vmul.f32 1.0, %v4028
    %v4030 = vrcp.pop %v3639
    %v4031 = vmul.f32 1.0, %v4030
    %v4032 = vrcp.pop %v3640
    %v4033 = vmul.f32 1.0, %v4032
    %v4034 = vrcp.pop %v3641
    %v4035 = vmul.f32 1.0, %v4034
    %v4036 = vrcp.pop %v3642
    %v4037 = vmul.f32 1.0, %v4036
    %v4038 = vrcp.pop %v3643
    %v4039 = vmul.f32 1.0, %v4038
    %v4040 = vrcp.pop %v3644
    %v4041 = vmul.f32 1.0, %v4040
    %v4042 = vrcp.pop %v3645
    %v4043 = vmul.f32 1.0, %v4042
    %v4044 = vrcp.pop %v3646
    %v4045 = vmul.f32 1.0, %v4044
    %v4046 = vrcp.pop %v3647
    %v4047 = vmul.f32 1.0, %v4046
    %v4048 = vrcp.pop %v3648
    %v4049 = vmul.f32 1.0, %v4048
    %v4050 = vrcp.pop %v3649
    %v4051 = vmul.f32 1.0, %v4050
    %v4052 = vrcp.pop %v3650
    %v4053 = vmul.f32 1.0, %v4052
    %v4054 = vrcp.pop %v3651
    %v4055 = vmul.f32 1.0, %v4054
    %v4056 = vrcp.pop %v3652
    %v4057 = vmul.f32 1.0, %v4056
    %v4058 = vrcp.pop %v3653
    %v4059 = vmul.f32 1.0, %v4058
    %v4060 = vrcp.pop %v3654
    %v4061 = vmul.f32 1.0, %v4060
    %v4062 = vrcp.pop %v3655
    %v4063 = vmul.f32 1.0, %v4062
    %v4064 = vrcp.pop %v3656
    %v4065 = vmul.f32 1.0, %v4064
    %v4066 = vrcp.pop %v3657
    %v4067 = vmul.f32 1.0, %v4066
    %v4068 = vrcp.pop %v3658
    %v4069 = vmul.f32 1.0, %v4068
    %v4070 = vrcp.pop %v3659
    %v4071 = vmul.f32 1.0, %v4070
    %v4072 = vrcp.pop %v3660
    %v4073 = vmul.f32 1.0, %v4072
    %v4074 = vrcp.pop %v3661
    %v4075 = vmul.f32 1.0, %v4074
    %v4076 = vrcp.pop %v3662
    %v4077 = vmul.f32 1.0, %v4076
    %v4078 = vrcp.pop %v3663
    %v4079 = vmul.f32 1.0, %v4078
    %v4080 = vrcp.pop %v3664
    %v4081 = vmul.f32 1.0, %v4080
    %v4082 = vrcp.pop %v3665
    %v4083 = vmul.f32 1.0, %v4082
    %v4084 = vrcp.pop %v3666
    %v4085 = vmul.f32 1.0, %v4084
    %v4086 = vrcp.pop %v3667
    %v4087 = vmul.f32 1.0, %v4086
    %v4088 = vrcp.pop %v3668
    %v4089 = vmul.f32 1.0, %v4088
    %v4090 = vrcp.pop %v3669
    %v4091 = vmul.f32 1.0, %v4090
    %v4092 = vrcp.pop %v3670
    %v4093 = vmul.f32 1.0, %v4092
    %v4094 = vrcp.pop %v3671
    %v4095 = vmul.f32 1.0, %v4094
    %v4096 = vrcp.pop %v3672
    %v4097 = vmul.f32 1.0, %v4096
    %v4098 = vrcp.pop %v3673
    %v4099 = vmul.f32 1.0, %v4098
    %v4100 = vrcp.pop %v3674
    %v4101 = vmul.f32 1.0, %v4100
    %v4102 = vrcp.pop %v3675
    %v4103 = vmul.f32 1.0, %v4102
    %v4104 = vrcp.pop %v3676
    %v4105 = vmul.f32 1.0, %v4104
    %v4106 = vrcp.pop %v3677
    %v4107 = vmul.f32 1.0, %v4106
    %v4108 = vrcp.pop %v3678
    %v4109 = vmul.f32 1.0, %v4108
    %v4110 = vrcp.pop %v3679
    %v4111 = vmul.f32 1.0, %v4110
    %v4112 = vrcp.pop %v3680
    %v4113 = vmul.f32 1.0, %v4112
    %v4114 = vrcp.pop %v3681
    %v4115 = vmul.f32 1.0, %v4114
    %v4116 = vrcp.pop %v3682
    %v4117 = vmul.f32 1.0, %v4116
    %v4118 = vrcp.pop %v3683
    %v4119 = vmul.f32 1.0, %v4118
    %v4120 = vrcp.pop %v3684
    %v4121 = vmul.f32 1.0, %v4120
    %v4122 = vrcp.pop %v3685
    %v4123 = vmul.f32 1.0, %v4122
    %v4124 = vrcp.pop %v3686
    %v4125 = vmul.f32 1.0, %v4124
    %v4126 = vrcp.pop %v3687
    %v4127 = vmul.f32 1.0, %v4126
    %v4128 = vrcp.pop %v3688
    %v4129 = vmul.f32 1.0, %v4128
    %v4130 = vrcp.pop %v3689
    %v4131 = vmul.f32 1.0, %v4130
    %v4132 = vrcp.pop %v3690
    %v4133 = vmul.f32 1.0, %v4132
    %v4134 = vrcp.pop %v3691
    %v4135 = vmul.f32 1.0, %v4134
    %v4136 = vrcp.pop %v3692
    %v4137 = vmul.f32 1.0, %v4136
    %v4138 = vrcp.pop %v3693
    %v4139 = vmul.f32 1.0, %v4138
    %v4140 = vrcp.pop %v3694
    %v4141 = vmul.f32 1.0, %v4140
    %v4142 = vrcp.pop %v3695
    %v4143 = vmul.f32 1.0, %v4142
    %v4144 = vrcp.pop %v3696
    %v4145 = vmul.f32 1.0, %v4144
    %v4146 = vrcp.pop %v3697
    %v4147 = vmul.f32 1.0, %v4146
    %v4148 = vrcp.pop %v3698
    %v4149 = vmul.f32 1.0, %v4148
    %v4150 = vrcp.pop %v3699
    %v4151 = vmul.f32 1.0, %v4150
    %v4152 = vrcp.pop %v3700
    %v4153 = vmul.f32 1.0, %v4152
    %v4154 = vrcp.pop %v3701
    %v4155 = vmul.f32 1.0, %v4154
    %v4156 = vrcp.pop %v3702
    %v4157 = vmul.f32 1.0, %v4156
    %v4158 = vrcp.pop %v3703
    %v4159 = vmul.f32 1.0, %v4158
    %v4160 = vrcp.pop %v3704
    %v4161 = vmul.f32 1.0, %v4160
    %v4162 = vrcp.pop %v3705
    %v4163 = vmul.f32 1.0, %v4162
    %v4164 = vrcp.pop %v3706
    %v4165 = vmul.f32 1.0, %v4164
    %v4166 = vrcp.pop %v3707
    %v4167 = vmul.f32 1.0, %v4166
    %v4168 = vrcp.pop %v3708
    %v4169 = vmul.f32 1.0, %v4168
    %v4170 = vrcp.pop %v3709
    %v4171 = vmul.f32 1.0, %v4170
    %v4172 = vrcp.pop %v3710
    %v4173 = vmul.f32 1.0, %v4172
    %v4174 = vrcp.pop %v3711
    %v4175 = vmul.f32 1.0, %v4174
    %v4176 = vrcp.pop %v3712
    %v4177 = vmul.f32 1.0, %v4176
    %v4178 = vrcp.pop %v3713
    %v4179 = vmul.f32 1.0, %v4178
    %v4180 = vrcp.pop %v3714
    %v4181 = vmul.f32 1.0, %v4180
    %v4182 = vrcp.pop %v3715
    %v4183 = vmul.f32 1.0, %v4182
    %v4184 = vrcp.pop %v3716
    %v4185 = vmul.f32 1.0, %v4184
    %v4186 = vrcp.pop %v3717
    %v4187 = vmul.f32 1.0, %v4186
    %v4188 = vrcp.pop %v3718
    %v4189 = vmul.f32 1.0, %v4188
    %v4190 = vrcp.pop %v3719
    %v4191 = vmul.f32 1.0, %v4190
    %v4192 = vrcp.pop %v3720
    %v4193 = vmul.f32 1.0, %v4192
    %v4194 = vrcp.pop %v3721
    %v4195 = vmul.f32 1.0, %v4194
    %v4196 = vrcp.pop %v3722
    %v4197 = vmul.f32 1.0, %v4196
    %v4198 = vrcp.pop %v3723
    %v4199 = vmul.f32 1.0, %v4198
    %v4200 = vrcp.pop %v3724
    %v4201 = vmul.f32 1.0, %v4200
    %v4202 = vrcp.pop %v3725
    %v4203 = vmul.f32 1.0, %v4202
    %v4204 = vrcp.pop %v3726
    %v4205 = vmul.f32 1.0, %v4204
    %v4206 = vrcp.pop %v3727
    %v4207 = vmul.f32 1.0, %v4206
    %v4208 = vrcp.pop %v3728
    %v4209 = vmul.f32 1.0, %v4208
    %v4210 = vrcp.pop %v3729
    %v4211 = vmul.f32 1.0, %v4210
    %v4212 = vrcp.pop %v3730
    %v4213 = vmul.f32 1.0, %v4212
    %v4214 = vrcp.pop %v3731
    %v4215 = vmul.f32 1.0, %v4214
    %v4216 = vrcp.pop %v3732
    %v4217 = vmul.f32 1.0, %v4216
    %v4218 = vrcp.pop %v3733
    %v4219 = vmul.f32 1.0, %v4218
    %v4220 = vrcp.pop %v3734
    %v4221 = vmul.f32 1.0, %v4220
    %v4222 = vrcp.pop %v3735
    %v4223 = vmul.f32 1.0, %v4222
    %v4224 = vrcp.pop %v3736
    %v4225 = vmul.f32 1.0, %v4224
    %v4226 = vrcp.pop %v3737
    %v4227 = vmul.f32 1.0, %v4226
    %v4228 = vrcp.pop %v3738
    %v4229 = vmul.f32 1.0, %v4228
    %v4230 = vrcp.pop %v3739
    %v4231 = vmul.f32 1.0, %v4230
    %v4232 = vrcp.pop %v3740
    %v4233 = vmul.f32 1.0, %v4232
    %v4234 = vrcp.pop %v3741
    %v4235 = vmul.f32 1.0, %v4234
    %v4236 = vrcp.pop %v3742
    %v4237 = vmul.f32 1.0, %v4236
    %v4238 = vrcp.pop %v3743
    %v4239 = vmul.f32 1.0, %v4238
    %v4240 = vrcp.pop %v3744
    %v4241 = vmul.f32 1.0, %v4240
    %v4242 = vrcp.pop %v3745
    %v4243 = vmul.f32 1.0, %v4242
    %v4244 = vrcp.pop %v3746
    %v4245 = vmul.f32 1.0, %v4244
    %v4246 = vrcp.pop %v3747
    %v4247 = vmul.f32 1.0, %v4246
    %v4248 = vrcp.pop %v3748
    %v4249 = vmul.f32 1.0, %v4248
    %v4250 = vrcp.pop %v3749
    %v4251 = vmul.f32 1.0, %v4250
    %v4252 = vrcp.pop %v3750
    %v4253 = vmul.f32 1.0, %v4252
    %v4254 = vrcp.pop %v3751
    %v4255 = vmul.f32 1.0, %v4254
    %v4256 = vrcp.pop %v3752
    %v4257 = vmul.f32 1.0, %v4256
    %v4258 = vrcp.pop %v3753
    %v4259 = vmul.f32 1.0, %v4258
    %v4260 = vrcp.pop %v3754
    %v4261 = vmul.f32 1.0, %v4260
    %v4262 = vrcp.pop %v3755
    %v4263 = vmul.f32 1.0, %v4262
    %v4264 = vrcp.pop %v3756
    %v4265 = vmul.f32 1.0, %v4264
    %v4266 = vrcp.pop %v3757
    %v4267 = vmul.f32 1.0, %v4266
    %v4268 = vrcp.pop %v3758
    %v4269 = vmul.f32 1.0, %v4268
    %v4270 = vrcp.pop %v3759
    %v4271 = vmul.f32 1.0, %v4270
    %v4272 = vrcp.pop %v3760
    %v4273 = vmul.f32 1.0, %v4272
    %v4274 = vrcp.pop %v3761
    %v4275 = vmul.f32 1.0, %v4274
    %v4276 = vrcp.pop %v3762
    %v4277 = vmul.f32 1.0, %v4276
    %v4278 = vrcp.pop %v3763
    %v4279 = vmul.f32 1.0, %v4278
    %v4280 = vrcp.pop %v3764
    %v4281 = vmul.f32 1.0, %v4280
    %v4282 = vrcp.pop %v3765
    %v4283 = vmul.f32 1.0, %v4282
    %v4284 = vrcp.pop %v3766
    %v4285 = vmul.f32 1.0, %v4284
    %v4286 = vrcp.pop %v3767
    %v4287 = vmul.f32 1.0, %v4286
    %v4288 = vrcp.pop %v3768
    %v4289 = vmul.f32 1.0, %v4288
    %v4290 = vrcp.pop %v3769
    %v4291 = vmul.f32 1.0, %v4290
    %v4292 = vrcp.pop %v3770
    %v4293 = vmul.f32 1.0, %v4292
    %v4294 = vrcp.pop %v3771
    %v4295 = vmul.f32 1.0, %v4294
    %v4296 = vrcp.pop %v3772
    %v4297 = vmul.f32 1.0, %v4296
    %v4298 = vrcp.pop %v3773
    %v4299 = vmul.f32 1.0, %v4298
    %v4300 = vrcp.pop %v3774
    %v4301 = vmul.f32 1.0, %v4300
    %v4302 = vrcp.pop %v3775
    %v4303 = vmul.f32 1.0, %v4302
    %v4304 = vrcp.pop %v3776
    %v4305 = vmul.f32 1.0, %v4304
    %v4306 = vrcp.pop %v3777
    %v4307 = vmul.f32 1.0, %v4306
    %v4308 = vrcp.pop %v3778
    %v4309 = vmul.f32 1.0, %v4308
    %v4310 = vrcp.pop %v3779
    %v4311 = vmul.f32 1.0, %v4310
    %v4312 = vrcp.pop %v3780
    %v4313 = vmul.f32 1.0, %v4312
    %v4314 = vrcp.pop %v3781
    %v4315 = vmul.f32 1.0, %v4314
    %v4316 = vrcp.pop %v3782
    %v4317 = vmul.f32 1.0, %v4316
    %v4318 = vrcp.pop %v3783
    %v4319 = vmul.f32 1.0, %v4318
    %v4320 = vrcp.pop %v3784
    %v4321 = vmul.f32 1.0, %v4320
    %v4322 = vrcp.pop %v3785
    %v4323 = vmul.f32 1.0, %v4322
    %v4324 = vrcp.pop %v3786
    %v4325 = vmul.f32 1.0, %v4324
    %v4326 = vrcp.pop %v3787
    %v4327 = vmul.f32 1.0, %v4326
    %v4328 = vrcp.pop %v3788
    %v4329 = vmul.f32 1.0, %v4328
    %v4330 = vrcp.pop %v3789
    %v4331 = vmul.f32 1.0, %v4330
    %v4332 = vrcp.pop %v3790
    %v4333 = vmul.f32 1.0, %v4332
    %v4334 = vrcp.pop %v3791
    %v4335 = vmul.f32 1.0, %v4334
    %v4336 = vrcp.pop %v3792
    %v4337 = vmul.f32 1.0, %v4336
    %v4338 = vrcp.pop %v3793
    %v4339 = vmul.f32 1.0, %v4338
    %v4340 = vrcp.pop %v3794
    %v4341 = vmul.f32 1.0, %v4340
    %v4342 = vrcp.pop %v3795
    %v4343 = vmul.f32 1.0, %v4342
    %v4344 = vrcp.pop %v3796
    %v4345 = vmul.f32 1.0, %v4344
    %v4346 = vrcp.pop %v3797
    %v4347 = vmul.f32 1.0, %v4346
    %v4348 = vrcp.pop %v3798
    %v4349 = vmul.f32 1.0, %v4348
    %v4350 = vrcp.pop %v3799
    %v4351 = vmul.f32 1.0, %v4350
    %v4352 = vrcp.pop %v3800
    %v4353 = vmul.f32 1.0, %v4352
    %v4354 = vrcp.pop %v3801
    %v4355 = vmul.f32 1.0, %v4354
    %v4356 = vrcp.pop %v3802
    %v4357 = vmul.f32 1.0, %v4356
    %v4358 = vrcp.pop %v3803
    %v4359 = vmul.f32 1.0, %v4358
    %v4360 = vrcp.pop %v3804
    %v4361 = vmul.f32 1.0, %v4360
    %v4362 = vrcp.pop %v3805
    %v4363 = vmul.f32 1.0, %v4362
    %v4364 = vrcp.pop %v3806
    %v4365 = vmul.f32 1.0, %v4364
    %v4366 = vrcp.pop %v3807
    %v4367 = vmul.f32 1.0, %v4366
    %v4368 = vrcp.pop %v3808
    %v4369 = vmul.f32 1.0, %v4368
    %v4370 = vrcp.pop %v3809
    %v4371 = vmul.f32 1.0, %v4370
    %v4372 = vrcp.pop %v3810
    %v4373 = vmul.f32 1.0, %v4372
    %v4374 = vrcp.pop %v3811
    %v4375 = vmul.f32 1.0, %v4374
    %v4376 = vrcp.pop %v3812
    %v4377 = vmul.f32 1.0, %v4376
    %v4378 = vrcp.pop %v3813
    %v4379 = vmul.f32 1.0, %v4378
    %v4380 = vrcp.pop %v3814
    %v4381 = vmul.f32 1.0, %v4380
    %v4382 = vrcp.pop %v3815
    %v4383 = vmul.f32 1.0, %v4382
    %v4384 = vrcp.pop %v3816
    %v4385 = vmul.f32 1.0, %v4384
    %v4386 = vrcp.pop %v3817
    %v4387 = vmul.f32 1.0, %v4386
    %v4388 = vrcp.pop %v3818
    %v4389 = vmul.f32 1.0, %v4388
    %v4390 = vrcp.pop %v3819
    %v4391 = vmul.f32 1.0, %v4390
    %v4392 = vrcp.pop %v3820
    %v4393 = vmul.f32 1.0, %v4392
    %v4394 = vrcp.pop %v3821
    %v4395 = vmul.f32 1.0, %v4394
    %v4396 = vrcp.pop %v3822
    %v4397 = vmul.f32 1.0, %v4396
    %v4398 = vrcp.pop %v3823
    %v4399 = vmul.f32 1.0, %v4398
    %v4400 = vrcp.pop %v3824
    %v4401 = vmul.f32 1.0, %v4400
    %v4402 = vrcp.pop %v3825
    %v4403 = vmul.f32 1.0, %v4402
    %v4404 = vrcp.pop %v3826
    %v4405 = vmul.f32 1.0, %v4404
    %v4406 = vrcp.pop %v3827
    %v4407 = vmul.f32 1.0, %v4406
    %v4408 = vrcp.pop %v3828
    %v4409 = vmul.f32 1.0, %v4408
    %v4410 = vrcp.pop %v3829
    %v4411 = vmul.f32 1.0, %v4410
    %v4412 = vrcp.pop %v3830
    %v4413 = vmul.f32 1.0, %v4412
    %v4414 = vrcp.pop %v3831
    %v4415 = vmul.f32 1.0, %v4414
    %v4416 = vrcp.pop %v3832
    %v4417 = vmul.f32 1.0, %v4416
    %v4418 = vrcp.pop %v3833
    %v4419 = vmul.f32 1.0, %v4418
    %v4420 = vrcp.pop %v3834
    %v4421 = vmul.f32 1.0, %v4420
    %v4422 = vrcp.pop %v3835
    %v4423 = vmul.f32 1.0, %v4422
    %v4424 = vrcp.pop %v3836
    %v4425 = vmul.f32 1.0, %v4424
    %v4426 = vrcp.pop %v3837
    %v4427 = vmul.f32 1.0, %v4426
    %v4428 = vrcp.pop %v3838
    %v4429 = vmul.f32 1.0, %v4428
    %v4430 = vrcp.pop %v3839
    %v4431 = vmul.f32 1.0, %v4430
    %v4432 = vrcp.pop %v3840
    %v4433 = vmul.f32 1.0, %v4432
    %v4434 = vrcp.pop %v3841
    %v4435 = vmul.f32 1.0, %v4434
    %v4436 = vrcp.pop %v3842
    %v4437 = vmul.f32 1.0, %v4436
    %v4438 = vrcp.pop %v3843
    %v4439 = vmul.f32 1.0, %v4438
    %v4440 = vrcp.pop %v3844
    %v4441 = vmul.f32 1.0, %v4440
    %v4442 = vrcp.pop %v3845
    %v4443 = vmul.f32 1.0, %v4442
    %v4444 = vrcp.pop %v3846
    %v4445 = vmul.f32 1.0, %v4444
    %v4446 = vrcp.pop %v3847
    %v4447 = vmul.f32 1.0, %v4446
    %v4448 = vrcp.pop %v3848
    %v4449 = vmul.f32 1.0, %v4448
    %v4450 = vrcp.pop %v3849
    %v4451 = vmul.f32 1.0, %v4450
    %v4452 = vrcp.pop %v3850
    %v4453 = vmul.f32 1.0, %v4452
    %v4454 = vrcp.pop %v3851
    %v4455 = vmul.f32 1.0, %v4454
    %v4456 = vrcp.pop %v3852
    %v4457 = vmul.f32 1.0, %v4456
    %v4458 = vrcp.pop %v3853
    %v4459 = vmul.f32 1.0, %v4458
    %v4460 = vrcp.pop %v3854
    %v4461 = vmul.f32 1.0, %v4460
    %v4462 = vrcp.pop %v3855
    %v4463 = vmul.f32 1.0, %v4462
    %v4464 = vrcp.pop %v3856
    %v4465 = vmul.f32 1.0, %v4464
    %v4466 = vrcp.pop %v3857
    %v4467 = vmul.f32 1.0, %v4466
    %v4468 = vrcp.pop %v3858
    %v4469 = vmul.f32 1.0, %v4468
    %v4470 = vrcp.pop %v3859
    %v4471 = vmul.f32 1.0, %v4470
    %v4472 = vrcp.pop %v3860
    %v4473 = vmul.f32 1.0, %v4472
    %v4474 = vrcp.pop %v3861
    %v4475 = vmul.f32 1.0, %v4474
    %v4476 = vrcp.pop %v3862
    %v4477 = vmul.f32 1.0, %v4476
    %v4478 = vrcp.pop %v3863
    %v4479 = vmul.f32 1.0, %v4478
    %v4480 = vrcp.pop %v3864
    %v4481 = vmul.f32 1.0, %v4480
    %v4482 = vrcp.pop %v3865
    %v4483 = vmul.f32 1.0, %v4482
    %v4484 = vrcp.pop %v3866
    %v4485 = vmul.f32 1.0, %v4484
    %v4486 = vrcp.pop %v3867
    %v4487 = vmul.f32 1.0, %v4486
    %v4488 = vrcp.pop %v3868
    %v4489 = vmul.f32 1.0, %v4488
    %v4490 = vrcp.pop %v3869
    %v4491 = vmul.f32 1.0, %v4490
    %v4492 = vrcp.pop %v3870
    %v4493 = vmul.f32 1.0, %v4492
    %v4494 = vrcp.pop %v3871
    %v4495 = vmul.f32 1.0, %v4494
    %v4496 = vrcp.pop %v3872
    %v4497 = vmul.f32 1.0, %v4496
    %v4498 = vrcp.pop %v3873
    %v4499 = vmul.f32 1.0, %v4498
    %v4500 = vrcp.pop %v3874
    %v4501 = vmul.f32 1.0, %v4500
    %v4502 = vrcp.pop %v3875
    %v4503 = vmul.f32 1.0, %v4502
    %v4504 = vrcp.pop %v3876
    %v4505 = vmul.f32 1.0, %v4504
    %v4506 = vrcp.pop %v3877
    %v4507 = vmul.f32 1.0, %v4506
    %v4508 = vrcp.pop %v3878
    %v4509 = vmul.f32 1.0, %v4508
    %v4510 = vrcp.pop %v3879
    %v4511 = vmul.f32 1.0, %v4510
    %v4512 = vrcp.pop %v3880
    %v4513 = vmul.f32 1.0, %v4512
    %v4514 = vrcp.pop %v3881
    %v4515 = vmul.f32 1.0, %v4514
    %v4516 = vrcp.pop %v3882
    %v4517 = vmul.f32 1.0, %v4516
    %v4518 = vrcp.pop %v3883
    %v4519 = vmul.f32 1.0, %v4518
    %v4520 = vrcp.pop %v3884
    %v4521 = vmul.f32 1.0, %v4520
    %v4522 = vrcp.pop %v3885
    %v4523 = vmul.f32 1.0, %v4522
    %v4524 = vrcp.pop %v3886
    %v4525 = vmul.f32 1.0, %v4524
    %v4526 = vrcp.pop %v3887
    %v4527 = vmul.f32 1.0, %v4526
    %v4528 = vmul.f32 %v2288, %v3889
    %v4529 = vmul.f32 %v2289, %v3891
    %v4530 = vmul.f32 %v2290, %v3893
    %v4531 = vmul.f32 %v2291, %v3895
    %v4532 = vmul.f32 %v2292, %v3897
    %v4533 = vmul.f32 %v2293, %v3899
    %v4534 = vmul.f32 %v2294, %v3901
    %v4535 = vmul.f32 %v2295, %v3903
    %v4536 = vmul.f32 %v2296, %v3905
    %v4537 = vmul.f32 %v2297, %v3907
    %v4538 = vmul.f32 %v2298, %v3909
    %v4539 = vmul.f32 %v2299, %v3911
    %v4540 = vmul.f32 %v2300, %v3913
    %v4541 = vmul.f32 %v2301, %v3915
    %v4542 = vmul.f32 %v2302, %v3917
    %v4543 = vmul.f32 %v2303, %v3919
    %v4544 = vmul.f32 %v2304, %v3921
    %v4545 = vmul.f32 %v2305, %v3923
    %v4546 = vmul.f32 %v2306, %v3925
    %v4547 = vmul.f32 %v2307, %v3927
    %v4548 = vmul.f32 %v2308, %v3929
    %v4549 = vmul.f32 %v2309, %v3931
    %v4550 = vmul.f32 %v2310, %v3933
    %v4551 = vmul.f32 %v2311, %v3935
    %v4552 = vmul.f32 %v2312, %v3937
    %v4553 = vmul.f32 %v2313, %v3939
    %v4554 = vmul.f32 %v2314, %v3941
    %v4555 = vmul.f32 %v2315, %v3943
    %v4556 = vmul.f32 %v2316, %v3945
    %v4557 = vmul.f32 %v2317, %v3947
    %v4558 = vmul.f32 %v2318, %v3949
    %v4559 = vmul.f32 %v2319, %v3951
    %v4560 = vmul.f32 %v2320, %v3953
    %v4561 = vmul.f32 %v2321, %v3955
    %v4562 = vmul.f32 %v2322, %v3957
    %v4563 = vmul.f32 %v2323, %v3959
    %v4564 = vmul.f32 %v2324, %v3961
    %v4565 = vmul.f32 %v2325, %v3963
    %v4566 = vmul.f32 %v2326, %v3965
    %v4567 = vmul.f32 %v2327, %v3967
    %v4568 = vmul.f32 %v2328, %v3969
    %v4569 = vmul.f32 %v2329, %v3971
    %v4570 = vmul.f32 %v2330, %v3973
    %v4571 = vmul.f32 %v2331, %v3975
    %v4572 = vmul.f32 %v2332, %v3977
    %v4573 = vmul.f32 %v2333, %v3979
    %v4574 = vmul.f32 %v2334, %v3981
    %v4575 = vmul.f32 %v2335, %v3983
    %v4576 = vmul.f32 %v2336, %v3985
    %v4577 = vmul.f32 %v2337, %v3987
    %v4578 = vmul.f32 %v2338, %v3989
    %v4579 = vmul.f32 %v2339, %v3991
    %v4580 = vmul.f32 %v2340, %v3993
    %v4581 = vmul.f32 %v2341, %v3995
    %v4582 = vmul.f32 %v2342, %v3997
    %v4583 = vmul.f32 %v2343, %v3999
    %v4584 = vmul.f32 %v2344, %v4001
    %v4585 = vmul.f32 %v2345, %v4003
    %v4586 = vmul.f32 %v2346, %v4005
    %v4587 = vmul.f32 %v2347, %v4007
    %v4588 = vmul.f32 %v2348, %v4009
    %v4589 = vmul.f32 %v2349, %v4011
    %v4590 = vmul.f32 %v2350, %v4013
    %v4591 = vmul.f32 %v2351, %v4015
    %v4592 = vmul.f32 %v2352, %v4017
    %v4593 = vmul.f32 %v2353, %v4019
    %v4594 = vmul.f32 %v2354, %v4021
    %v4595 = vmul.f32 %v2355, %v4023
    %v4596 = vmul.f32 %v2356, %v4025
    %v4597 = vmul.f32 %v2357, %v4027
    %v4598 = vmul.f32 %v2358, %v4029
    %v4599 = vmul.f32 %v2359, %v4031
    %v4600 = vmul.f32 %v2360, %v4033
    %v4601 = vmul.f32 %v2361, %v4035
    %v4602 = vmul.f32 %v2362, %v4037
    %v4603 = vmul.f32 %v2363, %v4039
    %v4604 = vmul.f32 %v2364, %v4041
    %v4605 = vmul.f32 %v2365, %v4043
    %v4606 = vmul.f32 %v2366, %v4045
    %v4607 = vmul.f32 %v2367, %v4047
    %v4608 = vmul.f32 %v2368, %v4049
    %v4609 = vmul.f32 %v2369, %v4051
    %v4610 = vmul.f32 %v2370, %v4053
    %v4611 = vmul.f32 %v2371, %v4055
    %v4612 = vmul.f32 %v2372, %v4057
    %v4613 = vmul.f32 %v2373, %v4059
    %v4614 = vmul.f32 %v2374, %v4061
    %v4615 = vmul.f32 %v2375, %v4063
    %v4616 = vmul.f32 %v2376, %v4065
    %v4617 = vmul.f32 %v2377, %v4067
    %v4618 = vmul.f32 %v2378, %v4069
    %v4619 = vmul.f32 %v2379, %v4071
    %v4620 = vmul.f32 %v2380, %v4073
    %v4621 = vmul.f32 %v2381, %v4075
    %v4622 = vmul.f32 %v2382, %v4077
    %v4623 = vmul.f32 %v2383, %v4079
    %v4624 = vmul.f32 %v2384, %v4081
    %v4625 = vmul.f32 %v2385, %v4083
    %v4626 = vmul.f32 %v2386, %v4085
    %v4627 = vmul.f32 %v2387, %v4087
    %v4628 = vmul.f32 %v2388, %v4089
    %v4629 = vmul.f32 %v2389, %v4091
    %v4630 = vmul.f32 %v2390, %v4093
    %v4631 = vmul.f32 %v2391, %v4095
    %v4632 = vmul.f32 %v2392, %v4097
    %v4633 = vmul.f32 %v2393, %v4099
    %v4634 = vmul.f32 %v2394, %v4101
    %v4635 = vmul.f32 %v2395, %v4103
    %v4636 = vmul.f32 %v2396, %v4105
    %v4637 = vmul.f32 %v2397, %v4107
    %v4638 = vmul.f32 %v2398, %v4109
    %v4639 = vmul.f32 %v2399, %v4111
    %v4640 = vmul.f32 %v2400, %v4113
    %v4641 = vmul.f32 %v2401, %v4115
    %v4642 = vmul.f32 %v2402, %v4117
    %v4643 = vmul.f32 %v2403, %v4119
    %v4644 = vmul.f32 %v2404, %v4121
    %v4645 = vmul.f32 %v2405, %v4123
    %v4646 = vmul.f32 %v2406, %v4125
    %v4647 = vmul.f32 %v2407, %v4127
    %v4648 = vmul.f32 %v2408, %v4129
    %v4649 = vmul.f32 %v2409, %v4131
    %v4650 = vmul.f32 %v2410, %v4133
    %v4651 = vmul.f32 %v2411, %v4135
    %v4652 = vmul.f32 %v2412, %v4137
    %v4653 = vmul.f32 %v2413, %v4139
    %v4654 = vmul.f32 %v2414, %v4141
    %v4655 = vmul.f32 %v2415, %v4143
    %v4656 = vmul.f32 %v2416, %v4145
    %v4657 = vmul.f32 %v2417, %v4147
    %v4658 = vmul.f32 %v2418, %v4149
    %v4659 = vmul.f32 %v2419, %v4151
    %v4660 = vmul.f32 %v2420, %v4153
    %v4661 = vmul.f32 %v2421, %v4155
    %v4662 = vmul.f32 %v2422, %v4157
    %v4663 = vmul.f32 %v2423, %v4159
    %v4664 = vmul.f32 %v2424, %v4161
    %v4665 = vmul.f32 %v2425, %v4163
    %v4666 = vmul.f32 %v2426, %v4165
    %v4667 = vmul.f32 %v2427, %v4167
    %v4668 = vmul.f32 %v2428, %v4169
    %v4669 = vmul.f32 %v2429, %v4171
    %v4670 = vmul.f32 %v2430, %v4173
    %v4671 = vmul.f32 %v2431, %v4175
    %v4672 = vmul.f32 %v2432, %v4177
    %v4673 = vmul.f32 %v2433, %v4179
    %v4674 = vmul.f32 %v2434, %v4181
    %v4675 = vmul.f32 %v2435, %v4183
    %v4676 = vmul.f32 %v2436, %v4185
    %v4677 = vmul.f32 %v2437, %v4187
    %v4678 = vmul.f32 %v2438, %v4189
    %v4679 = vmul.f32 %v2439, %v4191
    %v4680 = vmul.f32 %v2440, %v4193
    %v4681 = vmul.f32 %v2441, %v4195
    %v4682 = vmul.f32 %v2442, %v4197
    %v4683 = vmul.f32 %v2443, %v4199
    %v4684 = vmul.f32 %v2444, %v4201
    %v4685 = vmul.f32 %v2445, %v4203
    %v4686 = vmul.f32 %v2446, %v4205
    %v4687 = vmul.f32 %v2447, %v4207
    %v4688 = vmul.f32 %v2448, %v4209
    %v4689 = vmul.f32 %v2449, %v4211
    %v4690 = vmul.f32 %v2450, %v4213
    %v4691 = vmul.f32 %v2451, %v4215
    %v4692 = vmul.f32 %v2452, %v4217
    %v4693 = vmul.f32 %v2453, %v4219
    %v4694 = vmul.f32 %v2454, %v4221
    %v4695 = vmul.f32 %v2455, %v4223
    %v4696 = vmul.f32 %v2456, %v4225
    %v4697 = vmul.f32 %v2457, %v4227
    %v4698 = vmul.f32 %v2458, %v4229
    %v4699 = vmul.f32 %v2459, %v4231
    %v4700 = vmul.f32 %v2460, %v4233
    %v4701 = vmul.f32 %v2461, %v4235
    %v4702 = vmul.f32 %v2462, %v4237
    %v4703 = vmul.f32 %v2463, %v4239
    %v4704 = vmul.f32 %v2464, %v4241
    %v4705 = vmul.f32 %v2465, %v4243
    %v4706 = vmul.f32 %v2466, %v4245
    %v4707 = vmul.f32 %v2467, %v4247
    %v4708 = vmul.f32 %v2468, %v4249
    %v4709 = vmul.f32 %v2469, %v4251
    %v4710 = vmul.f32 %v2470, %v4253
    %v4711 = vmul.f32 %v2471, %v4255
    %v4712 = vmul.f32 %v2472, %v4257
    %v4713 = vmul.f32 %v2473, %v4259
    %v4714 = vmul.f32 %v2474, %v4261
    %v4715 = vmul.f32 %v2475, %v4263
    %v4716 = vmul.f32 %v2476, %v4265
    %v4717 = vmul.f32 %v2477, %v4267
    %v4718 = vmul.f32 %v2478, %v4269
    %v4719 = vmul.f32 %v2479, %v4271
    %v4720 = vmul.f32 %v2480, %v4273
    %v4721 = vmul.f32 %v2481, %v4275
    %v4722 = vmul.f32 %v2482, %v4277
    %v4723 = vmul.f32 %v2483, %v4279
    %v4724 = vmul.f32 %v2484, %v4281
    %v4725 = vmul.f32 %v2485, %v4283
    %v4726 = vmul.f32 %v2486, %v4285
    %v4727 = vmul.f32 %v2487, %v4287
    %v4728 = vmul.f32 %v2488, %v4289
    %v4729 = vmul.f32 %v2489, %v4291
    %v4730 = vmul.f32 %v2490, %v4293
    %v4731 = vmul.f32 %v2491, %v4295
    %v4732 = vmul.f32 %v2492, %v4297
    %v4733 = vmul.f32 %v2493, %v4299
    %v4734 = vmul.f32 %v2494, %v4301
    %v4735 = vmul.f32 %v2495, %v4303
    %v4736 = vmul.f32 %v2496, %v4305
    %v4737 = vmul.f32 %v2497, %v4307
    %v4738 = vmul.f32 %v2498, %v4309
    %v4739 = vmul.f32 %v2499, %v4311
    %v4740 = vmul.f32 %v2500, %v4313
    %v4741 = vmul.f32 %v2501, %v4315
    %v4742 = vmul.f32 %v2502, %v4317
    %v4743 = vmul.f32 %v2503, %v4319
    %v4744 = vmul.f32 %v2504, %v4321
    %v4745 = vmul.f32 %v2505, %v4323
    %v4746 = vmul.f32 %v2506, %v4325
    %v4747 = vmul.f32 %v2507, %v4327
    %v4748 = vmul.f32 %v2508, %v4329
    %v4749 = vmul.f32 %v2509, %v4331
    %v4750 = vmul.f32 %v2510, %v4333
    %v4751 = vmul.f32 %v2511, %v4335
    %v4752 = vmul.f32 %v2512, %v4337
    %v4753 = vmul.f32 %v2513, %v4339
    %v4754 = vmul.f32 %v2514, %v4341
    %v4755 = vmul.f32 %v2515, %v4343
    %v4756 = vmul.f32 %v2516, %v4345
    %v4757 = vmul.f32 %v2517, %v4347
    %v4758 = vmul.f32 %v2518, %v4349
    %v4759 = vmul.f32 %v2519, %v4351
    %v4760 = vmul.f32 %v2520, %v4353
    %v4761 = vmul.f32 %v2521, %v4355
    %v4762 = vmul.f32 %v2522, %v4357
    %v4763 = vmul.f32 %v2523, %v4359
    %v4764 = vmul.f32 %v2524, %v4361
    %v4765 = vmul.f32 %v2525, %v4363
    %v4766 = vmul.f32 %v2526, %v4365
    %v4767 = vmul.f32 %v2527, %v4367
    %v4768 = vmul.f32 %v2528, %v4369
    %v4769 = vmul.f32 %v2529, %v4371
    %v4770 = vmul.f32 %v2530, %v4373
    %v4771 = vmul.f32 %v2531, %v4375
    %v4772 = vmul.f32 %v2532, %v4377
    %v4773 = vmul.f32 %v2533, %v4379
    %v4774 = vmul.f32 %v2534, %v4381
    %v4775 = vmul.f32 %v2535, %v4383
    %v4776 = vmul.f32 %v2536, %v4385
    %v4777 = vmul.f32 %v2537, %v4387
    %v4778 = vmul.f32 %v2538, %v4389
    %v4779 = vmul.f32 %v2539, %v4391
    %v4780 = vmul.f32 %v2540, %v4393
    %v4781 = vmul.f32 %v2541, %v4395
    %v4782 = vmul.f32 %v2542, %v4397
    %v4783 = vmul.f32 %v2543, %v4399
    %v4784 = vmul.f32 %v2544, %v4401
    %v4785 = vmul.f32 %v2545, %v4403
    %v4786 = vmul.f32 %v2546, %v4405
    %v4787 = vmul.f32 %v2547, %v4407
    %v4788 = vmul.f32 %v2548, %v4409
    %v4789 = vmul.f32 %v2549, %v4411
    %v4790 = vmul.f32 %v2550, %v4413
    %v4791 = vmul.f32 %v2551, %v4415
    %v4792 = vmul.f32 %v2552, %v4417
    %v4793 = vmul.f32 %v2553, %v4419
    %v4794 = vmul.f32 %v2554, %v4421
    %v4795 = vmul.f32 %v2555, %v4423
    %v4796 = vmul.f32 %v2556, %v4425
    %v4797 = vmul.f32 %v2557, %v4427
    %v4798 = vmul.f32 %v2558, %v4429
    %v4799 = vmul.f32 %v2559, %v4431
    %v4800 = vmul.f32 %v2560, %v4433
    %v4801 = vmul.f32 %v2561, %v4435
    %v4802 = vmul.f32 %v2562, %v4437
    %v4803 = vmul.f32 %v2563, %v4439
    %v4804 = vmul.f32 %v2564, %v4441
    %v4805 = vmul.f32 %v2565, %v4443
    %v4806 = vmul.f32 %v2566, %v4445
    %v4807 = vmul.f32 %v2567, %v4447
    %v4808 = vmul.f32 %v2568, %v4449
    %v4809 = vmul.f32 %v2569, %v4451
    %v4810 = vmul.f32 %v2570, %v4453
    %v4811 = vmul.f32 %v2571, %v4455
    %v4812 = vmul.f32 %v2572, %v4457
    %v4813 = vmul.f32 %v2573, %v4459
    %v4814 = vmul.f32 %v2574, %v4461
    %v4815 = vmul.f32 %v2575, %v4463
    %v4816 = vmul.f32 %v2576, %v4465
    %v4817 = vmul.f32 %v2577, %v4467
    %v4818 = vmul.f32 %v2578, %v4469
    %v4819 = vmul.f32 %v2579, %v4471
    %v4820 = vmul.f32 %v2580, %v4473
    %v4821 = vmul.f32 %v2581, %v4475
    %v4822 = vmul.f32 %v2582, %v4477
    %v4823 = vmul.f32 %v2583, %v4479
    %v4824 = vmul.f32 %v2584, %v4481
    %v4825 = vmul.f32 %v2585, %v4483
    %v4826 = vmul.f32 %v2586, %v4485
    %v4827 = vmul.f32 %v2587, %v4487
    %v4828 = vmul.f32 %v2588, %v4489
    %v4829 = vmul.f32 %v2589, %v4491
    %v4830 = vmul.f32 %v2590, %v4493
    %v4831 = vmul.f32 %v2591, %v4495
    %v4832 = vmul.f32 %v2592, %v4497
    %v4833 = vmul.f32 %v2593, %v4499
    %v4834 = vmul.f32 %v2594, %v4501
    %v4835 = vmul.f32 %v2595, %v4503
    %v4836 = vmul.f32 %v2596, %v4505
    %v4837 = vmul.f32 %v2597, %v4507
    %v4838 = vmul.f32 %v2598, %v4509
    %v4839 = vmul.f32 %v2599, %v4511
    %v4840 = vmul.f32 %v2600, %v4513
    %v4841 = vmul.f32 %v2601, %v4515
    %v4842 = vmul.f32 %v2602, %v4517
    %v4843 = vmul.f32 %v2603, %v4519
    %v4844 = vmul.f32 %v2604, %v4521
    %v4845 = vmul.f32 %v2605, %v4523
    %v4846 = vmul.f32 %v2606, %v4525
    %v4847 = vmul.f32 %v2607, %v4527
    %v4848 = vadd.f32 %v4528, %v4548
    %v4849 = vadd.f32 %v4848, %v4568
    %v4850 = vadd.f32 %v4849, %v4588
    %v4851 = vadd.f32 %v4850, %v4608
    %v4852 = vadd.f32 %v4851, %v4628
    %v4853 = vadd.f32 %v4852, %v4648
    %v4854 = vadd.f32 %v4853, %v4668
    %v4855 = vrot.slane %v4854, 4
    %v4856 = vadd.f32 %v4854, %v4855
    %v4857 = vrot.slane %v4856, 2
    %v4858 = vadd.f32 %v4856, %v4857
    %v4859 = vrot.slane %v4858, 1
    %v4860 = vadd.f32 %v4858, %v4859
    %v4861 = vadd.f32 %v4529, %v4549
    %v4862 = vadd.f32 %v4861, %v4569
    %v4863 = vadd.f32 %v4862, %v4589
    %v4864 = vadd.f32 %v4863, %v4609
    %v4865 = vadd.f32 %v4864, %v4629
    %v4866 = vadd.f32 %v4865, %v4649
    %v4867 = vadd.f32 %v4866, %v4669
    %v4868 = vrot.slane %v4867, 4
    %v4869 = vadd.f32 %v4867, %v4868
    %v4870 = vrot.slane %v4869, 2
    %v4871 = vadd.f32 %v4869, %v4870
    %v4872 = vrot.slane %v4871, 1
    %v4873 = vadd.f32 %v4871, %v4872
    %v4874 = vadd.f32 %v4530, %v4550
    %v4875 = vadd.f32 %v4874, %v4570
    %v4876 = vadd.f32 %v4875, %v4590
    %v4877 = vadd.f32 %v4876, %v4610
    %v4878 = vadd.f32 %v4877, %v4630
    %v4879 = vadd.f32 %v4878, %v4650
    %v4880 = vadd.f32 %v4879, %v4670
    %v4881 = vrot.slane %v4880, 4
    %v4882 = vadd.f32 %v4880, %v4881
    %v4883 = vrot.slane %v4882, 2
    %v4884 = vadd.f32 %v4882, %v4883
    %v4885 = vrot.slane %v4884, 1
    %v4886 = vadd.f32 %v4884, %v4885
    %v4887 = vadd.f32 %v4531, %v4551
    %v4888 = vadd.f32 %v4887, %v4571
    %v4889 = vadd.f32 %v4888, %v4591
    %v4890 = vadd.f32 %v4889, %v4611
    %v4891 = vadd.f32 %v4890, %v4631
    %v4892 = vadd.f32 %v4891, %v4651
    %v4893 = vadd.f32 %v4892, %v4671
    %v4894 = vrot.slane %v4893, 4
    %v4895 = vadd.f32 %v4893, %v4894
    %v4896 = vrot.slane %v4895, 2
    %v4897 = vadd.f32 %v4895, %v4896
    %v4898 = vrot.slane %v4897, 1
    %v4899 = vadd.f32 %v4897, %v4898
    %v4900 = vadd.f32 %v4532, %v4552
    %v4901 = vadd.f32 %v4900, %v4572
    %v4902 = vadd.f32 %v4901, %v4592
    %v4903 = vadd.f32 %v4902, %v4612
    %v4904 = vadd.f32 %v4903, %v4632
    %v4905 = vadd.f32 %v4904, %v4652
    %v4906 = vadd.f32 %v4905, %v4672
    %v4907 = vrot.slane %v4906, 4
    %v4908 = vadd.f32 %v4906, %v4907
    %v4909 = vrot.slane %v4908, 2
    %v4910 = vadd.f32 %v4908, %v4909
    %v4911 = vrot.slane %v4910, 1
    %v4912 = vadd.f32 %v4910, %v4911
    %v4913 = vadd.f32 %v4533, %v4553
    %v4914 = vadd.f32 %v4913, %v4573
    %v4915 = vadd.f32 %v4914, %v4593
    %v4916 = vadd.f32 %v4915, %v4613
    %v4917 = vadd.f32 %v4916, %v4633
    %v4918 = vadd.f32 %v4917, %v4653
    %v4919 = vadd.f32 %v4918, %v4673
    %v4920 = vrot.slane %v4919, 4
    %v4921 = vadd.f32 %v4919, %v4920
    %v4922 = vrot.slane %v4921, 2
    %v4923 = vadd.f32 %v4921, %v4922
    %v4924 = vrot.slane %v4923, 1
    %v4925 = vadd.f32 %v4923, %v4924
    %v4926 = vadd.f32 %v4534, %v4554
    %v4927 = vadd.f32 %v4926, %v4574
    %v4928 = vadd.f32 %v4927, %v4594
    %v4929 = vadd.f32 %v4928, %v4614
    %v4930 = vadd.f32 %v4929, %v4634
    %v4931 = vadd.f32 %v4930, %v4654
    %v4932 = vadd.f32 %v4931, %v4674
    %v4933 = vrot.slane %v4932, 4
    %v4934 = vadd.f32 %v4932, %v4933
    %v4935 = vrot.slane %v4934, 2
    %v4936 = vadd.f32 %v4934, %v4935
    %v4937 = vrot.slane %v4936, 1
    %v4938 = vadd.f32 %v4936, %v4937
    %v4939 = vadd.f32 %v4535, %v4555
    %v4940 = vadd.f32 %v4939, %v4575
    %v4941 = vadd.f32 %v4940, %v4595
    %v4942 = vadd.f32 %v4941, %v4615
    %v4943 = vadd.f32 %v4942, %v4635
    %v4944 = vadd.f32 %v4943, %v4655
    %v4945 = vadd.f32 %v4944, %v4675
    %v4946 = vrot.slane %v4945, 4
    %v4947 = vadd.f32 %v4945, %v4946
    %v4948 = vrot.slane %v4947, 2
    %v4949 = vadd.f32 %v4947, %v4948
    %v4950 = vrot.slane %v4949, 1
    %v4951 = vadd.f32 %v4949, %v4950
    %v4952 = vadd.f32 %v4536, %v4556
    %v4953 = vadd.f32 %v4952, %v4576
    %v4954 = vadd.f32 %v4953, %v4596
    %v4955 = vadd.f32 %v4954, %v4616
    %v4956 = vadd.f32 %v4955, %v4636
    %v4957 = vadd.f32 %v4956, %v4656
    %v4958 = vadd.f32 %v4957, %v4676
    %v4959 = vrot.slane %v4958, 4
    %v4960 = vadd.f32 %v4958, %v4959
    %v4961 = vrot.slane %v4960, 2
    %v4962 = vadd.f32 %v4960, %v4961
    %v4963 = vrot.slane %v4962, 1
    %v4964 = vadd.f32 %v4962, %v4963
    %v4965 = vadd.f32 %v4537, %v4557
    %v4966 = vadd.f32 %v4965, %v4577
    %v4967 = vadd.f32 %v4966, %v4597
    %v4968 = vadd.f32 %v4967, %v4617
    %v4969 = vadd.f32 %v4968, %v4637
    %v4970 = vadd.f32 %v4969, %v4657
    %v4971 = vadd.f32 %v4970, %v4677
    %v4972 = vrot.slane %v4971, 4
    %v4973 = vadd.f32 %v4971, %v4972
    %v4974 = vrot.slane %v4973, 2
    %v4975 = vadd.f32 %v4973, %v4974
    %v4976 = vrot.slane %v4975, 1
    %v4977 = vadd.f32 %v4975, %v4976
    %v4978 = vadd.f32 %v4538, %v4558
    %v4979 = vadd.f32 %v4978, %v4578
    %v4980 = vadd.f32 %v4979, %v4598
    %v4981 = vadd.f32 %v4980, %v4618
    %v4982 = vadd.f32 %v4981, %v4638
    %v4983 = vadd.f32 %v4982, %v4658
    %v4984 = vadd.f32 %v4983, %v4678
    %v4985 = vrot.slane %v4984, 4
    %v4986 = vadd.f32 %v4984, %v4985
    %v4987 = vrot.slane %v4986, 2
    %v4988 = vadd.f32 %v4986, %v4987
    %v4989 = vrot.slane %v4988, 1
    %v4990 = vadd.f32 %v4988, %v4989
    %v4991 = vadd.f32 %v4539, %v4559
    %v4992 = vadd.f32 %v4991, %v4579
    %v4993 = vadd.f32 %v4992, %v4599
    %v4994 = vadd.f32 %v4993, %v4619
    %v4995 = vadd.f32 %v4994, %v4639
    %v4996 = vadd.f32 %v4995, %v4659
    %v4997 = vadd.f32 %v4996, %v4679
    %v4998 = vrot.slane %v4997, 4
    %v4999 = vadd.f32 %v4997, %v4998
    %v5000 = vrot.slane %v4999, 2
    %v5001 = vadd.f32 %v4999, %v5000
    %v5002 = vrot.slane %v5001, 1
    %v5003 = vadd.f32 %v5001, %v5002
    %v5004 = vadd.f32 %v4540, %v4560
    %v5005 = vadd.f32 %v5004, %v4580
    %v5006 = vadd.f32 %v5005, %v4600
    %v5007 = vadd.f32 %v5006, %v4620
    %v5008 = vadd.f32 %v5007, %v4640
    %v5009 = vadd.f32 %v5008, %v4660
    %v5010 = vadd.f32 %v5009, %v4680
    %v5011 = vrot.slane %v5010, 4
    %v5012 = vadd.f32 %v5010, %v5011
    %v5013 = vrot.slane %v5012, 2
    %v5014 = vadd.f32 %v5012, %v5013
    %v5015 = vrot.slane %v5014, 1
    %v5016 = vadd.f32 %v5014, %v5015
    %v5017 = vadd.f32 %v4541, %v4561
    %v5018 = vadd.f32 %v5017, %v4581
    %v5019 = vadd.f32 %v5018, %v4601
    %v5020 = vadd.f32 %v5019, %v4621
    %v5021 = vadd.f32 %v5020, %v4641
    %v5022 = vadd.f32 %v5021, %v4661
    %v5023 = vadd.f32 %v5022, %v4681
    %v5024 = vrot.slane %v5023, 4
    %v5025 = vadd.f32 %v5023, %v5024
    %v5026 = vrot.slane %v5025, 2
    %v5027 = vadd.f32 %v5025, %v5026
    %v5028 = vrot.slane %v5027, 1
    %v5029 = vadd.f32 %v5027, %v5028
    %v5030 = vadd.f32 %v4542, %v4562
    %v5031 = vadd.f32 %v5030, %v4582
    %v5032 = vadd.f32 %v5031, %v4602
    %v5033 = vadd.f32 %v5032, %v4622
    %v5034 = vadd.f32 %v5033, %v4642
    %v5035 = vadd.f32 %v5034, %v4662
    %v5036 = vadd.f32 %v5035, %v4682
    %v5037 = vrot.slane %v5036, 4
    %v5038 = vadd.f32 %v5036, %v5037
    %v5039 = vrot.slane %v5038, 2
    %v5040 = vadd.f32 %v5038, %v5039
    %v5041 = vrot.slane %v5040, 1
    %v5042 = vadd.f32 %v5040, %v5041
    %v5043 = vadd.f32 %v4543, %v4563
    %v5044 = vadd.f32 %v5043, %v4583
    %v5045 = vadd.f32 %v5044, %v4603
    %v5046 = vadd.f32 %v5045, %v4623
    %v5047 = vadd.f32 %v5046, %v4643
    %v5048 = vadd.f32 %v5047, %v4663
    %v5049 = vadd.f32 %v5048, %v4683
    %v5050 = vrot.slane %v5049, 4
    %v5051 = vadd.f32 %v5049, %v5050
    %v5052 = vrot.slane %v5051, 2
    %v5053 = vadd.f32 %v5051, %v5052
    %v5054 = vrot.slane %v5053, 1
    %v5055 = vadd.f32 %v5053, %v5054
    %v5056 = vadd.f32 %v4544, %v4564
    %v5057 = vadd.f32 %v5056, %v4584
    %v5058 = vadd.f32 %v5057, %v4604
    %v5059 = vadd.f32 %v5058, %v4624
    %v5060 = vadd.f32 %v5059, %v4644
    %v5061 = vadd.f32 %v5060, %v4664
    %v5062 = vadd.f32 %v5061, %v4684
    %v5063 = vrot.slane %v5062, 4
    %v5064 = vadd.f32 %v5062, %v5063
    %v5065 = vrot.slane %v5064, 2
    %v5066 = vadd.f32 %v5064, %v5065
    %v5067 = vrot.slane %v5066, 1
    %v5068 = vadd.f32 %v5066, %v5067
    %v5069 = vadd.f32 %v4545, %v4565
    %v5070 = vadd.f32 %v5069, %v4585
    %v5071 = vadd.f32 %v5070, %v4605
    %v5072 = vadd.f32 %v5071, %v4625
    %v5073 = vadd.f32 %v5072, %v4645
    %v5074 = vadd.f32 %v5073, %v4665
    %v5075 = vadd.f32 %v5074, %v4685
    %v5076 = vrot.slane %v5075, 4
    %v5077 = vadd.f32 %v5075, %v5076
    %v5078 = vrot.slane %v5077, 2
    %v5079 = vadd.f32 %v5077, %v5078
    %v5080 = vrot.slane %v5079, 1
    %v5081 = vadd.f32 %v5079, %v5080
    %v5082 = vadd.f32 %v4546, %v4566
    %v5083 = vadd.f32 %v5082, %v4586
    %v5084 = vadd.f32 %v5083, %v4606
    %v5085 = vadd.f32 %v5084, %v4626
    %v5086 = vadd.f32 %v5085, %v4646
    %v5087 = vadd.f32 %v5086, %v4666
    %v5088 = vadd.f32 %v5087, %v4686
    %v5089 = vrot.slane %v5088, 4
    %v5090 = vadd.f32 %v5088, %v5089
    %v5091 = vrot.slane %v5090, 2
    %v5092 = vadd.f32 %v5090, %v5091
    %v5093 = vrot.slane %v5092, 1
    %v5094 = vadd.f32 %v5092, %v5093
    %v5095 = vadd.f32 %v4547, %v4567
    %v5096 = vadd.f32 %v5095, %v4587
    %v5097 = vadd.f32 %v5096, %v4607
    %v5098 = vadd.f32 %v5097, %v4627
    %v5099 = vadd.f32 %v5098, %v4647
    %v5100 = vadd.f32 %v5099, %v4667
    %v5101 = vadd.f32 %v5100, %v4687
    %v5102 = vrot.slane %v5101, 4
    %v5103 = vadd.f32 %v5101, %v5102
    %v5104 = vrot.slane %v5103, 2
    %v5105 = vadd.f32 %v5103, %v5104
    %v5106 = vrot.slane %v5105, 1
    %v5107 = vadd.f32 %v5105, %v5106
    %v5108 = vadd.f32 %v4688, %v4708
    %v5109 = vadd.f32 %v5108, %v4728
    %v5110 = vadd.f32 %v5109, %v4748
    %v5111 = vadd.f32 %v5110, %v4768
    %v5112 = vadd.f32 %v5111, %v4788
    %v5113 = vadd.f32 %v5112, %v4808
    %v5114 = vadd.f32 %v5113, %v4828
    %v5115 = vrot.slane %v5114, 4
    %v5116 = vadd.f32 %v5114, %v5115
    %v5117 = vrot.slane %v5116, 2
    %v5118 = vadd.f32 %v5116, %v5117
    %v5119 = vrot.slane %v5118, 1
    %v5120 = vadd.f32 %v5118, %v5119
    %v5121 = vadd.f32 %v4689, %v4709
    %v5122 = vadd.f32 %v5121, %v4729
    %v5123 = vadd.f32 %v5122, %v4749
    %v5124 = vadd.f32 %v5123, %v4769
    %v5125 = vadd.f32 %v5124, %v4789
    %v5126 = vadd.f32 %v5125, %v4809
    %v5127 = vadd.f32 %v5126, %v4829
    %v5128 = vrot.slane %v5127, 4
    %v5129 = vadd.f32 %v5127, %v5128
    %v5130 = vrot.slane %v5129, 2
    %v5131 = vadd.f32 %v5129, %v5130
    %v5132 = vrot.slane %v5131, 1
    %v5133 = vadd.f32 %v5131, %v5132
    %v5134 = vadd.f32 %v4690, %v4710
    %v5135 = vadd.f32 %v5134, %v4730
    %v5136 = vadd.f32 %v5135, %v4750
    %v5137 = vadd.f32 %v5136, %v4770
    %v5138 = vadd.f32 %v5137, %v4790
    %v5139 = vadd.f32 %v5138, %v4810
    %v5140 = vadd.f32 %v5139, %v4830
    %v5141 = vrot.slane %v5140, 4
    %v5142 = vadd.f32 %v5140, %v5141
    %v5143 = vrot.slane %v5142, 2
    %v5144 = vadd.f32 %v5142, %v5143
    %v5145 = vrot.slane %v5144, 1
    %v5146 = vadd.f32 %v5144, %v5145
    %v5147 = vadd.f32 %v4691, %v4711
    %v5148 = vadd.f32 %v5147, %v4731
    %v5149 = vadd.f32 %v5148, %v4751
    %v5150 = vadd.f32 %v5149, %v4771
    %v5151 = vadd.f32 %v5150, %v4791
    %v5152 = vadd.f32 %v5151, %v4811
    %v5153 = vadd.f32 %v5152, %v4831
    %v5154 = vrot.slane %v5153, 4
    %v5155 = vadd.f32 %v5153, %v5154
    %v5156 = vrot.slane %v5155, 2
    %v5157 = vadd.f32 %v5155, %v5156
    %v5158 = vrot.slane %v5157, 1
    %v5159 = vadd.f32 %v5157, %v5158
    %v5160 = vadd.f32 %v4692, %v4712
    %v5161 = vadd.f32 %v5160, %v4732
    %v5162 = vadd.f32 %v5161, %v4752
    %v5163 = vadd.f32 %v5162, %v4772
    %v5164 = vadd.f32 %v5163, %v4792
    %v5165 = vadd.f32 %v5164, %v4812
    %v5166 = vadd.f32 %v5165, %v4832
    %v5167 = vrot.slane %v5166, 4
    %v5168 = vadd.f32 %v5166, %v5167
    %v5169 = vrot.slane %v5168, 2
    %v5170 = vadd.f32 %v5168, %v5169
    %v5171 = vrot.slane %v5170, 1
    %v5172 = vadd.f32 %v5170, %v5171
    %v5173 = vadd.f32 %v4693, %v4713
    %v5174 = vadd.f32 %v5173, %v4733
    %v5175 = vadd.f32 %v5174, %v4753
    %v5176 = vadd.f32 %v5175, %v4773
    %v5177 = vadd.f32 %v5176, %v4793
    %v5178 = vadd.f32 %v5177, %v4813
    %v5179 = vadd.f32 %v5178, %v4833
    %v5180 = vrot.slane %v5179, 4
    %v5181 = vadd.f32 %v5179, %v5180
    %v5182 = vrot.slane %v5181, 2
    %v5183 = vadd.f32 %v5181, %v5182
    %v5184 = vrot.slane %v5183, 1
    %v5185 = vadd.f32 %v5183, %v5184
    %v5186 = vadd.f32 %v4694, %v4714
    %v5187 = vadd.f32 %v5186, %v4734
    %v5188 = vadd.f32 %v5187, %v4754
    %v5189 = vadd.f32 %v5188, %v4774
    %v5190 = vadd.f32 %v5189, %v4794
    %v5191 = vadd.f32 %v5190, %v4814
    %v5192 = vadd.f32 %v5191, %v4834
    %v5193 = vrot.slane %v5192, 4
    %v5194 = vadd.f32 %v5192, %v5193
    %v5195 = vrot.slane %v5194, 2
    %v5196 = vadd.f32 %v5194, %v5195
    %v5197 = vrot.slane %v5196, 1
    %v5198 = vadd.f32 %v5196, %v5197
    %v5199 = vadd.f32 %v4695, %v4715
    %v5200 = vadd.f32 %v5199, %v4735
    %v5201 = vadd.f32 %v5200, %v4755
    %v5202 = vadd.f32 %v5201, %v4775
    %v5203 = vadd.f32 %v5202, %v4795
    %v5204 = vadd.f32 %v5203, %v4815
    %v5205 = vadd.f32 %v5204, %v4835
    %v5206 = vrot.slane %v5205, 4
    %v5207 = vadd.f32 %v5205, %v5206
    %v5208 = vrot.slane %v5207, 2
    %v5209 = vadd.f32 %v5207, %v5208
    %v5210 = vrot.slane %v5209, 1
    %v5211 = vadd.f32 %v5209, %v5210
    %v5212 = vadd.f32 %v4696, %v4716
    %v5213 = vadd.f32 %v5212, %v4736
    %v5214 = vadd.f32 %v5213, %v4756
    %v5215 = vadd.f32 %v5214, %v4776
    %v5216 = vadd.f32 %v5215, %v4796
    %v5217 = vadd.f32 %v5216, %v4816
    %v5218 = vadd.f32 %v5217, %v4836
    %v5219 = vrot.slane %v5218, 4
    %v5220 = vadd.f32 %v5218, %v5219
    %v5221 = vrot.slane %v5220, 2
    %v5222 = vadd.f32 %v5220, %v5221
    %v5223 = vrot.slane %v5222, 1
    %v5224 = vadd.f32 %v5222, %v5223
    %v5225 = vadd.f32 %v4697, %v4717
    %v5226 = vadd.f32 %v5225, %v4737
    %v5227 = vadd.f32 %v5226, %v4757
    %v5228 = vadd.f32 %v5227, %v4777
    %v5229 = vadd.f32 %v5228, %v4797
    %v5230 = vadd.f32 %v5229, %v4817
    %v5231 = vadd.f32 %v5230, %v4837
    %v5232 = vrot.slane %v5231, 4
    %v5233 = vadd.f32 %v5231, %v5232
    %v5234 = vrot.slane %v5233, 2
    %v5235 = vadd.f32 %v5233, %v5234
    %v5236 = vrot.slane %v5235, 1
    %v5237 = vadd.f32 %v5235, %v5236
    %v5238 = vadd.f32 %v4698, %v4718
    %v5239 = vadd.f32 %v5238, %v4738
    %v5240 = vadd.f32 %v5239, %v4758
    %v5241 = vadd.f32 %v5240, %v4778
    %v5242 = vadd.f32 %v5241, %v4798
    %v5243 = vadd.f32 %v5242, %v4818
    %v5244 = vadd.f32 %v5243, %v4838
    %v5245 = vrot.slane %v5244, 4
    %v5246 = vadd.f32 %v5244, %v5245
    %v5247 = vrot.slane %v5246, 2
    %v5248 = vadd.f32 %v5246, %v5247
    %v5249 = vrot.slane %v5248, 1
    %v5250 = vadd.f32 %v5248, %v5249
    %v5251 = vadd.f32 %v4699, %v4719
    %v5252 = vadd.f32 %v5251, %v4739
    %v5253 = vadd.f32 %v5252, %v4759
    %v5254 = vadd.f32 %v5253, %v4779
    %v5255 = vadd.f32 %v5254, %v4799
    %v5256 = vadd.f32 %v5255, %v4819
    %v5257 = vadd.f32 %v5256, %v4839
    %v5258 = vrot.slane %v5257, 4
    %v5259 = vadd.f32 %v5257, %v5258
    %v5260 = vrot.slane %v5259, 2
    %v5261 = vadd.f32 %v5259, %v5260
    %v5262 = vrot.slane %v5261, 1
    %v5263 = vadd.f32 %v5261, %v5262
    %v5264 = vadd.f32 %v4700, %v4720
    %v5265 = vadd.f32 %v5264, %v4740
    %v5266 = vadd.f32 %v5265, %v4760
    %v5267 = vadd.f32 %v5266, %v4780
    %v5268 = vadd.f32 %v5267, %v4800
    %v5269 = vadd.f32 %v5268, %v4820
    %v5270 = vadd.f32 %v5269, %v4840
    %v5271 = vrot.slane %v5270, 4
    %v5272 = vadd.f32 %v5270, %v5271
    %v5273 = vrot.slane %v5272, 2
    %v5274 = vadd.f32 %v5272, %v5273
    %v5275 = vrot.slane %v5274, 1
    %v5276 = vadd.f32 %v5274, %v5275
    %v5277 = vadd.f32 %v4701, %v4721
    %v5278 = vadd.f32 %v5277, %v4741
    %v5279 = vadd.f32 %v5278, %v4761
    %v5280 = vadd.f32 %v5279, %v4781
    %v5281 = vadd.f32 %v5280, %v4801
    %v5282 = vadd.f32 %v5281, %v4821
    %v5283 = vadd.f32 %v5282, %v4841
    %v5284 = vrot.slane %v5283, 4
    %v5285 = vadd.f32 %v5283, %v5284
    %v5286 = vrot.slane %v5285, 2
    %v5287 = vadd.f32 %v5285, %v5286
    %v5288 = vrot.slane %v5287, 1
    %v5289 = vadd.f32 %v5287, %v5288
    %v5290 = vadd.f32 %v4702, %v4722
    %v5291 = vadd.f32 %v5290, %v4742
    %v5292 = vadd.f32 %v5291, %v4762
    %v5293 = vadd.f32 %v5292, %v4782
    %v5294 = vadd.f32 %v5293, %v4802
    %v5295 = vadd.f32 %v5294, %v4822
    %v5296 = vadd.f32 %v5295, %v4842
    %v5297 = vrot.slane %v5296, 4
    %v5298 = vadd.f32 %v5296, %v5297
    %v5299 = vrot.slane %v5298, 2
    %v5300 = vadd.f32 %v5298, %v5299
    %v5301 = vrot.slane %v5300, 1
    %v5302 = vadd.f32 %v5300, %v5301
    %v5303 = vadd.f32 %v4703, %v4723
    %v5304 = vadd.f32 %v5303, %v4743
    %v5305 = vadd.f32 %v5304, %v4763
    %v5306 = vadd.f32 %v5305, %v4783
    %v5307 = vadd.f32 %v5306, %v4803
    %v5308 = vadd.f32 %v5307, %v4823
    %v5309 = vadd.f32 %v5308, %v4843
    %v5310 = vrot.slane %v5309, 4
    %v5311 = vadd.f32 %v5309, %v5310
    %v5312 = vrot.slane %v5311, 2
    %v5313 = vadd.f32 %v5311, %v5312
    %v5314 = vrot.slane %v5313, 1
    %v5315 = vadd.f32 %v5313, %v5314
    %v5316 = vadd.f32 %v4704, %v4724
    %v5317 = vadd.f32 %v5316, %v4744
    %v5318 = vadd.f32 %v5317, %v4764
    %v5319 = vadd.f32 %v5318, %v4784
    %v5320 = vadd.f32 %v5319, %v4804
    %v5321 = vadd.f32 %v5320, %v4824
    %v5322 = vadd.f32 %v5321, %v4844
    %v5323 = vrot.slane %v5322, 4
    %v5324 = vadd.f32 %v5322, %v5323
    %v5325 = vrot.slane %v5324, 2
    %v5326 = vadd.f32 %v5324, %v5325
    %v5327 = vrot.slane %v5326, 1
    %v5328 = vadd.f32 %v5326, %v5327
    %v5329 = vadd.f32 %v4705, %v4725
    %v5330 = vadd.f32 %v5329, %v4745
    %v5331 = vadd.f32 %v5330, %v4765
    %v5332 = vadd.f32 %v5331, %v4785
    %v5333 = vadd.f32 %v5332, %v4805
    %v5334 = vadd.f32 %v5333, %v4825
    %v5335 = vadd.f32 %v5334, %v4845
    %v5336 = vrot.slane %v5335, 4
    %v5337 = vadd.f32 %v5335, %v5336
    %v5338 = vrot.slane %v5337, 2
    %v5339 = vadd.f32 %v5337, %v5338
    %v5340 = vrot.slane %v5339, 1
    %v5341 = vadd.f32 %v5339, %v5340
    %v5342 = vadd.f32 %v4706, %v4726
    %v5343 = vadd.f32 %v5342, %v4746
    %v5344 = vadd.f32 %v5343, %v4766
    %v5345 = vadd.f32 %v5344, %v4786
    %v5346 = vadd.f32 %v5345, %v4806
    %v5347 = vadd.f32 %v5346, %v4826
    %v5348 = vadd.f32 %v5347, %v4846
    %v5349 = vrot.slane %v5348, 4
    %v5350 = vadd.f32 %v5348, %v5349
    %v5351 = vrot.slane %v5350, 2
    %v5352 = vadd.f32 %v5350, %v5351
    %v5353 = vrot.slane %v5352, 1
    %v5354 = vadd.f32 %v5352, %v5353
    %v5355 = vadd.f32 %v4707, %v4727
    %v5356 = vadd.f32 %v5355, %v4747
    %v5357 = vadd.f32 %v5356, %v4767
    %v5358 = vadd.f32 %v5357, %v4787
    %v5359 = vadd.f32 %v5358, %v4807
    %v5360 = vadd.f32 %v5359, %v4827
    %v5361 = vadd.f32 %v5360, %v4847
    %v5362 = vrot.slane %v5361, 4
    %v5363 = vadd.f32 %v5361, %v5362
    %v5364 = vrot.slane %v5363, 2
    %v5365 = vadd.f32 %v5363, %v5364
    %v5366 = vrot.slane %v5365, 1
    %v5367 = vadd.f32 %v5365, %v5366
    %v5368 = vmul.f32 %v4860, 0.015625
    %v5369 = vmul.f32 %v4873, 0.015625
    %v5370 = vmul.f32 %v4886, 0.015625
    %v5371 = vmul.f32 %v4899, 0.015625
    %v5372 = vmul.f32 %v4912, 0.015625
    %v5373 = vmul.f32 %v4925, 0.015625
    %v5374 = vmul.f32 %v4938, 0.015625
    %v5375 = vmul.f32 %v4951, 0.015625
    %v5376 = vmul.f32 %v4964, 0.015625
    %v5377 = vmul.f32 %v4977, 0.015625
    %v5378 = vmul.f32 %v4990, 0.015625
    %v5379 = vmul.f32 %v5003, 0.015625
    %v5380 = vmul.f32 %v5016, 0.015625
    %v5381 = vmul.f32 %v5029, 0.015625
    %v5382 = vmul.f32 %v5042, 0.015625
    %v5383 = vmul.f32 %v5055, 0.015625
    %v5384 = vmul.f32 %v5068, 0.015625
    %v5385 = vmul.f32 %v5081, 0.015625
    %v5386 = vmul.f32 %v5094, 0.015625
    %v5387 = vmul.f32 %v5107, 0.015625
    %v5388 = vmul.f32 %v5120, 0.015625
    %v5389 = vmul.f32 %v5133, 0.015625
    %v5390 = vmul.f32 %v5146, 0.015625
    %v5391 = vmul.f32 %v5159, 0.015625
    %v5392 = vmul.f32 %v5172, 0.015625
    %v5393 = vmul.f32 %v5185, 0.015625
    %v5394 = vmul.f32 %v5198, 0.015625
    %v5395 = vmul.f32 %v5211, 0.015625
    %v5396 = vmul.f32 %v5224, 0.015625
    %v5397 = vmul.f32 %v5237, 0.015625
    %v5398 = vmul.f32 %v5250, 0.015625
    %v5399 = vmul.f32 %v5263, 0.015625
    %v5400 = vmul.f32 %v5276, 0.015625
    %v5401 = vmul.f32 %v5289, 0.015625
    %v5402 = vmul.f32 %v5302, 0.015625
    %v5403 = vmul.f32 %v5315, 0.015625
    %v5404 = vmul.f32 %v5328, 0.015625
    %v5405 = vmul.f32 %v5341, 0.015625
    %v5406 = vmul.f32 %v5354, 0.015625
    %v5407 = vmul.f32 %v5367, 0.015625
    %v5448 = vcombine.low %v5368, %v5369
    %v5449 = vcombine.low %v5370, %v5371
    %v5451 = vunpack.c.l.s4 1983009808
    %v5452 = vunpack.c.0.s8 %v5451
    %v5453 = vlaneseq
    %v5454 = vshrl.u32 %v5453, 7
    %v5455 = vsub.s32 %v5452, %v5454
    %v5456 = vrot.slane %v5448, %v5455
    %v5458 = vunpack.c.l.s4 1983009808
    %v5459 = vunpack.c.0.s8 %v5458
    %v5460 = vlaneseq
    %v5461 = vshrl.u32 %v5460, 7
    %v5462 = vsub.s32 %v5459, %v5461
    %v5463 = vrot.slane %v5449, %v5462
    %v5464 = vcombine.low %v5456, %v5463
    %v5465 = vcombine.low %v5372, %v5373
    %v5466 = vcombine.low %v5374, %v5375
    %v5468 = vunpack.c.l.s4 1983009808
    %v5469 = vunpack.c.0.s8 %v5468
    %v5470 = vlaneseq
    %v5471 = vshrl.u32 %v5470, 7
    %v5472 = vsub.s32 %v5469, %v5471
    %v5473 = vrot.slane %v5465, %v5472
    %v5475 = vunpack.c.l.s4 1983009808
    %v5476 = vunpack.c.0.s8 %v5475
    %v5477 = vlaneseq
    %v5478 = vshrl.u32 %v5477, 7
    %v5479 = vsub.s32 %v5476, %v5478
    %v5480 = vrot.slane %v5466, %v5479
    %v5481 = vcombine.low %v5473, %v5480
    %v5482 = vcombine.low %v5376, %v5377
    %v5483 = vcombine.low %v5378, %v5379
    %v5485 = vunpack.c.l.s4 1983009808
    %v5486 = vunpack.c.0.s8 %v5485
    %v5487 = vlaneseq
    %v5488 = vshrl.u32 %v5487, 7
    %v5489 = vsub.s32 %v5486, %v5488
    %v5490 = vrot.slane %v5482, %v5489
    %v5492 = vunpack.c.l.s4 1983009808
    %v5493 = vunpack.c.0.s8 %v5492
    %v5494 = vlaneseq
    %v5495 = vshrl.u32 %v5494, 7
    %v5496 = vsub.s32 %v5493, %v5495
    %v5497 = vrot.slane %v5483, %v5496
    %v5498 = vcombine.low %v5490, %v5497
    %v5499 = vcombine.low %v5380, %v5381
    %v5500 = vcombine.low %v5382, %v5383
    %v5502 = vunpack.c.l.s4 1983009808
    %v5503 = vunpack.c.0.s8 %v5502
    %v5504 = vlaneseq
    %v5505 = vshrl.u32 %v5504, 7
    %v5506 = vsub.s32 %v5503, %v5505
    %v5507 = vrot.slane %v5499, %v5506
    %v5509 = vunpack.c.l.s4 1983009808
    %v5510 = vunpack.c.0.s8 %v5509
    %v5511 = vlaneseq
    %v5512 = vshrl.u32 %v5511, 7
    %v5513 = vsub.s32 %v5510, %v5512
    %v5514 = vrot.slane %v5500, %v5513
    %v5515 = vcombine.low %v5507, %v5514
    %v5516 = vcombine.low %v5384, %v5385
    %v5517 = vcombine.low %v5386, %v5387
    %v5519 = vunpack.c.l.s4 1983009808
    %v5520 = vunpack.c.0.s8 %v5519
    %v5521 = vlaneseq
    %v5522 = vshrl.u32 %v5521, 7
    %v5523 = vsub.s32 %v5520, %v5522
    %v5524 = vrot.slane %v5516, %v5523
    %v5526 = vunpack.c.l.s4 1983009808
    %v5527 = vunpack.c.0.s8 %v5526
    %v5528 = vlaneseq
    %v5529 = vshrl.u32 %v5528, 7
    %v5530 = vsub.s32 %v5527, %v5529
    %v5531 = vrot.slane %v5517, %v5530
    %v5532 = vcombine.low %v5524, %v5531
    %v5533 = vcombine.low %v5388, %v5389
    %v5534 = vcombine.low %v5390, %v5391
    %v5536 = vunpack.c.l.s4 1983009808
    %v5537 = vunpack.c.0.s8 %v5536
    %v5538 = vlaneseq
    %v5539 = vshrl.u32 %v5538, 7
    %v5540 = vsub.s32 %v5537, %v5539
    %v5541 = vrot.slane %v5533, %v5540
    %v5543 = vunpack.c.l.s4 1983009808
    %v5544 = vunpack.c.0.s8 %v5543
    %v5545 = vlaneseq
    %v5546 = vshrl.u32 %v5545, 7
    %v5547 = vsub.s32 %v5544, %v5546
    %v5548 = vrot.slane %v5534, %v5547
    %v5549 = vcombine.low %v5541, %v5548
    %v5550 = vcombine.low %v5392, %v5393
    %v5551 = vcombine.low %v5394, %v5395
    %v5553 = vunpack.c.l.s4 1983009808
    %v5554 = vunpack.c.0.s8 %v5553
    %v5555 = vlaneseq
    %v5556 = vshrl.u32 %v5555, 7
    %v5557 = vsub.s32 %v5554, %v5556
    %v5558 = vrot.slane %v5550, %v5557
    %v5560 = vunpack.c.l.s4 1983009808
    %v5561 = vunpack.c.0.s8 %v5560
    %v5562 = vlaneseq
    %v5563 = vshrl.u32 %v5562, 7
    %v5564 = vsub.s32 %v5561, %v5563
    %v5565 = vrot.slane %v5551, %v5564
    %v5566 = vcombine.low %v5558, %v5565
    %v5567 = vcombine.low %v5396, %v5397
    %v5568 = vcombine.low %v5398, %v5399
    %v5570 = vunpack.c.l.s4 1983009808
    %v5571 = vunpack.c.0.s8 %v5570
    %v5572 = vlaneseq
    %v5573 = vshrl.u32 %v5572, 7
    %v5574 = vsub.s32 %v5571, %v5573
    %v5575 = vrot.slane %v5567, %v5574
    %v5577 = vunpack.c.l.s4 1983009808
    %v5578 = vunpack.c.0.s8 %v5577
    %v5579 = vlaneseq
    %v5580 = vshrl.u32 %v5579, 7
    %v5581 = vsub.s32 %v5578, %v5580
    %v5582 = vrot.slane %v5568, %v5581
    %v5583 = vcombine.low %v5575, %v5582
    %v5584 = vcombine.low %v5400, %v5401
    %v5585 = vcombine.low %v5402, %v5403
    %v5587 = vunpack.c.l.s4 1983009808
    %v5588 = vunpack.c.0.s8 %v5587
    %v5589 = vlaneseq
    %v5590 = vshrl.u32 %v5589, 7
    %v5591 = vsub.s32 %v5588, %v5590
    %v5592 = vrot.slane %v5584, %v5591
    %v5594 = vunpack.c.l.s4 1983009808
    %v5595 = vunpack.c.0.s8 %v5594
    %v5596 = vlaneseq
    %v5597 = vshrl.u32 %v5596, 7
    %v5598 = vsub.s32 %v5595, %v5597
    %v5599 = vrot.slane %v5585, %v5598
    %v5600 = vcombine.low %v5592, %v5599
    %v5601 = vcombine.low %v5404, %v5405
    %v5602 = vcombine.low %v5406, %v5407
    %v5604 = vunpack.c.l.s4 1983009808
    %v5605 = vunpack.c.0.s8 %v5604
    %v5606 = vlaneseq
    %v5607 = vshrl.u32 %v5606, 7
    %v5608 = vsub.s32 %v5605, %v5607
    %v5609 = vrot.slane %v5601, %v5608
    %v5611 = vunpack.c.l.s4 1983009808
    %v5612 = vunpack.c.0.s8 %v5611
    %v5613 = vlaneseq
    %v5614 = vshrl.u32 %v5613, 7
    %v5615 = vsub.s32 %v5612, %v5614
    %v5616 = vrot.slane %v5602, %v5615
    %v5617 = vcombine.low %v5609, %v5616
    %vm5618 = vcmask 1044484
    %v5619 = vsel %vm5618, %v5464, %v5464
    %vm5620 = vcmask 1046534
    %v5621 = vsel %vm5620, %v5464, %v5619
    %v5622 = vrot.slane %v5549, 7
    %vm5623 = vcmask 1041409
    %v5624 = vsel %vm5623, %v5622, %v5621
    %vm5625 = vcmask 1043459
    %v5626 = vsel %vm5625, %v5622, %v5624
    %vm5627 = vcmask 1045509
    %v5628 = vsel %vm5627, %v5622, %v5626
    %vm5629 = vcmask 1047559
    %v5630 = vsel %vm5629, %v5622, %v5628
    %v5631 = vsel %vm5618, %v5481, %v5481
    %v5632 = vsel %vm5620, %v5481, %v5631
    %v5633 = vrot.slane %v5566, 7
    %v5634 = vsel %vm5623, %v5633, %v5632
    %v5635 = vsel %vm5625, %v5633, %v5634
    %v5636 = vsel %vm5627, %v5633, %v5635
    %v5637 = vsel %vm5629, %v5633, %v5636
    %v5638 = vsel %vm5618, %v5498, %v5498
    %v5639 = vsel %vm5620, %v5498, %v5638
    %v5640 = vrot.slane %v5583, 7
    %v5641 = vsel %vm5623, %v5640, %v5639
    %v5642 = vsel %vm5625, %v5640, %v5641
    %v5643 = vsel %vm5627, %v5640, %v5642
    %v5644 = vsel %vm5629, %v5640, %v5643
    %v5645 = vsel %vm5618, %v5515, %v5515
    %v5646 = vsel %vm5620, %v5515, %v5645
    %v5647 = vrot.slane %v5600, 7
    %v5648 = vsel %vm5623, %v5647, %v5646
    %v5649 = vsel %vm5625, %v5647, %v5648
    %v5650 = vsel %vm5627, %v5647, %v5649
    %v5651 = vsel %vm5629, %v5647, %v5650
    %v5652 = vsel %vm5618, %v5532, %v5532
    %v5653 = vsel %vm5620, %v5532, %v5652
    %v5654 = vrot.slane %v5617, 7
    %v5655 = vsel %vm5623, %v5654, %v5653
    %v5656 = vsel %vm5625, %v5654, %v5655
    %v5657 = vsel %vm5627, %v5654, %v5656
    %v5658 = vsel %vm5629, %v5654, %v5657
    %5664 = vst [vmem:[#allocation4] sm:$0xff] %v5630
    %5665 = vst [vmem:[#allocation4 + $0x8] sm:$0xff] %v5637
    %5666 = vst [vmem:[#allocation4 + $0x10] sm:$0xff] %v5644
    %5667 = vst [vmem:[#allocation4 + $0x18] sm:$0xff] %v5651
    %5668 = vst [vmem:[#allocation4 + $0x20] sm:$0xff] %v5658
    %v5669 = vpack.c.bf16 %v5368, %v5368
    %v5670 = vpack.c.bf16 %v5369, %v5369
    %v5671 = vpack.c.bf16 %v5370, %v5370
    %v5672 = vpack.c.bf16 %v5371, %v5371
    %v5673 = vpack.c.bf16 %v5372, %v5372
    %v5674 = vpack.c.bf16 %v5373, %v5373
    %v5675 = vpack.c.bf16 %v5374, %v5374
    %v5676 = vpack.c.bf16 %v5375, %v5375
    %v5677 = vpack.c.bf16 %v5376, %v5376
    %v5678 = vpack.c.bf16 %v5377, %v5377
    %v5679 = vpack.c.bf16 %v5378, %v5378
    %v5680 = vpack.c.bf16 %v5379, %v5379
    %v5681 = vpack.c.bf16 %v5380, %v5380
    %v5682 = vpack.c.bf16 %v5381, %v5381
    %v5683 = vpack.c.bf16 %v5382, %v5382
    %v5684 = vpack.c.bf16 %v5383, %v5383
    %v5685 = vpack.c.bf16 %v5384, %v5384
    %v5686 = vpack.c.bf16 %v5385, %v5385
    %v5687 = vpack.c.bf16 %v5386, %v5386
    %v5688 = vpack.c.bf16 %v5387, %v5387
    %v5689 = vpack.c.bf16 %v5388, %v5388
    %v5690 = vpack.c.bf16 %v5389, %v5389
    %v5691 = vpack.c.bf16 %v5390, %v5390
    %v5692 = vpack.c.bf16 %v5391, %v5391
    %v5693 = vpack.c.bf16 %v5392, %v5392
    %v5694 = vpack.c.bf16 %v5393, %v5393
    %v5695 = vpack.c.bf16 %v5394, %v5394
    %v5696 = vpack.c.bf16 %v5395, %v5395
    %v5697 = vpack.c.bf16 %v5396, %v5396
    %v5698 = vpack.c.bf16 %v5397, %v5397
    %v5699 = vpack.c.bf16 %v5398, %v5398
    %v5700 = vpack.c.bf16 %v5399, %v5399
    %v5701 = vpack.c.bf16 %v5400, %v5400
    %v5702 = vpack.c.bf16 %v5401, %v5401
    %v5703 = vpack.c.bf16 %v5402, %v5402
    %v5704 = vpack.c.bf16 %v5403, %v5403
    %v5705 = vpack.c.bf16 %v5404, %v5404
    %v5706 = vpack.c.bf16 %v5405, %v5405
    %v5707 = vpack.c.bf16 %v5406, %v5406
    %v5708 = vpack.c.bf16 %v5407, %v5407
    %v5709 = vld [vmem:[%s6] sm:$0xf]
    %v5710 = vld [vmem:[%s6 + $0x4] sm:$0xf]
    %v5711 = vld [vmem:[%s6 + $0x8] sm:$0xf]
    %v5712 = vld [vmem:[%s6 + $0xc] sm:$0xf]
    %v5713 = vld [vmem:[%s6 + $0x10] sm:$0xf]
    %v5714 = vld [vmem:[%s6 + $0x14] sm:$0xf]
    %v5715 = vld [vmem:[%s6 + $0x18] sm:$0xf]
    %v5716 = vld [vmem:[%s6 + $0x1c] sm:$0xf]
    %v5717 = vld [vmem:[%s6 + $0x20] sm:$0xf]
    %v5718 = vld [vmem:[%s6 + $0x24] sm:$0xf]
    %v5719 = vld [vmem:[%s6 + $0x28] sm:$0xf]
    %v5720 = vld [vmem:[%s6 + $0x2c] sm:$0xf]
    %v5721 = vld [vmem:[%s6 + $0x30] sm:$0xf]
    %v5722 = vld [vmem:[%s6 + $0x34] sm:$0xf]
    %v5723 = vld [vmem:[%s6 + $0x38] sm:$0xf]
    %v5724 = vld [vmem:[%s6 + $0x3c] sm:$0xf]
    %v5725 = vld [vmem:[%s6 + $0x40] sm:$0xf]
    %v5726 = vld [vmem:[%s6 + $0x44] sm:$0xf]
    %v5727 = vld [vmem:[%s6 + $0x48] sm:$0xf]
    %v5728 = vld [vmem:[%s6 + $0x4c] sm:$0xf]
    %v5729 = vld [vmem:[%s6 + $0x50] sm:$0xf]
    %v5730 = vld [vmem:[%s6 + $0x54] sm:$0xf]
    %v5731 = vld [vmem:[%s6 + $0x58] sm:$0xf]
    %v5732 = vld [vmem:[%s6 + $0x5c] sm:$0xf]
    %v5733 = vld [vmem:[%s6 + $0x60] sm:$0xf]
    %v5734 = vld [vmem:[%s6 + $0x64] sm:$0xf]
    %v5735 = vld [vmem:[%s6 + $0x68] sm:$0xf]
    %v5736 = vld [vmem:[%s6 + $0x6c] sm:$0xf]
    %v5737 = vld [vmem:[%s6 + $0x70] sm:$0xf]
    %v5738 = vld [vmem:[%s6 + $0x74] sm:$0xf]
    %v5739 = vld [vmem:[%s6 + $0x78] sm:$0xf]
    %v5740 = vld [vmem:[%s6 + $0x7c] sm:$0xf]
    %v5741 = vld [vmem:[%s6 + $0x80] sm:$0xf]
    %v5742 = vld [vmem:[%s6 + $0x84] sm:$0xf]
    %v5743 = vld [vmem:[%s6 + $0x88] sm:$0xf]
    %v5744 = vld [vmem:[%s6 + $0x8c] sm:$0xf]
    %v5745 = vld [vmem:[%s6 + $0x90] sm:$0xf]
    %v5746 = vld [vmem:[%s6 + $0x94] sm:$0xf]
    %v5747 = vld [vmem:[%s6 + $0x98] sm:$0xf]
    %v5748 = vld [vmem:[%s6 + $0x9c] sm:$0xf]
    %v5749 = vld [vmem:[%s6 + $0xa0] sm:$0xf]
    %v5750 = vld [vmem:[%s6 + $0xa4] sm:$0xf]
    %v5751 = vld [vmem:[%s6 + $0xa8] sm:$0xf]
    %v5752 = vld [vmem:[%s6 + $0xac] sm:$0xf]
    %v5753 = vld [vmem:[%s6 + $0xb0] sm:$0xf]
    %v5754 = vld [vmem:[%s6 + $0xb4] sm:$0xf]
    %v5755 = vld [vmem:[%s6 + $0xb8] sm:$0xf]
    %v5756 = vld [vmem:[%s6 + $0xbc] sm:$0xf]
    %v5757 = vld [vmem:[%s6 + $0xc0] sm:$0xf]
    %v5758 = vld [vmem:[%s6 + $0xc4] sm:$0xf]
    %v5759 = vld [vmem:[%s6 + $0xc8] sm:$0xf]
    %v5760 = vld [vmem:[%s6 + $0xcc] sm:$0xf]
    %v5761 = vld [vmem:[%s6 + $0xd0] sm:$0xf]
    %v5762 = vld [vmem:[%s6 + $0xd4] sm:$0xf]
    %v5763 = vld [vmem:[%s6 + $0xd8] sm:$0xf]
    %v5764 = vld [vmem:[%s6 + $0xdc] sm:$0xf]
    %v5765 = vld [vmem:[%s6 + $0xe0] sm:$0xf]
    %v5766 = vld [vmem:[%s6 + $0xe4] sm:$0xf]
    %v5767 = vld [vmem:[%s6 + $0xe8] sm:$0xf]
    %v5768 = vld [vmem:[%s6 + $0xec] sm:$0xf]
    %v5769 = vld [vmem:[%s6 + $0xf0] sm:$0xf]
    %v5770 = vld [vmem:[%s6 + $0xf4] sm:$0xf]
    %v5771 = vld [vmem:[%s6 + $0xf8] sm:$0xf]
    %v5772 = vld [vmem:[%s6 + $0xfc] sm:$0xf]
    %v5773 = vld [vmem:[%s6 + $0x100] sm:$0xf]
    %v5774 = vld [vmem:[%s6 + $0x104] sm:$0xf]
    %v5775 = vld [vmem:[%s6 + $0x108] sm:$0xf]
    %v5776 = vld [vmem:[%s6 + $0x10c] sm:$0xf]
    %v5777 = vld [vmem:[%s6 + $0x110] sm:$0xf]
    %v5778 = vld [vmem:[%s6 + $0x114] sm:$0xf]
    %v5779 = vld [vmem:[%s6 + $0x118] sm:$0xf]
    %v5780 = vld [vmem:[%s6 + $0x11c] sm:$0xf]
    %v5781 = vld [vmem:[%s6 + $0x120] sm:$0xf]
    %v5782 = vld [vmem:[%s6 + $0x124] sm:$0xf]
    %v5783 = vld [vmem:[%s6 + $0x128] sm:$0xf]
    %v5784 = vld [vmem:[%s6 + $0x12c] sm:$0xf]
    %v5785 = vld [vmem:[%s6 + $0x130] sm:$0xf]
    %v5786 = vld [vmem:[%s6 + $0x134] sm:$0xf]
    %v5787 = vld [vmem:[%s6 + $0x138] sm:$0xf]
    %v5788 = vld [vmem:[%s6 + $0x13c] sm:$0xf]
    %v5789 = vld [vmem:[%s6 + $0x140] sm:$0xf]
    %v5790 = vld [vmem:[%s6 + $0x144] sm:$0xf]
    %v5791 = vld [vmem:[%s6 + $0x148] sm:$0xf]
    %v5792 = vld [vmem:[%s6 + $0x14c] sm:$0xf]
    %v5793 = vld [vmem:[%s6 + $0x150] sm:$0xf]
    %v5794 = vld [vmem:[%s6 + $0x154] sm:$0xf]
    %v5795 = vld [vmem:[%s6 + $0x158] sm:$0xf]
    %v5796 = vld [vmem:[%s6 + $0x15c] sm:$0xf]
    %v5797 = vld [vmem:[%s6 + $0x160] sm:$0xf]
    %v5798 = vld [vmem:[%s6 + $0x164] sm:$0xf]
    %v5799 = vld [vmem:[%s6 + $0x168] sm:$0xf]
    %v5800 = vld [vmem:[%s6 + $0x16c] sm:$0xf]
    %v5801 = vld [vmem:[%s6 + $0x170] sm:$0xf]
    %v5802 = vld [vmem:[%s6 + $0x174] sm:$0xf]
    %v5803 = vld [vmem:[%s6 + $0x178] sm:$0xf]
    %v5804 = vld [vmem:[%s6 + $0x17c] sm:$0xf]
    %v5805 = vld [vmem:[%s6 + $0x180] sm:$0xf]
    %v5806 = vld [vmem:[%s6 + $0x184] sm:$0xf]
    %v5807 = vld [vmem:[%s6 + $0x188] sm:$0xf]
    %v5808 = vld [vmem:[%s6 + $0x18c] sm:$0xf]
    %v5809 = vld [vmem:[%s6 + $0x190] sm:$0xf]
    %v5810 = vld [vmem:[%s6 + $0x194] sm:$0xf]
    %v5811 = vld [vmem:[%s6 + $0x198] sm:$0xf]
    %v5812 = vld [vmem:[%s6 + $0x19c] sm:$0xf]
    %v5813 = vld [vmem:[%s6 + $0x1a0] sm:$0xf]
    %v5814 = vld [vmem:[%s6 + $0x1a4] sm:$0xf]
    %v5815 = vld [vmem:[%s6 + $0x1a8] sm:$0xf]
    %v5816 = vld [vmem:[%s6 + $0x1ac] sm:$0xf]
    %v5817 = vld [vmem:[%s6 + $0x1b0] sm:$0xf]
    %v5818 = vld [vmem:[%s6 + $0x1b4] sm:$0xf]
    %v5819 = vld [vmem:[%s6 + $0x1b8] sm:$0xf]
    %v5820 = vld [vmem:[%s6 + $0x1bc] sm:$0xf]
    %v5821 = vld [vmem:[%s6 + $0x1c0] sm:$0xf]
    %v5822 = vld [vmem:[%s6 + $0x1c4] sm:$0xf]
    %v5823 = vld [vmem:[%s6 + $0x1c8] sm:$0xf]
    %v5824 = vld [vmem:[%s6 + $0x1cc] sm:$0xf]
    %v5825 = vld [vmem:[%s6 + $0x1d0] sm:$0xf]
    %v5826 = vld [vmem:[%s6 + $0x1d4] sm:$0xf]
    %v5827 = vld [vmem:[%s6 + $0x1d8] sm:$0xf]
    %v5828 = vld [vmem:[%s6 + $0x1dc] sm:$0xf]
    %v5829 = vld [vmem:[%s6 + $0x1e0] sm:$0xf]
    %v5830 = vld [vmem:[%s6 + $0x1e4] sm:$0xf]
    %v5831 = vld [vmem:[%s6 + $0x1e8] sm:$0xf]
    %v5832 = vld [vmem:[%s6 + $0x1ec] sm:$0xf]
    %v5833 = vld [vmem:[%s6 + $0x1f0] sm:$0xf]
    %v5834 = vld [vmem:[%s6 + $0x1f4] sm:$0xf]
    %v5835 = vld [vmem:[%s6 + $0x1f8] sm:$0xf]
    %v5836 = vld [vmem:[%s6 + $0x1fc] sm:$0xf]
    %v5837 = vld [vmem:[%s6 + $0x200] sm:$0xf]
    %v5838 = vld [vmem:[%s6 + $0x204] sm:$0xf]
    %v5839 = vld [vmem:[%s6 + $0x208] sm:$0xf]
    %v5840 = vld [vmem:[%s6 + $0x20c] sm:$0xf]
    %v5841 = vld [vmem:[%s6 + $0x210] sm:$0xf]
    %v5842 = vld [vmem:[%s6 + $0x214] sm:$0xf]
    %v5843 = vld [vmem:[%s6 + $0x218] sm:$0xf]
    %v5844 = vld [vmem:[%s6 + $0x21c] sm:$0xf]
    %v5845 = vld [vmem:[%s6 + $0x220] sm:$0xf]
    %v5846 = vld [vmem:[%s6 + $0x224] sm:$0xf]
    %v5847 = vld [vmem:[%s6 + $0x228] sm:$0xf]
    %v5848 = vld [vmem:[%s6 + $0x22c] sm:$0xf]
    %v5849 = vld [vmem:[%s6 + $0x230] sm:$0xf]
    %v5850 = vld [vmem:[%s6 + $0x234] sm:$0xf]
    %v5851 = vld [vmem:[%s6 + $0x238] sm:$0xf]
    %v5852 = vld [vmem:[%s6 + $0x23c] sm:$0xf]
    %v5853 = vld [vmem:[%s6 + $0x240] sm:$0xf]
    %v5854 = vld [vmem:[%s6 + $0x244] sm:$0xf]
    %v5855 = vld [vmem:[%s6 + $0x248] sm:$0xf]
    %v5856 = vld [vmem:[%s6 + $0x24c] sm:$0xf]
    %v5857 = vld [vmem:[%s6 + $0x250] sm:$0xf]
    %v5858 = vld [vmem:[%s6 + $0x254] sm:$0xf]
    %v5859 = vld [vmem:[%s6 + $0x258] sm:$0xf]
    %v5860 = vld [vmem:[%s6 + $0x25c] sm:$0xf]
    %v5861 = vld [vmem:[%s6 + $0x260] sm:$0xf]
    %v5862 = vld [vmem:[%s6 + $0x264] sm:$0xf]
    %v5863 = vld [vmem:[%s6 + $0x268] sm:$0xf]
    %v5864 = vld [vmem:[%s6 + $0x26c] sm:$0xf]
    %v5865 = vld [vmem:[%s6 + $0x270] sm:$0xf]
    %v5866 = vld [vmem:[%s6 + $0x274] sm:$0xf]
    %v5867 = vld [vmem:[%s6 + $0x278] sm:$0xf]
    %v5868 = vld [vmem:[%s6 + $0x27c] sm:$0xf]
    %v5869 = vld [vmem:[%s6 + $0x280] sm:$0xf]
    %v5870 = vld [vmem:[%s6 + $0x284] sm:$0xf]
    %v5871 = vld [vmem:[%s6 + $0x288] sm:$0xf]
    %v5872 = vld [vmem:[%s6 + $0x28c] sm:$0xf]
    %v5873 = vld [vmem:[%s6 + $0x290] sm:$0xf]
    %v5874 = vld [vmem:[%s6 + $0x294] sm:$0xf]
    %v5875 = vld [vmem:[%s6 + $0x298] sm:$0xf]
    %v5876 = vld [vmem:[%s6 + $0x29c] sm:$0xf]
    %v5877 = vld [vmem:[%s6 + $0x2a0] sm:$0xf]
    %v5878 = vld [vmem:[%s6 + $0x2a4] sm:$0xf]
    %v5879 = vld [vmem:[%s6 + $0x2a8] sm:$0xf]
    %v5880 = vld [vmem:[%s6 + $0x2ac] sm:$0xf]
    %v5881 = vld [vmem:[%s6 + $0x2b0] sm:$0xf]
    %v5882 = vld [vmem:[%s6 + $0x2b4] sm:$0xf]
    %v5883 = vld [vmem:[%s6 + $0x2b8] sm:$0xf]
    %v5884 = vld [vmem:[%s6 + $0x2bc] sm:$0xf]
    %v5885 = vld [vmem:[%s6 + $0x2c0] sm:$0xf]
    %v5886 = vld [vmem:[%s6 + $0x2c4] sm:$0xf]
    %v5887 = vld [vmem:[%s6 + $0x2c8] sm:$0xf]
    %v5888 = vld [vmem:[%s6 + $0x2cc] sm:$0xf]
    %v5889 = vld [vmem:[%s6 + $0x2d0] sm:$0xf]
    %v5890 = vld [vmem:[%s6 + $0x2d4] sm:$0xf]
    %v5891 = vld [vmem:[%s6 + $0x2d8] sm:$0xf]
    %v5892 = vld [vmem:[%s6 + $0x2dc] sm:$0xf]
    %v5893 = vld [vmem:[%s6 + $0x2e0] sm:$0xf]
    %v5894 = vld [vmem:[%s6 + $0x2e4] sm:$0xf]
    %v5895 = vld [vmem:[%s6 + $0x2e8] sm:$0xf]
    %v5896 = vld [vmem:[%s6 + $0x2ec] sm:$0xf]
    %v5897 = vld [vmem:[%s6 + $0x2f0] sm:$0xf]
    %v5898 = vld [vmem:[%s6 + $0x2f4] sm:$0xf]
    %v5899 = vld [vmem:[%s6 + $0x2f8] sm:$0xf]
    %v5900 = vld [vmem:[%s6 + $0x2fc] sm:$0xf]
    %v5901 = vld [vmem:[%s6 + $0x300] sm:$0xf]
    %v5902 = vld [vmem:[%s6 + $0x304] sm:$0xf]
    %v5903 = vld [vmem:[%s6 + $0x308] sm:$0xf]
    %v5904 = vld [vmem:[%s6 + $0x30c] sm:$0xf]
    %v5905 = vld [vmem:[%s6 + $0x310] sm:$0xf]
    %v5906 = vld [vmem:[%s6 + $0x314] sm:$0xf]
    %v5907 = vld [vmem:[%s6 + $0x318] sm:$0xf]
    %v5908 = vld [vmem:[%s6 + $0x31c] sm:$0xf]
    %v5909 = vld [vmem:[%s6 + $0x320] sm:$0xf]
    %v5910 = vld [vmem:[%s6 + $0x324] sm:$0xf]
    %v5911 = vld [vmem:[%s6 + $0x328] sm:$0xf]
    %v5912 = vld [vmem:[%s6 + $0x32c] sm:$0xf]
    %v5913 = vld [vmem:[%s6 + $0x330] sm:$0xf]
    %v5914 = vld [vmem:[%s6 + $0x334] sm:$0xf]
    %v5915 = vld [vmem:[%s6 + $0x338] sm:$0xf]
    %v5916 = vld [vmem:[%s6 + $0x33c] sm:$0xf]
    %v5917 = vld [vmem:[%s6 + $0x340] sm:$0xf]
    %v5918 = vld [vmem:[%s6 + $0x344] sm:$0xf]
    %v5919 = vld [vmem:[%s6 + $0x348] sm:$0xf]
    %v5920 = vld [vmem:[%s6 + $0x34c] sm:$0xf]
    %v5921 = vld [vmem:[%s6 + $0x350] sm:$0xf]
    %v5922 = vld [vmem:[%s6 + $0x354] sm:$0xf]
    %v5923 = vld [vmem:[%s6 + $0x358] sm:$0xf]
    %v5924 = vld [vmem:[%s6 + $0x35c] sm:$0xf]
    %v5925 = vld [vmem:[%s6 + $0x360] sm:$0xf]
    %v5926 = vld [vmem:[%s6 + $0x364] sm:$0xf]
    %v5927 = vld [vmem:[%s6 + $0x368] sm:$0xf]
    %v5928 = vld [vmem:[%s6 + $0x36c] sm:$0xf]
    %v5929 = vld [vmem:[%s6 + $0x370] sm:$0xf]
    %v5930 = vld [vmem:[%s6 + $0x374] sm:$0xf]
    %v5931 = vld [vmem:[%s6 + $0x378] sm:$0xf]
    %v5932 = vld [vmem:[%s6 + $0x37c] sm:$0xf]
    %v5933 = vld [vmem:[%s6 + $0x380] sm:$0xf]
    %v5934 = vld [vmem:[%s6 + $0x384] sm:$0xf]
    %v5935 = vld [vmem:[%s6 + $0x388] sm:$0xf]
    %v5936 = vld [vmem:[%s6 + $0x38c] sm:$0xf]
    %v5937 = vld [vmem:[%s6 + $0x390] sm:$0xf]
    %v5938 = vld [vmem:[%s6 + $0x394] sm:$0xf]
    %v5939 = vld [vmem:[%s6 + $0x398] sm:$0xf]
    %v5940 = vld [vmem:[%s6 + $0x39c] sm:$0xf]
    %v5941 = vld [vmem:[%s6 + $0x3a0] sm:$0xf]
    %v5942 = vld [vmem:[%s6 + $0x3a4] sm:$0xf]
    %v5943 = vld [vmem:[%s6 + $0x3a8] sm:$0xf]
    %v5944 = vld [vmem:[%s6 + $0x3ac] sm:$0xf]
    %v5945 = vld [vmem:[%s6 + $0x3b0] sm:$0xf]
    %v5946 = vld [vmem:[%s6 + $0x3b4] sm:$0xf]
    %v5947 = vld [vmem:[%s6 + $0x3b8] sm:$0xf]
    %v5948 = vld [vmem:[%s6 + $0x3bc] sm:$0xf]
    %v5949 = vld [vmem:[%s6 + $0x3c0] sm:$0xf]
    %v5950 = vld [vmem:[%s6 + $0x3c4] sm:$0xf]
    %v5951 = vld [vmem:[%s6 + $0x3c8] sm:$0xf]
    %v5952 = vld [vmem:[%s6 + $0x3cc] sm:$0xf]
    %v5953 = vld [vmem:[%s6 + $0x3d0] sm:$0xf]
    %v5954 = vld [vmem:[%s6 + $0x3d4] sm:$0xf]
    %v5955 = vld [vmem:[%s6 + $0x3d8] sm:$0xf]
    %v5956 = vld [vmem:[%s6 + $0x3dc] sm:$0xf]
    %v5957 = vld [vmem:[%s6 + $0x3e0] sm:$0xf]
    %v5958 = vld [vmem:[%s6 + $0x3e4] sm:$0xf]
    %v5959 = vld [vmem:[%s6 + $0x3e8] sm:$0xf]
    %v5960 = vld [vmem:[%s6 + $0x3ec] sm:$0xf]
    %v5961 = vld [vmem:[%s6 + $0x3f0] sm:$0xf]
    %v5962 = vld [vmem:[%s6 + $0x3f4] sm:$0xf]
    %v5963 = vld [vmem:[%s6 + $0x3f8] sm:$0xf]
    %v5964 = vld [vmem:[%s6 + $0x3fc] sm:$0xf]
    %v5965 = vld [vmem:[%s6 + $0x400] sm:$0xf]
    %v5966 = vld [vmem:[%s6 + $0x404] sm:$0xf]
    %v5967 = vld [vmem:[%s6 + $0x408] sm:$0xf]
    %v5968 = vld [vmem:[%s6 + $0x40c] sm:$0xf]
    %v5969 = vld [vmem:[%s6 + $0x410] sm:$0xf]
    %v5970 = vld [vmem:[%s6 + $0x414] sm:$0xf]
    %v5971 = vld [vmem:[%s6 + $0x418] sm:$0xf]
    %v5972 = vld [vmem:[%s6 + $0x41c] sm:$0xf]
    %v5973 = vld [vmem:[%s6 + $0x420] sm:$0xf]
    %v5974 = vld [vmem:[%s6 + $0x424] sm:$0xf]
    %v5975 = vld [vmem:[%s6 + $0x428] sm:$0xf]
    %v5976 = vld [vmem:[%s6 + $0x42c] sm:$0xf]
    %v5977 = vld [vmem:[%s6 + $0x430] sm:$0xf]
    %v5978 = vld [vmem:[%s6 + $0x434] sm:$0xf]
    %v5979 = vld [vmem:[%s6 + $0x438] sm:$0xf]
    %v5980 = vld [vmem:[%s6 + $0x43c] sm:$0xf]
    %v5981 = vld [vmem:[%s6 + $0x440] sm:$0xf]
    %v5982 = vld [vmem:[%s6 + $0x444] sm:$0xf]
    %v5983 = vld [vmem:[%s6 + $0x448] sm:$0xf]
    %v5984 = vld [vmem:[%s6 + $0x44c] sm:$0xf]
    %v5985 = vld [vmem:[%s6 + $0x450] sm:$0xf]
    %v5986 = vld [vmem:[%s6 + $0x454] sm:$0xf]
    %v5987 = vld [vmem:[%s6 + $0x458] sm:$0xf]
    %v5988 = vld [vmem:[%s6 + $0x45c] sm:$0xf]
    %v5989 = vld [vmem:[%s6 + $0x460] sm:$0xf]
    %v5990 = vld [vmem:[%s6 + $0x464] sm:$0xf]
    %v5991 = vld [vmem:[%s6 + $0x468] sm:$0xf]
    %v5992 = vld [vmem:[%s6 + $0x46c] sm:$0xf]
    %v5993 = vld [vmem:[%s6 + $0x470] sm:$0xf]
    %v5994 = vld [vmem:[%s6 + $0x474] sm:$0xf]
    %v5995 = vld [vmem:[%s6 + $0x478] sm:$0xf]
    %v5996 = vld [vmem:[%s6 + $0x47c] sm:$0xf]
    %v5997 = vld [vmem:[%s6 + $0x480] sm:$0xf]
    %v5998 = vld [vmem:[%s6 + $0x484] sm:$0xf]
    %v5999 = vld [vmem:[%s6 + $0x488] sm:$0xf]
    %v6000 = vld [vmem:[%s6 + $0x48c] sm:$0xf]
    %v6001 = vld [vmem:[%s6 + $0x490] sm:$0xf]
    %v6002 = vld [vmem:[%s6 + $0x494] sm:$0xf]
    %v6003 = vld [vmem:[%s6 + $0x498] sm:$0xf]
    %v6004 = vld [vmem:[%s6 + $0x49c] sm:$0xf]
    %v6005 = vld [vmem:[%s6 + $0x4a0] sm:$0xf]
    %v6006 = vld [vmem:[%s6 + $0x4a4] sm:$0xf]
    %v6007 = vld [vmem:[%s6 + $0x4a8] sm:$0xf]
    %v6008 = vld [vmem:[%s6 + $0x4ac] sm:$0xf]
    %v6009 = vld [vmem:[%s6 + $0x4b0] sm:$0xf]
    %v6010 = vld [vmem:[%s6 + $0x4b4] sm:$0xf]
    %v6011 = vld [vmem:[%s6 + $0x4b8] sm:$0xf]
    %v6012 = vld [vmem:[%s6 + $0x4bc] sm:$0xf]
    %v6013 = vld [vmem:[%s6 + $0x4c0] sm:$0xf]
    %v6014 = vld [vmem:[%s6 + $0x4c4] sm:$0xf]
    %v6015 = vld [vmem:[%s6 + $0x4c8] sm:$0xf]
    %v6016 = vld [vmem:[%s6 + $0x4cc] sm:$0xf]
    %v6017 = vld [vmem:[%s6 + $0x4d0] sm:$0xf]
    %v6018 = vld [vmem:[%s6 + $0x4d4] sm:$0xf]
    %v6019 = vld [vmem:[%s6 + $0x4d8] sm:$0xf]
    %v6020 = vld [vmem:[%s6 + $0x4dc] sm:$0xf]
    %v6021 = vld [vmem:[%s6 + $0x4e0] sm:$0xf]
    %v6022 = vld [vmem:[%s6 + $0x4e4] sm:$0xf]
    %v6023 = vld [vmem:[%s6 + $0x4e8] sm:$0xf]
    %v6024 = vld [vmem:[%s6 + $0x4ec] sm:$0xf]
    %v6025 = vld [vmem:[%s6 + $0x4f0] sm:$0xf]
    %v6026 = vld [vmem:[%s6 + $0x4f4] sm:$0xf]
    %v6027 = vld [vmem:[%s6 + $0x4f8] sm:$0xf]
    %v6028 = vld [vmem:[%s6 + $0x4fc] sm:$0xf]
    %v6029 = vld [vmem:[%s7] sm:$0x1]
    %v6031 = vlaneseq
    %v6032 = vshrl.u32 %v6031, 7
    %v6033 = vsub.s32 0, %v6032
    %v6034 = vrot.slane %v6029, %v6033
    %v6076 = vunpack.c.l.b16 %v5669
    %v6077 = vunpack.c.l.b16 %v5670
    %v6078 = vunpack.c.l.b16 %v5671
    %v6079 = vunpack.c.l.b16 %v5672
    %v6080 = vunpack.c.l.b16 %v5673
    %v6081 = vunpack.c.l.b16 %v5674
    %v6082 = vunpack.c.l.b16 %v5675
    %v6083 = vunpack.c.l.b16 %v5676
    %v6084 = vunpack.c.l.b16 %v5677
    %v6085 = vunpack.c.l.b16 %v5678
    %v6086 = vunpack.c.l.b16 %v5679
    %v6087 = vunpack.c.l.b16 %v5680
    %v6088 = vunpack.c.l.b16 %v5681
    %v6089 = vunpack.c.l.b16 %v5682
    %v6090 = vunpack.c.l.b16 %v5683
    %v6091 = vunpack.c.l.b16 %v5684
    %v6092 = vunpack.c.l.b16 %v5685
    %v6093 = vunpack.c.l.b16 %v5686
    %v6094 = vunpack.c.l.b16 %v5687
    %v6095 = vunpack.c.l.b16 %v5688
    %v6096 = vunpack.c.l.b16 %v5689
    %v6097 = vunpack.c.l.b16 %v5690
    %v6098 = vunpack.c.l.b16 %v5691
    %v6099 = vunpack.c.l.b16 %v5692
    %v6100 = vunpack.c.l.b16 %v5693
    %v6101 = vunpack.c.l.b16 %v5694
    %v6102 = vunpack.c.l.b16 %v5695
    %v6103 = vunpack.c.l.b16 %v5696
    %v6104 = vunpack.c.l.b16 %v5697
    %v6105 = vunpack.c.l.b16 %v5698
    %v6106 = vunpack.c.l.b16 %v5699
    %v6107 = vunpack.c.l.b16 %v5700
    %v6108 = vunpack.c.l.b16 %v5701
    %v6109 = vunpack.c.l.b16 %v5702
    %v6110 = vunpack.c.l.b16 %v5703
    %v6111 = vunpack.c.l.b16 %v5704
    %v6112 = vunpack.c.l.b16 %v5705
    %v6113 = vunpack.c.l.b16 %v5706
    %v6114 = vunpack.c.l.b16 %v5707
    %v6115 = vunpack.c.l.b16 %v5708
    %v6116 = vsel %vm5623, %v6096, %v6076
    %v6117 = vsel %vm5623, %v6097, %v6077
    %v6118 = vsel %vm5623, %v6098, %v6078
    %v6119 = vsel %vm5623, %v6099, %v6079
    %v6120 = vsel %vm5623, %v6100, %v6080
    %v6121 = vsel %vm5623, %v6101, %v6081
    %v6122 = vsel %vm5623, %v6102, %v6082
    %v6123 = vsel %vm5623, %v6103, %v6083
    %v6124 = vsel %vm5623, %v6104, %v6084
    %v6125 = vsel %vm5623, %v6105, %v6085
    %v6126 = vsel %vm5623, %v6106, %v6086
    %v6127 = vsel %vm5623, %v6107, %v6087
    %v6128 = vsel %vm5623, %v6108, %v6088
    %v6129 = vsel %vm5623, %v6109, %v6089
    %v6130 = vsel %vm5623, %v6110, %v6090
    %v6131 = vsel %vm5623, %v6111, %v6091
    %v6132 = vsel %vm5623, %v6112, %v6092
    %v6133 = vsel %vm5623, %v6113, %v6093
    %v6134 = vsel %vm5623, %v6114, %v6094
    %v6135 = vsel %vm5623, %v6115, %v6095
    %v6136 = vpack.c.b16 %v6116, %v6116
    %v6137 = vpack.c.b16 %v6117, %v6117
    %v6138 = vpack.c.b16 %v6118, %v6118
    %v6139 = vpack.c.b16 %v6119, %v6119
    %v6140 = vpack.c.b16 %v6120, %v6120
    %v6141 = vpack.c.b16 %v6121, %v6121
    %v6142 = vpack.c.b16 %v6122, %v6122
    %v6143 = vpack.c.b16 %v6123, %v6123
    %v6144 = vpack.c.b16 %v6124, %v6124
    %v6145 = vpack.c.b16 %v6125, %v6125
    %v6146 = vpack.c.b16 %v6126, %v6126
    %v6147 = vpack.c.b16 %v6127, %v6127
    %v6148 = vpack.c.b16 %v6128, %v6128
    %v6149 = vpack.c.b16 %v6129, %v6129
    %v6150 = vpack.c.b16 %v6130, %v6130
    %v6151 = vpack.c.b16 %v6131, %v6131
    %v6152 = vpack.c.b16 %v6132, %v6132
    %v6153 = vpack.c.b16 %v6133, %v6133
    %v6154 = vpack.c.b16 %v6134, %v6134
    %v6155 = vpack.c.b16 %v6135, %v6135
    %v6496 = vunpack.c.l.b16 %v5709
    %v6497 = vunpack.c.l.b16 %v5710
    %v6498 = vunpack.c.l.b16 %v5711
    %v6499 = vunpack.c.l.b16 %v5712
    %v6500 = vunpack.c.l.b16 %v5713
    %v6501 = vunpack.c.l.b16 %v5714
    %v6502 = vunpack.c.l.b16 %v5715
    %v6503 = vunpack.c.l.b16 %v5716
    %v6504 = vunpack.c.l.b16 %v5717
    %v6505 = vunpack.c.l.b16 %v5718
    %v6506 = vunpack.c.l.b16 %v5719
    %v6507 = vunpack.c.l.b16 %v5720
    %v6508 = vunpack.c.l.b16 %v5721
    %v6509 = vunpack.c.l.b16 %v5722
    %v6510 = vunpack.c.l.b16 %v5723
    %v6511 = vunpack.c.l.b16 %v5724
    %v6512 = vunpack.c.l.b16 %v5725
    %v6513 = vunpack.c.l.b16 %v5726
    %v6514 = vunpack.c.l.b16 %v5727
    %v6515 = vunpack.c.l.b16 %v5728
    %v6516 = vunpack.c.l.b16 %v5729
    %v6517 = vunpack.c.l.b16 %v5730
    %v6518 = vunpack.c.l.b16 %v5731
    %v6519 = vunpack.c.l.b16 %v5732
    %v6520 = vunpack.c.l.b16 %v5733
    %v6521 = vunpack.c.l.b16 %v5734
    %v6522 = vunpack.c.l.b16 %v5735
    %v6523 = vunpack.c.l.b16 %v5736
    %v6524 = vunpack.c.l.b16 %v5737
    %v6525 = vunpack.c.l.b16 %v5738
    %v6526 = vunpack.c.l.b16 %v5739
    %v6527 = vunpack.c.l.b16 %v5740
    %v6528 = vunpack.c.l.b16 %v5741
    %v6529 = vunpack.c.l.b16 %v5742
    %v6530 = vunpack.c.l.b16 %v5743
    %v6531 = vunpack.c.l.b16 %v5744
    %v6532 = vunpack.c.l.b16 %v5745
    %v6533 = vunpack.c.l.b16 %v5746
    %v6534 = vunpack.c.l.b16 %v5747
    %v6535 = vunpack.c.l.b16 %v5748
    %v6536 = vunpack.c.l.b16 %v5749
    %v6537 = vunpack.c.l.b16 %v5750
    %v6538 = vunpack.c.l.b16 %v5751
    %v6539 = vunpack.c.l.b16 %v5752
    %v6540 = vunpack.c.l.b16 %v5753
    %v6541 = vunpack.c.l.b16 %v5754
    %v6542 = vunpack.c.l.b16 %v5755
    %v6543 = vunpack.c.l.b16 %v5756
    %v6544 = vunpack.c.l.b16 %v5757
    %v6545 = vunpack.c.l.b16 %v5758
    %v6546 = vunpack.c.l.b16 %v5759
    %v6547 = vunpack.c.l.b16 %v5760
    %v6548 = vunpack.c.l.b16 %v5761
    %v6549 = vunpack.c.l.b16 %v5762
    %v6550 = vunpack.c.l.b16 %v5763
    %v6551 = vunpack.c.l.b16 %v5764
    %v6552 = vunpack.c.l.b16 %v5765
    %v6553 = vunpack.c.l.b16 %v5766
    %v6554 = vunpack.c.l.b16 %v5767
    %v6555 = vunpack.c.l.b16 %v5768
    %v6556 = vunpack.c.l.b16 %v5769
    %v6557 = vunpack.c.l.b16 %v5770
    %v6558 = vunpack.c.l.b16 %v5771
    %v6559 = vunpack.c.l.b16 %v5772
    %v6560 = vunpack.c.l.b16 %v5773
    %v6561 = vunpack.c.l.b16 %v5774
    %v6562 = vunpack.c.l.b16 %v5775
    %v6563 = vunpack.c.l.b16 %v5776
    %v6564 = vunpack.c.l.b16 %v5777
    %v6565 = vunpack.c.l.b16 %v5778
    %v6566 = vunpack.c.l.b16 %v5779
    %v6567 = vunpack.c.l.b16 %v5780
    %v6568 = vunpack.c.l.b16 %v5781
    %v6569 = vunpack.c.l.b16 %v5782
    %v6570 = vunpack.c.l.b16 %v5783
    %v6571 = vunpack.c.l.b16 %v5784
    %v6572 = vunpack.c.l.b16 %v5785
    %v6573 = vunpack.c.l.b16 %v5786
    %v6574 = vunpack.c.l.b16 %v5787
    %v6575 = vunpack.c.l.b16 %v5788
    %v6576 = vunpack.c.l.b16 %v5789
    %v6577 = vunpack.c.l.b16 %v5790
    %v6578 = vunpack.c.l.b16 %v5791
    %v6579 = vunpack.c.l.b16 %v5792
    %v6580 = vunpack.c.l.b16 %v5793
    %v6581 = vunpack.c.l.b16 %v5794
    %v6582 = vunpack.c.l.b16 %v5795
    %v6583 = vunpack.c.l.b16 %v5796
    %v6584 = vunpack.c.l.b16 %v5797
    %v6585 = vunpack.c.l.b16 %v5798
    %v6586 = vunpack.c.l.b16 %v5799
    %v6587 = vunpack.c.l.b16 %v5800
    %v6588 = vunpack.c.l.b16 %v5801
    %v6589 = vunpack.c.l.b16 %v5802
    %v6590 = vunpack.c.l.b16 %v5803
    %v6591 = vunpack.c.l.b16 %v5804
    %v6592 = vunpack.c.l.b16 %v5805
    %v6593 = vunpack.c.l.b16 %v5806
    %v6594 = vunpack.c.l.b16 %v5807
    %v6595 = vunpack.c.l.b16 %v5808
    %v6596 = vunpack.c.l.b16 %v5809
    %v6597 = vunpack.c.l.b16 %v5810
    %v6598 = vunpack.c.l.b16 %v5811
    %v6599 = vunpack.c.l.b16 %v5812
    %v6600 = vunpack.c.l.b16 %v5813
    %v6601 = vunpack.c.l.b16 %v5814
    %v6602 = vunpack.c.l.b16 %v5815
    %v6603 = vunpack.c.l.b16 %v5816
    %v6604 = vunpack.c.l.b16 %v5817
    %v6605 = vunpack.c.l.b16 %v5818
    %v6606 = vunpack.c.l.b16 %v5819
    %v6607 = vunpack.c.l.b16 %v5820
    %v6608 = vunpack.c.l.b16 %v5821
    %v6609 = vunpack.c.l.b16 %v5822
    %v6610 = vunpack.c.l.b16 %v5823
    %v6611 = vunpack.c.l.b16 %v5824
    %v6612 = vunpack.c.l.b16 %v5825
    %v6613 = vunpack.c.l.b16 %v5826
    %v6614 = vunpack.c.l.b16 %v5827
    %v6615 = vunpack.c.l.b16 %v5828
    %v6616 = vunpack.c.l.b16 %v5829
    %v6617 = vunpack.c.l.b16 %v5830
    %v6618 = vunpack.c.l.b16 %v5831
    %v6619 = vunpack.c.l.b16 %v5832
    %v6620 = vunpack.c.l.b16 %v5833
    %v6621 = vunpack.c.l.b16 %v5834
    %v6622 = vunpack.c.l.b16 %v5835
    %v6623 = vunpack.c.l.b16 %v5836
    %v6624 = vunpack.c.l.b16 %v5837
    %v6625 = vunpack.c.l.b16 %v5838
    %v6626 = vunpack.c.l.b16 %v5839
    %v6627 = vunpack.c.l.b16 %v5840
    %v6628 = vunpack.c.l.b16 %v5841
    %v6629 = vunpack.c.l.b16 %v5842
    %v6630 = vunpack.c.l.b16 %v5843
    %v6631 = vunpack.c.l.b16 %v5844
    %v6632 = vunpack.c.l.b16 %v5845
    %v6633 = vunpack.c.l.b16 %v5846
    %v6634 = vunpack.c.l.b16 %v5847
    %v6635 = vunpack.c.l.b16 %v5848
    %v6636 = vunpack.c.l.b16 %v5849
    %v6637 = vunpack.c.l.b16 %v5850
    %v6638 = vunpack.c.l.b16 %v5851
    %v6639 = vunpack.c.l.b16 %v5852
    %v6640 = vunpack.c.l.b16 %v5853
    %v6641 = vunpack.c.l.b16 %v5854
    %v6642 = vunpack.c.l.b16 %v5855
    %v6643 = vunpack.c.l.b16 %v5856
    %v6644 = vunpack.c.l.b16 %v5857
    %v6645 = vunpack.c.l.b16 %v5858
    %v6646 = vunpack.c.l.b16 %v5859
    %v6647 = vunpack.c.l.b16 %v5860
    %v6648 = vunpack.c.l.b16 %v5861
    %v6649 = vunpack.c.l.b16 %v5862
    %v6650 = vunpack.c.l.b16 %v5863
    %v6651 = vunpack.c.l.b16 %v5864
    %v6652 = vunpack.c.l.b16 %v5865
    %v6653 = vunpack.c.l.b16 %v5866
    %v6654 = vunpack.c.l.b16 %v5867
    %v6655 = vunpack.c.l.b16 %v5868
    %v6656 = vunpack.c.l.b16 %v5869
    %v6657 = vunpack.c.l.b16 %v5870
    %v6658 = vunpack.c.l.b16 %v5871
    %v6659 = vunpack.c.l.b16 %v5872
    %v6660 = vunpack.c.l.b16 %v5873
    %v6661 = vunpack.c.l.b16 %v5874
    %v6662 = vunpack.c.l.b16 %v5875
    %v6663 = vunpack.c.l.b16 %v5876
    %v6664 = vunpack.c.l.b16 %v5877
    %v6665 = vunpack.c.l.b16 %v5878
    %v6666 = vunpack.c.l.b16 %v5879
    %v6667 = vunpack.c.l.b16 %v5880
    %v6668 = vunpack.c.l.b16 %v5881
    %v6669 = vunpack.c.l.b16 %v5882
    %v6670 = vunpack.c.l.b16 %v5883
    %v6671 = vunpack.c.l.b16 %v5884
    %v6672 = vunpack.c.l.b16 %v5885
    %v6673 = vunpack.c.l.b16 %v5886
    %v6674 = vunpack.c.l.b16 %v5887
    %v6675 = vunpack.c.l.b16 %v5888
    %v6676 = vunpack.c.l.b16 %v5889
    %v6677 = vunpack.c.l.b16 %v5890
    %v6678 = vunpack.c.l.b16 %v5891
    %v6679 = vunpack.c.l.b16 %v5892
    %v6680 = vunpack.c.l.b16 %v5893
    %v6681 = vunpack.c.l.b16 %v5894
    %v6682 = vunpack.c.l.b16 %v5895
    %v6683 = vunpack.c.l.b16 %v5896
    %v6684 = vunpack.c.l.b16 %v5897
    %v6685 = vunpack.c.l.b16 %v5898
    %v6686 = vunpack.c.l.b16 %v5899
    %v6687 = vunpack.c.l.b16 %v5900
    %v6688 = vunpack.c.l.b16 %v5901
    %v6689 = vunpack.c.l.b16 %v5902
    %v6690 = vunpack.c.l.b16 %v5903
    %v6691 = vunpack.c.l.b16 %v5904
    %v6692 = vunpack.c.l.b16 %v5905
    %v6693 = vunpack.c.l.b16 %v5906
    %v6694 = vunpack.c.l.b16 %v5907
    %v6695 = vunpack.c.l.b16 %v5908
    %v6696 = vunpack.c.l.b16 %v5909
    %v6697 = vunpack.c.l.b16 %v5910
    %v6698 = vunpack.c.l.b16 %v5911
    %v6699 = vunpack.c.l.b16 %v5912
    %v6700 = vunpack.c.l.b16 %v5913
    %v6701 = vunpack.c.l.b16 %v5914
    %v6702 = vunpack.c.l.b16 %v5915
    %v6703 = vunpack.c.l.b16 %v5916
    %v6704 = vunpack.c.l.b16 %v5917
    %v6705 = vunpack.c.l.b16 %v5918
    %v6706 = vunpack.c.l.b16 %v5919
    %v6707 = vunpack.c.l.b16 %v5920
    %v6708 = vunpack.c.l.b16 %v5921
    %v6709 = vunpack.c.l.b16 %v5922
    %v6710 = vunpack.c.l.b16 %v5923
    %v6711 = vunpack.c.l.b16 %v5924
    %v6712 = vunpack.c.l.b16 %v5925
    %v6713 = vunpack.c.l.b16 %v5926
    %v6714 = vunpack.c.l.b16 %v5927
    %v6715 = vunpack.c.l.b16 %v5928
    %v6716 = vunpack.c.l.b16 %v5929
    %v6717 = vunpack.c.l.b16 %v5930
    %v6718 = vunpack.c.l.b16 %v5931
    %v6719 = vunpack.c.l.b16 %v5932
    %v6720 = vunpack.c.l.b16 %v5933
    %v6721 = vunpack.c.l.b16 %v5934
    %v6722 = vunpack.c.l.b16 %v5935
    %v6723 = vunpack.c.l.b16 %v5936
    %v6724 = vunpack.c.l.b16 %v5937
    %v6725 = vunpack.c.l.b16 %v5938
    %v6726 = vunpack.c.l.b16 %v5939
    %v6727 = vunpack.c.l.b16 %v5940
    %v6728 = vunpack.c.l.b16 %v5941
    %v6729 = vunpack.c.l.b16 %v5942
    %v6730 = vunpack.c.l.b16 %v5943
    %v6731 = vunpack.c.l.b16 %v5944
    %v6732 = vunpack.c.l.b16 %v5945
    %v6733 = vunpack.c.l.b16 %v5946
    %v6734 = vunpack.c.l.b16 %v5947
    %v6735 = vunpack.c.l.b16 %v5948
    %v6736 = vunpack.c.l.b16 %v5949
    %v6737 = vunpack.c.l.b16 %v5950
    %v6738 = vunpack.c.l.b16 %v5951
    %v6739 = vunpack.c.l.b16 %v5952
    %v6740 = vunpack.c.l.b16 %v5953
    %v6741 = vunpack.c.l.b16 %v5954
    %v6742 = vunpack.c.l.b16 %v5955
    %v6743 = vunpack.c.l.b16 %v5956
    %v6744 = vunpack.c.l.b16 %v5957
    %v6745 = vunpack.c.l.b16 %v5958
    %v6746 = vunpack.c.l.b16 %v5959
    %v6747 = vunpack.c.l.b16 %v5960
    %v6748 = vunpack.c.l.b16 %v5961
    %v6749 = vunpack.c.l.b16 %v5962
    %v6750 = vunpack.c.l.b16 %v5963
    %v6751 = vunpack.c.l.b16 %v5964
    %v6752 = vunpack.c.l.b16 %v5965
    %v6753 = vunpack.c.l.b16 %v5966
    %v6754 = vunpack.c.l.b16 %v5967
    %v6755 = vunpack.c.l.b16 %v5968
    %v6756 = vunpack.c.l.b16 %v5969
    %v6757 = vunpack.c.l.b16 %v5970
    %v6758 = vunpack.c.l.b16 %v5971
    %v6759 = vunpack.c.l.b16 %v5972
    %v6760 = vunpack.c.l.b16 %v5973
    %v6761 = vunpack.c.l.b16 %v5974
    %v6762 = vunpack.c.l.b16 %v5975
    %v6763 = vunpack.c.l.b16 %v5976
    %v6764 = vunpack.c.l.b16 %v5977
    %v6765 = vunpack.c.l.b16 %v5978
    %v6766 = vunpack.c.l.b16 %v5979
    %v6767 = vunpack.c.l.b16 %v5980
    %v6768 = vunpack.c.l.b16 %v5981
    %v6769 = vunpack.c.l.b16 %v5982
    %v6770 = vunpack.c.l.b16 %v5983
    %v6771 = vunpack.c.l.b16 %v5984
    %v6772 = vunpack.c.l.b16 %v5985
    %v6773 = vunpack.c.l.b16 %v5986
    %v6774 = vunpack.c.l.b16 %v5987
    %v6775 = vunpack.c.l.b16 %v5988
    %v6776 = vunpack.c.l.b16 %v5989
    %v6777 = vunpack.c.l.b16 %v5990
    %v6778 = vunpack.c.l.b16 %v5991
    %v6779 = vunpack.c.l.b16 %v5992
    %v6780 = vunpack.c.l.b16 %v5993
    %v6781 = vunpack.c.l.b16 %v5994
    %v6782 = vunpack.c.l.b16 %v5995
    %v6783 = vunpack.c.l.b16 %v5996
    %v6784 = vunpack.c.l.b16 %v5997
    %v6785 = vunpack.c.l.b16 %v5998
    %v6786 = vunpack.c.l.b16 %v5999
    %v6787 = vunpack.c.l.b16 %v6000
    %v6788 = vunpack.c.l.b16 %v6001
    %v6789 = vunpack.c.l.b16 %v6002
    %v6790 = vunpack.c.l.b16 %v6003
    %v6791 = vunpack.c.l.b16 %v6004
    %v6792 = vunpack.c.l.b16 %v6005
    %v6793 = vunpack.c.l.b16 %v6006
    %v6794 = vunpack.c.l.b16 %v6007
    %v6795 = vunpack.c.l.b16 %v6008
    %v6796 = vunpack.c.l.b16 %v6009
    %v6797 = vunpack.c.l.b16 %v6010
    %v6798 = vunpack.c.l.b16 %v6011
    %v6799 = vunpack.c.l.b16 %v6012
    %v6800 = vunpack.c.l.b16 %v6013
    %v6801 = vunpack.c.l.b16 %v6014
    %v6802 = vunpack.c.l.b16 %v6015
    %v6803 = vunpack.c.l.b16 %v6016
    %v6804 = vunpack.c.l.b16 %v6017
    %v6805 = vunpack.c.l.b16 %v6018
    %v6806 = vunpack.c.l.b16 %v6019
    %v6807 = vunpack.c.l.b16 %v6020
    %v6808 = vunpack.c.l.b16 %v6021
    %v6809 = vunpack.c.l.b16 %v6022
    %v6810 = vunpack.c.l.b16 %v6023
    %v6811 = vunpack.c.l.b16 %v6024
    %v6812 = vunpack.c.l.b16 %v6025
    %v6813 = vunpack.c.l.b16 %v6026
    %v6814 = vunpack.c.l.b16 %v6027
    %v6815 = vunpack.c.l.b16 %v6028
    %v6816 = vpack.c.b16 %v6497, %v6496
    %v6817 = vpack.c.b16 %v6499, %v6498
    %v6818 = vpack.c.b16 %v6501, %v6500
    %v6819 = vpack.c.b16 %v6503, %v6502
    %v6820 = vpack.c.b16 %v6505, %v6504
    %v6821 = vpack.c.b16 %v6507, %v6506
    %v6822 = vpack.c.b16 %v6509, %v6508
    %v6823 = vpack.c.b16 %v6511, %v6510
    %v6824 = vpack.c.b16 %v6513, %v6512
    %v6825 = vpack.c.b16 %v6515, %v6514
    %v6826 = vpack.c.b16 %v6517, %v6516
    %v6827 = vpack.c.b16 %v6519, %v6518
    %v6828 = vpack.c.b16 %v6521, %v6520
    %v6829 = vpack.c.b16 %v6523, %v6522
    %v6830 = vpack.c.b16 %v6525, %v6524
    %v6831 = vpack.c.b16 %v6527, %v6526
    %v6832 = vpack.c.b16 %v6529, %v6528
    %v6833 = vpack.c.b16 %v6531, %v6530
    %v6834 = vpack.c.b16 %v6533, %v6532
    %v6835 = vpack.c.b16 %v6535, %v6534
    %v6836 = vpack.c.b16 %v6537, %v6536
    %v6837 = vpack.c.b16 %v6539, %v6538
    %v6838 = vpack.c.b16 %v6541, %v6540
    %v6839 = vpack.c.b16 %v6543, %v6542
    %v6840 = vpack.c.b16 %v6545, %v6544
    %v6841 = vpack.c.b16 %v6547, %v6546
    %v6842 = vpack.c.b16 %v6549, %v6548
    %v6843 = vpack.c.b16 %v6551, %v6550
    %v6844 = vpack.c.b16 %v6553, %v6552
    %v6845 = vpack.c.b16 %v6555, %v6554
    %v6846 = vpack.c.b16 %v6557, %v6556
    %v6847 = vpack.c.b16 %v6559, %v6558
    %v6848 = vpack.c.b16 %v6561, %v6560
    %v6849 = vpack.c.b16 %v6563, %v6562
    %v6850 = vpack.c.b16 %v6565, %v6564
    %v6851 = vpack.c.b16 %v6567, %v6566
    %v6852 = vpack.c.b16 %v6569, %v6568
    %v6853 = vpack.c.b16 %v6571, %v6570
    %v6854 = vpack.c.b16 %v6573, %v6572
    %v6855 = vpack.c.b16 %v6575, %v6574
    %v6856 = vpack.c.b16 %v6577, %v6576
    %v6857 = vpack.c.b16 %v6579, %v6578
    %v6858 = vpack.c.b16 %v6581, %v6580
    %v6859 = vpack.c.b16 %v6583, %v6582
    %v6860 = vpack.c.b16 %v6585, %v6584
    %v6861 = vpack.c.b16 %v6587, %v6586
    %v6862 = vpack.c.b16 %v6589, %v6588
    %v6863 = vpack.c.b16 %v6591, %v6590
    %v6864 = vpack.c.b16 %v6593, %v6592
    %v6865 = vpack.c.b16 %v6595, %v6594
    %v6866 = vpack.c.b16 %v6597, %v6596
    %v6867 = vpack.c.b16 %v6599, %v6598
    %v6868 = vpack.c.b16 %v6601, %v6600
    %v6869 = vpack.c.b16 %v6603, %v6602
    %v6870 = vpack.c.b16 %v6605, %v6604
    %v6871 = vpack.c.b16 %v6607, %v6606
    %v6872 = vpack.c.b16 %v6609, %v6608
    %v6873 = vpack.c.b16 %v6611, %v6610
    %v6874 = vpack.c.b16 %v6613, %v6612
    %v6875 = vpack.c.b16 %v6615, %v6614
    %v6876 = vpack.c.b16 %v6617, %v6616
    %v6877 = vpack.c.b16 %v6619, %v6618
    %v6878 = vpack.c.b16 %v6621, %v6620
    %v6879 = vpack.c.b16 %v6623, %v6622
    %v6880 = vpack.c.b16 %v6625, %v6624
    %v6881 = vpack.c.b16 %v6627, %v6626
    %v6882 = vpack.c.b16 %v6629, %v6628
    %v6883 = vpack.c.b16 %v6631, %v6630
    %v6884 = vpack.c.b16 %v6633, %v6632
    %v6885 = vpack.c.b16 %v6635, %v6634
    %v6886 = vpack.c.b16 %v6637, %v6636
    %v6887 = vpack.c.b16 %v6639, %v6638
    %v6888 = vpack.c.b16 %v6641, %v6640
    %v6889 = vpack.c.b16 %v6643, %v6642
    %v6890 = vpack.c.b16 %v6645, %v6644
    %v6891 = vpack.c.b16 %v6647, %v6646
    %v6892 = vpack.c.b16 %v6649, %v6648
    %v6893 = vpack.c.b16 %v6651, %v6650
    %v6894 = vpack.c.b16 %v6653, %v6652
    %v6895 = vpack.c.b16 %v6655, %v6654
    %v6896 = vpack.c.b16 %v6657, %v6656
    %v6897 = vpack.c.b16 %v6659, %v6658
    %v6898 = vpack.c.b16 %v6661, %v6660
    %v6899 = vpack.c.b16 %v6663, %v6662
    %v6900 = vpack.c.b16 %v6665, %v6664
    %v6901 = vpack.c.b16 %v6667, %v6666
    %v6902 = vpack.c.b16 %v6669, %v6668
    %v6903 = vpack.c.b16 %v6671, %v6670
    %v6904 = vpack.c.b16 %v6673, %v6672
    %v6905 = vpack.c.b16 %v6675, %v6674
    %v6906 = vpack.c.b16 %v6677, %v6676
    %v6907 = vpack.c.b16 %v6679, %v6678
    %v6908 = vpack.c.b16 %v6681, %v6680
    %v6909 = vpack.c.b16 %v6683, %v6682
    %v6910 = vpack.c.b16 %v6685, %v6684
    %v6911 = vpack.c.b16 %v6687, %v6686
    %v6912 = vpack.c.b16 %v6689, %v6688
    %v6913 = vpack.c.b16 %v6691, %v6690
    %v6914 = vpack.c.b16 %v6693, %v6692
    %v6915 = vpack.c.b16 %v6695, %v6694
    %v6916 = vpack.c.b16 %v6697, %v6696
    %v6917 = vpack.c.b16 %v6699, %v6698
    %v6918 = vpack.c.b16 %v6701, %v6700
    %v6919 = vpack.c.b16 %v6703, %v6702
    %v6920 = vpack.c.b16 %v6705, %v6704
    %v6921 = vpack.c.b16 %v6707, %v6706
    %v6922 = vpack.c.b16 %v6709, %v6708
    %v6923 = vpack.c.b16 %v6711, %v6710
    %v6924 = vpack.c.b16 %v6713, %v6712
    %v6925 = vpack.c.b16 %v6715, %v6714
    %v6926 = vpack.c.b16 %v6717, %v6716
    %v6927 = vpack.c.b16 %v6719, %v6718
    %v6928 = vpack.c.b16 %v6721, %v6720
    %v6929 = vpack.c.b16 %v6723, %v6722
    %v6930 = vpack.c.b16 %v6725, %v6724
    %v6931 = vpack.c.b16 %v6727, %v6726
    %v6932 = vpack.c.b16 %v6729, %v6728
    %v6933 = vpack.c.b16 %v6731, %v6730
    %v6934 = vpack.c.b16 %v6733, %v6732
    %v6935 = vpack.c.b16 %v6735, %v6734
    %v6936 = vpack.c.b16 %v6737, %v6736
    %v6937 = vpack.c.b16 %v6739, %v6738
    %v6938 = vpack.c.b16 %v6741, %v6740
    %v6939 = vpack.c.b16 %v6743, %v6742
    %v6940 = vpack.c.b16 %v6745, %v6744
    %v6941 = vpack.c.b16 %v6747, %v6746
    %v6942 = vpack.c.b16 %v6749, %v6748
    %v6943 = vpack.c.b16 %v6751, %v6750
    %v6944 = vpack.c.b16 %v6753, %v6752
    %v6945 = vpack.c.b16 %v6755, %v6754
    %v6946 = vpack.c.b16 %v6757, %v6756
    %v6947 = vpack.c.b16 %v6759, %v6758
    %v6948 = vpack.c.b16 %v6761, %v6760
    %v6949 = vpack.c.b16 %v6763, %v6762
    %v6950 = vpack.c.b16 %v6765, %v6764
    %v6951 = vpack.c.b16 %v6767, %v6766
    %v6952 = vpack.c.b16 %v6769, %v6768
    %v6953 = vpack.c.b16 %v6771, %v6770
    %v6954 = vpack.c.b16 %v6773, %v6772
    %v6955 = vpack.c.b16 %v6775, %v6774
    %v6956 = vpack.c.b16 %v6777, %v6776
    %v6957 = vpack.c.b16 %v6779, %v6778
    %v6958 = vpack.c.b16 %v6781, %v6780
    %v6959 = vpack.c.b16 %v6783, %v6782
    %v6960 = vpack.c.b16 %v6785, %v6784
    %v6961 = vpack.c.b16 %v6787, %v6786
    %v6962 = vpack.c.b16 %v6789, %v6788
    %v6963 = vpack.c.b16 %v6791, %v6790
    %v6964 = vpack.c.b16 %v6793, %v6792
    %v6965 = vpack.c.b16 %v6795, %v6794
    %v6966 = vpack.c.b16 %v6797, %v6796
    %v6967 = vpack.c.b16 %v6799, %v6798
    %v6968 = vpack.c.b16 %v6801, %v6800
    %v6969 = vpack.c.b16 %v6803, %v6802
    %v6970 = vpack.c.b16 %v6805, %v6804
    %v6971 = vpack.c.b16 %v6807, %v6806
    %v6972 = vpack.c.b16 %v6809, %v6808
    %v6973 = vpack.c.b16 %v6811, %v6810
    %v6974 = vpack.c.b16 %v6813, %v6812
    %v6975 = vpack.c.b16 %v6815, %v6814
    %7136 = vmatprep.subr.bf16.mxu0 0
    %7137 = vmatpush1.bf16.msra.mxu0 %v6823
    %7138 = vmatprep.subr.bf16.mxu0 0
    %7139 = vmatpush1.bf16.msra.mxu0 %v6822
    %7140 = vmatprep.subr.bf16.mxu0 0
    %7141 = vmatpush1.bf16.msra.mxu0 %v6821
    %7142 = vmatprep.subr.bf16.mxu0 0
    %7143 = vmatpush1.bf16.msra.mxu0 %v6820
    %7144 = vmatprep.subr.bf16.mxu0 0
    %7145 = vmatpush1.bf16.msra.mxu0 %v6819
    %7146 = vmatprep.subr.bf16.mxu0 0
    %7147 = vmatpush1.bf16.msra.mxu0 %v6818
    %7148 = vmatprep.subr.bf16.mxu0 0
    %7149 = vmatpush1.bf16.msra.mxu0 %v6817
    %7150 = vmatprep.subr.bf16.mxu0 0
    %7151 = vmatpush1.bf16.msra.mxu0 %v6816
    %7152 = vmatprep.subr.bf16.mxu0 0
    %7153 = vmatpush2.bf16.msra.mxu0 %v6831
    %7154 = vmatprep.subr.bf16.mxu0 0
    %7155 = vmatpush2.bf16.msra.mxu0 %v6830
    %7156 = vmatprep.subr.bf16.mxu0 0
    %7157 = vmatpush2.bf16.msra.mxu0 %v6829
    %7158 = vmatprep.subr.bf16.mxu0 0
    %7159 = vmatpush2.bf16.msra.mxu0 %v6828
    %7160 = vmatprep.subr.bf16.mxu0 0
    %7161 = vmatpush2.bf16.msra.mxu0 %v6827
    %7162 = vmatprep.subr.bf16.mxu0 0
    %7163 = vmatpush2.bf16.msra.mxu0 %v6826
    %7164 = vmatprep.subr.bf16.mxu0 0
    %7165 = vmatpush2.bf16.msra.mxu0 %v6825
    %7166 = vmatprep.subr.bf16.mxu0 0
    %7167 = vmatpush2.bf16.msra.mxu0 %v6824
    %7168 = vmatprep.mubr.bf16.mxu0 %v6137
    %7169 = vmatmul.mubr.bf16.gmra.mxu0 %v6136
    %v7170 = vpop.f32.mrf.mxu0
    %v7171 = vadd.f32 %v6034, %v7170
    %v7172 = vpop.f32.mrf.mxu0
    %v7173 = vpop.f32.mrf.mxu0
    %v7174 = vpop.f32.mrf.mxu0
    %7175 = vdwg.mxu0
    %7176 = vmatprep.subr.bf16.mxu0 0
    %7177 = vmatpush1.bf16.msra.mxu0 %v6839
    %7178 = vmatprep.subr.bf16.mxu0 0
    %7179 = vmatpush1.bf16.msra.mxu0 %v6838
    %7180 = vmatprep.subr.bf16.mxu0 0
    %7181 = vmatpush1.bf16.msra.mxu0 %v6837
    %7182 = vmatprep.subr.bf16.mxu0 0
    %7183 = vmatpush1.bf16.msra.mxu0 %v6836
    %7184 = vmatprep.subr.bf16.mxu0 0
    %7185 = vmatpush1.bf16.msra.mxu0 %v6835
    %7186 = vmatprep.subr.bf16.mxu0 0
    %7187 = vmatpush1.bf16.msra.mxu0 %v6834
    %7188 = vmatprep.subr.bf16.mxu0 0
    %7189 = vmatpush1.bf16.msra.mxu0 %v6833
    %7190 = vmatprep.subr.bf16.mxu0 0
    %7191 = vmatpush1.bf16.msra.mxu0 %v6832
    %7192 = vmatprep.subr.bf16.mxu0 0
    %7193 = vmatpush2.bf16.msra.mxu0 %v6847
    %7194 = vmatprep.subr.bf16.mxu0 0
    %7195 = vmatpush2.bf16.msra.mxu0 %v6846
    %7196 = vmatprep.subr.bf16.mxu0 0
    %7197 = vmatpush2.bf16.msra.mxu0 %v6845
    %7198 = vmatprep.subr.bf16.mxu0 0
    %7199 = vmatpush2.bf16.msra.mxu0 %v6844
    %7200 = vmatprep.subr.bf16.mxu0 0
    %7201 = vmatpush2.bf16.msra.mxu0 %v6843
    %7202 = vmatprep.subr.bf16.mxu0 0
    %7203 = vmatpush2.bf16.msra.mxu0 %v6842
    %7204 = vmatprep.subr.bf16.mxu0 0
    %7205 = vmatpush2.bf16.msra.mxu0 %v6841
    %7206 = vmatprep.subr.bf16.mxu0 0
    %7207 = vmatpush2.bf16.msra.mxu0 %v6840
    %7208 = vmatprep.mubr.bf16.mxu0 %v6139
    %7209 = vmatmul.mubr.bf16.gmra.mxu0 %v6138
    %v7210 = vpop.f32.mrf.mxu0
    %v7211 = vadd.f32 %v7171, %v7210
    %v7212 = vpop.f32.mrf.mxu0
    %v7213 = vpop.f32.mrf.mxu0
    %v7214 = vpop.f32.mrf.mxu0
    %7215 = vdwg.mxu0
    %7216 = vmatprep.subr.bf16.mxu0 0
    %7217 = vmatpush1.bf16.msra.mxu0 %v6855
    %7218 = vmatprep.subr.bf16.mxu0 0
    %7219 = vmatpush1.bf16.msra.mxu0 %v6854
    %7220 = vmatprep.subr.bf16.mxu0 0
    %7221 = vmatpush1.bf16.msra.mxu0 %v6853
    %7222 = vmatprep.subr.bf16.mxu0 0
    %7223 = vmatpush1.bf16.msra.mxu0 %v6852
    %7224 = vmatprep.subr.bf16.mxu0 0
    %7225 = vmatpush1.bf16.msra.mxu0 %v6851
    %7226 = vmatprep.subr.bf16.mxu0 0
    %7227 = vmatpush1.bf16.msra.mxu0 %v6850
    %7228 = vmatprep.subr.bf16.mxu0 0
    %7229 = vmatpush1.bf16.msra.mxu0 %v6849
    %7230 = vmatprep.subr.bf16.mxu0 0
    %7231 = vmatpush1.bf16.msra.mxu0 %v6848
    %7232 = vmatprep.subr.bf16.mxu0 0
    %7233 = vmatpush2.bf16.msra.mxu0 %v6863
    %7234 = vmatprep.subr.bf16.mxu0 0
    %7235 = vmatpush2.bf16.msra.mxu0 %v6862
    %7236 = vmatprep.subr.bf16.mxu0 0
    %7237 = vmatpush2.bf16.msra.mxu0 %v6861
    %7238 = vmatprep.subr.bf16.mxu0 0
    %7239 = vmatpush2.bf16.msra.mxu0 %v6860
    %7240 = vmatprep.subr.bf16.mxu0 0
    %7241 = vmatpush2.bf16.msra.mxu0 %v6859
    %7242 = vmatprep.subr.bf16.mxu0 0
    %7243 = vmatpush2.bf16.msra.mxu0 %v6858
    %7244 = vmatprep.subr.bf16.mxu0 0
    %7245 = vmatpush2.bf16.msra.mxu0 %v6857
    %7246 = vmatprep.subr.bf16.mxu0 0
    %7247 = vmatpush2.bf16.msra.mxu0 %v6856
    %7248 = vmatprep.mubr.bf16.mxu0 %v6141
    %7249 = vmatmul.mubr.bf16.gmra.mxu0 %v6140
    %v7250 = vpop.f32.mrf.mxu0
    %v7251 = vadd.f32 %v7211, %v7250
    %v7252 = vpop.f32.mrf.mxu0
    %v7253 = vpop.f32.mrf.mxu0
    %v7254 = vpop.f32.mrf.mxu0
    %7255 = vdwg.mxu0
    %7256 = vmatprep.subr.bf16.mxu0 0
    %7257 = vmatpush1.bf16.msra.mxu0 %v6871
    %7258 = vmatprep.subr.bf16.mxu0 0
    %7259 = vmatpush1.bf16.msra.mxu0 %v6870
    %7260 = vmatprep.subr.bf16.mxu0 0
    %7261 = vmatpush1.bf16.msra.mxu0 %v6869
    %7262 = vmatprep.subr.bf16.mxu0 0
    %7263 = vmatpush1.bf16.msra.mxu0 %v6868
    %7264 = vmatprep.subr.bf16.mxu0 0
    %7265 = vmatpush1.bf16.msra.mxu0 %v6867
    %7266 = vmatprep.subr.bf16.mxu0 0
    %7267 = vmatpush1.bf16.msra.mxu0 %v6866
    %7268 = vmatprep.subr.bf16.mxu0 0
    %7269 = vmatpush1.bf16.msra.mxu0 %v6865
    %7270 = vmatprep.subr.bf16.mxu0 0
    %7271 = vmatpush1.bf16.msra.mxu0 %v6864
    %7272 = vmatprep.subr.bf16.mxu0 0
    %7273 = vmatpush2.bf16.msra.mxu0 %v6879
    %7274 = vmatprep.subr.bf16.mxu0 0
    %7275 = vmatpush2.bf16.msra.mxu0 %v6878
    %7276 = vmatprep.subr.bf16.mxu0 0
    %7277 = vmatpush2.bf16.msra.mxu0 %v6877
    %7278 = vmatprep.subr.bf16.mxu0 0
    %7279 = vmatpush2.bf16.msra.mxu0 %v6876
    %7280 = vmatprep.subr.bf16.mxu0 0
    %7281 = vmatpush2.bf16.msra.mxu0 %v6875
    %7282 = vmatprep.subr.bf16.mxu0 0
    %7283 = vmatpush2.bf16.msra.mxu0 %v6874
    %7284 = vmatprep.subr.bf16.mxu0 0
    %7285 = vmatpush2.bf16.msra.mxu0 %v6873
    %7286 = vmatprep.subr.bf16.mxu0 0
    %7287 = vmatpush2.bf16.msra.mxu0 %v6872
    %7288 = vmatprep.mubr.bf16.mxu0 %v6143
    %7289 = vmatmul.mubr.bf16.gmra.mxu0 %v6142
    %v7290 = vpop.f32.mrf.mxu0
    %v7291 = vadd.f32 %v7251, %v7290
    %v7292 = vpop.f32.mrf.mxu0
    %v7293 = vpop.f32.mrf.mxu0
    %v7294 = vpop.f32.mrf.mxu0
    %7295 = vdwg.mxu0
    %7296 = vmatprep.subr.bf16.mxu0 0
    %7297 = vmatpush1.bf16.msra.mxu0 %v6887
    %7298 = vmatprep.subr.bf16.mxu0 0
    %7299 = vmatpush1.bf16.msra.mxu0 %v6886
    %7300 = vmatprep.subr.bf16.mxu0 0
    %7301 = vmatpush1.bf16.msra.mxu0 %v6885
    %7302 = vmatprep.subr.bf16.mxu0 0
    %7303 = vmatpush1.bf16.msra.mxu0 %v6884
    %7304 = vmatprep.subr.bf16.mxu0 0
    %7305 = vmatpush1.bf16.msra.mxu0 %v6883
    %7306 = vmatprep.subr.bf16.mxu0 0
    %7307 = vmatpush1.bf16.msra.mxu0 %v6882
    %7308 = vmatprep.subr.bf16.mxu0 0
    %7309 = vmatpush1.bf16.msra.mxu0 %v6881
    %7310 = vmatprep.subr.bf16.mxu0 0
    %7311 = vmatpush1.bf16.msra.mxu0 %v6880
    %7312 = vmatprep.subr.bf16.mxu0 0
    %7313 = vmatpush2.bf16.msra.mxu0 %v6895
    %7314 = vmatprep.subr.bf16.mxu0 0
    %7315 = vmatpush2.bf16.msra.mxu0 %v6894
    %7316 = vmatprep.subr.bf16.mxu0 0
    %7317 = vmatpush2.bf16.msra.mxu0 %v6893
    %7318 = vmatprep.subr.bf16.mxu0 0
    %7319 = vmatpush2.bf16.msra.mxu0 %v6892
    %7320 = vmatprep.subr.bf16.mxu0 0
    %7321 = vmatpush2.bf16.msra.mxu0 %v6891
    %7322 = vmatprep.subr.bf16.mxu0 0
    %7323 = vmatpush2.bf16.msra.mxu0 %v6890
    %7324 = vmatprep.subr.bf16.mxu0 0
    %7325 = vmatpush2.bf16.msra.mxu0 %v6889
    %7326 = vmatprep.subr.bf16.mxu0 0
    %7327 = vmatpush2.bf16.msra.mxu0 %v6888
    %7328 = vmatprep.mubr.bf16.mxu0 %v6145
    %7329 = vmatmul.mubr.bf16.gmra.mxu0 %v6144
    %v7330 = vpop.f32.mrf.mxu0
    %v7331 = vadd.f32 %v7291, %v7330
    %v7332 = vpop.f32.mrf.mxu0
    %v7333 = vpop.f32.mrf.mxu0
    %v7334 = vpop.f32.mrf.mxu0
    %7335 = vdwg.mxu0
    %7336 = vmatprep.subr.bf16.mxu0 0
    %7337 = vmatpush1.bf16.msra.mxu0 %v6903
    %7338 = vmatprep.subr.bf16.mxu0 0
    %7339 = vmatpush1.bf16.msra.mxu0 %v6902
    %7340 = vmatprep.subr.bf16.mxu0 0
    %7341 = vmatpush1.bf16.msra.mxu0 %v6901
    %7342 = vmatprep.subr.bf16.mxu0 0
    %7343 = vmatpush1.bf16.msra.mxu0 %v6900
    %7344 = vmatprep.subr.bf16.mxu0 0
    %7345 = vmatpush1.bf16.msra.mxu0 %v6899
    %7346 = vmatprep.subr.bf16.mxu0 0
    %7347 = vmatpush1.bf16.msra.mxu0 %v6898
    %7348 = vmatprep.subr.bf16.mxu0 0
    %7349 = vmatpush1.bf16.msra.mxu0 %v6897
    %7350 = vmatprep.subr.bf16.mxu0 0
    %7351 = vmatpush1.bf16.msra.mxu0 %v6896
    %7352 = vmatprep.subr.bf16.mxu0 0
    %7353 = vmatpush2.bf16.msra.mxu0 %v6911
    %7354 = vmatprep.subr.bf16.mxu0 0
    %7355 = vmatpush2.bf16.msra.mxu0 %v6910
    %7356 = vmatprep.subr.bf16.mxu0 0
    %7357 = vmatpush2.bf16.msra.mxu0 %v6909
    %7358 = vmatprep.subr.bf16.mxu0 0
    %7359 = vmatpush2.bf16.msra.mxu0 %v6908
    %7360 = vmatprep.subr.bf16.mxu0 0
    %7361 = vmatpush2.bf16.msra.mxu0 %v6907
    %7362 = vmatprep.subr.bf16.mxu0 0
    %7363 = vmatpush2.bf16.msra.mxu0 %v6906
    %7364 = vmatprep.subr.bf16.mxu0 0
    %7365 = vmatpush2.bf16.msra.mxu0 %v6905
    %7366 = vmatprep.subr.bf16.mxu0 0
    %7367 = vmatpush2.bf16.msra.mxu0 %v6904
    %7368 = vmatprep.mubr.bf16.mxu0 %v6147
    %7369 = vmatmul.mubr.bf16.gmra.mxu0 %v6146
    %v7370 = vpop.f32.mrf.mxu0
    %v7371 = vadd.f32 %v7331, %v7370
    %v7372 = vpop.f32.mrf.mxu0
    %v7373 = vpop.f32.mrf.mxu0
    %v7374 = vpop.f32.mrf.mxu0
    %7375 = vdwg.mxu0
    %7376 = vmatprep.subr.bf16.mxu0 0
    %7377 = vmatpush1.bf16.msra.mxu0 %v6919
    %7378 = vmatprep.subr.bf16.mxu0 0
    %7379 = vmatpush1.bf16.msra.mxu0 %v6918
    %7380 = vmatprep.subr.bf16.mxu0 0
    %7381 = vmatpush1.bf16.msra.mxu0 %v6917
    %7382 = vmatprep.subr.bf16.mxu0 0
    %7383 = vmatpush1.bf16.msra.mxu0 %v6916
    %7384 = vmatprep.subr.bf16.mxu0 0
    %7385 = vmatpush1.bf16.msra.mxu0 %v6915
    %7386 = vmatprep.subr.bf16.mxu0 0
    %7387 = vmatpush1.bf16.msra.mxu0 %v6914
    %7388 = vmatprep.subr.bf16.mxu0 0
    %7389 = vmatpush1.bf16.msra.mxu0 %v6913
    %7390 = vmatprep.subr.bf16.mxu0 0
    %7391 = vmatpush1.bf16.msra.mxu0 %v6912
    %7392 = vmatprep.subr.bf16.mxu0 0
    %7393 = vmatpush2.bf16.msra.mxu0 %v6927
    %7394 = vmatprep.subr.bf16.mxu0 0
    %7395 = vmatpush2.bf16.msra.mxu0 %v6926
    %7396 = vmatprep.subr.bf16.mxu0 0
    %7397 = vmatpush2.bf16.msra.mxu0 %v6925
    %7398 = vmatprep.subr.bf16.mxu0 0
    %7399 = vmatpush2.bf16.msra.mxu0 %v6924
    %7400 = vmatprep.subr.bf16.mxu0 0
    %7401 = vmatpush2.bf16.msra.mxu0 %v6923
    %7402 = vmatprep.subr.bf16.mxu0 0
    %7403 = vmatpush2.bf16.msra.mxu0 %v6922
    %7404 = vmatprep.subr.bf16.mxu0 0
    %7405 = vmatpush2.bf16.msra.mxu0 %v6921
    %7406 = vmatprep.subr.bf16.mxu0 0
    %7407 = vmatpush2.bf16.msra.mxu0 %v6920
    %7408 = vmatprep.mubr.bf16.mxu0 %v6149
    %7409 = vmatmul.mubr.bf16.gmra.mxu0 %v6148
    %v7410 = vpop.f32.mrf.mxu0
    %v7411 = vadd.f32 %v7371, %v7410
    %v7412 = vpop.f32.mrf.mxu0
    %v7413 = vpop.f32.mrf.mxu0
    %v7414 = vpop.f32.mrf.mxu0
    %7415 = vdwg.mxu0
    %7416 = vmatprep.subr.bf16.mxu0 0
    %7417 = vmatpush1.bf16.msra.mxu0 %v6935
    %7418 = vmatprep.subr.bf16.mxu0 0
    %7419 = vmatpush1.bf16.msra.mxu0 %v6934
    %7420 = vmatprep.subr.bf16.mxu0 0
    %7421 = vmatpush1.bf16.msra.mxu0 %v6933
    %7422 = vmatprep.subr.bf16.mxu0 0
    %7423 = vmatpush1.bf16.msra.mxu0 %v6932
    %7424 = vmatprep.subr.bf16.mxu0 0
    %7425 = vmatpush1.bf16.msra.mxu0 %v6931
    %7426 = vmatprep.subr.bf16.mxu0 0
    %7427 = vmatpush1.bf16.msra.mxu0 %v6930
    %7428 = vmatprep.subr.bf16.mxu0 0
    %7429 = vmatpush1.bf16.msra.mxu0 %v6929
    %7430 = vmatprep.subr.bf16.mxu0 0
    %7431 = vmatpush1.bf16.msra.mxu0 %v6928
    %7432 = vmatprep.subr.bf16.mxu0 0
    %7433 = vmatpush2.bf16.msra.mxu0 %v6943
    %7434 = vmatprep.subr.bf16.mxu0 0
    %7435 = vmatpush2.bf16.msra.mxu0 %v6942
    %7436 = vmatprep.subr.bf16.mxu0 0
    %7437 = vmatpush2.bf16.msra.mxu0 %v6941
    %7438 = vmatprep.subr.bf16.mxu0 0
    %7439 = vmatpush2.bf16.msra.mxu0 %v6940
    %7440 = vmatprep.subr.bf16.mxu0 0
    %7441 = vmatpush2.bf16.msra.mxu0 %v6939
    %7442 = vmatprep.subr.bf16.mxu0 0
    %7443 = vmatpush2.bf16.msra.mxu0 %v6938
    %7444 = vmatprep.subr.bf16.mxu0 0
    %7445 = vmatpush2.bf16.msra.mxu0 %v6937
    %7446 = vmatprep.subr.bf16.mxu0 0
    %7447 = vmatpush2.bf16.msra.mxu0 %v6936
    %7448 = vmatprep.mubr.bf16.mxu0 %v6151
    %7449 = vmatmul.mubr.bf16.gmra.mxu0 %v6150
    %v7450 = vpop.f32.mrf.mxu0
    %v7451 = vadd.f32 %v7411, %v7450
    %v7452 = vpop.f32.mrf.mxu0
    %v7453 = vpop.f32.mrf.mxu0
    %v7454 = vpop.f32.mrf.mxu0
    %7455 = vdwg.mxu0
    %7456 = vmatprep.subr.bf16.mxu0 0
    %7457 = vmatpush1.bf16.msra.mxu0 %v6951
    %7458 = vmatprep.subr.bf16.mxu0 0
    %7459 = vmatpush1.bf16.msra.mxu0 %v6950
    %7460 = vmatprep.subr.bf16.mxu0 0
    %7461 = vmatpush1.bf16.msra.mxu0 %v6949
    %7462 = vmatprep.subr.bf16.mxu0 0
    %7463 = vmatpush1.bf16.msra.mxu0 %v6948
    %7464 = vmatprep.subr.bf16.mxu0 0
    %7465 = vmatpush1.bf16.msra.mxu0 %v6947
    %7466 = vmatprep.subr.bf16.mxu0 0
    %7467 = vmatpush1.bf16.msra.mxu0 %v6946
    %7468 = vmatprep.subr.bf16.mxu0 0
    %7469 = vmatpush1.bf16.msra.mxu0 %v6945
    %7470 = vmatprep.subr.bf16.mxu0 0
    %7471 = vmatpush1.bf16.msra.mxu0 %v6944
    %7472 = vmatprep.subr.bf16.mxu0 0
    %7473 = vmatpush2.bf16.msra.mxu0 %v6959
    %7474 = vmatprep.subr.bf16.mxu0 0
    %7475 = vmatpush2.bf16.msra.mxu0 %v6958
    %7476 = vmatprep.subr.bf16.mxu0 0
    %7477 = vmatpush2.bf16.msra.mxu0 %v6957
    %7478 = vmatprep.subr.bf16.mxu0 0
    %7479 = vmatpush2.bf16.msra.mxu0 %v6956
    %7480 = vmatprep.subr.bf16.mxu0 0
    %7481 = vmatpush2.bf16.msra.mxu0 %v6955
    %7482 = vmatprep.subr.bf16.mxu0 0
    %7483 = vmatpush2.bf16.msra.mxu0 %v6954
    %7484 = vmatprep.subr.bf16.mxu0 0
    %7485 = vmatpush2.bf16.msra.mxu0 %v6953
    %7486 = vmatprep.subr.bf16.mxu0 0
    %7487 = vmatpush2.bf16.msra.mxu0 %v6952
    %7488 = vmatprep.mubr.bf16.mxu0 %v6153
    %7489 = vmatmul.mubr.bf16.gmra.mxu0 %v6152
    %v7490 = vpop.f32.mrf.mxu0
    %v7491 = vadd.f32 %v7451, %v7490
    %v7492 = vpop.f32.mrf.mxu0
    %v7493 = vpop.f32.mrf.mxu0
    %v7494 = vpop.f32.mrf.mxu0
    %7495 = vdwg.mxu0
    %7496 = vmatprep.subr.bf16.mxu0 0
    %7497 = vmatpush1.bf16.msra.mxu0 %v6967
    %7498 = vmatprep.subr.bf16.mxu0 0
    %7499 = vmatpush1.bf16.msra.mxu0 %v6966
    %7500 = vmatprep.subr.bf16.mxu0 0
    %7501 = vmatpush1.bf16.msra.mxu0 %v6965
    %7502 = vmatprep.subr.bf16.mxu0 0
    %7503 = vmatpush1.bf16.msra.mxu0 %v6964
    %7504 = vmatprep.subr.bf16.mxu0 0
    %7505 = vmatpush1.bf16.msra.mxu0 %v6963
    %7506 = vmatprep.subr.bf16.mxu0 0
    %7507 = vmatpush1.bf16.msra.mxu0 %v6962
    %7508 = vmatprep.subr.bf16.mxu0 0
    %7509 = vmatpush1.bf16.msra.mxu0 %v6961
    %7510 = vmatprep.subr.bf16.mxu0 0
    %7511 = vmatpush1.bf16.msra.mxu0 %v6960
    %7512 = vmatprep.subr.bf16.mxu0 0
    %7513 = vmatpush2.bf16.msra.mxu0 %v6975
    %7514 = vmatprep.subr.bf16.mxu0 0
    %7515 = vmatpush2.bf16.msra.mxu0 %v6974
    %7516 = vmatprep.subr.bf16.mxu0 0
    %7517 = vmatpush2.bf16.msra.mxu0 %v6973
    %7518 = vmatprep.subr.bf16.mxu0 0
    %7519 = vmatpush2.bf16.msra.mxu0 %v6972
    %7520 = vmatprep.subr.bf16.mxu0 0
    %7521 = vmatpush2.bf16.msra.mxu0 %v6971
    %7522 = vmatprep.subr.bf16.mxu0 0
    %7523 = vmatpush2.bf16.msra.mxu0 %v6970
    %7524 = vmatprep.subr.bf16.mxu0 0
    %7525 = vmatpush2.bf16.msra.mxu0 %v6969
    %7526 = vmatprep.subr.bf16.mxu0 0
    %7527 = vmatpush2.bf16.msra.mxu0 %v6968
    %7528 = vmatprep.mubr.bf16.mxu0 %v6155
    %7529 = vmatmul.mubr.bf16.gmra.mxu0 %v6154
    %v7530 = vpop.f32.mrf.mxu0
    %v7531 = vadd.f32 %v7491, %v7530
    %v7532 = vpop.f32.mrf.mxu0
    %v7533 = vpop.f32.mrf.mxu0
    %v7534 = vpop.f32.mrf.mxu0
    %7535 = vdwg.mxu0
    %7536 = vst [vmem:[#allocation2] sm:$0x3] %v7531
    // Predicated region
    $region34: #{my_efficientnet_forward.1} parent=1 // pred_check
      _
    $region35: #{my_efficientnet_forward.1} parent=1 // pred_check_branch
      %7538 = sbr.rel (0) target = $region37
    $region36: #{my_efficientnet_forward.1} parent=1 // pred_region
      %s7540 = ssub.s32 32, 32
      %7541 = vsyncadd [#allocation3], %s7540
      %s7543 = sshll.u32 [#allocation2], 4
      %s7544 = int_to_ptr.vmem [resolvable:$true] %s7543
      %7546 = dma.vmem_to_hbm [thread:$0]  %s7544, 32, %s8, [#allocation3]
    $region37: #{my_efficientnet_forward.1} parent=1 // pred_fallthru
      _
    // Predicated region
    $region38: #{my_efficientnet_forward.1} parent=1 // pred_check
      _
    $region39: #{my_efficientnet_forward.1} parent=1 // pred_check_branch
      %7548 = sbr.rel (0) target = $region41
    $region40: #{my_efficientnet_forward.1} parent=1 // pred_region
      %s7550 = ssub.s32 640, 640
      %7551 = vsyncadd [#allocation5], %s7550
      %s7553 = sshll.u32 [#allocation4], 4
      %s7554 = int_to_ptr.vmem [resolvable:$true] %s7553
      %7556 = dma.vmem_to_hbm [thread:$0]  %s7554, 640, %s9, [#allocation5]
    $region41: #{my_efficientnet_forward.1} parent=1 // pred_fallthru
      _
    // Predicated region
    $region42: #{my_efficientnet_forward.1} parent=1 // pred_check
      _
    $region43: #{my_efficientnet_forward.1} parent=1 // pred_check_branch
      %7558 = sbr.rel (0) target = $region45
    $region44: #{my_efficientnet_forward.1} parent=1 // pred_region
      %7559 = dma.done [#allocation3], 32
    $region45: #{my_efficientnet_forward.1} parent=1 // pred_fallthru
      _
    // Predicated region
    $region46: #{my_efficientnet_forward.1} parent=1 // pred_check
      _
    $region47: #{my_efficientnet_forward.1} parent=1 // pred_check_branch
      %7561 = sbr.rel (0) target = $region49
    $region48: #{my_efficientnet_forward.1} parent=1 // pred_region
      %7562 = dma.done [#allocation5], 640
    $region49: #{my_efficientnet_forward.1} parent=1 // pred_fallthru
      _
    %7563 = vsyncpa [#allocation3], 1
    %7564 = vsyncpa [#allocation5], 1

</llo_original>
